<compile_context>
chip_gen: v7x
topology: tpu7x:2x2x1
jax: 0.10.0
libtpu: 0.0.40
codegen_flags: <defaults>
</compile_context>

<pallas_src>
import jax
import jax.numpy as jnp
from jax.experimental import pallas as pl
from jax.experimental.pallas import tpu as pltpu

# ----------------------------- problem sizes ---------------------------------
B = 2              # batch
A = 8              # num_angles (transformer sequence length)
TOK = B * A        # folded token count
F_IN = 16          # per-angle signal features
O_DIM = 4          # orientation features
F_PAD = 32         # signal+orientation padded to 32 lanes
H = 32             # hidden dimension of the single-position model
NUM_HEADS = 8
HEAD_DIM = H // NUM_HEADS
DFF = 64           # dim_feedforward
NUM_LAYERS = 3
C = 3              # num_coordinates
LN_EPS = 1e-5
SCALE = 1.0 / (HEAD_DIM ** 0.5)

# --------------------- packed-slab row offsets (static) -----------------------
# slab 1: w_mlp (MLP_ROWS, H) -- single-position MLP + final linear + pooling mat
R_SPW1 = 0          # rows 0:32   Linear(F_PAD -> H) weight (rows >= 20 are zero)
R_SPW2 = 32         # rows 32:64  Linear(H -> H) weight
R_LINW = 64         # rows 64:96  final Linear(H -> C) weight (cols >= C zero)
R_SPB1 = 96         # row  96     sp bias 1
R_SPB2 = 97         # row  97     sp bias 2
R_LINB = 98         # row  98     final linear bias (cols >= C zero)
R_POOL = 100        # rows 100:102  (B, TOK) per-batch mean-pool matrix (1/A)
MLP_ROWS = 104

# slab 2: w_layers (NUM_LAYERS, LYR_ROWS, 3H) -- per-layer weights, col-padded to 96
R_QKV = 0           # rows 0:32    W_qkv^T  (H, 3H)
R_OUT = 32          # rows 32:64   W_out^T  (H, H)
R_FF1 = 64          # rows 64:96   W_ff1^T  (H, DFF)
R_FF2 = 96          # rows 96:160  W_ff2^T  (DFF, H)
LYR_ROWS = 160

# slab 3: b_layers (NUM_LAYERS, 8, 3H) -- per-layer biases / LayerNorm params
BR_QKV, BR_OUT, BR_LN1W, BR_LN1B, BR_LN2W, BR_LN2B, BR_FF1, BR_FF2 = range(8)


# ------------------------------- Pallas kernel --------------------------------
def _layer_norm(x, w, b):
    mu = jnp.mean(x, axis=-1, keepdims=True)
    xc = x - mu
    var = jnp.mean(xc * xc, axis=-1, keepdims=True)
    return xc * jax.lax.rsqrt(var + LN_EPS) * w + b


def _multi_position_kernel(x_ref, wmlp_ref, wlay_ref, blay_ref, out_ref):
    """x_ref: (TOK, F_PAD) signal+orientation; out_ref: (B, C)."""
    f32 = jnp.float32
    x = x_ref[...]                                               # (TOK, F_PAD)

    # ---- single-position encoder: Linear + ReLU, Linear + ReLU (final Identity)
    w1 = wmlp_ref[R_SPW1:R_SPW1 + F_PAD, :]                      # (F_PAD, H)
    b1 = wmlp_ref[R_SPB1:R_SPB1 + 1, :]                          # (1, H)
    w2 = wmlp_ref[R_SPW2:R_SPW2 + H, :]                          # (H, H)
    b2 = wmlp_ref[R_SPB2:R_SPB2 + 1, :]
    h = jnp.maximum(jnp.dot(x, w1, preferred_element_type=f32) + b1, 0.0)
    h = jnp.maximum(jnp.dot(h, w2, preferred_element_type=f32) + b2, 0.0)   # (TOK, H)

    # ---- robust_aggregator: TransformerEncoder (post-norm, ReLU FFN)
    # NUM_LAYERS=3 is small enough to keep the Python loop unrolled.
    for l in range(NUM_LAYERS):
        w_qkv = wlay_ref[l, R_QKV:R_QKV + H, :]                  # (H, 3H)
        w_out = wlay_ref[l, R_OUT:R_OUT + H, 0:H]                # (H, H)
        w_ff1 = wlay_ref[l, R_FF1:R_FF1 + H, 0:DFF]              # (H, DFF)
        w_ff2 = wlay_ref[l, R_FF2:R_FF2 + DFF, 0:H]              # (DFF, H)
        b_qkv = blay_ref[l, BR_QKV:BR_QKV + 1, :]                # (1, 3H)
        b_out = blay_ref[l, BR_OUT:BR_OUT + 1, 0:H]
        ln1w = blay_ref[l, BR_LN1W:BR_LN1W + 1, 0:H]
        ln1b = blay_ref[l, BR_LN1B:BR_LN1B + 1, 0:H]
        ln2w = blay_ref[l, BR_LN2W:BR_LN2W + 1, 0:H]
        ln2b = blay_ref[l, BR_LN2B:BR_LN2B + 1, 0:H]
        b_ff1 = blay_ref[l, BR_FF1:BR_FF1 + 1, 0:DFF]
        b_ff2 = blay_ref[l, BR_FF2:BR_FF2 + 1, 0:H]

        # fused QKV projection: one MXU push for all of Q, K, V
        qkv = jnp.dot(h, w_qkv, preferred_element_type=f32) + b_qkv     # (TOK, 3H)

        # per-(batch, head) scores, stacked along sublanes -> ONE softmax
        s_parts = []
        for b in range(B):
            r0 = b * A
            for hh in range(NUM_HEADS):
                c = hh * HEAD_DIM
                qh = qkv[r0:r0 + A, c:c + HEAD_DIM]              # (A, HD)
                kh = qkv[r0:r0 + A, H + c:H + c + HEAD_DIM]      # (A, HD)
                s_parts.append(jax.lax.dot_general(
                    qh, kh, (((1,), (1,)), ((), ())),
                    preferred_element_type=f32))                  # (A, A)
        s = jnp.concatenate(s_parts, axis=0) * SCALE             # (B*NH*A, A)
        s = s - jnp.max(s, axis=-1, keepdims=True)
        e = jnp.exp(s)
        p = e * pl.reciprocal(jnp.sum(e, axis=-1, keepdims=True), approx=True)

        # PV per head, heads re-assembled on lanes, single output projection
        rows = []
        for b in range(B):
            r0 = b * A
            heads = []
            for hh in range(NUM_HEADS):
                c = hh * HEAD_DIM
                blk = (b * NUM_HEADS + hh) * A
                ph = p[blk:blk + A, :]                           # (A, A)
                vh = qkv[r0:r0 + A, 2 * H + c:2 * H + c + HEAD_DIM]  # (A, HD)
                heads.append(jnp.dot(ph, vh, preferred_element_type=f32))
            rows.append(jnp.concatenate(heads, axis=-1))         # (A, H)
        attn = jnp.concatenate(rows, axis=0)                     # (TOK, H)
        attn = jnp.dot(attn, w_out, preferred_element_type=f32) + b_out

        # residual + LayerNorm1
        h = _layer_norm(h + attn, ln1w, ln1b)

        # feed-forward (ReLU), residual + LayerNorm2
        f = jnp.maximum(jnp.dot(h, w_ff1, preferred_element_type=f32) + b_ff1, 0.0)
        f = jnp.dot(f, w_ff2, preferred_element_type=f32) + b_ff2
        h = _layer_norm(h + f, ln2w, ln2b)

    # ---- mean over angles (per batch) via pooling-matrix matmul, final linear
    pool_m = wmlp_ref[R_POOL:R_POOL + B, 0:TOK]                  # (B, TOK), 1/A blocks
    pooled = jnp.dot(pool_m, h, preferred_element_type=f32)      # (B, H)
    lin_w = wmlp_ref[R_LINW:R_LINW + H, :]                       # (H, H), cols>=C zero
    lin_b = wmlp_ref[R_LINB:R_LINB + 1, :]
    out = jnp.dot(pooled, lin_w, preferred_element_type=f32) + lin_b   # (B, H)
    out_ref[...] = out[:, 0:C].astype(out_ref.dtype)


# ------------------------------ wrapper ---------------------------------------
@jax.jit
def multi_position_forward(x, orientation, w_mlp, w_layers, b_layers):
    """x: (B, A, F_IN), orientation: (B, A, O_DIM) -> (B, C)."""
    tok = x.shape[0] * x.shape[1]
    feat = jnp.concatenate(
        [x.reshape(tok, F_IN),
         orientation.reshape(tok, O_DIM),
         jnp.zeros((tok, F_PAD - F_IN - O_DIM), x.dtype)],
        axis=-1)                                                 # (TOK, F_PAD)

    vmem = pl.BlockSpec(memory_space=pltpu.MemorySpace.VMEM)
    return pl.pallas_call(
        _multi_position_kernel,
        out_shape=jax.ShapeDtypeStruct((x.shape[0], C), jnp.float32),
        in_specs=[vmem, vmem, vmem, vmem],      # whole arrays in VMEM, no grid
        out_specs=vmem,
    )(feat, w_mlp, w_layers, b_layers)


# --------------------------- parameter handling --------------------------------
def init_params(key):
    """PyTorch-convention (out_features, in_features) weights, deterministic."""
    ks = jax.random.split(key, 16)

    def nrm(k, shape):
        return 0.05 * jax.random.normal(k, shape, dtype=jnp.float32)

    return dict(
        sp_w1=nrm(ks[0], (H, F_IN + O_DIM)), sp_b1=nrm(ks[1], (H,)),
        sp_w2=nrm(ks[2], (H, H)), sp_b2=nrm(ks[3], (H,)),
        qkv_w=nrm(ks[4], (NUM_LAYERS, 3 * H, H)), qkv_b=nrm(ks[5], (NUM_LAYERS, 3 * H)),
        out_w=nrm(ks[6], (NUM_LAYERS, H, H)), out_b=nrm(ks[7], (NUM_LAYERS, H)),
        ln1_w=jnp.ones((NUM_LAYERS, H), jnp.float32), ln1_b=jnp.zeros((NUM_LAYERS, H), jnp.float32),
        ln2_w=jnp.ones((NUM_LAYERS, H), jnp.float32), ln2_b=jnp.zeros((NUM_LAYERS, H), jnp.float32),
        ff1_w=nrm(ks[8], (NUM_LAYERS, DFF, H)), ff1_b=nrm(ks[9], (NUM_LAYERS, DFF)),
        ff2_w=nrm(ks[10], (NUM_LAYERS, H, DFF)), ff2_b=nrm(ks[11], (NUM_LAYERS, H)),
        lin_w=nrm(ks[12], (C, H)), lin_b=nrm(ks[13], (C,)),
    )


def pack_params(p):
    """One-time host-side packing of all 20 tensors into 3 kernel slabs."""
    f32 = jnp.float32

    w_mlp = jnp.zeros((MLP_ROWS, H), f32)
    w_mlp = w_mlp.at[R_SPW1:R_SPW1 + F_IN + O_DIM, :].set(p["sp_w1"].T)
    w_mlp = w_mlp.at[R_SPW2:R_SPW2 + H, :].set(p["sp_w2"].T)
    w_mlp = w_mlp.at[R_LINW:R_LINW + H, 0:C].set(p["lin_w"].T)
    w_mlp = w_mlp.at[R_SPB1, :].set(p["sp_b1"])
    w_mlp = w_mlp.at[R_SPB2, :].set(p["sp_b2"])
    w_mlp = w_mlp.at[R_LINB, 0:C].set(p["lin_b"])
    pool = jnp.zeros((B, TOK), f32)
    for b in range(B):
        pool = pool.at[b, b * A:(b + 1) * A].set(1.0 / A)
    w_mlp = w_mlp.at[R_POOL:R_POOL + B, 0:TOK].set(pool)

    w_layers = jnp.zeros((NUM_LAYERS, LYR_ROWS, 3 * H), f32)
    b_layers = jnp.zeros((NUM_LAYERS, 8, 3 * H), f32)
    for l in range(NUM_LAYERS):
        w_layers = w_layers.at[l, R_QKV:R_QKV + H, :].set(p["qkv_w"][l].T)
        w_layers = w_layers.at[l, R_OUT:R_OUT + H, 0:H].set(p["out_w"][l].T)
        w_layers = w_layers.at[l, R_FF1:R_FF1 + H, 0:DFF].set(p["ff1_w"][l].T)
        w_layers = w_layers.at[l, R_FF2:R_FF2 + DFF, 0:H].set(p["ff2_w"][l].T)
        b_layers = b_layers.at[l, BR_QKV, :].set(p["qkv_b"][l])
        b_layers = b_layers.at[l, BR_OUT, 0:H].set(p["out_b"][l])
        b_layers = b_layers.at[l, BR_LN1W, 0:H].set(p["ln1_w"][l])
        b_layers = b_layers.at[l, BR_LN1B, 0:H].set(p["ln1_b"][l])
        b_layers = b_layers.at[l, BR_LN2W, 0:H].set(p["ln2_w"][l])
        b_layers = b_layers.at[l, BR_LN2B, 0:H].set(p["ln2_b"][l])
        b_layers = b_layers.at[l, BR_FF1, 0:DFF].set(p["ff1_b"][l])
        b_layers = b_layers.at[l, BR_FF2, 0:H].set(p["ff2_b"][l])
    return w_mlp, w_layers, b_layers


# ------------------------ pure-JAX reference (semantics check) -----------------
def _layernorm_ref(x, w, b):
    mu = jnp.mean(x, axis=-1, keepdims=True)
    var = jnp.mean(jnp.square(x - mu), axis=-1, keepdims=True)
    return (x - mu) * jax.lax.rsqrt(var + LN_EPS) * w + b


def reference_forward(x, orientation, p):
    bsz, na = x.shape[0], x.shape[1]
    xi = x.reshape(bsz * na, -1)
    oi = orientation.reshape(bsz * na, -1)
    feat = jnp.concatenate([xi, oi], axis=-1)
    h = jax.nn.relu(feat @ p["sp_w1"].T + p["sp_b1"])
    h = jax.nn.relu(h @ p["sp_w2"].T + p["sp_b2"])
    h = h.reshape(bsz, na, H)
    for l in range(NUM_LAYERS):
        wq, wk, wv = jnp.split(p["qkv_w"][l], 3, axis=0)
        bq, bk, bv = jnp.split(p["qkv_b"][l], 3)
        q = (h @ wq.T + bq).reshape(bsz, na, NUM_HEADS, HEAD_DIM).transpose(0, 2, 1, 3)
        k = (h @ wk.T + bk).reshape(bsz, na, NUM_HEADS, HEAD_DIM).transpose(0, 2, 1, 3)
        v = (h @ wv.T + bv).reshape(bsz, na, NUM_HEADS, HEAD_DIM).transpose(0, 2, 1, 3)
        scores = jnp.einsum("bhqd,bhkd->bhqk", q, k) / jnp.sqrt(jnp.float32(HEAD_DIM))
        attn = jax.nn.softmax(scores, axis=-1)
        a = jnp.einsum("bhqk,bhkd->bhqd", attn, v).transpose(0, 2, 1, 3).reshape(bsz, na, H)
        a = a @ p["out_w"][l].T + p["out_b"][l]
        h = _layernorm_ref(h + a, p["ln1_w"][l], p["ln1_b"][l])
        f = jax.nn.relu(h @ p["ff1_w"][l].T + p["ff1_b"][l])
        f = f @ p["ff2_w"][l].T + p["ff2_b"][l]
        h = _layernorm_ref(h + f, p["ln2_w"][l], p["ln2_b"][l])
    pooled = jnp.mean(h, axis=1)
    return pooled @ p["lin_w"].T + p["lin_b"]


# ----------------------------------- main --------------------------------------
if __name__ == "__main__":
    key = jax.random.PRNGKey(0)
    k_x, k_o, k_p = jax.random.split(key, 3)
    x = jax.random.normal(k_x, (B, A, F_IN), dtype=jnp.float32)
    orientation = jax.random.normal(k_o, (B, A, O_DIM), dtype=jnp.float32)
    params = init_params(k_p)

    # pack/transposes happen exactly once, outside the per-call path
    w_mlp, w_layers, b_layers = pack_params(params)

    out = multi_position_forward(x, orientation, w_mlp, w_layers, b_layers)
    out = jax.block_until_ready(out)
    assert out.shape == (B, C), out.shape

    # f32 ground truth; kernel runs at default MXU precision, so allow a
    # correspondingly small tolerance (structural bugs are orders of magnitude larger).
    with jax.default_matmul_precision("highest"):
        ref = jax.block_until_ready(reference_forward(x, orientation, params))
    assert jnp.allclose(out, ref, rtol=5e-2, atol=5e-3), (out, ref)
    print("KERNEL_OK")
</pallas_src>

<mosaic_0001>
module attributes {stable_mosaic.version = 11 : i64} {
  func.func @_multi_position_kernel(%arg0: memref<16x32xf32, #tpu.memory_space<vmem>>, %arg1: memref<104x32xf32, #tpu.memory_space<vmem>>, %arg2: memref<3x160x96xf32, #tpu.memory_space<vmem>>, %arg3: memref<3x8x96xf32, #tpu.memory_space<vmem>>, %arg4: memref<2x3xf32, #tpu.memory_space<vmem>>) attributes {dimension_semantics = [], scalar_prefetch = 0 : i64, scratch_operands = 0 : i64, tpu.core_type = #tpu.core_type<tc>} {
    %c0 = arith.constant 0 : index
    %c0_0 = arith.constant 0 : index
    %0 = vector.load %arg0[%c0, %c0_0] : memref<16x32xf32, #tpu.memory_space<vmem>>, vector<16x32xf32>
    %c0_1 = arith.constant 0 : index
    %c0_2 = arith.constant 0 : index
    %1 = vector.load %arg1[%c0_1, %c0_2] : memref<104x32xf32, #tpu.memory_space<vmem>>, vector<32x32xf32>
    %c96 = arith.constant 96 : index
    %c0_3 = arith.constant 0 : index
    %2 = vector.load %arg1[%c96, %c0_3] : memref<104x32xf32, #tpu.memory_space<vmem>>, vector<1x32xf32>
    %c32 = arith.constant 32 : index
    %c0_4 = arith.constant 0 : index
    %3 = vector.load %arg1[%c32, %c0_4] : memref<104x32xf32, #tpu.memory_space<vmem>>, vector<32x32xf32>
    %c97 = arith.constant 97 : index
    %c0_5 = arith.constant 0 : index
    %4 = vector.load %arg1[%c97, %c0_5] : memref<104x32xf32, #tpu.memory_space<vmem>>, vector<1x32xf32>
    %cst = arith.constant dense<0.000000e+00> : vector<16x32xf32>
    %5 = tpu.matmul %0, %1, %cst {dimension_numbers = #tpu.dot_dimension_numbers<[1], [0], [0], [1], [0, 0, 1, 1], [], []>} : vector<16x32xf32>, vector<32x32xf32>, vector<16x32xf32> -> vector<16x32xf32>
    %6 = vector.broadcast %2 : vector<1x32xf32> to vector<16x32xf32>
    %7 = arith.addf %5, %6 : vector<16x32xf32>
    %cst_6 = arith.constant 0.000000e+00 : f32
    %8 = vector.broadcast %cst_6 : f32 to vector<16x32xf32>
    %9 = arith.maximumf %7, %8 : vector<16x32xf32>
    %cst_7 = arith.constant dense<0.000000e+00> : vector<16x32xf32>
    %10 = tpu.matmul %9, %3, %cst_7 {dimension_numbers = #tpu.dot_dimension_numbers<[1], [0], [0], [1], [0, 0, 1, 1], [], []>} : vector<16x32xf32>, vector<32x32xf32>, vector<16x32xf32> -> vector<16x32xf32>
    %11 = vector.broadcast %4 : vector<1x32xf32> to vector<16x32xf32>
    %12 = arith.addf %10, %11 : vector<16x32xf32>
    %cst_8 = arith.constant 0.000000e+00 : f32
    %13 = vector.broadcast %cst_8 : f32 to vector<16x32xf32>
    %14 = arith.maximumf %12, %13 : vector<16x32xf32>
    %c0_9 = arith.constant 0 : index
    %c0_10 = arith.constant 0 : index
    %c0_11 = arith.constant 0 : index
    %15 = vector.load %arg2[%c0_9, %c0_10, %c0_11] : memref<3x160x96xf32, #tpu.memory_space<vmem>>, vector<1x32x96xf32>
    %16 = vector.shape_cast %15 : vector<1x32x96xf32> to vector<32x96xf32>
    %c0_12 = arith.constant 0 : index
    %c32_13 = arith.constant 32 : index
    %c0_14 = arith.constant 0 : index
    %17 = vector.load %arg2[%c0_12, %c32_13, %c0_14] : memref<3x160x96xf32, #tpu.memory_space<vmem>>, vector<1x32x32xf32>
    %18 = vector.shape_cast %17 : vector<1x32x32xf32> to vector<32x32xf32>
    %c0_15 = arith.constant 0 : index
    %c64 = arith.constant 64 : index
    %c0_16 = arith.constant 0 : index
    %19 = vector.load %arg2[%c0_15, %c64, %c0_16] : memref<3x160x96xf32, #tpu.memory_space<vmem>>, vector<1x32x64xf32>
    %20 = vector.shape_cast %19 : vector<1x32x64xf32> to vector<32x64xf32>
    %c0_17 = arith.constant 0 : index
    %c96_18 = arith.constant 96 : index
    %c0_19 = arith.constant 0 : index
    %21 = vector.load %arg2[%c0_17, %c96_18, %c0_19] : memref<3x160x96xf32, #tpu.memory_space<vmem>>, vector<1x64x32xf32>
    %22 = vector.shape_cast %21 : vector<1x64x32xf32> to vector<64x32xf32>
    %c0_20 = arith.constant 0 : index
    %c0_21 = arith.constant 0 : index
    %c0_22 = arith.constant 0 : index
    %23 = vector.load %arg3[%c0_20, %c0_21, %c0_22] : memref<3x8x96xf32, #tpu.memory_space<vmem>>, vector<1x1x96xf32>
    %24 = vector.shape_cast %23 : vector<1x1x96xf32> to vector<1x96xf32>
    %c0_23 = arith.constant 0 : index
    %c1 = arith.constant 1 : index
    %c0_24 = arith.constant 0 : index
    %25 = vector.load %arg3[%c0_23, %c1, %c0_24] : memref<3x8x96xf32, #tpu.memory_space<vmem>>, vector<1x1x32xf32>
    %26 = vector.shape_cast %25 : vector<1x1x32xf32> to vector<1x32xf32>
    %c0_25 = arith.constant 0 : index
    %c2 = arith.constant 2 : index
    %c0_26 = arith.constant 0 : index
    %27 = vector.load %arg3[%c0_25, %c2, %c0_26] : memref<3x8x96xf32, #tpu.memory_space<vmem>>, vector<1x1x32xf32>
    %28 = vector.shape_cast %27 : vector<1x1x32xf32> to vector<1x32xf32>
    %c0_27 = arith.constant 0 : index
    %c3 = arith.constant 3 : index
    %c0_28 = arith.constant 0 : index
    %29 = vector.load %arg3[%c0_27, %c3, %c0_28] : memref<3x8x96xf32, #tpu.memory_space<vmem>>, vector<1x1x32xf32>
    %30 = vector.shape_cast %29 : vector<1x1x32xf32> to vector<1x32xf32>
    %c0_29 = arith.constant 0 : index
    %c4 = arith.constant 4 : index
    %c0_30 = arith.constant 0 : index
    %31 = vector.load %arg3[%c0_29, %c4, %c0_30] : memref<3x8x96xf32, #tpu.memory_space<vmem>>, vector<1x1x32xf32>
    %32 = vector.shape_cast %31 : vector<1x1x32xf32> to vector<1x32xf32>
    %c0_31 = arith.constant 0 : index
    %c5 = arith.constant 5 : index
    %c0_32 = arith.constant 0 : index
    %33 = vector.load %arg3[%c0_31, %c5, %c0_32] : memref<3x8x96xf32, #tpu.memory_space<vmem>>, vector<1x1x32xf32>
    %34 = vector.shape_cast %33 : vector<1x1x32xf32> to vector<1x32xf32>
    %c0_33 = arith.constant 0 : index
    %c6 = arith.constant 6 : index
    %c0_34 = arith.constant 0 : index
    %35 = vector.load %arg3[%c0_33, %c6, %c0_34] : memref<3x8x96xf32, #tpu.memory_space<vmem>>, vector<1x1x64xf32>
    %36 = vector.shape_cast %35 : vector<1x1x64xf32> to vector<1x64xf32>
    %c0_35 = arith.constant 0 : index
    %c7 = arith.constant 7 : index
    %c0_36 = arith.constant 0 : index
    %37 = vector.load %arg3[%c0_35, %c7, %c0_36] : memref<3x8x96xf32, #tpu.memory_space<vmem>>, vector<1x1x32xf32>
    %38 = vector.shape_cast %37 : vector<1x1x32xf32> to vector<1x32xf32>
    %cst_37 = arith.constant dense<0.000000e+00> : vector<16x96xf32>
    %39 = tpu.matmul %14, %16, %cst_37 {dimension_numbers = #tpu.dot_dimension_numbers<[1], [0], [0], [1], [0, 0, 1, 1], [], []>} : vector<16x32xf32>, vector<32x96xf32>, vector<16x96xf32> -> vector<16x96xf32>
    %40 = vector.broadcast %24 : vector<1x96xf32> to vector<16x96xf32>
    %41 = arith.addf %39, %40 : vector<16x96xf32>
    %42 = vector.extract_strided_slice %41 {offsets = [0, 0], sizes = [8, 4], strides = [1, 1]} : vector<16x96xf32> to vector<8x4xf32>
    %43 = vector.extract_strided_slice %41 {offsets = [0, 32], sizes = [8, 4], strides = [1, 1]} : vector<16x96xf32> to vector<8x4xf32>
    %cst_38 = arith.constant dense<0.000000e+00> : vector<8x8xf32>
    %44 = tpu.matmul %42, %43, %cst_38 {dimension_numbers = #tpu.dot_dimension_numbers<[1], [1], [0], [0], [0, 0, 1, 0], [], []>} : vector<8x4xf32>, vector<8x4xf32>, vector<8x8xf32> -> vector<8x8xf32>
    %45 = vector.extract_strided_slice %41 {offsets = [0, 4], sizes = [8, 4], strides = [1, 1]} : vector<16x96xf32> to vector<8x4xf32>
    %46 = vector.extract_strided_slice %41 {offsets = [0, 36], sizes = [8, 4], strides = [1, 1]} : vector<16x96xf32> to vector<8x4xf32>
    %cst_39 = arith.constant dense<0.000000e+00> : vector<8x8xf32>
    %47 = tpu.matmul %45, %46, %cst_39 {dimension_numbers = #tpu.dot_dimension_numbers<[1], [1], [0], [0], [0, 0, 1, 0], [], []>} : vector<8x4xf32>, vector<8x4xf32>, vector<8x8xf32> -> vector<8x8xf32>
    %48 = vector.extract_strided_slice %41 {offsets = [0, 8], sizes = [8, 4], strides = [1, 1]} : vector<16x96xf32> to vector<8x4xf32>
    %49 = vector.extract_strided_slice %41 {offsets = [0, 40], sizes = [8, 4], strides = [1, 1]} : vector<16x96xf32> to vector<8x4xf32>
    %cst_40 = arith.constant dense<0.000000e+00> : vector<8x8xf32>
    %50 = tpu.matmul %48, %49, %cst_40 {dimension_numbers = #tpu.dot_dimension_numbers<[1], [1], [0], [0], [0, 0, 1, 0], [], []>} : vector<8x4xf32>, vector<8x4xf32>, vector<8x8xf32> -> vector<8x8xf32>
    %51 = vector.extract_strided_slice %41 {offsets = [0, 12], sizes = [8, 4], strides = [1, 1]} : vector<16x96xf32> to vector<8x4xf32>
    %52 = vector.extract_strided_slice %41 {offsets = [0, 44], sizes = [8, 4], strides = [1, 1]} : vector<16x96xf32> to vector<8x4xf32>
    %cst_41 = arith.constant dense<0.000000e+00> : vector<8x8xf32>
    %53 = tpu.matmul %51, %52, %cst_41 {dimension_numbers = #tpu.dot_dimension_numbers<[1], [1], [0], [0], [0, 0, 1, 0], [], []>} : vector<8x4xf32>, vector<8x4xf32>, vector<8x8xf32> -> vector<8x8xf32>
    %54 = vector.extract_strided_slice %41 {offsets = [0, 16], sizes = [8, 4], strides = [1, 1]} : vector<16x96xf32> to vector<8x4xf32>
    %55 = vector.extract_strided_slice %41 {offsets = [0, 48], sizes = [8, 4], strides = [1, 1]} : vector<16x96xf32> to vector<8x4xf32>
    %cst_42 = arith.constant dense<0.000000e+00> : vector<8x8xf32>
    %56 = tpu.matmul %54, %55, %cst_42 {dimension_numbers = #tpu.dot_dimension_numbers<[1], [1], [0], [0], [0, 0, 1, 0], [], []>} : vector<8x4xf32>, vector<8x4xf32>, vector<8x8xf32> -> vector<8x8xf32>
    %57 = vector.extract_strided_slice %41 {offsets = [0, 20], sizes = [8, 4], strides = [1, 1]} : vector<16x96xf32> to vector<8x4xf32>
    %58 = vector.extract_strided_slice %41 {offsets = [0, 52], sizes = [8, 4], strides = [1, 1]} : vector<16x96xf32> to vector<8x4xf32>
    %cst_43 = arith.constant dense<0.000000e+00> : vector<8x8xf32>
    %59 = tpu.matmul %57, %58, %cst_43 {dimension_numbers = #tpu.dot_dimension_numbers<[1], [1], [0], [0], [0, 0, 1, 0], [], []>} : vector<8x4xf32>, vector<8x4xf32>, vector<8x8xf32> -> vector<8x8xf32>
    %60 = vector.extract_strided_slice %41 {offsets = [0, 24], sizes = [8, 4], strides = [1, 1]} : vector<16x96xf32> to vector<8x4xf32>
    %61 = vector.extract_strided_slice %41 {offsets = [0, 56], sizes = [8, 4], strides = [1, 1]} : vector<16x96xf32> to vector<8x4xf32>
    %cst_44 = arith.constant dense<0.000000e+00> : vector<8x8xf32>
    %62 = tpu.matmul %60, %61, %cst_44 {dimension_numbers = #tpu.dot_dimension_numbers<[1], [1], [0], [0], [0, 0, 1, 0], [], []>} : vector<8x4xf32>, vector<8x4xf32>, vector<8x8xf32> -> vector<8x8xf32>
    %63 = vector.extract_strided_slice %41 {offsets = [0, 28], sizes = [8, 4], strides = [1, 1]} : vector<16x96xf32> to vector<8x4xf32>
    %64 = vector.extract_strided_slice %41 {offsets = [0, 60], sizes = [8, 4], strides = [1, 1]} : vector<16x96xf32> to vector<8x4xf32>
    %cst_45 = arith.constant dense<0.000000e+00> : vector<8x8xf32>
    %65 = tpu.matmul %63, %64, %cst_45 {dimension_numbers = #tpu.dot_dimension_numbers<[1], [1], [0], [0], [0, 0, 1, 0], [], []>} : vector<8x4xf32>, vector<8x4xf32>, vector<8x8xf32> -> vector<8x8xf32>
    %66 = vector.extract_strided_slice %41 {offsets = [8, 0], sizes = [8, 4], strides = [1, 1]} : vector<16x96xf32> to vector<8x4xf32>
    %67 = vector.extract_strided_slice %41 {offsets = [8, 32], sizes = [8, 4], strides = [1, 1]} : vector<16x96xf32> to vector<8x4xf32>
    %cst_46 = arith.constant dense<0.000000e+00> : vector<8x8xf32>
    %68 = tpu.matmul %66, %67, %cst_46 {dimension_numbers = #tpu.dot_dimension_numbers<[1], [1], [0], [0], [0, 0, 1, 0], [], []>} : vector<8x4xf32>, vector<8x4xf32>, vector<8x8xf32> -> vector<8x8xf32>
    %69 = vector.extract_strided_slice %41 {offsets = [8, 4], sizes = [8, 4], strides = [1, 1]} : vector<16x96xf32> to vector<8x4xf32>
    %70 = vector.extract_strided_slice %41 {offsets = [8, 36], sizes = [8, 4], strides = [1, 1]} : vector<16x96xf32> to vector<8x4xf32>
    %cst_47 = arith.constant dense<0.000000e+00> : vector<8x8xf32>
    %71 = tpu.matmul %69, %70, %cst_47 {dimension_numbers = #tpu.dot_dimension_numbers<[1], [1], [0], [0], [0, 0, 1, 0], [], []>} : vector<8x4xf32>, vector<8x4xf32>, vector<8x8xf32> -> vector<8x8xf32>
    %72 = vector.extract_strided_slice %41 {offsets = [8, 8], sizes = [8, 4], strides = [1, 1]} : vector<16x96xf32> to vector<8x4xf32>
    %73 = vector.extract_strided_slice %41 {offsets = [8, 40], sizes = [8, 4], strides = [1, 1]} : vector<16x96xf32> to vector<8x4xf32>
    %cst_48 = arith.constant dense<0.000000e+00> : vector<8x8xf32>
    %74 = tpu.matmul %72, %73, %cst_48 {dimension_numbers = #tpu.dot_dimension_numbers<[1], [1], [0], [0], [0, 0, 1, 0], [], []>} : vector<8x4xf32>, vector<8x4xf32>, vector<8x8xf32> -> vector<8x8xf32>
    %75 = vector.extract_strided_slice %41 {offsets = [8, 12], sizes = [8, 4], strides = [1, 1]} : vector<16x96xf32> to vector<8x4xf32>
    %76 = vector.extract_strided_slice %41 {offsets = [8, 44], sizes = [8, 4], strides = [1, 1]} : vector<16x96xf32> to vector<8x4xf32>
    %cst_49 = arith.constant dense<0.000000e+00> : vector<8x8xf32>
    %77 = tpu.matmul %75, %76, %cst_49 {dimension_numbers = #tpu.dot_dimension_numbers<[1], [1], [0], [0], [0, 0, 1, 0], [], []>} : vector<8x4xf32>, vector<8x4xf32>, vector<8x8xf32> -> vector<8x8xf32>
    %78 = vector.extract_strided_slice %41 {offsets = [8, 16], sizes = [8, 4], strides = [1, 1]} : vector<16x96xf32> to vector<8x4xf32>
    %79 = vector.extract_strided_slice %41 {offsets = [8, 48], sizes = [8, 4], strides = [1, 1]} : vector<16x96xf32> to vector<8x4xf32>
    %cst_50 = arith.constant dense<0.000000e+00> : vector<8x8xf32>
    %80 = tpu.matmul %78, %79, %cst_50 {dimension_numbers = #tpu.dot_dimension_numbers<[1], [1], [0], [0], [0, 0, 1, 0], [], []>} : vector<8x4xf32>, vector<8x4xf32>, vector<8x8xf32> -> vector<8x8xf32>
    %81 = vector.extract_strided_slice %41 {offsets = [8, 20], sizes = [8, 4], strides = [1, 1]} : vector<16x96xf32> to vector<8x4xf32>
    %82 = vector.extract_strided_slice %41 {offsets = [8, 52], sizes = [8, 4], strides = [1, 1]} : vector<16x96xf32> to vector<8x4xf32>
    %cst_51 = arith.constant dense<0.000000e+00> : vector<8x8xf32>
    %83 = tpu.matmul %81, %82, %cst_51 {dimension_numbers = #tpu.dot_dimension_numbers<[1], [1], [0], [0], [0, 0, 1, 0], [], []>} : vector<8x4xf32>, vector<8x4xf32>, vector<8x8xf32> -> vector<8x8xf32>
    %84 = vector.extract_strided_slice %41 {offsets = [8, 24], sizes = [8, 4], strides = [1, 1]} : vector<16x96xf32> to vector<8x4xf32>
    %85 = vector.extract_strided_slice %41 {offsets = [8, 56], sizes = [8, 4], strides = [1, 1]} : vector<16x96xf32> to vector<8x4xf32>
    %cst_52 = arith.constant dense<0.000000e+00> : vector<8x8xf32>
    %86 = tpu.matmul %84, %85, %cst_52 {dimension_numbers = #tpu.dot_dimension_numbers<[1], [1], [0], [0], [0, 0, 1, 0], [], []>} : vector<8x4xf32>, vector<8x4xf32>, vector<8x8xf32> -> vector<8x8xf32>
    %87 = vector.extract_strided_slice %41 {offsets = [8, 28], sizes = [8, 4], strides = [1, 1]} : vector<16x96xf32> to vector<8x4xf32>
    %88 = vector.extract_strided_slice %41 {offsets = [8, 60], sizes = [8, 4], strides = [1, 1]} : vector<16x96xf32> to vector<8x4xf32>
    %cst_53 = arith.constant dense<0.000000e+00> : vector<8x8xf32>
    %89 = tpu.matmul %87, %88, %cst_53 {dimension_numbers = #tpu.dot_dimension_numbers<[1], [1], [0], [0], [0, 0, 1, 0], [], []>} : vector<8x4xf32>, vector<8x4xf32>, vector<8x8xf32> -> vector<8x8xf32>
    %90 = tpu.concatenate %44, %47, %50, %53, %56, %59, %62, %65, %68, %71, %74, %77, %80, %83, %86, %89 in 0 : vector<8x8xf32>, vector<8x8xf32>, vector<8x8xf32>, vector<8x8xf32>, vector<8x8xf32>, vector<8x8xf32>, vector<8x8xf32>, vector<8x8xf32>, vector<8x8xf32>, vector<8x8xf32>, vector<8x8xf32>, vector<8x8xf32>, vector<8x8xf32>, vector<8x8xf32>, vector<8x8xf32>, vector<8x8xf32> -> vector<128x8xf32>
    %cst_54 = arith.constant 5.000000e-01 : f32
    %91 = vector.broadcast %cst_54 : f32 to vector<128x8xf32>
    %92 = arith.mulf %90, %91 : vector<128x8xf32>
    %cst_55 = arith.constant dense<0xFF800000> : vector<128xf32>
    %93 = vector.multi_reduction <maximumf>, %92, %cst_55 [1] : vector<128x8xf32> to vector<128xf32>
    %94 = vector.shape_cast %93 : vector<128xf32> to vector<128x1xf32>
    %95 = vector.broadcast %94 : vector<128x1xf32> to vector<128x8xf32>
    %96 = arith.subf %92, %95 : vector<128x8xf32>
    %97 = math.exp %96 : vector<128x8xf32>
    %cst_56 = arith.constant dense<0.000000e+00> : vector<128xf32>
    %98 = vector.multi_reduction <add>, %97, %cst_56 [1] : vector<128x8xf32> to vector<128xf32>
    %99 = vector.shape_cast %98 : vector<128xf32> to vector<128x1xf32>
    %100 = tpu.reciprocal %99 {approx = true} : vector<128x1xf32> -> vector<128x1xf32>
    %101 = vector.broadcast %100 : vector<128x1xf32> to vector<128x8xf32>
    %102 = arith.mulf %97, %101 : vector<128x8xf32>
    %103 = vector.extract_strided_slice %102 {offsets = [0, 0], sizes = [8, 8], strides = [1, 1]} : vector<128x8xf32> to vector<8x8xf32>
    %104 = vector.extract_strided_slice %41 {offsets = [0, 64], sizes = [8, 4], strides = [1, 1]} : vector<16x96xf32> to vector<8x4xf32>
    %cst_57 = arith.constant dense<0.000000e+00> : vector<8x4xf32>
    %105 = tpu.matmul %103, %104, %cst_57 {dimension_numbers = #tpu.dot_dimension_numbers<[1], [0], [0], [1], [0, 0, 1, 1], [], []>} : vector<8x8xf32>, vector<8x4xf32>, vector<8x4xf32> -> vector<8x4xf32>
    %106 = vector.extract_strided_slice %102 {offsets = [8, 0], sizes = [8, 8], strides = [1, 1]} : vector<128x8xf32> to vector<8x8xf32>
    %107 = vector.extract_strided_slice %41 {offsets = [0, 68], sizes = [8, 4], strides = [1, 1]} : vector<16x96xf32> to vector<8x4xf32>
    %cst_58 = arith.constant dense<0.000000e+00> : vector<8x4xf32>
    %108 = tpu.matmul %106, %107, %cst_58 {dimension_numbers = #tpu.dot_dimension_numbers<[1], [0], [0], [1], [0, 0, 1, 1], [], []>} : vector<8x8xf32>, vector<8x4xf32>, vector<8x4xf32> -> vector<8x4xf32>
    %109 = vector.extract_strided_slice %102 {offsets = [16, 0], sizes = [8, 8], strides = [1, 1]} : vector<128x8xf32> to vector<8x8xf32>
    %110 = vector.extract_strided_slice %41 {offsets = [0, 72], sizes = [8, 4], strides = [1, 1]} : vector<16x96xf32> to vector<8x4xf32>
    %cst_59 = arith.constant dense<0.000000e+00> : vector<8x4xf32>
    %111 = tpu.matmul %109, %110, %cst_59 {dimension_numbers = #tpu.dot_dimension_numbers<[1], [0], [0], [1], [0, 0, 1, 1], [], []>} : vector<8x8xf32>, vector<8x4xf32>, vector<8x4xf32> -> vector<8x4xf32>
    %112 = vector.extract_strided_slice %102 {offsets = [24, 0], sizes = [8, 8], strides = [1, 1]} : vector<128x8xf32> to vector<8x8xf32>
    %113 = vector.extract_strided_slice %41 {offsets = [0, 76], sizes = [8, 4], strides = [1, 1]} : vector<16x96xf32> to vector<8x4xf32>
    %cst_60 = arith.constant dense<0.000000e+00> : vector<8x4xf32>
    %114 = tpu.matmul %112, %113, %cst_60 {dimension_numbers = #tpu.dot_dimension_numbers<[1], [0], [0], [1], [0, 0, 1, 1], [], []>} : vector<8x8xf32>, vector<8x4xf32>, vector<8x4xf32> -> vector<8x4xf32>
    %115 = vector.extract_strided_slice %102 {offsets = [32, 0], sizes = [8, 8], strides = [1, 1]} : vector<128x8xf32> to vector<8x8xf32>
    %116 = vector.extract_strided_slice %41 {offsets = [0, 80], sizes = [8, 4], strides = [1, 1]} : vector<16x96xf32> to vector<8x4xf32>
    %cst_61 = arith.constant dense<0.000000e+00> : vector<8x4xf32>
    %117 = tpu.matmul %115, %116, %cst_61 {dimension_numbers = #tpu.dot_dimension_numbers<[1], [0], [0], [1], [0, 0, 1, 1], [], []>} : vector<8x8xf32>, vector<8x4xf32>, vector<8x4xf32> -> vector<8x4xf32>
    %118 = vector.extract_strided_slice %102 {offsets = [40, 0], sizes = [8, 8], strides = [1, 1]} : vector<128x8xf32> to vector<8x8xf32>
    %119 = vector.extract_strided_slice %41 {offsets = [0, 84], sizes = [8, 4], strides = [1, 1]} : vector<16x96xf32> to vector<8x4xf32>
    %cst_62 = arith.constant dense<0.000000e+00> : vector<8x4xf32>
    %120 = tpu.matmul %118, %119, %cst_62 {dimension_numbers = #tpu.dot_dimension_numbers<[1], [0], [0], [1], [0, 0, 1, 1], [], []>} : vector<8x8xf32>, vector<8x4xf32>, vector<8x4xf32> -> vector<8x4xf32>
    %121 = vector.extract_strided_slice %102 {offsets = [48, 0], sizes = [8, 8], strides = [1, 1]} : vector<128x8xf32> to vector<8x8xf32>
    %122 = vector.extract_strided_slice %41 {offsets = [0, 88], sizes = [8, 4], strides = [1, 1]} : vector<16x96xf32> to vector<8x4xf32>
    %cst_63 = arith.constant dense<0.000000e+00> : vector<8x4xf32>
    %123 = tpu.matmul %121, %122, %cst_63 {dimension_numbers = #tpu.dot_dimension_numbers<[1], [0], [0], [1], [0, 0, 1, 1], [], []>} : vector<8x8xf32>, vector<8x4xf32>, vector<8x4xf32> -> vector<8x4xf32>
    %124 = vector.extract_strided_slice %102 {offsets = [56, 0], sizes = [8, 8], strides = [1, 1]} : vector<128x8xf32> to vector<8x8xf32>
    %125 = vector.extract_strided_slice %41 {offsets = [0, 92], sizes = [8, 4], strides = [1, 1]} : vector<16x96xf32> to vector<8x4xf32>
    %cst_64 = arith.constant dense<0.000000e+00> : vector<8x4xf32>
    %126 = tpu.matmul %124, %125, %cst_64 {dimension_numbers = #tpu.dot_dimension_numbers<[1], [0], [0], [1], [0, 0, 1, 1], [], []>} : vector<8x8xf32>, vector<8x4xf32>, vector<8x4xf32> -> vector<8x4xf32>
    %127 = tpu.concatenate %105, %108, %111, %114, %117, %120, %123, %126 in 1 : vector<8x4xf32>, vector<8x4xf32>, vector<8x4xf32>, vector<8x4xf32>, vector<8x4xf32>, vector<8x4xf32>, vector<8x4xf32>, vector<8x4xf32> -> vector<8x32xf32>
    %128 = vector.extract_strided_slice %102 {offsets = [64, 0], sizes = [8, 8], strides = [1, 1]} : vector<128x8xf32> to vector<8x8xf32>
    %129 = vector.extract_strided_slice %41 {offsets = [8, 64], sizes = [8, 4], strides = [1, 1]} : vector<16x96xf32> to vector<8x4xf32>
    %cst_65 = arith.constant dense<0.000000e+00> : vector<8x4xf32>
    %130 = tpu.matmul %128, %129, %cst_65 {dimension_numbers = #tpu.dot_dimension_numbers<[1], [0], [0], [1], [0, 0, 1, 1], [], []>} : vector<8x8xf32>, vector<8x4xf32>, vector<8x4xf32> -> vector<8x4xf32>
    %131 = vector.extract_strided_slice %102 {offsets = [72, 0], sizes = [8, 8], strides = [1, 1]} : vector<128x8xf32> to vector<8x8xf32>
    %132 = vector.extract_strided_slice %41 {offsets = [8, 68], sizes = [8, 4], strides = [1, 1]} : vector<16x96xf32> to vector<8x4xf32>
    %cst_66 = arith.constant dense<0.000000e+00> : vector<8x4xf32>
    %133 = tpu.matmul %131, %132, %cst_66 {dimension_numbers = #tpu.dot_dimension_numbers<[1], [0], [0], [1], [0, 0, 1, 1], [], []>} : vector<8x8xf32>, vector<8x4xf32>, vector<8x4xf32> -> vector<8x4xf32>
    %134 = vector.extract_strided_slice %102 {offsets = [80, 0], sizes = [8, 8], strides = [1, 1]} : vector<128x8xf32> to vector<8x8xf32>
    %135 = vector.extract_strided_slice %41 {offsets = [8, 72], sizes = [8, 4], strides = [1, 1]} : vector<16x96xf32> to vector<8x4xf32>
    %cst_67 = arith.constant dense<0.000000e+00> : vector<8x4xf32>
    %136 = tpu.matmul %134, %135, %cst_67 {dimension_numbers = #tpu.dot_dimension_numbers<[1], [0], [0], [1], [0, 0, 1, 1], [], []>} : vector<8x8xf32>, vector<8x4xf32>, vector<8x4xf32> -> vector<8x4xf32>
    %137 = vector.extract_strided_slice %102 {offsets = [88, 0], sizes = [8, 8], strides = [1, 1]} : vector<128x8xf32> to vector<8x8xf32>
    %138 = vector.extract_strided_slice %41 {offsets = [8, 76], sizes = [8, 4], strides = [1, 1]} : vector<16x96xf32> to vector<8x4xf32>
    %cst_68 = arith.constant dense<0.000000e+00> : vector<8x4xf32>
    %139 = tpu.matmul %137, %138, %cst_68 {dimension_numbers = #tpu.dot_dimension_numbers<[1], [0], [0], [1], [0, 0, 1, 1], [], []>} : vector<8x8xf32>, vector<8x4xf32>, vector<8x4xf32> -> vector<8x4xf32>
    %140 = vector.extract_strided_slice %102 {offsets = [96, 0], sizes = [8, 8], strides = [1, 1]} : vector<128x8xf32> to vector<8x8xf32>
    %141 = vector.extract_strided_slice %41 {offsets = [8, 80], sizes = [8, 4], strides = [1, 1]} : vector<16x96xf32> to vector<8x4xf32>
    %cst_69 = arith.constant dense<0.000000e+00> : vector<8x4xf32>
    %142 = tpu.matmul %140, %141, %cst_69 {dimension_numbers = #tpu.dot_dimension_numbers<[1], [0], [0], [1], [0, 0, 1, 1], [], []>} : vector<8x8xf32>, vector<8x4xf32>, vector<8x4xf32> -> vector<8x4xf32>
    %143 = vector.extract_strided_slice %102 {offsets = [104, 0], sizes = [8, 8], strides = [1, 1]} : vector<128x8xf32> to vector<8x8xf32>
    %144 = vector.extract_strided_slice %41 {offsets = [8, 84], sizes = [8, 4], strides = [1, 1]} : vector<16x96xf32> to vector<8x4xf32>
    %cst_70 = arith.constant dense<0.000000e+00> : vector<8x4xf32>
    %145 = tpu.matmul %143, %144, %cst_70 {dimension_numbers = #tpu.dot_dimension_numbers<[1], [0], [0], [1], [0, 0, 1, 1], [], []>} : vector<8x8xf32>, vector<8x4xf32>, vector<8x4xf32> -> vector<8x4xf32>
    %146 = vector.extract_strided_slice %102 {offsets = [112, 0], sizes = [8, 8], strides = [1, 1]} : vector<128x8xf32> to vector<8x8xf32>
    %147 = vector.extract_strided_slice %41 {offsets = [8, 88], sizes = [8, 4], strides = [1, 1]} : vector<16x96xf32> to vector<8x4xf32>
    %cst_71 = arith.constant dense<0.000000e+00> : vector<8x4xf32>
    %148 = tpu.matmul %146, %147, %cst_71 {dimension_numbers = #tpu.dot_dimension_numbers<[1], [0], [0], [1], [0, 0, 1, 1], [], []>} : vector<8x8xf32>, vector<8x4xf32>, vector<8x4xf32> -> vector<8x4xf32>
    %149 = vector.extract_strided_slice %102 {offsets = [120, 0], sizes = [8, 8], strides = [1, 1]} : vector<128x8xf32> to vector<8x8xf32>
    %150 = vector.extract_strided_slice %41 {offsets = [8, 92], sizes = [8, 4], strides = [1, 1]} : vector<16x96xf32> to vector<8x4xf32>
    %cst_72 = arith.constant dense<0.000000e+00> : vector<8x4xf32>
    %151 = tpu.matmul %149, %150, %cst_72 {dimension_numbers = #tpu.dot_dimension_numbers<[1], [0], [0], [1], [0, 0, 1, 1], [], []>} : vector<8x8xf32>, vector<8x4xf32>, vector<8x4xf32> -> vector<8x4xf32>
    %152 = tpu.concatenate %130, %133, %136, %139, %142, %145, %148, %151 in 1 : vector<8x4xf32>, vector<8x4xf32>, vector<8x4xf32>, vector<8x4xf32>, vector<8x4xf32>, vector<8x4xf32>, vector<8x4xf32>, vector<8x4xf32> -> vector<8x32xf32>
    %153 = tpu.concatenate %127, %152 in 0 : vector<8x32xf32>, vector<8x32xf32> -> vector<16x32xf32>
    %cst_73 = arith.constant dense<0.000000e+00> : vector<16x32xf32>
    %154 = tpu.matmul %153, %18, %cst_73 {dimension_numbers = #tpu.dot_dimension_numbers<[1], [0], [0], [1], [0, 0, 1, 1], [], []>} : vector<16x32xf32>, vector<32x32xf32>, vector<16x32xf32> -> vector<16x32xf32>
    %155 = vector.broadcast %26 : vector<1x32xf32> to vector<16x32xf32>
    %156 = arith.addf %154, %155 : vector<16x32xf32>
    %157 = arith.addf %14, %156 : vector<16x32xf32>
    %cst_74 = arith.constant dense<0.000000e+00> : vector<16xf32>
    %158 = vector.multi_reduction <add>, %157, %cst_74 [1] : vector<16x32xf32> to vector<16xf32>
    %159 = vector.shape_cast %158 : vector<16xf32> to vector<16x1xf32>
    %cst_75 = arith.constant 3.200000e+01 : f32
    %160 = vector.broadcast %cst_75 : f32 to vector<16x1xf32>
    %161 = arith.divf %159, %160 : vector<16x1xf32>
    %162 = vector.broadcast %161 : vector<16x1xf32> to vector<16x32xf32>
    %163 = arith.subf %157, %162 : vector<16x32xf32>
    %164 = arith.mulf %163, %163 : vector<16x32xf32>
    %cst_76 = arith.constant dense<0.000000e+00> : vector<16xf32>
    %165 = vector.multi_reduction <add>, %164, %cst_76 [1] : vector<16x32xf32> to vector<16xf32>
    %166 = vector.shape_cast %165 : vector<16xf32> to vector<16x1xf32>
    %cst_77 = arith.constant 3.200000e+01 : f32
    %167 = vector.broadcast %cst_77 : f32 to vector<16x1xf32>
    %168 = arith.divf %166, %167 : vector<16x1xf32>
    %cst_78 = arith.constant 9.99999974E-6 : f32
    %169 = vector.broadcast %cst_78 : f32 to vector<16x1xf32>
    %170 = arith.addf %168, %169 : vector<16x1xf32>
    %171 = math.rsqrt %170 : vector<16x1xf32>
    %172 = vector.broadcast %171 : vector<16x1xf32> to vector<16x32xf32>
    %173 = arith.mulf %163, %172 : vector<16x32xf32>
    %174 = vector.broadcast %28 : vector<1x32xf32> to vector<16x32xf32>
    %175 = arith.mulf %173, %174 : vector<16x32xf32>
    %176 = vector.broadcast %30 : vector<1x32xf32> to vector<16x32xf32>
    %177 = arith.addf %175, %176 : vector<16x32xf32>
    %cst_79 = arith.constant dense<0.000000e+00> : vector<16x64xf32>
    %178 = tpu.matmul %177, %20, %cst_79 {dimension_numbers = #tpu.dot_dimension_numbers<[1], [0], [0], [1], [0, 0, 1, 1], [], []>} : vector<16x32xf32>, vector<32x64xf32>, vector<16x64xf32> -> vector<16x64xf32>
    %179 = vector.broadcast %36 : vector<1x64xf32> to vector<16x64xf32>
    %180 = arith.addf %178, %179 : vector<16x64xf32>
    %cst_80 = arith.constant 0.000000e+00 : f32
    %181 = vector.broadcast %cst_80 : f32 to vector<16x64xf32>
    %182 = arith.maximumf %180, %181 : vector<16x64xf32>
    %cst_81 = arith.constant dense<0.000000e+00> : vector<16x32xf32>
    %183 = tpu.matmul %182, %22, %cst_81 {dimension_numbers = #tpu.dot_dimension_numbers<[1], [0], [0], [1], [0, 0, 1, 1], [], []>} : vector<16x64xf32>, vector<64x32xf32>, vector<16x32xf32> -> vector<16x32xf32>
    %184 = vector.broadcast %38 : vector<1x32xf32> to vector<16x32xf32>
    %185 = arith.addf %183, %184 : vector<16x32xf32>
    %186 = arith.addf %177, %185 : vector<16x32xf32>
    %cst_82 = arith.constant dense<0.000000e+00> : vector<16xf32>
    %187 = vector.multi_reduction <add>, %186, %cst_82 [1] : vector<16x32xf32> to vector<16xf32>
    %188 = vector.shape_cast %187 : vector<16xf32> to vector<16x1xf32>
    %cst_83 = arith.constant 3.200000e+01 : f32
    %189 = vector.broadcast %cst_83 : f32 to vector<16x1xf32>
    %190 = arith.divf %188, %189 : vector<16x1xf32>
    %191 = vector.broadcast %190 : vector<16x1xf32> to vector<16x32xf32>
    %192 = arith.subf %186, %191 : vector<16x32xf32>
    %193 = arith.mulf %192, %192 : vector<16x32xf32>
    %cst_84 = arith.constant dense<0.000000e+00> : vector<16xf32>
    %194 = vector.multi_reduction <add>, %193, %cst_84 [1] : vector<16x32xf32> to vector<16xf32>
    %195 = vector.shape_cast %194 : vector<16xf32> to vector<16x1xf32>
    %cst_85 = arith.constant 3.200000e+01 : f32
    %196 = vector.broadcast %cst_85 : f32 to vector<16x1xf32>
    %197 = arith.divf %195, %196 : vector<16x1xf32>
    %cst_86 = arith.constant 9.99999974E-6 : f32
    %198 = vector.broadcast %cst_86 : f32 to vector<16x1xf32>
    %199 = arith.addf %197, %198 : vector<16x1xf32>
    %200 = math.rsqrt %199 : vector<16x1xf32>
    %201 = vector.broadcast %200 : vector<16x1xf32> to vector<16x32xf32>
    %202 = arith.mulf %192, %201 : vector<16x32xf32>
    %203 = vector.broadcast %32 : vector<1x32xf32> to vector<16x32xf32>
    %204 = arith.mulf %202, %203 : vector<16x32xf32>
    %205 = vector.broadcast %34 : vector<1x32xf32> to vector<16x32xf32>
    %206 = arith.addf %204, %205 : vector<16x32xf32>
    %c1_87 = arith.constant 1 : index
    %c0_88 = arith.constant 0 : index
    %c0_89 = arith.constant 0 : index
    %207 = vector.load %arg2[%c1_87, %c0_88, %c0_89] : memref<3x160x96xf32, #tpu.memory_space<vmem>>, vector<1x32x96xf32>
    %208 = vector.shape_cast %207 : vector<1x32x96xf32> to vector<32x96xf32>
    %c1_90 = arith.constant 1 : index
    %c32_91 = arith.constant 32 : index
    %c0_92 = arith.constant 0 : index
    %209 = vector.load %arg2[%c1_90, %c32_91, %c0_92] : memref<3x160x96xf32, #tpu.memory_space<vmem>>, vector<1x32x32xf32>
    %210 = vector.shape_cast %209 : vector<1x32x32xf32> to vector<32x32xf32>
    %c1_93 = arith.constant 1 : index
    %c64_94 = arith.constant 64 : index
    %c0_95 = arith.constant 0 : index
    %211 = vector.load %arg2[%c1_93, %c64_94, %c0_95] : memref<3x160x96xf32, #tpu.memory_space<vmem>>, vector<1x32x64xf32>
    %212 = vector.shape_cast %211 : vector<1x32x64xf32> to vector<32x64xf32>
    %c1_96 = arith.constant 1 : index
    %c96_97 = arith.constant 96 : index
    %c0_98 = arith.constant 0 : index
    %213 = vector.load %arg2[%c1_96, %c96_97, %c0_98] : memref<3x160x96xf32, #tpu.memory_space<vmem>>, vector<1x64x32xf32>
    %214 = vector.shape_cast %213 : vector<1x64x32xf32> to vector<64x32xf32>
    %c1_99 = arith.constant 1 : index
    %c0_100 = arith.constant 0 : index
    %c0_101 = arith.constant 0 : index
    %215 = vector.load %arg3[%c1_99, %c0_100, %c0_101] : memref<3x8x96xf32, #tpu.memory_space<vmem>>, vector<1x1x96xf32>
    %216 = vector.shape_cast %215 : vector<1x1x96xf32> to vector<1x96xf32>
    %c1_102 = arith.constant 1 : index
    %c1_103 = arith.constant 1 : index
    %c0_104 = arith.constant 0 : index
    %217 = vector.load %arg3[%c1_102, %c1_103, %c0_104] : memref<3x8x96xf32, #tpu.memory_space<vmem>>, vector<1x1x32xf32>
    %218 = vector.shape_cast %217 : vector<1x1x32xf32> to vector<1x32xf32>
    %c1_105 = arith.constant 1 : index
    %c2_106 = arith.constant 2 : index
    %c0_107 = arith.constant 0 : index
    %219 = vector.load %arg3[%c1_105, %c2_106, %c0_107] : memref<3x8x96xf32, #tpu.memory_space<vmem>>, vector<1x1x32xf32>
    %220 = vector.shape_cast %219 : vector<1x1x32xf32> to vector<1x32xf32>
    %c1_108 = arith.constant 1 : index
    %c3_109 = arith.constant 3 : index
    %c0_110 = arith.constant 0 : index
    %221 = vector.load %arg3[%c1_108, %c3_109, %c0_110] : memref<3x8x96xf32, #tpu.memory_space<vmem>>, vector<1x1x32xf32>
    %222 = vector.shape_cast %221 : vector<1x1x32xf32> to vector<1x32xf32>
    %c1_111 = arith.constant 1 : index
    %c4_112 = arith.constant 4 : index
    %c0_113 = arith.constant 0 : index
    %223 = vector.load %arg3[%c1_111, %c4_112, %c0_113] : memref<3x8x96xf32, #tpu.memory_space<vmem>>, vector<1x1x32xf32>
    %224 = vector.shape_cast %223 : vector<1x1x32xf32> to vector<1x32xf32>
    %c1_114 = arith.constant 1 : index
    %c5_115 = arith.constant 5 : index
    %c0_116 = arith.constant 0 : index
    %225 = vector.load %arg3[%c1_114, %c5_115, %c0_116] : memref<3x8x96xf32, #tpu.memory_space<vmem>>, vector<1x1x32xf32>
    %226 = vector.shape_cast %225 : vector<1x1x32xf32> to vector<1x32xf32>
    %c1_117 = arith.constant 1 : index
    %c6_118 = arith.constant 6 : index
    %c0_119 = arith.constant 0 : index
    %227 = vector.load %arg3[%c1_117, %c6_118, %c0_119] : memref<3x8x96xf32, #tpu.memory_space<vmem>>, vector<1x1x64xf32>
    %228 = vector.shape_cast %227 : vector<1x1x64xf32> to vector<1x64xf32>
    %c1_120 = arith.constant 1 : index
    %c7_121 = arith.constant 7 : index
    %c0_122 = arith.constant 0 : index
    %229 = vector.load %arg3[%c1_120, %c7_121, %c0_122] : memref<3x8x96xf32, #tpu.memory_space<vmem>>, vector<1x1x32xf32>
    %230 = vector.shape_cast %229 : vector<1x1x32xf32> to vector<1x32xf32>
    %cst_123 = arith.constant dense<0.000000e+00> : vector<16x96xf32>
    %231 = tpu.matmul %206, %208, %cst_123 {dimension_numbers = #tpu.dot_dimension_numbers<[1], [0], [0], [1], [0, 0, 1, 1], [], []>} : vector<16x32xf32>, vector<32x96xf32>, vector<16x96xf32> -> vector<16x96xf32>
    %232 = vector.broadcast %216 : vector<1x96xf32> to vector<16x96xf32>
    %233 = arith.addf %231, %232 : vector<16x96xf32>
    %234 = vector.extract_strided_slice %233 {offsets = [0, 0], sizes = [8, 4], strides = [1, 1]} : vector<16x96xf32> to vector<8x4xf32>
    %235 = vector.extract_strided_slice %233 {offsets = [0, 32], sizes = [8, 4], strides = [1, 1]} : vector<16x96xf32> to vector<8x4xf32>
    %cst_124 = arith.constant dense<0.000000e+00> : vector<8x8xf32>
    %236 = tpu.matmul %234, %235, %cst_124 {dimension_numbers = #tpu.dot_dimension_numbers<[1], [1], [0], [0], [0, 0, 1, 0], [], []>} : vector<8x4xf32>, vector<8x4xf32>, vector<8x8xf32> -> vector<8x8xf32>
    %237 = vector.extract_strided_slice %233 {offsets = [0, 4], sizes = [8, 4], strides = [1, 1]} : vector<16x96xf32> to vector<8x4xf32>
    %238 = vector.extract_strided_slice %233 {offsets = [0, 36], sizes = [8, 4], strides = [1, 1]} : vector<16x96xf32> to vector<8x4xf32>
    %cst_125 = arith.constant dense<0.000000e+00> : vector<8x8xf32>
    %239 = tpu.matmul %237, %238, %cst_125 {dimension_numbers = #tpu.dot_dimension_numbers<[1], [1], [0], [0], [0, 0, 1, 0], [], []>} : vector<8x4xf32>, vector<8x4xf32>, vector<8x8xf32> -> vector<8x8xf32>
    %240 = vector.extract_strided_slice %233 {offsets = [0, 8], sizes = [8, 4], strides = [1, 1]} : vector<16x96xf32> to vector<8x4xf32>
    %241 = vector.extract_strided_slice %233 {offsets = [0, 40], sizes = [8, 4], strides = [1, 1]} : vector<16x96xf32> to vector<8x4xf32>
    %cst_126 = arith.constant dense<0.000000e+00> : vector<8x8xf32>
    %242 = tpu.matmul %240, %241, %cst_126 {dimension_numbers = #tpu.dot_dimension_numbers<[1], [1], [0], [0], [0, 0, 1, 0], [], []>} : vector<8x4xf32>, vector<8x4xf32>, vector<8x8xf32> -> vector<8x8xf32>
    %243 = vector.extract_strided_slice %233 {offsets = [0, 12], sizes = [8, 4], strides = [1, 1]} : vector<16x96xf32> to vector<8x4xf32>
    %244 = vector.extract_strided_slice %233 {offsets = [0, 44], sizes = [8, 4], strides = [1, 1]} : vector<16x96xf32> to vector<8x4xf32>
    %cst_127 = arith.constant dense<0.000000e+00> : vector<8x8xf32>
    %245 = tpu.matmul %243, %244, %cst_127 {dimension_numbers = #tpu.dot_dimension_numbers<[1], [1], [0], [0], [0, 0, 1, 0], [], []>} : vector<8x4xf32>, vector<8x4xf32>, vector<8x8xf32> -> vector<8x8xf32>
    %246 = vector.extract_strided_slice %233 {offsets = [0, 16], sizes = [8, 4], strides = [1, 1]} : vector<16x96xf32> to vector<8x4xf32>
    %247 = vector.extract_strided_slice %233 {offsets = [0, 48], sizes = [8, 4], strides = [1, 1]} : vector<16x96xf32> to vector<8x4xf32>
    %cst_128 = arith.constant dense<0.000000e+00> : vector<8x8xf32>
    %248 = tpu.matmul %246, %247, %cst_128 {dimension_numbers = #tpu.dot_dimension_numbers<[1], [1], [0], [0], [0, 0, 1, 0], [], []>} : vector<8x4xf32>, vector<8x4xf32>, vector<8x8xf32> -> vector<8x8xf32>
    %249 = vector.extract_strided_slice %233 {offsets = [0, 20], sizes = [8, 4], strides = [1, 1]} : vector<16x96xf32> to vector<8x4xf32>
    %250 = vector.extract_strided_slice %233 {offsets = [0, 52], sizes = [8, 4], strides = [1, 1]} : vector<16x96xf32> to vector<8x4xf32>
    %cst_129 = arith.constant dense<0.000000e+00> : vector<8x8xf32>
    %251 = tpu.matmul %249, %250, %cst_129 {dimension_numbers = #tpu.dot_dimension_numbers<[1], [1], [0], [0], [0, 0, 1, 0], [], []>} : vector<8x4xf32>, vector<8x4xf32>, vector<8x8xf32> -> vector<8x8xf32>
    %252 = vector.extract_strided_slice %233 {offsets = [0, 24], sizes = [8, 4], strides = [1, 1]} : vector<16x96xf32> to vector<8x4xf32>
    %253 = vector.extract_strided_slice %233 {offsets = [0, 56], sizes = [8, 4], strides = [1, 1]} : vector<16x96xf32> to vector<8x4xf32>
    %cst_130 = arith.constant dense<0.000000e+00> : vector<8x8xf32>
    %254 = tpu.matmul %252, %253, %cst_130 {dimension_numbers = #tpu.dot_dimension_numbers<[1], [1], [0], [0], [0, 0, 1, 0], [], []>} : vector<8x4xf32>, vector<8x4xf32>, vector<8x8xf32> -> vector<8x8xf32>
    %255 = vector.extract_strided_slice %233 {offsets = [0, 28], sizes = [8, 4], strides = [1, 1]} : vector<16x96xf32> to vector<8x4xf32>
    %256 = vector.extract_strided_slice %233 {offsets = [0, 60], sizes = [8, 4], strides = [1, 1]} : vector<16x96xf32> to vector<8x4xf32>
    %cst_131 = arith.constant dense<0.000000e+00> : vector<8x8xf32>
    %257 = tpu.matmul %255, %256, %cst_131 {dimension_numbers = #tpu.dot_dimension_numbers<[1], [1], [0], [0], [0, 0, 1, 0], [], []>} : vector<8x4xf32>, vector<8x4xf32>, vector<8x8xf32> -> vector<8x8xf32>
    %258 = vector.extract_strided_slice %233 {offsets = [8, 0], sizes = [8, 4], strides = [1, 1]} : vector<16x96xf32> to vector<8x4xf32>
    %259 = vector.extract_strided_slice %233 {offsets = [8, 32], sizes = [8, 4], strides = [1, 1]} : vector<16x96xf32> to vector<8x4xf32>
    %cst_132 = arith.constant dense<0.000000e+00> : vector<8x8xf32>
    %260 = tpu.matmul %258, %259, %cst_132 {dimension_numbers = #tpu.dot_dimension_numbers<[1], [1], [0], [0], [0, 0, 1, 0], [], []>} : vector<8x4xf32>, vector<8x4xf32>, vector<8x8xf32> -> vector<8x8xf32>
    %261 = vector.extract_strided_slice %233 {offsets = [8, 4], sizes = [8, 4], strides = [1, 1]} : vector<16x96xf32> to vector<8x4xf32>
    %262 = vector.extract_strided_slice %233 {offsets = [8, 36], sizes = [8, 4], strides = [1, 1]} : vector<16x96xf32> to vector<8x4xf32>
    %cst_133 = arith.constant dense<0.000000e+00> : vector<8x8xf32>
    %263 = tpu.matmul %261, %262, %cst_133 {dimension_numbers = #tpu.dot_dimension_numbers<[1], [1], [0], [0], [0, 0, 1, 0], [], []>} : vector<8x4xf32>, vector<8x4xf32>, vector<8x8xf32> -> vector<8x8xf32>
    %264 = vector.extract_strided_slice %233 {offsets = [8, 8], sizes = [8, 4], strides = [1, 1]} : vector<16x96xf32> to vector<8x4xf32>
    %265 = vector.extract_strided_slice %233 {offsets = [8, 40], sizes = [8, 4], strides = [1, 1]} : vector<16x96xf32> to vector<8x4xf32>
    %cst_134 = arith.constant dense<0.000000e+00> : vector<8x8xf32>
    %266 = tpu.matmul %264, %265, %cst_134 {dimension_numbers = #tpu.dot_dimension_numbers<[1], [1], [0], [0], [0, 0, 1, 0], [], []>} : vector<8x4xf32>, vector<8x4xf32>, vector<8x8xf32> -> vector<8x8xf32>
    %267 = vector.extract_strided_slice %233 {offsets = [8, 12], sizes = [8, 4], strides = [1, 1]} : vector<16x96xf32> to vector<8x4xf32>
    %268 = vector.extract_strided_slice %233 {offsets = [8, 44], sizes = [8, 4], strides = [1, 1]} : vector<16x96xf32> to vector<8x4xf32>
    %cst_135 = arith.constant dense<0.000000e+00> : vector<8x8xf32>
    %269 = tpu.matmul %267, %268, %cst_135 {dimension_numbers = #tpu.dot_dimension_numbers<[1], [1], [0], [0], [0, 0, 1, 0], [], []>} : vector<8x4xf32>, vector<8x4xf32>, vector<8x8xf32> -> vector<8x8xf32>
    %270 = vector.extract_strided_slice %233 {offsets = [8, 16], sizes = [8, 4], strides = [1, 1]} : vector<16x96xf32> to vector<8x4xf32>
    %271 = vector.extract_strided_slice %233 {offsets = [8, 48], sizes = [8, 4], strides = [1, 1]} : vector<16x96xf32> to vector<8x4xf32>
    %cst_136 = arith.constant dense<0.000000e+00> : vector<8x8xf32>
    %272 = tpu.matmul %270, %271, %cst_136 {dimension_numbers = #tpu.dot_dimension_numbers<[1], [1], [0], [0], [0, 0, 1, 0], [], []>} : vector<8x4xf32>, vector<8x4xf32>, vector<8x8xf32> -> vector<8x8xf32>
    %273 = vector.extract_strided_slice %233 {offsets = [8, 20], sizes = [8, 4], strides = [1, 1]} : vector<16x96xf32> to vector<8x4xf32>
    %274 = vector.extract_strided_slice %233 {offsets = [8, 52], sizes = [8, 4], strides = [1, 1]} : vector<16x96xf32> to vector<8x4xf32>
    %cst_137 = arith.constant dense<0.000000e+00> : vector<8x8xf32>
    %275 = tpu.matmul %273, %274, %cst_137 {dimension_numbers = #tpu.dot_dimension_numbers<[1], [1], [0], [0], [0, 0, 1, 0], [], []>} : vector<8x4xf32>, vector<8x4xf32>, vector<8x8xf32> -> vector<8x8xf32>
    %276 = vector.extract_strided_slice %233 {offsets = [8, 24], sizes = [8, 4], strides = [1, 1]} : vector<16x96xf32> to vector<8x4xf32>
    %277 = vector.extract_strided_slice %233 {offsets = [8, 56], sizes = [8, 4], strides = [1, 1]} : vector<16x96xf32> to vector<8x4xf32>
    %cst_138 = arith.constant dense<0.000000e+00> : vector<8x8xf32>
    %278 = tpu.matmul %276, %277, %cst_138 {dimension_numbers = #tpu.dot_dimension_numbers<[1], [1], [0], [0], [0, 0, 1, 0], [], []>} : vector<8x4xf32>, vector<8x4xf32>, vector<8x8xf32> -> vector<8x8xf32>
    %279 = vector.extract_strided_slice %233 {offsets = [8, 28], sizes = [8, 4], strides = [1, 1]} : vector<16x96xf32> to vector<8x4xf32>
    %280 = vector.extract_strided_slice %233 {offsets = [8, 60], sizes = [8, 4], strides = [1, 1]} : vector<16x96xf32> to vector<8x4xf32>
    %cst_139 = arith.constant dense<0.000000e+00> : vector<8x8xf32>
    %281 = tpu.matmul %279, %280, %cst_139 {dimension_numbers = #tpu.dot_dimension_numbers<[1], [1], [0], [0], [0, 0, 1, 0], [], []>} : vector<8x4xf32>, vector<8x4xf32>, vector<8x8xf32> -> vector<8x8xf32>
    %282 = tpu.concatenate %236, %239, %242, %245, %248, %251, %254, %257, %260, %263, %266, %269, %272, %275, %278, %281 in 0 : vector<8x8xf32>, vector<8x8xf32>, vector<8x8xf32>, vector<8x8xf32>, vector<8x8xf32>, vector<8x8xf32>, vector<8x8xf32>, vector<8x8xf32>, vector<8x8xf32>, vector<8x8xf32>, vector<8x8xf32>, vector<8x8xf32>, vector<8x8xf32>, vector<8x8xf32>, vector<8x8xf32>, vector<8x8xf32> -> vector<128x8xf32>
    %cst_140 = arith.constant 5.000000e-01 : f32
    %283 = vector.broadcast %cst_140 : f32 to vector<128x8xf32>
    %284 = arith.mulf %282, %283 : vector<128x8xf32>
    %cst_141 = arith.constant dense<0xFF800000> : vector<128xf32>
    %285 = vector.multi_reduction <maximumf>, %284, %cst_141 [1] : vector<128x8xf32> to vector<128xf32>
    %286 = vector.shape_cast %285 : vector<128xf32> to vector<128x1xf32>
    %287 = vector.broadcast %286 : vector<128x1xf32> to vector<128x8xf32>
    %288 = arith.subf %284, %287 : vector<128x8xf32>
    %289 = math.exp %288 : vector<128x8xf32>
    %cst_142 = arith.constant dense<0.000000e+00> : vector<128xf32>
    %290 = vector.multi_reduction <add>, %289, %cst_142 [1] : vector<128x8xf32> to vector<128xf32>
    %291 = vector.shape_cast %290 : vector<128xf32> to vector<128x1xf32>
    %292 = tpu.reciprocal %291 {approx = true} : vector<128x1xf32> -> vector<128x1xf32>
    %293 = vector.broadcast %292 : vector<128x1xf32> to vector<128x8xf32>
    %294 = arith.mulf %289, %293 : vector<128x8xf32>
    %295 = vector.extract_strided_slice %294 {offsets = [0, 0], sizes = [8, 8], strides = [1, 1]} : vector<128x8xf32> to vector<8x8xf32>
    %296 = vector.extract_strided_slice %233 {offsets = [0, 64], sizes = [8, 4], strides = [1, 1]} : vector<16x96xf32> to vector<8x4xf32>
    %cst_143 = arith.constant dense<0.000000e+00> : vector<8x4xf32>
    %297 = tpu.matmul %295, %296, %cst_143 {dimension_numbers = #tpu.dot_dimension_numbers<[1], [0], [0], [1], [0, 0, 1, 1], [], []>} : vector<8x8xf32>, vector<8x4xf32>, vector<8x4xf32> -> vector<8x4xf32>
    %298 = vector.extract_strided_slice %294 {offsets = [8, 0], sizes = [8, 8], strides = [1, 1]} : vector<128x8xf32> to vector<8x8xf32>
    %299 = vector.extract_strided_slice %233 {offsets = [0, 68], sizes = [8, 4], strides = [1, 1]} : vector<16x96xf32> to vector<8x4xf32>
    %cst_144 = arith.constant dense<0.000000e+00> : vector<8x4xf32>
    %300 = tpu.matmul %298, %299, %cst_144 {dimension_numbers = #tpu.dot_dimension_numbers<[1], [0], [0], [1], [0, 0, 1, 1], [], []>} : vector<8x8xf32>, vector<8x4xf32>, vector<8x4xf32> -> vector<8x4xf32>
    %301 = vector.extract_strided_slice %294 {offsets = [16, 0], sizes = [8, 8], strides = [1, 1]} : vector<128x8xf32> to vector<8x8xf32>
    %302 = vector.extract_strided_slice %233 {offsets = [0, 72], sizes = [8, 4], strides = [1, 1]} : vector<16x96xf32> to vector<8x4xf32>
    %cst_145 = arith.constant dense<0.000000e+00> : vector<8x4xf32>
    %303 = tpu.matmul %301, %302, %cst_145 {dimension_numbers = #tpu.dot_dimension_numbers<[1], [0], [0], [1], [0, 0, 1, 1], [], []>} : vector<8x8xf32>, vector<8x4xf32>, vector<8x4xf32> -> vector<8x4xf32>
    %304 = vector.extract_strided_slice %294 {offsets = [24, 0], sizes = [8, 8], strides = [1, 1]} : vector<128x8xf32> to vector<8x8xf32>
    %305 = vector.extract_strided_slice %233 {offsets = [0, 76], sizes = [8, 4], strides = [1, 1]} : vector<16x96xf32> to vector<8x4xf32>
    %cst_146 = arith.constant dense<0.000000e+00> : vector<8x4xf32>
    %306 = tpu.matmul %304, %305, %cst_146 {dimension_numbers = #tpu.dot_dimension_numbers<[1], [0], [0], [1], [0, 0, 1, 1], [], []>} : vector<8x8xf32>, vector<8x4xf32>, vector<8x4xf32> -> vector<8x4xf32>
    %307 = vector.extract_strided_slice %294 {offsets = [32, 0], sizes = [8, 8], strides = [1, 1]} : vector<128x8xf32> to vector<8x8xf32>
    %308 = vector.extract_strided_slice %233 {offsets = [0, 80], sizes = [8, 4], strides = [1, 1]} : vector<16x96xf32> to vector<8x4xf32>
    %cst_147 = arith.constant dense<0.000000e+00> : vector<8x4xf32>
    %309 = tpu.matmul %307, %308, %cst_147 {dimension_numbers = #tpu.dot_dimension_numbers<[1], [0], [0], [1], [0, 0, 1, 1], [], []>} : vector<8x8xf32>, vector<8x4xf32>, vector<8x4xf32> -> vector<8x4xf32>
    %310 = vector.extract_strided_slice %294 {offsets = [40, 0], sizes = [8, 8], strides = [1, 1]} : vector<128x8xf32> to vector<8x8xf32>
    %311 = vector.extract_strided_slice %233 {offsets = [0, 84], sizes = [8, 4], strides = [1, 1]} : vector<16x96xf32> to vector<8x4xf32>
    %cst_148 = arith.constant dense<0.000000e+00> : vector<8x4xf32>
    %312 = tpu.matmul %310, %311, %cst_148 {dimension_numbers = #tpu.dot_dimension_numbers<[1], [0], [0], [1], [0, 0, 1, 1], [], []>} : vector<8x8xf32>, vector<8x4xf32>, vector<8x4xf32> -> vector<8x4xf32>
    %313 = vector.extract_strided_slice %294 {offsets = [48, 0], sizes = [8, 8], strides = [1, 1]} : vector<128x8xf32> to vector<8x8xf32>
    %314 = vector.extract_strided_slice %233 {offsets = [0, 88], sizes = [8, 4], strides = [1, 1]} : vector<16x96xf32> to vector<8x4xf32>
    %cst_149 = arith.constant dense<0.000000e+00> : vector<8x4xf32>
    %315 = tpu.matmul %313, %314, %cst_149 {dimension_numbers = #tpu.dot_dimension_numbers<[1], [0], [0], [1], [0, 0, 1, 1], [], []>} : vector<8x8xf32>, vector<8x4xf32>, vector<8x4xf32> -> vector<8x4xf32>
    %316 = vector.extract_strided_slice %294 {offsets = [56, 0], sizes = [8, 8], strides = [1, 1]} : vector<128x8xf32> to vector<8x8xf32>
    %317 = vector.extract_strided_slice %233 {offsets = [0, 92], sizes = [8, 4], strides = [1, 1]} : vector<16x96xf32> to vector<8x4xf32>
    %cst_150 = arith.constant dense<0.000000e+00> : vector<8x4xf32>
    %318 = tpu.matmul %316, %317, %cst_150 {dimension_numbers = #tpu.dot_dimension_numbers<[1], [0], [0], [1], [0, 0, 1, 1], [], []>} : vector<8x8xf32>, vector<8x4xf32>, vector<8x4xf32> -> vector<8x4xf32>
    %319 = tpu.concatenate %297, %300, %303, %306, %309, %312, %315, %318 in 1 : vector<8x4xf32>, vector<8x4xf32>, vector<8x4xf32>, vector<8x4xf32>, vector<8x4xf32>, vector<8x4xf32>, vector<8x4xf32>, vector<8x4xf32> -> vector<8x32xf32>
    %320 = vector.extract_strided_slice %294 {offsets = [64, 0], sizes = [8, 8], strides = [1, 1]} : vector<128x8xf32> to vector<8x8xf32>
    %321 = vector.extract_strided_slice %233 {offsets = [8, 64], sizes = [8, 4], strides = [1, 1]} : vector<16x96xf32> to vector<8x4xf32>
    %cst_151 = arith.constant dense<0.000000e+00> : vector<8x4xf32>
    %322 = tpu.matmul %320, %321, %cst_151 {dimension_numbers = #tpu.dot_dimension_numbers<[1], [0], [0], [1], [0, 0, 1, 1], [], []>} : vector<8x8xf32>, vector<8x4xf32>, vector<8x4xf32> -> vector<8x4xf32>
    %323 = vector.extract_strided_slice %294 {offsets = [72, 0], sizes = [8, 8], strides = [1, 1]} : vector<128x8xf32> to vector<8x8xf32>
    %324 = vector.extract_strided_slice %233 {offsets = [8, 68], sizes = [8, 4], strides = [1, 1]} : vector<16x96xf32> to vector<8x4xf32>
    %cst_152 = arith.constant dense<0.000000e+00> : vector<8x4xf32>
    %325 = tpu.matmul %323, %324, %cst_152 {dimension_numbers = #tpu.dot_dimension_numbers<[1], [0], [0], [1], [0, 0, 1, 1], [], []>} : vector<8x8xf32>, vector<8x4xf32>, vector<8x4xf32> -> vector<8x4xf32>
    %326 = vector.extract_strided_slice %294 {offsets = [80, 0], sizes = [8, 8], strides = [1, 1]} : vector<128x8xf32> to vector<8x8xf32>
    %327 = vector.extract_strided_slice %233 {offsets = [8, 72], sizes = [8, 4], strides = [1, 1]} : vector<16x96xf32> to vector<8x4xf32>
    %cst_153 = arith.constant dense<0.000000e+00> : vector<8x4xf32>
    %328 = tpu.matmul %326, %327, %cst_153 {dimension_numbers = #tpu.dot_dimension_numbers<[1], [0], [0], [1], [0, 0, 1, 1], [], []>} : vector<8x8xf32>, vector<8x4xf32>, vector<8x4xf32> -> vector<8x4xf32>
    %329 = vector.extract_strided_slice %294 {offsets = [88, 0], sizes = [8, 8], strides = [1, 1]} : vector<128x8xf32> to vector<8x8xf32>
    %330 = vector.extract_strided_slice %233 {offsets = [8, 76], sizes = [8, 4], strides = [1, 1]} : vector<16x96xf32> to vector<8x4xf32>
    %cst_154 = arith.constant dense<0.000000e+00> : vector<8x4xf32>
    %331 = tpu.matmul %329, %330, %cst_154 {dimension_numbers = #tpu.dot_dimension_numbers<[1], [0], [0], [1], [0, 0, 1, 1], [], []>} : vector<8x8xf32>, vector<8x4xf32>, vector<8x4xf32> -> vector<8x4xf32>
    %332 = vector.extract_strided_slice %294 {offsets = [96, 0], sizes = [8, 8], strides = [1, 1]} : vector<128x8xf32> to vector<8x8xf32>
    %333 = vector.extract_strided_slice %233 {offsets = [8, 80], sizes = [8, 4], strides = [1, 1]} : vector<16x96xf32> to vector<8x4xf32>
    %cst_155 = arith.constant dense<0.000000e+00> : vector<8x4xf32>
    %334 = tpu.matmul %332, %333, %cst_155 {dimension_numbers = #tpu.dot_dimension_numbers<[1], [0], [0], [1], [0, 0, 1, 1], [], []>} : vector<8x8xf32>, vector<8x4xf32>, vector<8x4xf32> -> vector<8x4xf32>
    %335 = vector.extract_strided_slice %294 {offsets = [104, 0], sizes = [8, 8], strides = [1, 1]} : vector<128x8xf32> to vector<8x8xf32>
    %336 = vector.extract_strided_slice %233 {offsets = [8, 84], sizes = [8, 4], strides = [1, 1]} : vector<16x96xf32> to vector<8x4xf32>
    %cst_156 = arith.constant dense<0.000000e+00> : vector<8x4xf32>
    %337 = tpu.matmul %335, %336, %cst_156 {dimension_numbers = #tpu.dot_dimension_numbers<[1], [0], [0], [1], [0, 0, 1, 1], [], []>} : vector<8x8xf32>, vector<8x4xf32>, vector<8x4xf32> -> vector<8x4xf32>
    %338 = vector.extract_strided_slice %294 {offsets = [112, 0], sizes = [8, 8], strides = [1, 1]} : vector<128x8xf32> to vector<8x8xf32>
    %339 = vector.extract_strided_slice %233 {offsets = [8, 88], sizes = [8, 4], strides = [1, 1]} : vector<16x96xf32> to vector<8x4xf32>
    %cst_157 = arith.constant dense<0.000000e+00> : vector<8x4xf32>
    %340 = tpu.matmul %338, %339, %cst_157 {dimension_numbers = #tpu.dot_dimension_numbers<[1], [0], [0], [1], [0, 0, 1, 1], [], []>} : vector<8x8xf32>, vector<8x4xf32>, vector<8x4xf32> -> vector<8x4xf32>
    %341 = vector.extract_strided_slice %294 {offsets = [120, 0], sizes = [8, 8], strides = [1, 1]} : vector<128x8xf32> to vector<8x8xf32>
    %342 = vector.extract_strided_slice %233 {offsets = [8, 92], sizes = [8, 4], strides = [1, 1]} : vector<16x96xf32> to vector<8x4xf32>
    %cst_158 = arith.constant dense<0.000000e+00> : vector<8x4xf32>
    %343 = tpu.matmul %341, %342, %cst_158 {dimension_numbers = #tpu.dot_dimension_numbers<[1], [0], [0], [1], [0, 0, 1, 1], [], []>} : vector<8x8xf32>, vector<8x4xf32>, vector<8x4xf32> -> vector<8x4xf32>
    %344 = tpu.concatenate %322, %325, %328, %331, %334, %337, %340, %343 in 1 : vector<8x4xf32>, vector<8x4xf32>, vector<8x4xf32>, vector<8x4xf32>, vector<8x4xf32>, vector<8x4xf32>, vector<8x4xf32>, vector<8x4xf32> -> vector<8x32xf32>
    %345 = tpu.concatenate %319, %344 in 0 : vector<8x32xf32>, vector<8x32xf32> -> vector<16x32xf32>
    %cst_159 = arith.constant dense<0.000000e+00> : vector<16x32xf32>
    %346 = tpu.matmul %345, %210, %cst_159 {dimension_numbers = #tpu.dot_dimension_numbers<[1], [0], [0], [1], [0, 0, 1, 1], [], []>} : vector<16x32xf32>, vector<32x32xf32>, vector<16x32xf32> -> vector<16x32xf32>
    %347 = vector.broadcast %218 : vector<1x32xf32> to vector<16x32xf32>
    %348 = arith.addf %346, %347 : vector<16x32xf32>
    %349 = arith.addf %206, %348 : vector<16x32xf32>
    %cst_160 = arith.constant dense<0.000000e+00> : vector<16xf32>
    %350 = vector.multi_reduction <add>, %349, %cst_160 [1] : vector<16x32xf32> to vector<16xf32>
    %351 = vector.shape_cast %350 : vector<16xf32> to vector<16x1xf32>
    %cst_161 = arith.constant 3.200000e+01 : f32
    %352 = vector.broadcast %cst_161 : f32 to vector<16x1xf32>
    %353 = arith.divf %351, %352 : vector<16x1xf32>
    %354 = vector.broadcast %353 : vector<16x1xf32> to vector<16x32xf32>
    %355 = arith.subf %349, %354 : vector<16x32xf32>
    %356 = arith.mulf %355, %355 : vector<16x32xf32>
    %cst_162 = arith.constant dense<0.000000e+00> : vector<16xf32>
    %357 = vector.multi_reduction <add>, %356, %cst_162 [1] : vector<16x32xf32> to vector<16xf32>
    %358 = vector.shape_cast %357 : vector<16xf32> to vector<16x1xf32>
    %cst_163 = arith.constant 3.200000e+01 : f32
    %359 = vector.broadcast %cst_163 : f32 to vector<16x1xf32>
    %360 = arith.divf %358, %359 : vector<16x1xf32>
    %cst_164 = arith.constant 9.99999974E-6 : f32
    %361 = vector.broadcast %cst_164 : f32 to vector<16x1xf32>
    %362 = arith.addf %360, %361 : vector<16x1xf32>
    %363 = math.rsqrt %362 : vector<16x1xf32>
    %364 = vector.broadcast %363 : vector<16x1xf32> to vector<16x32xf32>
    %365 = arith.mulf %355, %364 : vector<16x32xf32>
    %366 = vector.broadcast %220 : vector<1x32xf32> to vector<16x32xf32>
    %367 = arith.mulf %365, %366 : vector<16x32xf32>
    %368 = vector.broadcast %222 : vector<1x32xf32> to vector<16x32xf32>
    %369 = arith.addf %367, %368 : vector<16x32xf32>
    %cst_165 = arith.constant dense<0.000000e+00> : vector<16x64xf32>
    %370 = tpu.matmul %369, %212, %cst_165 {dimension_numbers = #tpu.dot_dimension_numbers<[1], [0], [0], [1], [0, 0, 1, 1], [], []>} : vector<16x32xf32>, vector<32x64xf32>, vector<16x64xf32> -> vector<16x64xf32>
    %371 = vector.broadcast %228 : vector<1x64xf32> to vector<16x64xf32>
    %372 = arith.addf %370, %371 : vector<16x64xf32>
    %cst_166 = arith.constant 0.000000e+00 : f32
    %373 = vector.broadcast %cst_166 : f32 to vector<16x64xf32>
    %374 = arith.maximumf %372, %373 : vector<16x64xf32>
    %cst_167 = arith.constant dense<0.000000e+00> : vector<16x32xf32>
    %375 = tpu.matmul %374, %214, %cst_167 {dimension_numbers = #tpu.dot_dimension_numbers<[1], [0], [0], [1], [0, 0, 1, 1], [], []>} : vector<16x64xf32>, vector<64x32xf32>, vector<16x32xf32> -> vector<16x32xf32>
    %376 = vector.broadcast %230 : vector<1x32xf32> to vector<16x32xf32>
    %377 = arith.addf %375, %376 : vector<16x32xf32>
    %378 = arith.addf %369, %377 : vector<16x32xf32>
    %cst_168 = arith.constant dense<0.000000e+00> : vector<16xf32>
    %379 = vector.multi_reduction <add>, %378, %cst_168 [1] : vector<16x32xf32> to vector<16xf32>
    %380 = vector.shape_cast %379 : vector<16xf32> to vector<16x1xf32>
    %cst_169 = arith.constant 3.200000e+01 : f32
    %381 = vector.broadcast %cst_169 : f32 to vector<16x1xf32>
    %382 = arith.divf %380, %381 : vector<16x1xf32>
    %383 = vector.broadcast %382 : vector<16x1xf32> to vector<16x32xf32>
    %384 = arith.subf %378, %383 : vector<16x32xf32>
    %385 = arith.mulf %384, %384 : vector<16x32xf32>
    %cst_170 = arith.constant dense<0.000000e+00> : vector<16xf32>
    %386 = vector.multi_reduction <add>, %385, %cst_170 [1] : vector<16x32xf32> to vector<16xf32>
    %387 = vector.shape_cast %386 : vector<16xf32> to vector<16x1xf32>
    %cst_171 = arith.constant 3.200000e+01 : f32
    %388 = vector.broadcast %cst_171 : f32 to vector<16x1xf32>
    %389 = arith.divf %387, %388 : vector<16x1xf32>
    %cst_172 = arith.constant 9.99999974E-6 : f32
    %390 = vector.broadcast %cst_172 : f32 to vector<16x1xf32>
    %391 = arith.addf %389, %390 : vector<16x1xf32>
    %392 = math.rsqrt %391 : vector<16x1xf32>
    %393 = vector.broadcast %392 : vector<16x1xf32> to vector<16x32xf32>
    %394 = arith.mulf %384, %393 : vector<16x32xf32>
    %395 = vector.broadcast %224 : vector<1x32xf32> to vector<16x32xf32>
    %396 = arith.mulf %394, %395 : vector<16x32xf32>
    %397 = vector.broadcast %226 : vector<1x32xf32> to vector<16x32xf32>
    %398 = arith.addf %396, %397 : vector<16x32xf32>
    %c2_173 = arith.constant 2 : index
    %c0_174 = arith.constant 0 : index
    %c0_175 = arith.constant 0 : index
    %399 = vector.load %arg2[%c2_173, %c0_174, %c0_175] : memref<3x160x96xf32, #tpu.memory_space<vmem>>, vector<1x32x96xf32>
    %400 = vector.shape_cast %399 : vector<1x32x96xf32> to vector<32x96xf32>
    %c2_176 = arith.constant 2 : index
    %c32_177 = arith.constant 32 : index
    %c0_178 = arith.constant 0 : index
    %401 = vector.load %arg2[%c2_176, %c32_177, %c0_178] : memref<3x160x96xf32, #tpu.memory_space<vmem>>, vector<1x32x32xf32>
    %402 = vector.shape_cast %401 : vector<1x32x32xf32> to vector<32x32xf32>
    %c2_179 = arith.constant 2 : index
    %c64_180 = arith.constant 64 : index
    %c0_181 = arith.constant 0 : index
    %403 = vector.load %arg2[%c2_179, %c64_180, %c0_181] : memref<3x160x96xf32, #tpu.memory_space<vmem>>, vector<1x32x64xf32>
    %404 = vector.shape_cast %403 : vector<1x32x64xf32> to vector<32x64xf32>
    %c2_182 = arith.constant 2 : index
    %c96_183 = arith.constant 96 : index
    %c0_184 = arith.constant 0 : index
    %405 = vector.load %arg2[%c2_182, %c96_183, %c0_184] : memref<3x160x96xf32, #tpu.memory_space<vmem>>, vector<1x64x32xf32>
    %406 = vector.shape_cast %405 : vector<1x64x32xf32> to vector<64x32xf32>
    %c2_185 = arith.constant 2 : index
    %c0_186 = arith.constant 0 : index
    %c0_187 = arith.constant 0 : index
    %407 = vector.load %arg3[%c2_185, %c0_186, %c0_187] : memref<3x8x96xf32, #tpu.memory_space<vmem>>, vector<1x1x96xf32>
    %408 = vector.shape_cast %407 : vector<1x1x96xf32> to vector<1x96xf32>
    %c2_188 = arith.constant 2 : index
    %c1_189 = arith.constant 1 : index
    %c0_190 = arith.constant 0 : index
    %409 = vector.load %arg3[%c2_188, %c1_189, %c0_190] : memref<3x8x96xf32, #tpu.memory_space<vmem>>, vector<1x1x32xf32>
    %410 = vector.shape_cast %409 : vector<1x1x32xf32> to vector<1x32xf32>
    %c2_191 = arith.constant 2 : index
    %c2_192 = arith.constant 2 : index
    %c0_193 = arith.constant 0 : index
    %411 = vector.load %arg3[%c2_191, %c2_192, %c0_193] : memref<3x8x96xf32, #tpu.memory_space<vmem>>, vector<1x1x32xf32>
    %412 = vector.shape_cast %411 : vector<1x1x32xf32> to vector<1x32xf32>
    %c2_194 = arith.constant 2 : index
    %c3_195 = arith.constant 3 : index
    %c0_196 = arith.constant 0 : index
    %413 = vector.load %arg3[%c2_194, %c3_195, %c0_196] : memref<3x8x96xf32, #tpu.memory_space<vmem>>, vector<1x1x32xf32>
    %414 = vector.shape_cast %413 : vector<1x1x32xf32> to vector<1x32xf32>
    %c2_197 = arith.constant 2 : index
    %c4_198 = arith.constant 4 : index
    %c0_199 = arith.constant 0 : index
    %415 = vector.load %arg3[%c2_197, %c4_198, %c0_199] : memref<3x8x96xf32, #tpu.memory_space<vmem>>, vector<1x1x32xf32>
    %416 = vector.shape_cast %415 : vector<1x1x32xf32> to vector<1x32xf32>
    %c2_200 = arith.constant 2 : index
    %c5_201 = arith.constant 5 : index
    %c0_202 = arith.constant 0 : index
    %417 = vector.load %arg3[%c2_200, %c5_201, %c0_202] : memref<3x8x96xf32, #tpu.memory_space<vmem>>, vector<1x1x32xf32>
    %418 = vector.shape_cast %417 : vector<1x1x32xf32> to vector<1x32xf32>
    %c2_203 = arith.constant 2 : index
    %c6_204 = arith.constant 6 : index
    %c0_205 = arith.constant 0 : index
    %419 = vector.load %arg3[%c2_203, %c6_204, %c0_205] : memref<3x8x96xf32, #tpu.memory_space<vmem>>, vector<1x1x64xf32>
    %420 = vector.shape_cast %419 : vector<1x1x64xf32> to vector<1x64xf32>
    %c2_206 = arith.constant 2 : index
    %c7_207 = arith.constant 7 : index
    %c0_208 = arith.constant 0 : index
    %421 = vector.load %arg3[%c2_206, %c7_207, %c0_208] : memref<3x8x96xf32, #tpu.memory_space<vmem>>, vector<1x1x32xf32>
    %422 = vector.shape_cast %421 : vector<1x1x32xf32> to vector<1x32xf32>
    %cst_209 = arith.constant dense<0.000000e+00> : vector<16x96xf32>
    %423 = tpu.matmul %398, %400, %cst_209 {dimension_numbers = #tpu.dot_dimension_numbers<[1], [0], [0], [1], [0, 0, 1, 1], [], []>} : vector<16x32xf32>, vector<32x96xf32>, vector<16x96xf32> -> vector<16x96xf32>
    %424 = vector.broadcast %408 : vector<1x96xf32> to vector<16x96xf32>
    %425 = arith.addf %423, %424 : vector<16x96xf32>
    %426 = vector.extract_strided_slice %425 {offsets = [0, 0], sizes = [8, 4], strides = [1, 1]} : vector<16x96xf32> to vector<8x4xf32>
    %427 = vector.extract_strided_slice %425 {offsets = [0, 32], sizes = [8, 4], strides = [1, 1]} : vector<16x96xf32> to vector<8x4xf32>
    %cst_210 = arith.constant dense<0.000000e+00> : vector<8x8xf32>
    %428 = tpu.matmul %426, %427, %cst_210 {dimension_numbers = #tpu.dot_dimension_numbers<[1], [1], [0], [0], [0, 0, 1, 0], [], []>} : vector<8x4xf32>, vector<8x4xf32>, vector<8x8xf32> -> vector<8x8xf32>
    %429 = vector.extract_strided_slice %425 {offsets = [0, 4], sizes = [8, 4], strides = [1, 1]} : vector<16x96xf32> to vector<8x4xf32>
    %430 = vector.extract_strided_slice %425 {offsets = [0, 36], sizes = [8, 4], strides = [1, 1]} : vector<16x96xf32> to vector<8x4xf32>
    %cst_211 = arith.constant dense<0.000000e+00> : vector<8x8xf32>
    %431 = tpu.matmul %429, %430, %cst_211 {dimension_numbers = #tpu.dot_dimension_numbers<[1], [1], [0], [0], [0, 0, 1, 0], [], []>} : vector<8x4xf32>, vector<8x4xf32>, vector<8x8xf32> -> vector<8x8xf32>
    %432 = vector.extract_strided_slice %425 {offsets = [0, 8], sizes = [8, 4], strides = [1, 1]} : vector<16x96xf32> to vector<8x4xf32>
    %433 = vector.extract_strided_slice %425 {offsets = [0, 40], sizes = [8, 4], strides = [1, 1]} : vector<16x96xf32> to vector<8x4xf32>
    %cst_212 = arith.constant dense<0.000000e+00> : vector<8x8xf32>
    %434 = tpu.matmul %432, %433, %cst_212 {dimension_numbers = #tpu.dot_dimension_numbers<[1], [1], [0], [0], [0, 0, 1, 0], [], []>} : vector<8x4xf32>, vector<8x4xf32>, vector<8x8xf32> -> vector<8x8xf32>
    %435 = vector.extract_strided_slice %425 {offsets = [0, 12], sizes = [8, 4], strides = [1, 1]} : vector<16x96xf32> to vector<8x4xf32>
    %436 = vector.extract_strided_slice %425 {offsets = [0, 44], sizes = [8, 4], strides = [1, 1]} : vector<16x96xf32> to vector<8x4xf32>
    %cst_213 = arith.constant dense<0.000000e+00> : vector<8x8xf32>
    %437 = tpu.matmul %435, %436, %cst_213 {dimension_numbers = #tpu.dot_dimension_numbers<[1], [1], [0], [0], [0, 0, 1, 0], [], []>} : vector<8x4xf32>, vector<8x4xf32>, vector<8x8xf32> -> vector<8x8xf32>
    %438 = vector.extract_strided_slice %425 {offsets = [0, 16], sizes = [8, 4], strides = [1, 1]} : vector<16x96xf32> to vector<8x4xf32>
    %439 = vector.extract_strided_slice %425 {offsets = [0, 48], sizes = [8, 4], strides = [1, 1]} : vector<16x96xf32> to vector<8x4xf32>
    %cst_214 = arith.constant dense<0.000000e+00> : vector<8x8xf32>
    %440 = tpu.matmul %438, %439, %cst_214 {dimension_numbers = #tpu.dot_dimension_numbers<[1], [1], [0], [0], [0, 0, 1, 0], [], []>} : vector<8x4xf32>, vector<8x4xf32>, vector<8x8xf32> -> vector<8x8xf32>
    %441 = vector.extract_strided_slice %425 {offsets = [0, 20], sizes = [8, 4], strides = [1, 1]} : vector<16x96xf32> to vector<8x4xf32>
    %442 = vector.extract_strided_slice %425 {offsets = [0, 52], sizes = [8, 4], strides = [1, 1]} : vector<16x96xf32> to vector<8x4xf32>
    %cst_215 = arith.constant dense<0.000000e+00> : vector<8x8xf32>
    %443 = tpu.matmul %441, %442, %cst_215 {dimension_numbers = #tpu.dot_dimension_numbers<[1], [1], [0], [0], [0, 0, 1, 0], [], []>} : vector<8x4xf32>, vector<8x4xf32>, vector<8x8xf32> -> vector<8x8xf32>
    %444 = vector.extract_strided_slice %425 {offsets = [0, 24], sizes = [8, 4], strides = [1, 1]} : vector<16x96xf32> to vector<8x4xf32>
    %445 = vector.extract_strided_slice %425 {offsets = [0, 56], sizes = [8, 4], strides = [1, 1]} : vector<16x96xf32> to vector<8x4xf32>
    %cst_216 = arith.constant dense<0.000000e+00> : vector<8x8xf32>
    %446 = tpu.matmul %444, %445, %cst_216 {dimension_numbers = #tpu.dot_dimension_numbers<[1], [1], [0], [0], [0, 0, 1, 0], [], []>} : vector<8x4xf32>, vector<8x4xf32>, vector<8x8xf32> -> vector<8x8xf32>
    %447 = vector.extract_strided_slice %425 {offsets = [0, 28], sizes = [8, 4], strides = [1, 1]} : vector<16x96xf32> to vector<8x4xf32>
    %448 = vector.extract_strided_slice %425 {offsets = [0, 60], sizes = [8, 4], strides = [1, 1]} : vector<16x96xf32> to vector<8x4xf32>
    %cst_217 = arith.constant dense<0.000000e+00> : vector<8x8xf32>
    %449 = tpu.matmul %447, %448, %cst_217 {dimension_numbers = #tpu.dot_dimension_numbers<[1], [1], [0], [0], [0, 0, 1, 0], [], []>} : vector<8x4xf32>, vector<8x4xf32>, vector<8x8xf32> -> vector<8x8xf32>
    %450 = vector.extract_strided_slice %425 {offsets = [8, 0], sizes = [8, 4], strides = [1, 1]} : vector<16x96xf32> to vector<8x4xf32>
    %451 = vector.extract_strided_slice %425 {offsets = [8, 32], sizes = [8, 4], strides = [1, 1]} : vector<16x96xf32> to vector<8x4xf32>
    %cst_218 = arith.constant dense<0.000000e+00> : vector<8x8xf32>
    %452 = tpu.matmul %450, %451, %cst_218 {dimension_numbers = #tpu.dot_dimension_numbers<[1], [1], [0], [0], [0, 0, 1, 0], [], []>} : vector<8x4xf32>, vector<8x4xf32>, vector<8x8xf32> -> vector<8x8xf32>
    %453 = vector.extract_strided_slice %425 {offsets = [8, 4], sizes = [8, 4], strides = [1, 1]} : vector<16x96xf32> to vector<8x4xf32>
    %454 = vector.extract_strided_slice %425 {offsets = [8, 36], sizes = [8, 4], strides = [1, 1]} : vector<16x96xf32> to vector<8x4xf32>
    %cst_219 = arith.constant dense<0.000000e+00> : vector<8x8xf32>
    %455 = tpu.matmul %453, %454, %cst_219 {dimension_numbers = #tpu.dot_dimension_numbers<[1], [1], [0], [0], [0, 0, 1, 0], [], []>} : vector<8x4xf32>, vector<8x4xf32>, vector<8x8xf32> -> vector<8x8xf32>
    %456 = vector.extract_strided_slice %425 {offsets = [8, 8], sizes = [8, 4], strides = [1, 1]} : vector<16x96xf32> to vector<8x4xf32>
    %457 = vector.extract_strided_slice %425 {offsets = [8, 40], sizes = [8, 4], strides = [1, 1]} : vector<16x96xf32> to vector<8x4xf32>
    %cst_220 = arith.constant dense<0.000000e+00> : vector<8x8xf32>
    %458 = tpu.matmul %456, %457, %cst_220 {dimension_numbers = #tpu.dot_dimension_numbers<[1], [1], [0], [0], [0, 0, 1, 0], [], []>} : vector<8x4xf32>, vector<8x4xf32>, vector<8x8xf32> -> vector<8x8xf32>
    %459 = vector.extract_strided_slice %425 {offsets = [8, 12], sizes = [8, 4], strides = [1, 1]} : vector<16x96xf32> to vector<8x4xf32>
    %460 = vector.extract_strided_slice %425 {offsets = [8, 44], sizes = [8, 4], strides = [1, 1]} : vector<16x96xf32> to vector<8x4xf32>
    %cst_221 = arith.constant dense<0.000000e+00> : vector<8x8xf32>
    %461 = tpu.matmul %459, %460, %cst_221 {dimension_numbers = #tpu.dot_dimension_numbers<[1], [1], [0], [0], [0, 0, 1, 0], [], []>} : vector<8x4xf32>, vector<8x4xf32>, vector<8x8xf32> -> vector<8x8xf32>
    %462 = vector.extract_strided_slice %425 {offsets = [8, 16], sizes = [8, 4], strides = [1, 1]} : vector<16x96xf32> to vector<8x4xf32>
    %463 = vector.extract_strided_slice %425 {offsets = [8, 48], sizes = [8, 4], strides = [1, 1]} : vector<16x96xf32> to vector<8x4xf32>
    %cst_222 = arith.constant dense<0.000000e+00> : vector<8x8xf32>
    %464 = tpu.matmul %462, %463, %cst_222 {dimension_numbers = #tpu.dot_dimension_numbers<[1], [1], [0], [0], [0, 0, 1, 0], [], []>} : vector<8x4xf32>, vector<8x4xf32>, vector<8x8xf32> -> vector<8x8xf32>
    %465 = vector.extract_strided_slice %425 {offsets = [8, 20], sizes = [8, 4], strides = [1, 1]} : vector<16x96xf32> to vector<8x4xf32>
    %466 = vector.extract_strided_slice %425 {offsets = [8, 52], sizes = [8, 4], strides = [1, 1]} : vector<16x96xf32> to vector<8x4xf32>
    %cst_223 = arith.constant dense<0.000000e+00> : vector<8x8xf32>
    %467 = tpu.matmul %465, %466, %cst_223 {dimension_numbers = #tpu.dot_dimension_numbers<[1], [1], [0], [0], [0, 0, 1, 0], [], []>} : vector<8x4xf32>, vector<8x4xf32>, vector<8x8xf32> -> vector<8x8xf32>
    %468 = vector.extract_strided_slice %425 {offsets = [8, 24], sizes = [8, 4], strides = [1, 1]} : vector<16x96xf32> to vector<8x4xf32>
    %469 = vector.extract_strided_slice %425 {offsets = [8, 56], sizes = [8, 4], strides = [1, 1]} : vector<16x96xf32> to vector<8x4xf32>
    %cst_224 = arith.constant dense<0.000000e+00> : vector<8x8xf32>
    %470 = tpu.matmul %468, %469, %cst_224 {dimension_numbers = #tpu.dot_dimension_numbers<[1], [1], [0], [0], [0, 0, 1, 0], [], []>} : vector<8x4xf32>, vector<8x4xf32>, vector<8x8xf32> -> vector<8x8xf32>
    %471 = vector.extract_strided_slice %425 {offsets = [8, 28], sizes = [8, 4], strides = [1, 1]} : vector<16x96xf32> to vector<8x4xf32>
    %472 = vector.extract_strided_slice %425 {offsets = [8, 60], sizes = [8, 4], strides = [1, 1]} : vector<16x96xf32> to vector<8x4xf32>
    %cst_225 = arith.constant dense<0.000000e+00> : vector<8x8xf32>
    %473 = tpu.matmul %471, %472, %cst_225 {dimension_numbers = #tpu.dot_dimension_numbers<[1], [1], [0], [0], [0, 0, 1, 0], [], []>} : vector<8x4xf32>, vector<8x4xf32>, vector<8x8xf32> -> vector<8x8xf32>
    %474 = tpu.concatenate %428, %431, %434, %437, %440, %443, %446, %449, %452, %455, %458, %461, %464, %467, %470, %473 in 0 : vector<8x8xf32>, vector<8x8xf32>, vector<8x8xf32>, vector<8x8xf32>, vector<8x8xf32>, vector<8x8xf32>, vector<8x8xf32>, vector<8x8xf32>, vector<8x8xf32>, vector<8x8xf32>, vector<8x8xf32>, vector<8x8xf32>, vector<8x8xf32>, vector<8x8xf32>, vector<8x8xf32>, vector<8x8xf32> -> vector<128x8xf32>
    %cst_226 = arith.constant 5.000000e-01 : f32
    %475 = vector.broadcast %cst_226 : f32 to vector<128x8xf32>
    %476 = arith.mulf %474, %475 : vector<128x8xf32>
    %cst_227 = arith.constant dense<0xFF800000> : vector<128xf32>
    %477 = vector.multi_reduction <maximumf>, %476, %cst_227 [1] : vector<128x8xf32> to vector<128xf32>
    %478 = vector.shape_cast %477 : vector<128xf32> to vector<128x1xf32>
    %479 = vector.broadcast %478 : vector<128x1xf32> to vector<128x8xf32>
    %480 = arith.subf %476, %479 : vector<128x8xf32>
    %481 = math.exp %480 : vector<128x8xf32>
    %cst_228 = arith.constant dense<0.000000e+00> : vector<128xf32>
    %482 = vector.multi_reduction <add>, %481, %cst_228 [1] : vector<128x8xf32> to vector<128xf32>
    %483 = vector.shape_cast %482 : vector<128xf32> to vector<128x1xf32>
    %484 = tpu.reciprocal %483 {approx = true} : vector<128x1xf32> -> vector<128x1xf32>
    %485 = vector.broadcast %484 : vector<128x1xf32> to vector<128x8xf32>
    %486 = arith.mulf %481, %485 : vector<128x8xf32>
    %487 = vector.extract_strided_slice %486 {offsets = [0, 0], sizes = [8, 8], strides = [1, 1]} : vector<128x8xf32> to vector<8x8xf32>
    %488 = vector.extract_strided_slice %425 {offsets = [0, 64], sizes = [8, 4], strides = [1, 1]} : vector<16x96xf32> to vector<8x4xf32>
    %cst_229 = arith.constant dense<0.000000e+00> : vector<8x4xf32>
    %489 = tpu.matmul %487, %488, %cst_229 {dimension_numbers = #tpu.dot_dimension_numbers<[1], [0], [0], [1], [0, 0, 1, 1], [], []>} : vector<8x8xf32>, vector<8x4xf32>, vector<8x4xf32> -> vector<8x4xf32>
    %490 = vector.extract_strided_slice %486 {offsets = [8, 0], sizes = [8, 8], strides = [1, 1]} : vector<128x8xf32> to vector<8x8xf32>
    %491 = vector.extract_strided_slice %425 {offsets = [0, 68], sizes = [8, 4], strides = [1, 1]} : vector<16x96xf32> to vector<8x4xf32>
    %cst_230 = arith.constant dense<0.000000e+00> : vector<8x4xf32>
    %492 = tpu.matmul %490, %491, %cst_230 {dimension_numbers = #tpu.dot_dimension_numbers<[1], [0], [0], [1], [0, 0, 1, 1], [], []>} : vector<8x8xf32>, vector<8x4xf32>, vector<8x4xf32> -> vector<8x4xf32>
    %493 = vector.extract_strided_slice %486 {offsets = [16, 0], sizes = [8, 8], strides = [1, 1]} : vector<128x8xf32> to vector<8x8xf32>
    %494 = vector.extract_strided_slice %425 {offsets = [0, 72], sizes = [8, 4], strides = [1, 1]} : vector<16x96xf32> to vector<8x4xf32>
    %cst_231 = arith.constant dense<0.000000e+00> : vector<8x4xf32>
    %495 = tpu.matmul %493, %494, %cst_231 {dimension_numbers = #tpu.dot_dimension_numbers<[1], [0], [0], [1], [0, 0, 1, 1], [], []>} : vector<8x8xf32>, vector<8x4xf32>, vector<8x4xf32> -> vector<8x4xf32>
    %496 = vector.extract_strided_slice %486 {offsets = [24, 0], sizes = [8, 8], strides = [1, 1]} : vector<128x8xf32> to vector<8x8xf32>
    %497 = vector.extract_strided_slice %425 {offsets = [0, 76], sizes = [8, 4], strides = [1, 1]} : vector<16x96xf32> to vector<8x4xf32>
    %cst_232 = arith.constant dense<0.000000e+00> : vector<8x4xf32>
    %498 = tpu.matmul %496, %497, %cst_232 {dimension_numbers = #tpu.dot_dimension_numbers<[1], [0], [0], [1], [0, 0, 1, 1], [], []>} : vector<8x8xf32>, vector<8x4xf32>, vector<8x4xf32> -> vector<8x4xf32>
    %499 = vector.extract_strided_slice %486 {offsets = [32, 0], sizes = [8, 8], strides = [1, 1]} : vector<128x8xf32> to vector<8x8xf32>
    %500 = vector.extract_strided_slice %425 {offsets = [0, 80], sizes = [8, 4], strides = [1, 1]} : vector<16x96xf32> to vector<8x4xf32>
    %cst_233 = arith.constant dense<0.000000e+00> : vector<8x4xf32>
    %501 = tpu.matmul %499, %500, %cst_233 {dimension_numbers = #tpu.dot_dimension_numbers<[1], [0], [0], [1], [0, 0, 1, 1], [], []>} : vector<8x8xf32>, vector<8x4xf32>, vector<8x4xf32> -> vector<8x4xf32>
    %502 = vector.extract_strided_slice %486 {offsets = [40, 0], sizes = [8, 8], strides = [1, 1]} : vector<128x8xf32> to vector<8x8xf32>
    %503 = vector.extract_strided_slice %425 {offsets = [0, 84], sizes = [8, 4], strides = [1, 1]} : vector<16x96xf32> to vector<8x4xf32>
    %cst_234 = arith.constant dense<0.000000e+00> : vector<8x4xf32>
    %504 = tpu.matmul %502, %503, %cst_234 {dimension_numbers = #tpu.dot_dimension_numbers<[1], [0], [0], [1], [0, 0, 1, 1], [], []>} : vector<8x8xf32>, vector<8x4xf32>, vector<8x4xf32> -> vector<8x4xf32>
    %505 = vector.extract_strided_slice %486 {offsets = [48, 0], sizes = [8, 8], strides = [1, 1]} : vector<128x8xf32> to vector<8x8xf32>
    %506 = vector.extract_strided_slice %425 {offsets = [0, 88], sizes = [8, 4], strides = [1, 1]} : vector<16x96xf32> to vector<8x4xf32>
    %cst_235 = arith.constant dense<0.000000e+00> : vector<8x4xf32>
    %507 = tpu.matmul %505, %506, %cst_235 {dimension_numbers = #tpu.dot_dimension_numbers<[1], [0], [0], [1], [0, 0, 1, 1], [], []>} : vector<8x8xf32>, vector<8x4xf32>, vector<8x4xf32> -> vector<8x4xf32>
    %508 = vector.extract_strided_slice %486 {offsets = [56, 0], sizes = [8, 8], strides = [1, 1]} : vector<128x8xf32> to vector<8x8xf32>
    %509 = vector.extract_strided_slice %425 {offsets = [0, 92], sizes = [8, 4], strides = [1, 1]} : vector<16x96xf32> to vector<8x4xf32>
    %cst_236 = arith.constant dense<0.000000e+00> : vector<8x4xf32>
    %510 = tpu.matmul %508, %509, %cst_236 {dimension_numbers = #tpu.dot_dimension_numbers<[1], [0], [0], [1], [0, 0, 1, 1], [], []>} : vector<8x8xf32>, vector<8x4xf32>, vector<8x4xf32> -> vector<8x4xf32>
    %511 = tpu.concatenate %489, %492, %495, %498, %501, %504, %507, %510 in 1 : vector<8x4xf32>, vector<8x4xf32>, vector<8x4xf32>, vector<8x4xf32>, vector<8x4xf32>, vector<8x4xf32>, vector<8x4xf32>, vector<8x4xf32> -> vector<8x32xf32>
    %512 = vector.extract_strided_slice %486 {offsets = [64, 0], sizes = [8, 8], strides = [1, 1]} : vector<128x8xf32> to vector<8x8xf32>
    %513 = vector.extract_strided_slice %425 {offsets = [8, 64], sizes = [8, 4], strides = [1, 1]} : vector<16x96xf32> to vector<8x4xf32>
    %cst_237 = arith.constant dense<0.000000e+00> : vector<8x4xf32>
    %514 = tpu.matmul %512, %513, %cst_237 {dimension_numbers = #tpu.dot_dimension_numbers<[1], [0], [0], [1], [0, 0, 1, 1], [], []>} : vector<8x8xf32>, vector<8x4xf32>, vector<8x4xf32> -> vector<8x4xf32>
    %515 = vector.extract_strided_slice %486 {offsets = [72, 0], sizes = [8, 8], strides = [1, 1]} : vector<128x8xf32> to vector<8x8xf32>
    %516 = vector.extract_strided_slice %425 {offsets = [8, 68], sizes = [8, 4], strides = [1, 1]} : vector<16x96xf32> to vector<8x4xf32>
    %cst_238 = arith.constant dense<0.000000e+00> : vector<8x4xf32>
    %517 = tpu.matmul %515, %516, %cst_238 {dimension_numbers = #tpu.dot_dimension_numbers<[1], [0], [0], [1], [0, 0, 1, 1], [], []>} : vector<8x8xf32>, vector<8x4xf32>, vector<8x4xf32> -> vector<8x4xf32>
    %518 = vector.extract_strided_slice %486 {offsets = [80, 0], sizes = [8, 8], strides = [1, 1]} : vector<128x8xf32> to vector<8x8xf32>
    %519 = vector.extract_strided_slice %425 {offsets = [8, 72], sizes = [8, 4], strides = [1, 1]} : vector<16x96xf32> to vector<8x4xf32>
    %cst_239 = arith.constant dense<0.000000e+00> : vector<8x4xf32>
    %520 = tpu.matmul %518, %519, %cst_239 {dimension_numbers = #tpu.dot_dimension_numbers<[1], [0], [0], [1], [0, 0, 1, 1], [], []>} : vector<8x8xf32>, vector<8x4xf32>, vector<8x4xf32> -> vector<8x4xf32>
    %521 = vector.extract_strided_slice %486 {offsets = [88, 0], sizes = [8, 8], strides = [1, 1]} : vector<128x8xf32> to vector<8x8xf32>
    %522 = vector.extract_strided_slice %425 {offsets = [8, 76], sizes = [8, 4], strides = [1, 1]} : vector<16x96xf32> to vector<8x4xf32>
    %cst_240 = arith.constant dense<0.000000e+00> : vector<8x4xf32>
    %523 = tpu.matmul %521, %522, %cst_240 {dimension_numbers = #tpu.dot_dimension_numbers<[1], [0], [0], [1], [0, 0, 1, 1], [], []>} : vector<8x8xf32>, vector<8x4xf32>, vector<8x4xf32> -> vector<8x4xf32>
    %524 = vector.extract_strided_slice %486 {offsets = [96, 0], sizes = [8, 8], strides = [1, 1]} : vector<128x8xf32> to vector<8x8xf32>
    %525 = vector.extract_strided_slice %425 {offsets = [8, 80], sizes = [8, 4], strides = [1, 1]} : vector<16x96xf32> to vector<8x4xf32>
    %cst_241 = arith.constant dense<0.000000e+00> : vector<8x4xf32>
    %526 = tpu.matmul %524, %525, %cst_241 {dimension_numbers = #tpu.dot_dimension_numbers<[1], [0], [0], [1], [0, 0, 1, 1], [], []>} : vector<8x8xf32>, vector<8x4xf32>, vector<8x4xf32> -> vector<8x4xf32>
    %527 = vector.extract_strided_slice %486 {offsets = [104, 0], sizes = [8, 8], strides = [1, 1]} : vector<128x8xf32> to vector<8x8xf32>
    %528 = vector.extract_strided_slice %425 {offsets = [8, 84], sizes = [8, 4], strides = [1, 1]} : vector<16x96xf32> to vector<8x4xf32>
    %cst_242 = arith.constant dense<0.000000e+00> : vector<8x4xf32>
    %529 = tpu.matmul %527, %528, %cst_242 {dimension_numbers = #tpu.dot_dimension_numbers<[1], [0], [0], [1], [0, 0, 1, 1], [], []>} : vector<8x8xf32>, vector<8x4xf32>, vector<8x4xf32> -> vector<8x4xf32>
    %530 = vector.extract_strided_slice %486 {offsets = [112, 0], sizes = [8, 8], strides = [1, 1]} : vector<128x8xf32> to vector<8x8xf32>
    %531 = vector.extract_strided_slice %425 {offsets = [8, 88], sizes = [8, 4], strides = [1, 1]} : vector<16x96xf32> to vector<8x4xf32>
    %cst_243 = arith.constant dense<0.000000e+00> : vector<8x4xf32>
    %532 = tpu.matmul %530, %531, %cst_243 {dimension_numbers = #tpu.dot_dimension_numbers<[1], [0], [0], [1], [0, 0, 1, 1], [], []>} : vector<8x8xf32>, vector<8x4xf32>, vector<8x4xf32> -> vector<8x4xf32>
    %533 = vector.extract_strided_slice %486 {offsets = [120, 0], sizes = [8, 8], strides = [1, 1]} : vector<128x8xf32> to vector<8x8xf32>
    %534 = vector.extract_strided_slice %425 {offsets = [8, 92], sizes = [8, 4], strides = [1, 1]} : vector<16x96xf32> to vector<8x4xf32>
    %cst_244 = arith.constant dense<0.000000e+00> : vector<8x4xf32>
    %535 = tpu.matmul %533, %534, %cst_244 {dimension_numbers = #tpu.dot_dimension_numbers<[1], [0], [0], [1], [0, 0, 1, 1], [], []>} : vector<8x8xf32>, vector<8x4xf32>, vector<8x4xf32> -> vector<8x4xf32>
    %536 = tpu.concatenate %514, %517, %520, %523, %526, %529, %532, %535 in 1 : vector<8x4xf32>, vector<8x4xf32>, vector<8x4xf32>, vector<8x4xf32>, vector<8x4xf32>, vector<8x4xf32>, vector<8x4xf32>, vector<8x4xf32> -> vector<8x32xf32>
    %537 = tpu.concatenate %511, %536 in 0 : vector<8x32xf32>, vector<8x32xf32> -> vector<16x32xf32>
    %cst_245 = arith.constant dense<0.000000e+00> : vector<16x32xf32>
    %538 = tpu.matmul %537, %402, %cst_245 {dimension_numbers = #tpu.dot_dimension_numbers<[1], [0], [0], [1], [0, 0, 1, 1], [], []>} : vector<16x32xf32>, vector<32x32xf32>, vector<16x32xf32> -> vector<16x32xf32>
    %539 = vector.broadcast %410 : vector<1x32xf32> to vector<16x32xf32>
    %540 = arith.addf %538, %539 : vector<16x32xf32>
    %541 = arith.addf %398, %540 : vector<16x32xf32>
    %cst_246 = arith.constant dense<0.000000e+00> : vector<16xf32>
    %542 = vector.multi_reduction <add>, %541, %cst_246 [1] : vector<16x32xf32> to vector<16xf32>
    %543 = vector.shape_cast %542 : vector<16xf32> to vector<16x1xf32>
    %cst_247 = arith.constant 3.200000e+01 : f32
    %544 = vector.broadcast %cst_247 : f32 to vector<16x1xf32>
    %545 = arith.divf %543, %544 : vector<16x1xf32>
    %546 = vector.broadcast %545 : vector<16x1xf32> to vector<16x32xf32>
    %547 = arith.subf %541, %546 : vector<16x32xf32>
    %548 = arith.mulf %547, %547 : vector<16x32xf32>
    %cst_248 = arith.constant dense<0.000000e+00> : vector<16xf32>
    %549 = vector.multi_reduction <add>, %548, %cst_248 [1] : vector<16x32xf32> to vector<16xf32>
    %550 = vector.shape_cast %549 : vector<16xf32> to vector<16x1xf32>
    %cst_249 = arith.constant 3.200000e+01 : f32
    %551 = vector.broadcast %cst_249 : f32 to vector<16x1xf32>
    %552 = arith.divf %550, %551 : vector<16x1xf32>
    %cst_250 = arith.constant 9.99999974E-6 : f32
    %553 = vector.broadcast %cst_250 : f32 to vector<16x1xf32>
    %554 = arith.addf %552, %553 : vector<16x1xf32>
    %555 = math.rsqrt %554 : vector<16x1xf32>
    %556 = vector.broadcast %555 : vector<16x1xf32> to vector<16x32xf32>
    %557 = arith.mulf %547, %556 : vector<16x32xf32>
    %558 = vector.broadcast %412 : vector<1x32xf32> to vector<16x32xf32>
    %559 = arith.mulf %557, %558 : vector<16x32xf32>
    %560 = vector.broadcast %414 : vector<1x32xf32> to vector<16x32xf32>
    %561 = arith.addf %559, %560 : vector<16x32xf32>
    %cst_251 = arith.constant dense<0.000000e+00> : vector<16x64xf32>
    %562 = tpu.matmul %561, %404, %cst_251 {dimension_numbers = #tpu.dot_dimension_numbers<[1], [0], [0], [1], [0, 0, 1, 1], [], []>} : vector<16x32xf32>, vector<32x64xf32>, vector<16x64xf32> -> vector<16x64xf32>
    %563 = vector.broadcast %420 : vector<1x64xf32> to vector<16x64xf32>
    %564 = arith.addf %562, %563 : vector<16x64xf32>
    %cst_252 = arith.constant 0.000000e+00 : f32
    %565 = vector.broadcast %cst_252 : f32 to vector<16x64xf32>
    %566 = arith.maximumf %564, %565 : vector<16x64xf32>
    %cst_253 = arith.constant dense<0.000000e+00> : vector<16x32xf32>
    %567 = tpu.matmul %566, %406, %cst_253 {dimension_numbers = #tpu.dot_dimension_numbers<[1], [0], [0], [1], [0, 0, 1, 1], [], []>} : vector<16x64xf32>, vector<64x32xf32>, vector<16x32xf32> -> vector<16x32xf32>
    %568 = vector.broadcast %422 : vector<1x32xf32> to vector<16x32xf32>
    %569 = arith.addf %567, %568 : vector<16x32xf32>
    %570 = arith.addf %561, %569 : vector<16x32xf32>
    %cst_254 = arith.constant dense<0.000000e+00> : vector<16xf32>
    %571 = vector.multi_reduction <add>, %570, %cst_254 [1] : vector<16x32xf32> to vector<16xf32>
    %572 = vector.shape_cast %571 : vector<16xf32> to vector<16x1xf32>
    %cst_255 = arith.constant 3.200000e+01 : f32
    %573 = vector.broadcast %cst_255 : f32 to vector<16x1xf32>
    %574 = arith.divf %572, %573 : vector<16x1xf32>
    %575 = vector.broadcast %574 : vector<16x1xf32> to vector<16x32xf32>
    %576 = arith.subf %570, %575 : vector<16x32xf32>
    %577 = arith.mulf %576, %576 : vector<16x32xf32>
    %cst_256 = arith.constant dense<0.000000e+00> : vector<16xf32>
    %578 = vector.multi_reduction <add>, %577, %cst_256 [1] : vector<16x32xf32> to vector<16xf32>
    %579 = vector.shape_cast %578 : vector<16xf32> to vector<16x1xf32>
    %cst_257 = arith.constant 3.200000e+01 : f32
    %580 = vector.broadcast %cst_257 : f32 to vector<16x1xf32>
    %581 = arith.divf %579, %580 : vector<16x1xf32>
    %cst_258 = arith.constant 9.99999974E-6 : f32
    %582 = vector.broadcast %cst_258 : f32 to vector<16x1xf32>
    %583 = arith.addf %581, %582 : vector<16x1xf32>
    %584 = math.rsqrt %583 : vector<16x1xf32>
    %585 = vector.broadcast %584 : vector<16x1xf32> to vector<16x32xf32>
    %586 = arith.mulf %576, %585 : vector<16x32xf32>
    %587 = vector.broadcast %416 : vector<1x32xf32> to vector<16x32xf32>
    %588 = arith.mulf %586, %587 : vector<16x32xf32>
    %589 = vector.broadcast %418 : vector<1x32xf32> to vector<16x32xf32>
    %590 = arith.addf %588, %589 : vector<16x32xf32>
    %c100 = arith.constant 100 : index
    %c0_259 = arith.constant 0 : index
    %591 = vector.load %arg1[%c100, %c0_259] : memref<104x32xf32, #tpu.memory_space<vmem>>, vector<2x16xf32>
    %cst_260 = arith.constant dense<0.000000e+00> : vector<2x32xf32>
    %592 = tpu.matmul %591, %590, %cst_260 {dimension_numbers = #tpu.dot_dimension_numbers<[1], [0], [0], [1], [0, 0, 1, 1], [], []>} : vector<2x16xf32>, vector<16x32xf32>, vector<2x32xf32> -> vector<2x32xf32>
    %c64_261 = arith.constant 64 : index
    %c0_262 = arith.constant 0 : index
    %593 = vector.load %arg1[%c64_261, %c0_262] : memref<104x32xf32, #tpu.memory_space<vmem>>, vector<32x32xf32>
    %c98 = arith.constant 98 : index
    %c0_263 = arith.constant 0 : index
    %594 = vector.load %arg1[%c98, %c0_263] : memref<104x32xf32, #tpu.memory_space<vmem>>, vector<1x32xf32>
    %cst_264 = arith.constant dense<0.000000e+00> : vector<2x32xf32>
    %595 = tpu.matmul %592, %593, %cst_264 {dimension_numbers = #tpu.dot_dimension_numbers<[1], [0], [0], [1], [0, 0, 1, 1], [], []>} : vector<2x32xf32>, vector<32x32xf32>, vector<2x32xf32> -> vector<2x32xf32>
    %596 = vector.broadcast %594 : vector<1x32xf32> to vector<2x32xf32>
    %597 = arith.addf %595, %596 : vector<2x32xf32>
    %598 = vector.extract_strided_slice %597 {offsets = [0, 0], sizes = [2, 3], strides = [1, 1]} : vector<2x32xf32> to vector<2x3xf32>
    %c0_265 = arith.constant 0 : index
    %c0_266 = arith.constant 0 : index
    %599 = vector.load %arg4[%c0_265, %c0_266] : memref<2x3xf32, #tpu.memory_space<vmem>>, vector<2x3xf32>
    tpu.vector_store %arg4[%c0_265, %c0_266], %598 {strides = array<i32>} : memref<2x3xf32, #tpu.memory_space<vmem>>, vector<2x3xf32>,
    return
  }
}

</mosaic_0001>

<llo_original>
// kernel: multi_position_forward.1
$region0: #{multi_position_forward.1}
  #allocation0 [shape = 'u32[]', space=smem, size = 0x4, offset = 0x4, fixed_abs, tag = 'smem constant byte address 0x4 - core index']
  #allocation1 [shape = 'u32[144,128]{1,0:T(1,128)}', space=vmem, size = 0x12000, scoped, tag = 'internal scratch']
  %s0 = inlined_call_operand.vmem [shape: f32[16,32], index: 0, kind: input, shape index: {}]
  %s1 = inlined_call_operand.vmem [shape: f32[104,32], index: 1, kind: input, shape index: {}]
  %s2 = inlined_call_operand.hbm [shape: f32[3,160,96], index: 2, kind: input, shape index: {}]
  %s3 = inlined_call_operand.vmem [shape: f32[3,8,96], index: 3, kind: input, shape index: {}]
  %s4 = inlined_call_operand.hbm [shape: f32[2,3], index: 4, kind: output, shape index: {}]
  %s5 = sld [smem:[#allocation0]]
  $region30: #{multi_position_forward.1} parent=0
    _
  %s7 = ssub.s32 1, %s5
  %s8 = scalar_select 0, %s7, %s5
  $region1: #{multi_position_forward.1} parent=0
    #allocation2 [shape = 'u8[245760]{0}', space=vmem, size = 0x3c000, scoped, tag = 'input window, operand 2, single buffered']
    #allocation3 [shape = 's32[1]{0}', space=sflag, size = 0x4, scoped, tag = 'scoped memory for multi_position_forward.1']
    #allocation4 [shape = 's32[1]{0}', space=sflag, size = 0x4, scoped, tag = 'scoped memory for multi_position_forward.1']
    #allocation5 [shape = 'u8[1024]{0}', space=vmem, size = 0x400, scoped, tag = 'output window, operand 0, single buffered']
    %9 = vsyncpa [#allocation3], 0
    %10 = vsyncpa [#allocation4], 0
    // Predicated region
    $region2: #{multi_position_forward.1} parent=1 // pred_check
      _
    $region3: #{multi_position_forward.1} parent=1 // pred_check_branch
      %12 = sbr.rel (0) target = $region5
    $region4: #{multi_position_forward.1} parent=1 // pred_region
      _
    $region5: #{multi_position_forward.1} parent=1 // pred_fallthru
      _
    // Predicated region
    $region6: #{multi_position_forward.1} parent=1 // pred_check
      _
    $region7: #{multi_position_forward.1} parent=1 // pred_check_branch
      %14 = sbr.rel (0) target = $region9
    $region8: #{multi_position_forward.1} parent=1 // pred_region
      _
    $region9: #{multi_position_forward.1} parent=1 // pred_fallthru
      _
    // Predicated region
    $region10: #{multi_position_forward.1} parent=1 // pred_check
      _
    $region11: #{multi_position_forward.1} parent=1 // pred_check_branch
      %16 = sbr.rel (0) target = $region13
    $region12: #{multi_position_forward.1} parent=1 // pred_region
      %s18 = ssub.s32 7680, 7680
      %19 = vsyncadd [#allocation3], %s18
      %s20 = sshll.u32 [#allocation2], 4
      %s21 = int_to_ptr.vmem [resolvable:$true] %s20
      %26 = dma.hbm_to_vmem [thread:$0]  %s2, 7680, %s21, [#allocation3], 128, 128, 8
    $region13: #{multi_position_forward.1} parent=1 // pred_fallthru
      _
    // Predicated region
    $region14: #{multi_position_forward.1} parent=1 // pred_check
      _
    $region15: #{multi_position_forward.1} parent=1 // pred_check_branch
      %28 = sbr.rel (0) target = $region17
    $region16: #{multi_position_forward.1} parent=1 // pred_region
      _
    $region17: #{multi_position_forward.1} parent=1 // pred_fallthru
      _
    // Predicated region
    $region18: #{multi_position_forward.1} parent=1 // pred_check
      _
    $region19: #{multi_position_forward.1} parent=1 // pred_check_branch
      %30 = sbr.rel (0) target = $region21
    $region20: #{multi_position_forward.1} parent=1 // pred_region
      %31 = dma.done [#allocation3], 7680
    $region21: #{multi_position_forward.1} parent=1 // pred_fallthru
      _
    %v32 = vld [vmem:[%s0] sm:$0xff]
    %v33 = vld [vmem:[%s0 + $0x8] sm:$0xff]
    %v34 = vld [vmem:[%s1] sm:$0xff]
    %v35 = vld [vmem:[%s1 + $0x8] sm:$0xff]
    %v36 = vld [vmem:[%s1 + $0x10] sm:$0xff]
    %v37 = vld [vmem:[%s1 + $0x18] sm:$0xff]
    %v38 = vld [vmem:[%s1 + $0x60] sm:$0x1]
    %v39 = vld [vmem:[%s1 + $0x20] sm:$0xff]
    %v40 = vld [vmem:[%s1 + $0x28] sm:$0xff]
    %v41 = vld [vmem:[%s1 + $0x30] sm:$0xff]
    %v42 = vld [vmem:[%s1 + $0x38] sm:$0xff]
    %v43 = vld [vmem:[%s1 + $0x61] sm:$0x1]
    %v44 = vlaneseq
    %v45 = vshrl.u32 %v44, 7
    %v46 = vsub.s32 0, %v45
    %v47 = vrot.slane %v38, %v46
    %vm48 = vcmask 261120
    %v50 = vsel %vm48, %v32, 0
    %v53 = vsel %vm48, %v33, 0
    %55 = vmatprep.subr.mxu0 0.0
    %56 = vmatpush1.msra.mxu0 %v34
    %57 = vmatprep.subr.mxu0 0.0
    %58 = vmatpush1.msra.mxu0 %v35
    %59 = vmatprep.subr.mxu0 0.0
    %60 = vmatpush1.msra.mxu0 %v36
    %61 = vmatprep.subr.mxu0 0.0
    %62 = vmatpush1.msra.mxu0 %v37
    %63 = vmatprep.subr.mxu0 0.0
    %64 = vmatpush1.msra.mxu0 0.0
    %65 = vmatprep.subr.mxu0 0.0
    %66 = vmatpush1.msra.mxu0 0.0
    %67 = vmatprep.subr.mxu0 0.0
    %68 = vmatpush1.msra.mxu0 0.0
    %69 = vmatprep.subr.mxu0 0.0
    %70 = vmatpush1.msra.mxu0 0.0
    %71 = vmatprep.subr.mxu0 0.0
    %72 = vmatpush1.msra.mxu0 0.0
    %73 = vmatprep.subr.mxu0 0.0
    %74 = vmatpush1.msra.mxu0 0.0
    %75 = vmatprep.subr.mxu0 0.0
    %76 = vmatpush1.msra.mxu0 0.0
    %77 = vmatprep.subr.mxu0 0.0
    %78 = vmatpush1.msra.mxu0 0.0
    %79 = vmatprep.subr.mxu0 0.0
    %80 = vmatpush1.msra.mxu0 0.0
    %81 = vmatprep.subr.mxu0 0.0
    %82 = vmatpush1.msra.mxu0 0.0
    %83 = vmatprep.subr.mxu0 0.0
    %84 = vmatpush1.msra.mxu0 0.0
    %85 = vmatprep.subr.mxu0 0.0
    %86 = vmatpush1.msra.mxu0 0.0
    %87 = vmatprep.subr.mxu0 0.0
    %88 = vmatpush1.msra.mxu0 0.0
    %89 = vmatprep.subr.mxu0 0.0
    %90 = vmatpush1.msra.mxu0 0.0
    %91 = vmatprep.subr.mxu0 0.0
    %92 = vmatpush1.msra.mxu0 0.0
    %93 = vmatprep.subr.mxu0 0.0
    %94 = vmatpush1.msra.mxu0 0.0
    %95 = vmatprep.subr.mxu0 0.0
    %96 = vmatpush1.msra.mxu0 0.0
    %97 = vmatprep.subr.mxu0 0.0
    %98 = vmatpush1.msra.mxu0 0.0
    %99 = vmatprep.subr.mxu0 0.0
    %100 = vmatpush1.msra.mxu0 0.0
    %101 = vmatprep.subr.mxu0 0.0
    %102 = vmatpush1.msra.mxu0 0.0
    %103 = vmatprep.subr.mxu0 0.0
    %104 = vmatpush1.msra.mxu0 0.0
    %105 = vmatprep.subr.mxu0 0.0
    %106 = vmatpush1.msra.mxu0 0.0
    %107 = vmatprep.subr.mxu0 0.0
    %108 = vmatpush1.msra.mxu0 0.0
    %109 = vmatprep.subr.mxu0 0.0
    %110 = vmatpush1.msra.mxu0 0.0
    %111 = vmatprep.subr.mxu0 0.0
    %112 = vmatpush1.msra.mxu0 0.0
    %113 = vmatprep.subr.mxu0 0.0
    %114 = vmatpush1.msra.mxu0 0.0
    %115 = vmatprep.subr.mxu0 0.0
    %116 = vmatpush1.msra.mxu0 0.0
    %117 = vmatprep.subr.mxu0 0.0
    %118 = vmatpush1.msra.mxu0 0.0
    %119 = vmatprep.mubr.f32.mxu0 0.0
    %120 = vmatmul.mubr.f32.gmra.mrb[0].mxu0 %v50
    %v121 = vpop.f32.mrb[0].mxu0
    %v122 = vadd.f32 %v47, %v121
    %v123 = vpop.f32.mrb[0].mxu0
    %124 = vmatprep.mubr.f32.mxu0 0.0
    %125 = vmatmul.mubr.f32.gmra.mrb[0].mxu0 %v53
    %v126 = vpop.f32.mrb[0].mxu0
    %v127 = vadd.f32 %v47, %v126
    %v128 = vpop.f32.mrb[0].mxu0
    %129 = vdwg.mxu0
    %v130 = vmax.f32 %v122, 0.0
    %v131 = vmax.f32 %v127, 0.0
    %v132 = vlaneseq
    %v133 = vshrl.u32 %v132, 7
    %v134 = vsub.s32 0, %v133
    %v135 = vrot.slane %v43, %v134
    %v137 = vsel %vm48, %v130, 0
    %v140 = vsel %vm48, %v131, 0
    %142 = vmatprep.subr.mxu0 0.0
    %143 = vmatpush1.msra.mxu0 %v39
    %144 = vmatprep.subr.mxu0 0.0
    %145 = vmatpush1.msra.mxu0 %v40
    %146 = vmatprep.subr.mxu0 0.0
    %147 = vmatpush1.msra.mxu0 %v41
    %148 = vmatprep.subr.mxu0 0.0
    %149 = vmatpush1.msra.mxu0 %v42
    %150 = vmatprep.subr.mxu0 0.0
    %151 = vmatpush1.msra.mxu0 0.0
    %152 = vmatprep.subr.mxu0 0.0
    %153 = vmatpush1.msra.mxu0 0.0
    %154 = vmatprep.subr.mxu0 0.0
    %155 = vmatpush1.msra.mxu0 0.0
    %156 = vmatprep.subr.mxu0 0.0
    %157 = vmatpush1.msra.mxu0 0.0
    %158 = vmatprep.subr.mxu0 0.0
    %159 = vmatpush1.msra.mxu0 0.0
    %160 = vmatprep.subr.mxu0 0.0
    %161 = vmatpush1.msra.mxu0 0.0
    %162 = vmatprep.subr.mxu0 0.0
    %163 = vmatpush1.msra.mxu0 0.0
    %164 = vmatprep.subr.mxu0 0.0
    %165 = vmatpush1.msra.mxu0 0.0
    %166 = vmatprep.subr.mxu0 0.0
    %167 = vmatpush1.msra.mxu0 0.0
    %168 = vmatprep.subr.mxu0 0.0
    %169 = vmatpush1.msra.mxu0 0.0
    %170 = vmatprep.subr.mxu0 0.0
    %171 = vmatpush1.msra.mxu0 0.0
    %172 = vmatprep.subr.mxu0 0.0
    %173 = vmatpush1.msra.mxu0 0.0
    %174 = vmatprep.subr.mxu0 0.0
    %175 = vmatpush1.msra.mxu0 0.0
    %176 = vmatprep.subr.mxu0 0.0
    %177 = vmatpush1.msra.mxu0 0.0
    %178 = vmatprep.subr.mxu0 0.0
    %179 = vmatpush1.msra.mxu0 0.0
    %180 = vmatprep.subr.mxu0 0.0
    %181 = vmatpush1.msra.mxu0 0.0
    %182 = vmatprep.subr.mxu0 0.0
    %183 = vmatpush1.msra.mxu0 0.0
    %184 = vmatprep.subr.mxu0 0.0
    %185 = vmatpush1.msra.mxu0 0.0
    %186 = vmatprep.subr.mxu0 0.0
    %187 = vmatpush1.msra.mxu0 0.0
    %188 = vmatprep.subr.mxu0 0.0
    %189 = vmatpush1.msra.mxu0 0.0
    %190 = vmatprep.subr.mxu0 0.0
    %191 = vmatpush1.msra.mxu0 0.0
    %192 = vmatprep.subr.mxu0 0.0
    %193 = vmatpush1.msra.mxu0 0.0
    %194 = vmatprep.subr.mxu0 0.0
    %195 = vmatpush1.msra.mxu0 0.0
    %196 = vmatprep.subr.mxu0 0.0
    %197 = vmatpush1.msra.mxu0 0.0
    %198 = vmatprep.subr.mxu0 0.0
    %199 = vmatpush1.msra.mxu0 0.0
    %200 = vmatprep.subr.mxu0 0.0
    %201 = vmatpush1.msra.mxu0 0.0
    %202 = vmatprep.subr.mxu0 0.0
    %203 = vmatpush1.msra.mxu0 0.0
    %204 = vmatprep.subr.mxu0 0.0
    %205 = vmatpush1.msra.mxu0 0.0
    %206 = vmatprep.mubr.f32.mxu0 0.0
    %207 = vmatmul.mubr.f32.gmra.mrb[0].mxu0 %v137
    %v208 = vpop.f32.mrb[0].mxu0
    %v209 = vadd.f32 %v135, %v208
    %v210 = vpop.f32.mrb[0].mxu0
    %211 = vmatprep.mubr.f32.mxu0 0.0
    %212 = vmatmul.mubr.f32.gmra.mrb[0].mxu0 %v140
    %v213 = vpop.f32.mrb[0].mxu0
    %v214 = vadd.f32 %v135, %v213
    %v215 = vpop.f32.mrb[0].mxu0
    %216 = vdwg.mxu0
    %v217 = vmax.f32 %v209, 0.0
    %v218 = vmax.f32 %v214, 0.0
    %v219 = vld [vmem:[#allocation2] sm:$0xff]
    %v220 = vld [vmem:[#allocation2 + $0x8] sm:$0xff]
    %v221 = vld [vmem:[#allocation2 + $0x10] sm:$0xff]
    %v222 = vld [vmem:[#allocation2 + $0x18] sm:$0xff]
    %v223 = vld [vmem:[#allocation2 + $0x20] sm:$0xff]
    %v224 = vld [vmem:[#allocation2 + $0x28] sm:$0xff]
    %v225 = vld [vmem:[#allocation2 + $0x30] sm:$0xff]
    %v226 = vld [vmem:[#allocation2 + $0x38] sm:$0xff]
    %v227 = vld [vmem:[#allocation2 + $0x40] sm:$0xff]
    %v228 = vld [vmem:[#allocation2 + $0x48] sm:$0xff]
    %v229 = vld [vmem:[#allocation2 + $0x50] sm:$0xff]
    %v230 = vld [vmem:[#allocation2 + $0x58] sm:$0xff]
    %v231 = vld [vmem:[#allocation2 + $0x60] sm:$0xff]
    %v232 = vld [vmem:[#allocation2 + $0x68] sm:$0xff]
    %v233 = vld [vmem:[#allocation2 + $0x70] sm:$0xff]
    %v234 = vld [vmem:[#allocation2 + $0x78] sm:$0xff]
    %v235 = vld [vmem:[#allocation2 + $0x80] sm:$0xff]
    %v236 = vld [vmem:[#allocation2 + $0x88] sm:$0xff]
    %v237 = vld [vmem:[#allocation2 + $0x90] sm:$0xff]
    %v238 = vld [vmem:[#allocation2 + $0x98] sm:$0xff]
    %v239 = vld [vmem:[%s3] sm:$0x1]
    %v240 = vld [vmem:[%s3 + $0x1] sm:$0x1]
    %v241 = vld [vmem:[%s3 + $0x2] sm:$0x1]
    %v242 = vld [vmem:[%s3 + $0x3] sm:$0x1]
    %v243 = vld [vmem:[%s3 + $0x4] sm:$0x1]
    %v244 = vld [vmem:[%s3 + $0x5] sm:$0x1]
    %v245 = vld [vmem:[%s3 + $0x6] sm:$0x1]
    %v246 = vld [vmem:[%s3 + $0x7] sm:$0x1]
    %v247 = vlaneseq
    %v248 = vshrl.u32 %v247, 7
    %v249 = vsub.s32 0, %v248
    %v250 = vrot.slane %v239, %v249
    %v252 = vsel %vm48, %v217, 0
    %v255 = vsel %vm48, %v218, 0
    %257 = vmatprep.subr.mxu0 0.0
    %258 = vmatpush1.msra.mxu0 %v219
    %259 = vmatprep.subr.mxu0 0.0
    %260 = vmatpush1.msra.mxu0 %v220
    %261 = vmatprep.subr.mxu0 0.0
    %262 = vmatpush1.msra.mxu0 %v221
    %263 = vmatprep.subr.mxu0 0.0
    %264 = vmatpush1.msra.mxu0 %v222
    %265 = vmatprep.subr.mxu0 0.0
    %266 = vmatpush1.msra.mxu0 0.0
    %267 = vmatprep.subr.mxu0 0.0
    %268 = vmatpush1.msra.mxu0 0.0
    %269 = vmatprep.subr.mxu0 0.0
    %270 = vmatpush1.msra.mxu0 0.0
    %271 = vmatprep.subr.mxu0 0.0
    %272 = vmatpush1.msra.mxu0 0.0
    %273 = vmatprep.subr.mxu0 0.0
    %274 = vmatpush1.msra.mxu0 0.0
    %275 = vmatprep.subr.mxu0 0.0
    %276 = vmatpush1.msra.mxu0 0.0
    %277 = vmatprep.subr.mxu0 0.0
    %278 = vmatpush1.msra.mxu0 0.0
    %279 = vmatprep.subr.mxu0 0.0
    %280 = vmatpush1.msra.mxu0 0.0
    %281 = vmatprep.subr.mxu0 0.0
    %282 = vmatpush1.msra.mxu0 0.0
    %283 = vmatprep.subr.mxu0 0.0
    %284 = vmatpush1.msra.mxu0 0.0
    %285 = vmatprep.subr.mxu0 0.0
    %286 = vmatpush1.msra.mxu0 0.0
    %287 = vmatprep.subr.mxu0 0.0
    %288 = vmatpush1.msra.mxu0 0.0
    %289 = vmatprep.subr.mxu0 0.0
    %290 = vmatpush1.msra.mxu0 0.0
    %291 = vmatprep.subr.mxu0 0.0
    %292 = vmatpush1.msra.mxu0 0.0
    %293 = vmatprep.subr.mxu0 0.0
    %294 = vmatpush1.msra.mxu0 0.0
    %295 = vmatprep.subr.mxu0 0.0
    %296 = vmatpush1.msra.mxu0 0.0
    %297 = vmatprep.subr.mxu0 0.0
    %298 = vmatpush1.msra.mxu0 0.0
    %299 = vmatprep.subr.mxu0 0.0
    %300 = vmatpush1.msra.mxu0 0.0
    %301 = vmatprep.subr.mxu0 0.0
    %302 = vmatpush1.msra.mxu0 0.0
    %303 = vmatprep.subr.mxu0 0.0
    %304 = vmatpush1.msra.mxu0 0.0
    %305 = vmatprep.subr.mxu0 0.0
    %306 = vmatpush1.msra.mxu0 0.0
    %307 = vmatprep.subr.mxu0 0.0
    %308 = vmatpush1.msra.mxu0 0.0
    %309 = vmatprep.subr.mxu0 0.0
    %310 = vmatpush1.msra.mxu0 0.0
    %311 = vmatprep.subr.mxu0 0.0
    %312 = vmatpush1.msra.mxu0 0.0
    %313 = vmatprep.subr.mxu0 0.0
    %314 = vmatpush1.msra.mxu0 0.0
    %315 = vmatprep.subr.mxu0 0.0
    %316 = vmatpush1.msra.mxu0 0.0
    %317 = vmatprep.subr.mxu0 0.0
    %318 = vmatpush1.msra.mxu0 0.0
    %319 = vmatprep.subr.mxu0 0.0
    %320 = vmatpush1.msra.mxu0 0.0
    %321 = vmatprep.mubr.f32.mxu0 0.0
    %322 = vmatmul.mubr.f32.gmra.mrb[0].mxu0 %v252
    %v323 = vpop.f32.mrb[0].mxu0
    %v324 = vadd.f32 %v250, %v323
    %v325 = vpop.f32.mrb[0].mxu0
    %326 = vmatprep.mubr.f32.mxu0 0.0
    %327 = vmatmul.mubr.f32.gmra.mrb[0].mxu0 %v255
    %v328 = vpop.f32.mrb[0].mxu0
    %v329 = vadd.f32 %v250, %v328
    %v330 = vpop.f32.mrb[0].mxu0
    %331 = vdwg.mxu0
    %333 = vrot.lane.b32.xlu0 %v324, 96
    %v334 = vpop.permute.xlu0 %333
    %vm335 = vcmask 31744
    %v336 = vsel %vm335, %v324, 0
    %v338 = vsel %vm335, %v334, 0
    %340 = vmatprep.subr.mxu0 0.0
    %341 = vmatpush1.xpose.msra.mxu0 %v338
    %342 = vmatprep.subr.mxu0 0.0
    %343 = vmatpush1.xpose.msra.mxu0 0.0
    %344 = vmatprep.subr.mxu0 0.0
    %345 = vmatpush1.xpose.msra.mxu0 0.0
    %346 = vmatprep.subr.mxu0 0.0
    %347 = vmatpush1.xpose.msra.mxu0 0.0
    %348 = vmatprep.subr.mxu0 0.0
    %349 = vmatpush1.xpose.msra.mxu0 0.0
    %350 = vmatprep.subr.mxu0 0.0
    %351 = vmatpush1.xpose.msra.mxu0 0.0
    %352 = vmatprep.subr.mxu0 0.0
    %353 = vmatpush1.xpose.msra.mxu0 0.0
    %354 = vmatprep.subr.mxu0 0.0
    %355 = vmatpush1.xpose.msra.mxu0 0.0
    %356 = vmatprep.subr.mxu0 0.0
    %357 = vmatpush1.xpose.msra.mxu0 0.0
    %358 = vmatprep.subr.mxu0 0.0
    %359 = vmatpush1.xpose.msra.mxu0 0.0
    %360 = vmatprep.subr.mxu0 0.0
    %361 = vmatpush1.xpose.msra.mxu0 0.0
    %362 = vmatprep.subr.mxu0 0.0
    %363 = vmatpush1.xpose.msra.mxu0 0.0
    %364 = vmatprep.subr.mxu0 0.0
    %365 = vmatpush1.xpose.msra.mxu0 0.0
    %366 = vmatprep.subr.mxu0 0.0
    %367 = vmatpush1.xpose.msra.mxu0 0.0
    %368 = vmatprep.subr.mxu0 0.0
    %369 = vmatpush1.xpose.msra.mxu0 0.0
    %370 = vmatprep.subr.mxu0 0.0
    %371 = vmatpush1.xpose.msra.mxu0 0.0
    %372 = vmatprep.subr.mxu0 0.0
    %373 = vmatpush1.xpose.msra.mxu0 0.0
    %374 = vmatprep.subr.mxu0 0.0
    %375 = vmatpush1.xpose.msra.mxu0 0.0
    %376 = vmatprep.subr.mxu0 0.0
    %377 = vmatpush1.xpose.msra.mxu0 0.0
    %378 = vmatprep.subr.mxu0 0.0
    %379 = vmatpush1.xpose.msra.mxu0 0.0
    %380 = vmatprep.subr.mxu0 0.0
    %381 = vmatpush1.xpose.msra.mxu0 0.0
    %382 = vmatprep.subr.mxu0 0.0
    %383 = vmatpush1.xpose.msra.mxu0 0.0
    %384 = vmatprep.subr.mxu0 0.0
    %385 = vmatpush1.xpose.msra.mxu0 0.0
    %386 = vmatprep.subr.mxu0 0.0
    %387 = vmatpush1.xpose.msra.mxu0 0.0
    %388 = vmatprep.subr.mxu0 0.0
    %389 = vmatpush1.xpose.msra.mxu0 0.0
    %390 = vmatprep.subr.mxu0 0.0
    %391 = vmatpush1.xpose.msra.mxu0 0.0
    %392 = vmatprep.subr.mxu0 0.0
    %393 = vmatpush1.xpose.msra.mxu0 0.0
    %394 = vmatprep.subr.mxu0 0.0
    %395 = vmatpush1.xpose.msra.mxu0 0.0
    %396 = vmatprep.subr.mxu0 0.0
    %397 = vmatpush1.xpose.msra.mxu0 0.0
    %398 = vmatprep.subr.mxu0 0.0
    %399 = vmatpush1.xpose.msra.mxu0 0.0
    %400 = vmatprep.subr.mxu0 0.0
    %401 = vmatpush1.xpose.msra.mxu0 0.0
    %402 = vmatprep.subr.mxu0 0.0
    %403 = vmatpush1.xpose.msra.mxu0 0.0
    %404 = vmatprep.mubr.f32.mxu0 0.0
    %405 = vmatmul.mubr.f32.gmra.mrb[0].mxu0 %v336
    %v406 = vpop.f32.mrb[0].mxu0
    %v407 = vadd.f32 0.0, %v406
    %v408 = vpop.f32.mrb[0].mxu0
    %409 = vdwg.mxu0
    %410 = vrot.lane.b32.xlu0 %v324, 124
    %v411 = vpop.permute.xlu0 %410
    %412 = vrot.lane.b32.xlu0 %v324, 92
    %v413 = vpop.permute.xlu0 %412
    %v414 = vsel %vm335, %v411, 0
    %v416 = vsel %vm335, %v413, 0
    %418 = vmatprep.subr.mxu0 0.0
    %419 = vmatpush1.xpose.msra.mxu0 %v416
    %420 = vmatprep.subr.mxu0 0.0
    %421 = vmatpush1.xpose.msra.mxu0 0.0
    %422 = vmatprep.subr.mxu0 0.0
    %423 = vmatpush1.xpose.msra.mxu0 0.0
    %424 = vmatprep.subr.mxu0 0.0
    %425 = vmatpush1.xpose.msra.mxu0 0.0
    %426 = vmatprep.subr.mxu0 0.0
    %427 = vmatpush1.xpose.msra.mxu0 0.0
    %428 = vmatprep.subr.mxu0 0.0
    %429 = vmatpush1.xpose.msra.mxu0 0.0
    %430 = vmatprep.subr.mxu0 0.0
    %431 = vmatpush1.xpose.msra.mxu0 0.0
    %432 = vmatprep.subr.mxu0 0.0
    %433 = vmatpush1.xpose.msra.mxu0 0.0
    %434 = vmatprep.subr.mxu0 0.0
    %435 = vmatpush1.xpose.msra.mxu0 0.0
    %436 = vmatprep.subr.mxu0 0.0
    %437 = vmatpush1.xpose.msra.mxu0 0.0
    %438 = vmatprep.subr.mxu0 0.0
    %439 = vmatpush1.xpose.msra.mxu0 0.0
    %440 = vmatprep.subr.mxu0 0.0
    %441 = vmatpush1.xpose.msra.mxu0 0.0
    %442 = vmatprep.subr.mxu0 0.0
    %443 = vmatpush1.xpose.msra.mxu0 0.0
    %444 = vmatprep.subr.mxu0 0.0
    %445 = vmatpush1.xpose.msra.mxu0 0.0
    %446 = vmatprep.subr.mxu0 0.0
    %447 = vmatpush1.xpose.msra.mxu0 0.0
    %448 = vmatprep.subr.mxu0 0.0
    %449 = vmatpush1.xpose.msra.mxu0 0.0
    %450 = vmatprep.subr.mxu0 0.0
    %451 = vmatpush1.xpose.msra.mxu0 0.0
    %452 = vmatprep.subr.mxu0 0.0
    %453 = vmatpush1.xpose.msra.mxu0 0.0
    %454 = vmatprep.subr.mxu0 0.0
    %455 = vmatpush1.xpose.msra.mxu0 0.0
    %456 = vmatprep.subr.mxu0 0.0
    %457 = vmatpush1.xpose.msra.mxu0 0.0
    %458 = vmatprep.subr.mxu0 0.0
    %459 = vmatpush1.xpose.msra.mxu0 0.0
    %460 = vmatprep.subr.mxu0 0.0
    %461 = vmatpush1.xpose.msra.mxu0 0.0
    %462 = vmatprep.subr.mxu0 0.0
    %463 = vmatpush1.xpose.msra.mxu0 0.0
    %464 = vmatprep.subr.mxu0 0.0
    %465 = vmatpush1.xpose.msra.mxu0 0.0
    %466 = vmatprep.subr.mxu0 0.0
    %467 = vmatpush1.xpose.msra.mxu0 0.0
    %468 = vmatprep.subr.mxu0 0.0
    %469 = vmatpush1.xpose.msra.mxu0 0.0
    %470 = vmatprep.subr.mxu0 0.0
    %471 = vmatpush1.xpose.msra.mxu0 0.0
    %472 = vmatprep.subr.mxu0 0.0
    %473 = vmatpush1.xpose.msra.mxu0 0.0
    %474 = vmatprep.subr.mxu0 0.0
    %475 = vmatpush1.xpose.msra.mxu0 0.0
    %476 = vmatprep.subr.mxu0 0.0
    %477 = vmatpush1.xpose.msra.mxu0 0.0
    %478 = vmatprep.subr.mxu0 0.0
    %479 = vmatpush1.xpose.msra.mxu0 0.0
    %480 = vmatprep.subr.mxu0 0.0
    %481 = vmatpush1.xpose.msra.mxu0 0.0
    %482 = vmatprep.mubr.f32.mxu0 0.0
    %483 = vmatmul.mubr.f32.gmra.mrb[0].mxu0 %v414
    %v484 = vpop.f32.mrb[0].mxu0
    %v485 = vadd.f32 0.0, %v484
    %v486 = vpop.f32.mrb[0].mxu0
    %487 = vdwg.mxu0
    %488 = vrot.lane.b32.xlu0 %v324, 120
    %v489 = vpop.permute.xlu0 %488
    %490 = vrot.lane.b32.xlu0 %v324, 88
    %v491 = vpop.permute.xlu0 %490
    %v492 = vsel %vm335, %v489, 0
    %v494 = vsel %vm335, %v491, 0
    %496 = vmatprep.subr.mxu0 0.0
    %497 = vmatpush1.xpose.msra.mxu0 %v494
    %498 = vmatprep.subr.mxu0 0.0
    %499 = vmatpush1.xpose.msra.mxu0 0.0
    %500 = vmatprep.subr.mxu0 0.0
    %501 = vmatpush1.xpose.msra.mxu0 0.0
    %502 = vmatprep.subr.mxu0 0.0
    %503 = vmatpush1.xpose.msra.mxu0 0.0
    %504 = vmatprep.subr.mxu0 0.0
    %505 = vmatpush1.xpose.msra.mxu0 0.0
    %506 = vmatprep.subr.mxu0 0.0
    %507 = vmatpush1.xpose.msra.mxu0 0.0
    %508 = vmatprep.subr.mxu0 0.0
    %509 = vmatpush1.xpose.msra.mxu0 0.0
    %510 = vmatprep.subr.mxu0 0.0
    %511 = vmatpush1.xpose.msra.mxu0 0.0
    %512 = vmatprep.subr.mxu0 0.0
    %513 = vmatpush1.xpose.msra.mxu0 0.0
    %514 = vmatprep.subr.mxu0 0.0
    %515 = vmatpush1.xpose.msra.mxu0 0.0
    %516 = vmatprep.subr.mxu0 0.0
    %517 = vmatpush1.xpose.msra.mxu0 0.0
    %518 = vmatprep.subr.mxu0 0.0
    %519 = vmatpush1.xpose.msra.mxu0 0.0
    %520 = vmatprep.subr.mxu0 0.0
    %521 = vmatpush1.xpose.msra.mxu0 0.0
    %522 = vmatprep.subr.mxu0 0.0
    %523 = vmatpush1.xpose.msra.mxu0 0.0
    %524 = vmatprep.subr.mxu0 0.0
    %525 = vmatpush1.xpose.msra.mxu0 0.0
    %526 = vmatprep.subr.mxu0 0.0
    %527 = vmatpush1.xpose.msra.mxu0 0.0
    %528 = vmatprep.subr.mxu0 0.0
    %529 = vmatpush1.xpose.msra.mxu0 0.0
    %530 = vmatprep.subr.mxu0 0.0
    %531 = vmatpush1.xpose.msra.mxu0 0.0
    %532 = vmatprep.subr.mxu0 0.0
    %533 = vmatpush1.xpose.msra.mxu0 0.0
    %534 = vmatprep.subr.mxu0 0.0
    %535 = vmatpush1.xpose.msra.mxu0 0.0
    %536 = vmatprep.subr.mxu0 0.0
    %537 = vmatpush1.xpose.msra.mxu0 0.0
    %538 = vmatprep.subr.mxu0 0.0
    %539 = vmatpush1.xpose.msra.mxu0 0.0
    %540 = vmatprep.subr.mxu0 0.0
    %541 = vmatpush1.xpose.msra.mxu0 0.0
    %542 = vmatprep.subr.mxu0 0.0
    %543 = vmatpush1.xpose.msra.mxu0 0.0
    %544 = vmatprep.subr.mxu0 0.0
    %545 = vmatpush1.xpose.msra.mxu0 0.0
    %546 = vmatprep.subr.mxu0 0.0
    %547 = vmatpush1.xpose.msra.mxu0 0.0
    %548 = vmatprep.subr.mxu0 0.0
    %549 = vmatpush1.xpose.msra.mxu0 0.0
    %550 = vmatprep.subr.mxu0 0.0
    %551 = vmatpush1.xpose.msra.mxu0 0.0
    %552 = vmatprep.subr.mxu0 0.0
    %553 = vmatpush1.xpose.msra.mxu0 0.0
    %554 = vmatprep.subr.mxu0 0.0
    %555 = vmatpush1.xpose.msra.mxu0 0.0
    %556 = vmatprep.subr.mxu0 0.0
    %557 = vmatpush1.xpose.msra.mxu0 0.0
    %558 = vmatprep.subr.mxu0 0.0
    %559 = vmatpush1.xpose.msra.mxu0 0.0
    %560 = vmatprep.mubr.f32.mxu0 0.0
    %561 = vmatmul.mubr.f32.gmra.mrb[0].mxu0 %v492
    %v562 = vpop.f32.mrb[0].mxu0
    %v563 = vadd.f32 0.0, %v562
    %v564 = vpop.f32.mrb[0].mxu0
    %565 = vdwg.mxu0
    %566 = vrot.lane.b32.xlu0 %v324, 116
    %v567 = vpop.permute.xlu0 %566
    %568 = vrot.lane.b32.xlu0 %v324, 84
    %v569 = vpop.permute.xlu0 %568
    %v570 = vsel %vm335, %v567, 0
    %v572 = vsel %vm335, %v569, 0
    %574 = vmatprep.subr.mxu0 0.0
    %575 = vmatpush1.xpose.msra.mxu0 %v572
    %576 = vmatprep.subr.mxu0 0.0
    %577 = vmatpush1.xpose.msra.mxu0 0.0
    %578 = vmatprep.subr.mxu0 0.0
    %579 = vmatpush1.xpose.msra.mxu0 0.0
    %580 = vmatprep.subr.mxu0 0.0
    %581 = vmatpush1.xpose.msra.mxu0 0.0
    %582 = vmatprep.subr.mxu0 0.0
    %583 = vmatpush1.xpose.msra.mxu0 0.0
    %584 = vmatprep.subr.mxu0 0.0
    %585 = vmatpush1.xpose.msra.mxu0 0.0
    %586 = vmatprep.subr.mxu0 0.0
    %587 = vmatpush1.xpose.msra.mxu0 0.0
    %588 = vmatprep.subr.mxu0 0.0
    %589 = vmatpush1.xpose.msra.mxu0 0.0
    %590 = vmatprep.subr.mxu0 0.0
    %591 = vmatpush1.xpose.msra.mxu0 0.0
    %592 = vmatprep.subr.mxu0 0.0
    %593 = vmatpush1.xpose.msra.mxu0 0.0
    %594 = vmatprep.subr.mxu0 0.0
    %595 = vmatpush1.xpose.msra.mxu0 0.0
    %596 = vmatprep.subr.mxu0 0.0
    %597 = vmatpush1.xpose.msra.mxu0 0.0
    %598 = vmatprep.subr.mxu0 0.0
    %599 = vmatpush1.xpose.msra.mxu0 0.0
    %600 = vmatprep.subr.mxu0 0.0
    %601 = vmatpush1.xpose.msra.mxu0 0.0
    %602 = vmatprep.subr.mxu0 0.0
    %603 = vmatpush1.xpose.msra.mxu0 0.0
    %604 = vmatprep.subr.mxu0 0.0
    %605 = vmatpush1.xpose.msra.mxu0 0.0
    %606 = vmatprep.subr.mxu0 0.0
    %607 = vmatpush1.xpose.msra.mxu0 0.0
    %608 = vmatprep.subr.mxu0 0.0
    %609 = vmatpush1.xpose.msra.mxu0 0.0
    %610 = vmatprep.subr.mxu0 0.0
    %611 = vmatpush1.xpose.msra.mxu0 0.0
    %612 = vmatprep.subr.mxu0 0.0
    %613 = vmatpush1.xpose.msra.mxu0 0.0
    %614 = vmatprep.subr.mxu0 0.0
    %615 = vmatpush1.xpose.msra.mxu0 0.0
    %616 = vmatprep.subr.mxu0 0.0
    %617 = vmatpush1.xpose.msra.mxu0 0.0
    %618 = vmatprep.subr.mxu0 0.0
    %619 = vmatpush1.xpose.msra.mxu0 0.0
    %620 = vmatprep.subr.mxu0 0.0
    %621 = vmatpush1.xpose.msra.mxu0 0.0
    %622 = vmatprep.subr.mxu0 0.0
    %623 = vmatpush1.xpose.msra.mxu0 0.0
    %624 = vmatprep.subr.mxu0 0.0
    %625 = vmatpush1.xpose.msra.mxu0 0.0
    %626 = vmatprep.subr.mxu0 0.0
    %627 = vmatpush1.xpose.msra.mxu0 0.0
    %628 = vmatprep.subr.mxu0 0.0
    %629 = vmatpush1.xpose.msra.mxu0 0.0
    %630 = vmatprep.subr.mxu0 0.0
    %631 = vmatpush1.xpose.msra.mxu0 0.0
    %632 = vmatprep.subr.mxu0 0.0
    %633 = vmatpush1.xpose.msra.mxu0 0.0
    %634 = vmatprep.subr.mxu0 0.0
    %635 = vmatpush1.xpose.msra.mxu0 0.0
    %636 = vmatprep.subr.mxu0 0.0
    %637 = vmatpush1.xpose.msra.mxu0 0.0
    %638 = vmatprep.mubr.f32.mxu0 0.0
    %639 = vmatmul.mubr.f32.gmra.mrb[0].mxu0 %v570
    %v640 = vpop.f32.mrb[0].mxu0
    %v641 = vadd.f32 0.0, %v640
    %v642 = vpop.f32.mrb[0].mxu0
    %643 = vdwg.mxu0
    %644 = vrot.lane.b32.xlu0 %v324, 112
    %v645 = vpop.permute.xlu0 %644
    %646 = vrot.lane.b32.xlu0 %v324, 80
    %v647 = vpop.permute.xlu0 %646
    %v648 = vsel %vm335, %v645, 0
    %v650 = vsel %vm335, %v647, 0
    %652 = vmatprep.subr.mxu0 0.0
    %653 = vmatpush1.xpose.msra.mxu0 %v650
    %654 = vmatprep.subr.mxu0 0.0
    %655 = vmatpush1.xpose.msra.mxu0 0.0
    %656 = vmatprep.subr.mxu0 0.0
    %657 = vmatpush1.xpose.msra.mxu0 0.0
    %658 = vmatprep.subr.mxu0 0.0
    %659 = vmatpush1.xpose.msra.mxu0 0.0
    %660 = vmatprep.subr.mxu0 0.0
    %661 = vmatpush1.xpose.msra.mxu0 0.0
    %662 = vmatprep.subr.mxu0 0.0
    %663 = vmatpush1.xpose.msra.mxu0 0.0
    %664 = vmatprep.subr.mxu0 0.0
    %665 = vmatpush1.xpose.msra.mxu0 0.0
    %666 = vmatprep.subr.mxu0 0.0
    %667 = vmatpush1.xpose.msra.mxu0 0.0
    %668 = vmatprep.subr.mxu0 0.0
    %669 = vmatpush1.xpose.msra.mxu0 0.0
    %670 = vmatprep.subr.mxu0 0.0
    %671 = vmatpush1.xpose.msra.mxu0 0.0
    %672 = vmatprep.subr.mxu0 0.0
    %673 = vmatpush1.xpose.msra.mxu0 0.0
    %674 = vmatprep.subr.mxu0 0.0
    %675 = vmatpush1.xpose.msra.mxu0 0.0
    %676 = vmatprep.subr.mxu0 0.0
    %677 = vmatpush1.xpose.msra.mxu0 0.0
    %678 = vmatprep.subr.mxu0 0.0
    %679 = vmatpush1.xpose.msra.mxu0 0.0
    %680 = vmatprep.subr.mxu0 0.0
    %681 = vmatpush1.xpose.msra.mxu0 0.0
    %682 = vmatprep.subr.mxu0 0.0
    %683 = vmatpush1.xpose.msra.mxu0 0.0
    %684 = vmatprep.subr.mxu0 0.0
    %685 = vmatpush1.xpose.msra.mxu0 0.0
    %686 = vmatprep.subr.mxu0 0.0
    %687 = vmatpush1.xpose.msra.mxu0 0.0
    %688 = vmatprep.subr.mxu0 0.0
    %689 = vmatpush1.xpose.msra.mxu0 0.0
    %690 = vmatprep.subr.mxu0 0.0
    %691 = vmatpush1.xpose.msra.mxu0 0.0
    %692 = vmatprep.subr.mxu0 0.0
    %693 = vmatpush1.xpose.msra.mxu0 0.0
    %694 = vmatprep.subr.mxu0 0.0
    %695 = vmatpush1.xpose.msra.mxu0 0.0
    %696 = vmatprep.subr.mxu0 0.0
    %697 = vmatpush1.xpose.msra.mxu0 0.0
    %698 = vmatprep.subr.mxu0 0.0
    %699 = vmatpush1.xpose.msra.mxu0 0.0
    %700 = vmatprep.subr.mxu0 0.0
    %701 = vmatpush1.xpose.msra.mxu0 0.0
    %702 = vmatprep.subr.mxu0 0.0
    %703 = vmatpush1.xpose.msra.mxu0 0.0
    %704 = vmatprep.subr.mxu0 0.0
    %705 = vmatpush1.xpose.msra.mxu0 0.0
    %706 = vmatprep.subr.mxu0 0.0
    %707 = vmatpush1.xpose.msra.mxu0 0.0
    %708 = vmatprep.subr.mxu0 0.0
    %709 = vmatpush1.xpose.msra.mxu0 0.0
    %710 = vmatprep.subr.mxu0 0.0
    %711 = vmatpush1.xpose.msra.mxu0 0.0
    %712 = vmatprep.subr.mxu0 0.0
    %713 = vmatpush1.xpose.msra.mxu0 0.0
    %714 = vmatprep.subr.mxu0 0.0
    %715 = vmatpush1.xpose.msra.mxu0 0.0
    %716 = vmatprep.mubr.f32.mxu0 0.0
    %717 = vmatmul.mubr.f32.gmra.mrb[0].mxu0 %v648
    %v718 = vpop.f32.mrb[0].mxu0
    %v719 = vadd.f32 0.0, %v718
    %v720 = vpop.f32.mrb[0].mxu0
    %721 = vdwg.mxu0
    %722 = vrot.lane.b32.xlu0 %v324, 108
    %v723 = vpop.permute.xlu0 %722
    %724 = vrot.lane.b32.xlu0 %v324, 76
    %v725 = vpop.permute.xlu0 %724
    %v726 = vsel %vm335, %v723, 0
    %v728 = vsel %vm335, %v725, 0
    %730 = vmatprep.subr.mxu0 0.0
    %731 = vmatpush1.xpose.msra.mxu0 %v728
    %732 = vmatprep.subr.mxu0 0.0
    %733 = vmatpush1.xpose.msra.mxu0 0.0
    %734 = vmatprep.subr.mxu0 0.0
    %735 = vmatpush1.xpose.msra.mxu0 0.0
    %736 = vmatprep.subr.mxu0 0.0
    %737 = vmatpush1.xpose.msra.mxu0 0.0
    %738 = vmatprep.subr.mxu0 0.0
    %739 = vmatpush1.xpose.msra.mxu0 0.0
    %740 = vmatprep.subr.mxu0 0.0
    %741 = vmatpush1.xpose.msra.mxu0 0.0
    %742 = vmatprep.subr.mxu0 0.0
    %743 = vmatpush1.xpose.msra.mxu0 0.0
    %744 = vmatprep.subr.mxu0 0.0
    %745 = vmatpush1.xpose.msra.mxu0 0.0
    %746 = vmatprep.subr.mxu0 0.0
    %747 = vmatpush1.xpose.msra.mxu0 0.0
    %748 = vmatprep.subr.mxu0 0.0
    %749 = vmatpush1.xpose.msra.mxu0 0.0
    %750 = vmatprep.subr.mxu0 0.0
    %751 = vmatpush1.xpose.msra.mxu0 0.0
    %752 = vmatprep.subr.mxu0 0.0
    %753 = vmatpush1.xpose.msra.mxu0 0.0
    %754 = vmatprep.subr.mxu0 0.0
    %755 = vmatpush1.xpose.msra.mxu0 0.0
    %756 = vmatprep.subr.mxu0 0.0
    %757 = vmatpush1.xpose.msra.mxu0 0.0
    %758 = vmatprep.subr.mxu0 0.0
    %759 = vmatpush1.xpose.msra.mxu0 0.0
    %760 = vmatprep.subr.mxu0 0.0
    %761 = vmatpush1.xpose.msra.mxu0 0.0
    %762 = vmatprep.subr.mxu0 0.0
    %763 = vmatpush1.xpose.msra.mxu0 0.0
    %764 = vmatprep.subr.mxu0 0.0
    %765 = vmatpush1.xpose.msra.mxu0 0.0
    %766 = vmatprep.subr.mxu0 0.0
    %767 = vmatpush1.xpose.msra.mxu0 0.0
    %768 = vmatprep.subr.mxu0 0.0
    %769 = vmatpush1.xpose.msra.mxu0 0.0
    %770 = vmatprep.subr.mxu0 0.0
    %771 = vmatpush1.xpose.msra.mxu0 0.0
    %772 = vmatprep.subr.mxu0 0.0
    %773 = vmatpush1.xpose.msra.mxu0 0.0
    %774 = vmatprep.subr.mxu0 0.0
    %775 = vmatpush1.xpose.msra.mxu0 0.0
    %776 = vmatprep.subr.mxu0 0.0
    %777 = vmatpush1.xpose.msra.mxu0 0.0
    %778 = vmatprep.subr.mxu0 0.0
    %779 = vmatpush1.xpose.msra.mxu0 0.0
    %780 = vmatprep.subr.mxu0 0.0
    %781 = vmatpush1.xpose.msra.mxu0 0.0
    %782 = vmatprep.subr.mxu0 0.0
    %783 = vmatpush1.xpose.msra.mxu0 0.0
    %784 = vmatprep.subr.mxu0 0.0
    %785 = vmatpush1.xpose.msra.mxu0 0.0
    %786 = vmatprep.subr.mxu0 0.0
    %787 = vmatpush1.xpose.msra.mxu0 0.0
    %788 = vmatprep.subr.mxu0 0.0
    %789 = vmatpush1.xpose.msra.mxu0 0.0
    %790 = vmatprep.subr.mxu0 0.0
    %791 = vmatpush1.xpose.msra.mxu0 0.0
    %792 = vmatprep.subr.mxu0 0.0
    %793 = vmatpush1.xpose.msra.mxu0 0.0
    %794 = vmatprep.mubr.f32.mxu0 0.0
    %795 = vmatmul.mubr.f32.gmra.mrb[0].mxu0 %v726
    %v796 = vpop.f32.mrb[0].mxu0
    %v797 = vadd.f32 0.0, %v796
    %v798 = vpop.f32.mrb[0].mxu0
    %799 = vdwg.mxu0
    %800 = vrot.lane.b32.xlu0 %v324, 104
    %v801 = vpop.permute.xlu0 %800
    %802 = vrot.lane.b32.xlu0 %v324, 72
    %v803 = vpop.permute.xlu0 %802
    %v804 = vsel %vm335, %v801, 0
    %v806 = vsel %vm335, %v803, 0
    %808 = vmatprep.subr.mxu0 0.0
    %809 = vmatpush1.xpose.msra.mxu0 %v806
    %810 = vmatprep.subr.mxu0 0.0
    %811 = vmatpush1.xpose.msra.mxu0 0.0
    %812 = vmatprep.subr.mxu0 0.0
    %813 = vmatpush1.xpose.msra.mxu0 0.0
    %814 = vmatprep.subr.mxu0 0.0
    %815 = vmatpush1.xpose.msra.mxu0 0.0
    %816 = vmatprep.subr.mxu0 0.0
    %817 = vmatpush1.xpose.msra.mxu0 0.0
    %818 = vmatprep.subr.mxu0 0.0
    %819 = vmatpush1.xpose.msra.mxu0 0.0
    %820 = vmatprep.subr.mxu0 0.0
    %821 = vmatpush1.xpose.msra.mxu0 0.0
    %822 = vmatprep.subr.mxu0 0.0
    %823 = vmatpush1.xpose.msra.mxu0 0.0
    %824 = vmatprep.subr.mxu0 0.0
    %825 = vmatpush1.xpose.msra.mxu0 0.0
    %826 = vmatprep.subr.mxu0 0.0
    %827 = vmatpush1.xpose.msra.mxu0 0.0
    %828 = vmatprep.subr.mxu0 0.0
    %829 = vmatpush1.xpose.msra.mxu0 0.0
    %830 = vmatprep.subr.mxu0 0.0
    %831 = vmatpush1.xpose.msra.mxu0 0.0
    %832 = vmatprep.subr.mxu0 0.0
    %833 = vmatpush1.xpose.msra.mxu0 0.0
    %834 = vmatprep.subr.mxu0 0.0
    %835 = vmatpush1.xpose.msra.mxu0 0.0
    %836 = vmatprep.subr.mxu0 0.0
    %837 = vmatpush1.xpose.msra.mxu0 0.0
    %838 = vmatprep.subr.mxu0 0.0
    %839 = vmatpush1.xpose.msra.mxu0 0.0
    %840 = vmatprep.subr.mxu0 0.0
    %841 = vmatpush1.xpose.msra.mxu0 0.0
    %842 = vmatprep.subr.mxu0 0.0
    %843 = vmatpush1.xpose.msra.mxu0 0.0
    %844 = vmatprep.subr.mxu0 0.0
    %845 = vmatpush1.xpose.msra.mxu0 0.0
    %846 = vmatprep.subr.mxu0 0.0
    %847 = vmatpush1.xpose.msra.mxu0 0.0
    %848 = vmatprep.subr.mxu0 0.0
    %849 = vmatpush1.xpose.msra.mxu0 0.0
    %850 = vmatprep.subr.mxu0 0.0
    %851 = vmatpush1.xpose.msra.mxu0 0.0
    %852 = vmatprep.subr.mxu0 0.0
    %853 = vmatpush1.xpose.msra.mxu0 0.0
    %854 = vmatprep.subr.mxu0 0.0
    %855 = vmatpush1.xpose.msra.mxu0 0.0
    %856 = vmatprep.subr.mxu0 0.0
    %857 = vmatpush1.xpose.msra.mxu0 0.0
    %858 = vmatprep.subr.mxu0 0.0
    %859 = vmatpush1.xpose.msra.mxu0 0.0
    %860 = vmatprep.subr.mxu0 0.0
    %861 = vmatpush1.xpose.msra.mxu0 0.0
    %862 = vmatprep.subr.mxu0 0.0
    %863 = vmatpush1.xpose.msra.mxu0 0.0
    %864 = vmatprep.subr.mxu0 0.0
    %865 = vmatpush1.xpose.msra.mxu0 0.0
    %866 = vmatprep.subr.mxu0 0.0
    %867 = vmatpush1.xpose.msra.mxu0 0.0
    %868 = vmatprep.subr.mxu0 0.0
    %869 = vmatpush1.xpose.msra.mxu0 0.0
    %870 = vmatprep.subr.mxu0 0.0
    %871 = vmatpush1.xpose.msra.mxu0 0.0
    %872 = vmatprep.mubr.f32.mxu0 0.0
    %873 = vmatmul.mubr.f32.gmra.mrb[0].mxu0 %v804
    %v874 = vpop.f32.mrb[0].mxu0
    %v875 = vadd.f32 0.0, %v874
    %v876 = vpop.f32.mrb[0].mxu0
    %877 = vdwg.mxu0
    %878 = vrot.lane.b32.xlu0 %v324, 100
    %v879 = vpop.permute.xlu0 %878
    %880 = vrot.lane.b32.xlu0 %v324, 68
    %v881 = vpop.permute.xlu0 %880
    %v882 = vsel %vm335, %v879, 0
    %v884 = vsel %vm335, %v881, 0
    %886 = vmatprep.subr.mxu0 0.0
    %887 = vmatpush1.xpose.msra.mxu0 %v884
    %888 = vmatprep.subr.mxu0 0.0
    %889 = vmatpush1.xpose.msra.mxu0 0.0
    %890 = vmatprep.subr.mxu0 0.0
    %891 = vmatpush1.xpose.msra.mxu0 0.0
    %892 = vmatprep.subr.mxu0 0.0
    %893 = vmatpush1.xpose.msra.mxu0 0.0
    %894 = vmatprep.subr.mxu0 0.0
    %895 = vmatpush1.xpose.msra.mxu0 0.0
    %896 = vmatprep.subr.mxu0 0.0
    %897 = vmatpush1.xpose.msra.mxu0 0.0
    %898 = vmatprep.subr.mxu0 0.0
    %899 = vmatpush1.xpose.msra.mxu0 0.0
    %900 = vmatprep.subr.mxu0 0.0
    %901 = vmatpush1.xpose.msra.mxu0 0.0
    %902 = vmatprep.subr.mxu0 0.0
    %903 = vmatpush1.xpose.msra.mxu0 0.0
    %904 = vmatprep.subr.mxu0 0.0
    %905 = vmatpush1.xpose.msra.mxu0 0.0
    %906 = vmatprep.subr.mxu0 0.0
    %907 = vmatpush1.xpose.msra.mxu0 0.0
    %908 = vmatprep.subr.mxu0 0.0
    %909 = vmatpush1.xpose.msra.mxu0 0.0
    %910 = vmatprep.subr.mxu0 0.0
    %911 = vmatpush1.xpose.msra.mxu0 0.0
    %912 = vmatprep.subr.mxu0 0.0
    %913 = vmatpush1.xpose.msra.mxu0 0.0
    %914 = vmatprep.subr.mxu0 0.0
    %915 = vmatpush1.xpose.msra.mxu0 0.0
    %916 = vmatprep.subr.mxu0 0.0
    %917 = vmatpush1.xpose.msra.mxu0 0.0
    %918 = vmatprep.subr.mxu0 0.0
    %919 = vmatpush1.xpose.msra.mxu0 0.0
    %920 = vmatprep.subr.mxu0 0.0
    %921 = vmatpush1.xpose.msra.mxu0 0.0
    %922 = vmatprep.subr.mxu0 0.0
    %923 = vmatpush1.xpose.msra.mxu0 0.0
    %924 = vmatprep.subr.mxu0 0.0
    %925 = vmatpush1.xpose.msra.mxu0 0.0
    %926 = vmatprep.subr.mxu0 0.0
    %927 = vmatpush1.xpose.msra.mxu0 0.0
    %928 = vmatprep.subr.mxu0 0.0
    %929 = vmatpush1.xpose.msra.mxu0 0.0
    %930 = vmatprep.subr.mxu0 0.0
    %931 = vmatpush1.xpose.msra.mxu0 0.0
    %932 = vmatprep.subr.mxu0 0.0
    %933 = vmatpush1.xpose.msra.mxu0 0.0
    %934 = vmatprep.subr.mxu0 0.0
    %935 = vmatpush1.xpose.msra.mxu0 0.0
    %936 = vmatprep.subr.mxu0 0.0
    %937 = vmatpush1.xpose.msra.mxu0 0.0
    %938 = vmatprep.subr.mxu0 0.0
    %939 = vmatpush1.xpose.msra.mxu0 0.0
    %940 = vmatprep.subr.mxu0 0.0
    %941 = vmatpush1.xpose.msra.mxu0 0.0
    %942 = vmatprep.subr.mxu0 0.0
    %943 = vmatpush1.xpose.msra.mxu0 0.0
    %944 = vmatprep.subr.mxu0 0.0
    %945 = vmatpush1.xpose.msra.mxu0 0.0
    %946 = vmatprep.subr.mxu0 0.0
    %947 = vmatpush1.xpose.msra.mxu0 0.0
    %948 = vmatprep.subr.mxu0 0.0
    %949 = vmatpush1.xpose.msra.mxu0 0.0
    %950 = vmatprep.mubr.f32.mxu0 0.0
    %951 = vmatmul.mubr.f32.gmra.mrb[0].mxu0 %v882
    %v952 = vpop.f32.mrb[0].mxu0
    %v953 = vadd.f32 0.0, %v952
    %v954 = vpop.f32.mrb[0].mxu0
    %955 = vdwg.mxu0
    %957 = vrot.lane.b32.xlu0 %v329, 96
    %v958 = vpop.permute.xlu0 %957
    %v959 = vsel %vm335, %v329, 0
    %v961 = vsel %vm335, %v958, 0
    %963 = vmatprep.subr.mxu0 0.0
    %964 = vmatpush1.xpose.msra.mxu0 %v961
    %965 = vmatprep.subr.mxu0 0.0
    %966 = vmatpush1.xpose.msra.mxu0 0.0
    %967 = vmatprep.subr.mxu0 0.0
    %968 = vmatpush1.xpose.msra.mxu0 0.0
    %969 = vmatprep.subr.mxu0 0.0
    %970 = vmatpush1.xpose.msra.mxu0 0.0
    %971 = vmatprep.subr.mxu0 0.0
    %972 = vmatpush1.xpose.msra.mxu0 0.0
    %973 = vmatprep.subr.mxu0 0.0
    %974 = vmatpush1.xpose.msra.mxu0 0.0
    %975 = vmatprep.subr.mxu0 0.0
    %976 = vmatpush1.xpose.msra.mxu0 0.0
    %977 = vmatprep.subr.mxu0 0.0
    %978 = vmatpush1.xpose.msra.mxu0 0.0
    %979 = vmatprep.subr.mxu0 0.0
    %980 = vmatpush1.xpose.msra.mxu0 0.0
    %981 = vmatprep.subr.mxu0 0.0
    %982 = vmatpush1.xpose.msra.mxu0 0.0
    %983 = vmatprep.subr.mxu0 0.0
    %984 = vmatpush1.xpose.msra.mxu0 0.0
    %985 = vmatprep.subr.mxu0 0.0
    %986 = vmatpush1.xpose.msra.mxu0 0.0
    %987 = vmatprep.subr.mxu0 0.0
    %988 = vmatpush1.xpose.msra.mxu0 0.0
    %989 = vmatprep.subr.mxu0 0.0
    %990 = vmatpush1.xpose.msra.mxu0 0.0
    %991 = vmatprep.subr.mxu0 0.0
    %992 = vmatpush1.xpose.msra.mxu0 0.0
    %993 = vmatprep.subr.mxu0 0.0
    %994 = vmatpush1.xpose.msra.mxu0 0.0
    %995 = vmatprep.subr.mxu0 0.0
    %996 = vmatpush1.xpose.msra.mxu0 0.0
    %997 = vmatprep.subr.mxu0 0.0
    %998 = vmatpush1.xpose.msra.mxu0 0.0
    %999 = vmatprep.subr.mxu0 0.0
    %1000 = vmatpush1.xpose.msra.mxu0 0.0
    %1001 = vmatprep.subr.mxu0 0.0
    %1002 = vmatpush1.xpose.msra.mxu0 0.0
    %1003 = vmatprep.subr.mxu0 0.0
    %1004 = vmatpush1.xpose.msra.mxu0 0.0
    %1005 = vmatprep.subr.mxu0 0.0
    %1006 = vmatpush1.xpose.msra.mxu0 0.0
    %1007 = vmatprep.subr.mxu0 0.0
    %1008 = vmatpush1.xpose.msra.mxu0 0.0
    %1009 = vmatprep.subr.mxu0 0.0
    %1010 = vmatpush1.xpose.msra.mxu0 0.0
    %1011 = vmatprep.subr.mxu0 0.0
    %1012 = vmatpush1.xpose.msra.mxu0 0.0
    %1013 = vmatprep.subr.mxu0 0.0
    %1014 = vmatpush1.xpose.msra.mxu0 0.0
    %1015 = vmatprep.subr.mxu0 0.0
    %1016 = vmatpush1.xpose.msra.mxu0 0.0
    %1017 = vmatprep.subr.mxu0 0.0
    %1018 = vmatpush1.xpose.msra.mxu0 0.0
    %1019 = vmatprep.subr.mxu0 0.0
    %1020 = vmatpush1.xpose.msra.mxu0 0.0
    %1021 = vmatprep.subr.mxu0 0.0
    %1022 = vmatpush1.xpose.msra.mxu0 0.0
    %1023 = vmatprep.subr.mxu0 0.0
    %1024 = vmatpush1.xpose.msra.mxu0 0.0
    %1025 = vmatprep.subr.mxu0 0.0
    %1026 = vmatpush1.xpose.msra.mxu0 0.0
    %1027 = vmatprep.mubr.f32.mxu0 0.0
    %1028 = vmatmul.mubr.f32.gmra.mrb[0].mxu0 %v959
    %v1029 = vpop.f32.mrb[0].mxu0
    %v1030 = vadd.f32 0.0, %v1029
    %v1031 = vpop.f32.mrb[0].mxu0
    %1032 = vdwg.mxu0
    %1033 = vrot.lane.b32.xlu0 %v329, 124
    %v1034 = vpop.permute.xlu0 %1033
    %1035 = vrot.lane.b32.xlu0 %v329, 92
    %v1036 = vpop.permute.xlu0 %1035
    %v1037 = vsel %vm335, %v1034, 0
    %v1039 = vsel %vm335, %v1036, 0
    %1041 = vmatprep.subr.mxu0 0.0
    %1042 = vmatpush1.xpose.msra.mxu0 %v1039
    %1043 = vmatprep.subr.mxu0 0.0
    %1044 = vmatpush1.xpose.msra.mxu0 0.0
    %1045 = vmatprep.subr.mxu0 0.0
    %1046 = vmatpush1.xpose.msra.mxu0 0.0
    %1047 = vmatprep.subr.mxu0 0.0
    %1048 = vmatpush1.xpose.msra.mxu0 0.0
    %1049 = vmatprep.subr.mxu0 0.0
    %1050 = vmatpush1.xpose.msra.mxu0 0.0
    %1051 = vmatprep.subr.mxu0 0.0
    %1052 = vmatpush1.xpose.msra.mxu0 0.0
    %1053 = vmatprep.subr.mxu0 0.0
    %1054 = vmatpush1.xpose.msra.mxu0 0.0
    %1055 = vmatprep.subr.mxu0 0.0
    %1056 = vmatpush1.xpose.msra.mxu0 0.0
    %1057 = vmatprep.subr.mxu0 0.0
    %1058 = vmatpush1.xpose.msra.mxu0 0.0
    %1059 = vmatprep.subr.mxu0 0.0
    %1060 = vmatpush1.xpose.msra.mxu0 0.0
    %1061 = vmatprep.subr.mxu0 0.0
    %1062 = vmatpush1.xpose.msra.mxu0 0.0
    %1063 = vmatprep.subr.mxu0 0.0
    %1064 = vmatpush1.xpose.msra.mxu0 0.0
    %1065 = vmatprep.subr.mxu0 0.0
    %1066 = vmatpush1.xpose.msra.mxu0 0.0
    %1067 = vmatprep.subr.mxu0 0.0
    %1068 = vmatpush1.xpose.msra.mxu0 0.0
    %1069 = vmatprep.subr.mxu0 0.0
    %1070 = vmatpush1.xpose.msra.mxu0 0.0
    %1071 = vmatprep.subr.mxu0 0.0
    %1072 = vmatpush1.xpose.msra.mxu0 0.0
    %1073 = vmatprep.subr.mxu0 0.0
    %1074 = vmatpush1.xpose.msra.mxu0 0.0
    %1075 = vmatprep.subr.mxu0 0.0
    %1076 = vmatpush1.xpose.msra.mxu0 0.0
    %1077 = vmatprep.subr.mxu0 0.0
    %1078 = vmatpush1.xpose.msra.mxu0 0.0
    %1079 = vmatprep.subr.mxu0 0.0
    %1080 = vmatpush1.xpose.msra.mxu0 0.0
    %1081 = vmatprep.subr.mxu0 0.0
    %1082 = vmatpush1.xpose.msra.mxu0 0.0
    %1083 = vmatprep.subr.mxu0 0.0
    %1084 = vmatpush1.xpose.msra.mxu0 0.0
    %1085 = vmatprep.subr.mxu0 0.0
    %1086 = vmatpush1.xpose.msra.mxu0 0.0
    %1087 = vmatprep.subr.mxu0 0.0
    %1088 = vmatpush1.xpose.msra.mxu0 0.0
    %1089 = vmatprep.subr.mxu0 0.0
    %1090 = vmatpush1.xpose.msra.mxu0 0.0
    %1091 = vmatprep.subr.mxu0 0.0
    %1092 = vmatpush1.xpose.msra.mxu0 0.0
    %1093 = vmatprep.subr.mxu0 0.0
    %1094 = vmatpush1.xpose.msra.mxu0 0.0
    %1095 = vmatprep.subr.mxu0 0.0
    %1096 = vmatpush1.xpose.msra.mxu0 0.0
    %1097 = vmatprep.subr.mxu0 0.0
    %1098 = vmatpush1.xpose.msra.mxu0 0.0
    %1099 = vmatprep.subr.mxu0 0.0
    %1100 = vmatpush1.xpose.msra.mxu0 0.0
    %1101 = vmatprep.subr.mxu0 0.0
    %1102 = vmatpush1.xpose.msra.mxu0 0.0
    %1103 = vmatprep.subr.mxu0 0.0
    %1104 = vmatpush1.xpose.msra.mxu0 0.0
    %1105 = vmatprep.mubr.f32.mxu0 0.0
    %1106 = vmatmul.mubr.f32.gmra.mrb[0].mxu0 %v1037
    %v1107 = vpop.f32.mrb[0].mxu0
    %v1108 = vadd.f32 0.0, %v1107
    %v1109 = vpop.f32.mrb[0].mxu0
    %1110 = vdwg.mxu0
    %1111 = vrot.lane.b32.xlu0 %v329, 120
    %v1112 = vpop.permute.xlu0 %1111
    %1113 = vrot.lane.b32.xlu0 %v329, 88
    %v1114 = vpop.permute.xlu0 %1113
    %v1115 = vsel %vm335, %v1112, 0
    %v1117 = vsel %vm335, %v1114, 0
    %1119 = vmatprep.subr.mxu0 0.0
    %1120 = vmatpush1.xpose.msra.mxu0 %v1117
    %1121 = vmatprep.subr.mxu0 0.0
    %1122 = vmatpush1.xpose.msra.mxu0 0.0
    %1123 = vmatprep.subr.mxu0 0.0
    %1124 = vmatpush1.xpose.msra.mxu0 0.0
    %1125 = vmatprep.subr.mxu0 0.0
    %1126 = vmatpush1.xpose.msra.mxu0 0.0
    %1127 = vmatprep.subr.mxu0 0.0
    %1128 = vmatpush1.xpose.msra.mxu0 0.0
    %1129 = vmatprep.subr.mxu0 0.0
    %1130 = vmatpush1.xpose.msra.mxu0 0.0
    %1131 = vmatprep.subr.mxu0 0.0
    %1132 = vmatpush1.xpose.msra.mxu0 0.0
    %1133 = vmatprep.subr.mxu0 0.0
    %1134 = vmatpush1.xpose.msra.mxu0 0.0
    %1135 = vmatprep.subr.mxu0 0.0
    %1136 = vmatpush1.xpose.msra.mxu0 0.0
    %1137 = vmatprep.subr.mxu0 0.0
    %1138 = vmatpush1.xpose.msra.mxu0 0.0
    %1139 = vmatprep.subr.mxu0 0.0
    %1140 = vmatpush1.xpose.msra.mxu0 0.0
    %1141 = vmatprep.subr.mxu0 0.0
    %1142 = vmatpush1.xpose.msra.mxu0 0.0
    %1143 = vmatprep.subr.mxu0 0.0
    %1144 = vmatpush1.xpose.msra.mxu0 0.0
    %1145 = vmatprep.subr.mxu0 0.0
    %1146 = vmatpush1.xpose.msra.mxu0 0.0
    %1147 = vmatprep.subr.mxu0 0.0
    %1148 = vmatpush1.xpose.msra.mxu0 0.0
    %1149 = vmatprep.subr.mxu0 0.0
    %1150 = vmatpush1.xpose.msra.mxu0 0.0
    %1151 = vmatprep.subr.mxu0 0.0
    %1152 = vmatpush1.xpose.msra.mxu0 0.0
    %1153 = vmatprep.subr.mxu0 0.0
    %1154 = vmatpush1.xpose.msra.mxu0 0.0
    %1155 = vmatprep.subr.mxu0 0.0
    %1156 = vmatpush1.xpose.msra.mxu0 0.0
    %1157 = vmatprep.subr.mxu0 0.0
    %1158 = vmatpush1.xpose.msra.mxu0 0.0
    %1159 = vmatprep.subr.mxu0 0.0
    %1160 = vmatpush1.xpose.msra.mxu0 0.0
    %1161 = vmatprep.subr.mxu0 0.0
    %1162 = vmatpush1.xpose.msra.mxu0 0.0
    %1163 = vmatprep.subr.mxu0 0.0
    %1164 = vmatpush1.xpose.msra.mxu0 0.0
    %1165 = vmatprep.subr.mxu0 0.0
    %1166 = vmatpush1.xpose.msra.mxu0 0.0
    %1167 = vmatprep.subr.mxu0 0.0
    %1168 = vmatpush1.xpose.msra.mxu0 0.0
    %1169 = vmatprep.subr.mxu0 0.0
    %1170 = vmatpush1.xpose.msra.mxu0 0.0
    %1171 = vmatprep.subr.mxu0 0.0
    %1172 = vmatpush1.xpose.msra.mxu0 0.0
    %1173 = vmatprep.subr.mxu0 0.0
    %1174 = vmatpush1.xpose.msra.mxu0 0.0
    %1175 = vmatprep.subr.mxu0 0.0
    %1176 = vmatpush1.xpose.msra.mxu0 0.0
    %1177 = vmatprep.subr.mxu0 0.0
    %1178 = vmatpush1.xpose.msra.mxu0 0.0
    %1179 = vmatprep.subr.mxu0 0.0
    %1180 = vmatpush1.xpose.msra.mxu0 0.0
    %1181 = vmatprep.subr.mxu0 0.0
    %1182 = vmatpush1.xpose.msra.mxu0 0.0
    %1183 = vmatprep.mubr.f32.mxu0 0.0
    %1184 = vmatmul.mubr.f32.gmra.mrb[0].mxu0 %v1115
    %v1185 = vpop.f32.mrb[0].mxu0
    %v1186 = vadd.f32 0.0, %v1185
    %v1187 = vpop.f32.mrb[0].mxu0
    %1188 = vdwg.mxu0
    %1189 = vrot.lane.b32.xlu0 %v329, 116
    %v1190 = vpop.permute.xlu0 %1189
    %1191 = vrot.lane.b32.xlu0 %v329, 84
    %v1192 = vpop.permute.xlu0 %1191
    %v1193 = vsel %vm335, %v1190, 0
    %v1195 = vsel %vm335, %v1192, 0
    %1197 = vmatprep.subr.mxu0 0.0
    %1198 = vmatpush1.xpose.msra.mxu0 %v1195
    %1199 = vmatprep.subr.mxu0 0.0
    %1200 = vmatpush1.xpose.msra.mxu0 0.0
    %1201 = vmatprep.subr.mxu0 0.0
    %1202 = vmatpush1.xpose.msra.mxu0 0.0
    %1203 = vmatprep.subr.mxu0 0.0
    %1204 = vmatpush1.xpose.msra.mxu0 0.0
    %1205 = vmatprep.subr.mxu0 0.0
    %1206 = vmatpush1.xpose.msra.mxu0 0.0
    %1207 = vmatprep.subr.mxu0 0.0
    %1208 = vmatpush1.xpose.msra.mxu0 0.0
    %1209 = vmatprep.subr.mxu0 0.0
    %1210 = vmatpush1.xpose.msra.mxu0 0.0
    %1211 = vmatprep.subr.mxu0 0.0
    %1212 = vmatpush1.xpose.msra.mxu0 0.0
    %1213 = vmatprep.subr.mxu0 0.0
    %1214 = vmatpush1.xpose.msra.mxu0 0.0
    %1215 = vmatprep.subr.mxu0 0.0
    %1216 = vmatpush1.xpose.msra.mxu0 0.0
    %1217 = vmatprep.subr.mxu0 0.0
    %1218 = vmatpush1.xpose.msra.mxu0 0.0
    %1219 = vmatprep.subr.mxu0 0.0
    %1220 = vmatpush1.xpose.msra.mxu0 0.0
    %1221 = vmatprep.subr.mxu0 0.0
    %1222 = vmatpush1.xpose.msra.mxu0 0.0
    %1223 = vmatprep.subr.mxu0 0.0
    %1224 = vmatpush1.xpose.msra.mxu0 0.0
    %1225 = vmatprep.subr.mxu0 0.0
    %1226 = vmatpush1.xpose.msra.mxu0 0.0
    %1227 = vmatprep.subr.mxu0 0.0
    %1228 = vmatpush1.xpose.msra.mxu0 0.0
    %1229 = vmatprep.subr.mxu0 0.0
    %1230 = vmatpush1.xpose.msra.mxu0 0.0
    %1231 = vmatprep.subr.mxu0 0.0
    %1232 = vmatpush1.xpose.msra.mxu0 0.0
    %1233 = vmatprep.subr.mxu0 0.0
    %1234 = vmatpush1.xpose.msra.mxu0 0.0
    %1235 = vmatprep.subr.mxu0 0.0
    %1236 = vmatpush1.xpose.msra.mxu0 0.0
    %1237 = vmatprep.subr.mxu0 0.0
    %1238 = vmatpush1.xpose.msra.mxu0 0.0
    %1239 = vmatprep.subr.mxu0 0.0
    %1240 = vmatpush1.xpose.msra.mxu0 0.0
    %1241 = vmatprep.subr.mxu0 0.0
    %1242 = vmatpush1.xpose.msra.mxu0 0.0
    %1243 = vmatprep.subr.mxu0 0.0
    %1244 = vmatpush1.xpose.msra.mxu0 0.0
    %1245 = vmatprep.subr.mxu0 0.0
    %1246 = vmatpush1.xpose.msra.mxu0 0.0
    %1247 = vmatprep.subr.mxu0 0.0
    %1248 = vmatpush1.xpose.msra.mxu0 0.0
    %1249 = vmatprep.subr.mxu0 0.0
    %1250 = vmatpush1.xpose.msra.mxu0 0.0
    %1251 = vmatprep.subr.mxu0 0.0
    %1252 = vmatpush1.xpose.msra.mxu0 0.0
    %1253 = vmatprep.subr.mxu0 0.0
    %1254 = vmatpush1.xpose.msra.mxu0 0.0
    %1255 = vmatprep.subr.mxu0 0.0
    %1256 = vmatpush1.xpose.msra.mxu0 0.0
    %1257 = vmatprep.subr.mxu0 0.0
    %1258 = vmatpush1.xpose.msra.mxu0 0.0
    %1259 = vmatprep.subr.mxu0 0.0
    %1260 = vmatpush1.xpose.msra.mxu0 0.0
    %1261 = vmatprep.mubr.f32.mxu0 0.0
    %1262 = vmatmul.mubr.f32.gmra.mrb[0].mxu0 %v1193
    %v1263 = vpop.f32.mrb[0].mxu0
    %v1264 = vadd.f32 0.0, %v1263
    %v1265 = vpop.f32.mrb[0].mxu0
    %1266 = vdwg.mxu0
    %1267 = vrot.lane.b32.xlu0 %v329, 112
    %v1268 = vpop.permute.xlu0 %1267
    %1269 = vrot.lane.b32.xlu0 %v329, 80
    %v1270 = vpop.permute.xlu0 %1269
    %v1271 = vsel %vm335, %v1268, 0
    %v1273 = vsel %vm335, %v1270, 0
    %1275 = vmatprep.subr.mxu0 0.0
    %1276 = vmatpush1.xpose.msra.mxu0 %v1273
    %1277 = vmatprep.subr.mxu0 0.0
    %1278 = vmatpush1.xpose.msra.mxu0 0.0
    %1279 = vmatprep.subr.mxu0 0.0
    %1280 = vmatpush1.xpose.msra.mxu0 0.0
    %1281 = vmatprep.subr.mxu0 0.0
    %1282 = vmatpush1.xpose.msra.mxu0 0.0
    %1283 = vmatprep.subr.mxu0 0.0
    %1284 = vmatpush1.xpose.msra.mxu0 0.0
    %1285 = vmatprep.subr.mxu0 0.0
    %1286 = vmatpush1.xpose.msra.mxu0 0.0
    %1287 = vmatprep.subr.mxu0 0.0
    %1288 = vmatpush1.xpose.msra.mxu0 0.0
    %1289 = vmatprep.subr.mxu0 0.0
    %1290 = vmatpush1.xpose.msra.mxu0 0.0
    %1291 = vmatprep.subr.mxu0 0.0
    %1292 = vmatpush1.xpose.msra.mxu0 0.0
    %1293 = vmatprep.subr.mxu0 0.0
    %1294 = vmatpush1.xpose.msra.mxu0 0.0
    %1295 = vmatprep.subr.mxu0 0.0
    %1296 = vmatpush1.xpose.msra.mxu0 0.0
    %1297 = vmatprep.subr.mxu0 0.0
    %1298 = vmatpush1.xpose.msra.mxu0 0.0
    %1299 = vmatprep.subr.mxu0 0.0
    %1300 = vmatpush1.xpose.msra.mxu0 0.0
    %1301 = vmatprep.subr.mxu0 0.0
    %1302 = vmatpush1.xpose.msra.mxu0 0.0
    %1303 = vmatprep.subr.mxu0 0.0
    %1304 = vmatpush1.xpose.msra.mxu0 0.0
    %1305 = vmatprep.subr.mxu0 0.0
    %1306 = vmatpush1.xpose.msra.mxu0 0.0
    %1307 = vmatprep.subr.mxu0 0.0
    %1308 = vmatpush1.xpose.msra.mxu0 0.0
    %1309 = vmatprep.subr.mxu0 0.0
    %1310 = vmatpush1.xpose.msra.mxu0 0.0
    %1311 = vmatprep.subr.mxu0 0.0
    %1312 = vmatpush1.xpose.msra.mxu0 0.0
    %1313 = vmatprep.subr.mxu0 0.0
    %1314 = vmatpush1.xpose.msra.mxu0 0.0
    %1315 = vmatprep.subr.mxu0 0.0
    %1316 = vmatpush1.xpose.msra.mxu0 0.0
    %1317 = vmatprep.subr.mxu0 0.0
    %1318 = vmatpush1.xpose.msra.mxu0 0.0
    %1319 = vmatprep.subr.mxu0 0.0
    %1320 = vmatpush1.xpose.msra.mxu0 0.0
    %1321 = vmatprep.subr.mxu0 0.0
    %1322 = vmatpush1.xpose.msra.mxu0 0.0
    %1323 = vmatprep.subr.mxu0 0.0
    %1324 = vmatpush1.xpose.msra.mxu0 0.0
    %1325 = vmatprep.subr.mxu0 0.0
    %1326 = vmatpush1.xpose.msra.mxu0 0.0
    %1327 = vmatprep.subr.mxu0 0.0
    %1328 = vmatpush1.xpose.msra.mxu0 0.0
    %1329 = vmatprep.subr.mxu0 0.0
    %1330 = vmatpush1.xpose.msra.mxu0 0.0
    %1331 = vmatprep.subr.mxu0 0.0
    %1332 = vmatpush1.xpose.msra.mxu0 0.0
    %1333 = vmatprep.subr.mxu0 0.0
    %1334 = vmatpush1.xpose.msra.mxu0 0.0
    %1335 = vmatprep.subr.mxu0 0.0
    %1336 = vmatpush1.xpose.msra.mxu0 0.0
    %1337 = vmatprep.subr.mxu0 0.0
    %1338 = vmatpush1.xpose.msra.mxu0 0.0
    %1339 = vmatprep.mubr.f32.mxu0 0.0
    %1340 = vmatmul.mubr.f32.gmra.mrb[0].mxu0 %v1271
    %v1341 = vpop.f32.mrb[0].mxu0
    %v1342 = vadd.f32 0.0, %v1341
    %v1343 = vpop.f32.mrb[0].mxu0
    %1344 = vdwg.mxu0
    %1345 = vrot.lane.b32.xlu0 %v329, 108
    %v1346 = vpop.permute.xlu0 %1345
    %1347 = vrot.lane.b32.xlu0 %v329, 76
    %v1348 = vpop.permute.xlu0 %1347
    %v1349 = vsel %vm335, %v1346, 0
    %v1351 = vsel %vm335, %v1348, 0
    %1353 = vmatprep.subr.mxu0 0.0
    %1354 = vmatpush1.xpose.msra.mxu0 %v1351
    %1355 = vmatprep.subr.mxu0 0.0
    %1356 = vmatpush1.xpose.msra.mxu0 0.0
    %1357 = vmatprep.subr.mxu0 0.0
    %1358 = vmatpush1.xpose.msra.mxu0 0.0
    %1359 = vmatprep.subr.mxu0 0.0
    %1360 = vmatpush1.xpose.msra.mxu0 0.0
    %1361 = vmatprep.subr.mxu0 0.0
    %1362 = vmatpush1.xpose.msra.mxu0 0.0
    %1363 = vmatprep.subr.mxu0 0.0
    %1364 = vmatpush1.xpose.msra.mxu0 0.0
    %1365 = vmatprep.subr.mxu0 0.0
    %1366 = vmatpush1.xpose.msra.mxu0 0.0
    %1367 = vmatprep.subr.mxu0 0.0
    %1368 = vmatpush1.xpose.msra.mxu0 0.0
    %1369 = vmatprep.subr.mxu0 0.0
    %1370 = vmatpush1.xpose.msra.mxu0 0.0
    %1371 = vmatprep.subr.mxu0 0.0
    %1372 = vmatpush1.xpose.msra.mxu0 0.0
    %1373 = vmatprep.subr.mxu0 0.0
    %1374 = vmatpush1.xpose.msra.mxu0 0.0
    %1375 = vmatprep.subr.mxu0 0.0
    %1376 = vmatpush1.xpose.msra.mxu0 0.0
    %1377 = vmatprep.subr.mxu0 0.0
    %1378 = vmatpush1.xpose.msra.mxu0 0.0
    %1379 = vmatprep.subr.mxu0 0.0
    %1380 = vmatpush1.xpose.msra.mxu0 0.0
    %1381 = vmatprep.subr.mxu0 0.0
    %1382 = vmatpush1.xpose.msra.mxu0 0.0
    %1383 = vmatprep.subr.mxu0 0.0
    %1384 = vmatpush1.xpose.msra.mxu0 0.0
    %1385 = vmatprep.subr.mxu0 0.0
    %1386 = vmatpush1.xpose.msra.mxu0 0.0
    %1387 = vmatprep.subr.mxu0 0.0
    %1388 = vmatpush1.xpose.msra.mxu0 0.0
    %1389 = vmatprep.subr.mxu0 0.0
    %1390 = vmatpush1.xpose.msra.mxu0 0.0
    %1391 = vmatprep.subr.mxu0 0.0
    %1392 = vmatpush1.xpose.msra.mxu0 0.0
    %1393 = vmatprep.subr.mxu0 0.0
    %1394 = vmatpush1.xpose.msra.mxu0 0.0
    %1395 = vmatprep.subr.mxu0 0.0
    %1396 = vmatpush1.xpose.msra.mxu0 0.0
    %1397 = vmatprep.subr.mxu0 0.0
    %1398 = vmatpush1.xpose.msra.mxu0 0.0
    %1399 = vmatprep.subr.mxu0 0.0
    %1400 = vmatpush1.xpose.msra.mxu0 0.0
    %1401 = vmatprep.subr.mxu0 0.0
    %1402 = vmatpush1.xpose.msra.mxu0 0.0
    %1403 = vmatprep.subr.mxu0 0.0
    %1404 = vmatpush1.xpose.msra.mxu0 0.0
    %1405 = vmatprep.subr.mxu0 0.0
    %1406 = vmatpush1.xpose.msra.mxu0 0.0
    %1407 = vmatprep.subr.mxu0 0.0
    %1408 = vmatpush1.xpose.msra.mxu0 0.0
    %1409 = vmatprep.subr.mxu0 0.0
    %1410 = vmatpush1.xpose.msra.mxu0 0.0
    %1411 = vmatprep.subr.mxu0 0.0
    %1412 = vmatpush1.xpose.msra.mxu0 0.0
    %1413 = vmatprep.subr.mxu0 0.0
    %1414 = vmatpush1.xpose.msra.mxu0 0.0
    %1415 = vmatprep.subr.mxu0 0.0
    %1416 = vmatpush1.xpose.msra.mxu0 0.0
    %1417 = vmatprep.mubr.f32.mxu0 0.0
    %1418 = vmatmul.mubr.f32.gmra.mrb[0].mxu0 %v1349
    %v1419 = vpop.f32.mrb[0].mxu0
    %v1420 = vadd.f32 0.0, %v1419
    %v1421 = vpop.f32.mrb[0].mxu0
    %1422 = vdwg.mxu0
    %1423 = vrot.lane.b32.xlu0 %v329, 104
    %v1424 = vpop.permute.xlu0 %1423
    %1425 = vrot.lane.b32.xlu0 %v329, 72
    %v1426 = vpop.permute.xlu0 %1425
    %v1427 = vsel %vm335, %v1424, 0
    %v1429 = vsel %vm335, %v1426, 0
    %1431 = vmatprep.subr.mxu0 0.0
    %1432 = vmatpush1.xpose.msra.mxu0 %v1429
    %1433 = vmatprep.subr.mxu0 0.0
    %1434 = vmatpush1.xpose.msra.mxu0 0.0
    %1435 = vmatprep.subr.mxu0 0.0
    %1436 = vmatpush1.xpose.msra.mxu0 0.0
    %1437 = vmatprep.subr.mxu0 0.0
    %1438 = vmatpush1.xpose.msra.mxu0 0.0
    %1439 = vmatprep.subr.mxu0 0.0
    %1440 = vmatpush1.xpose.msra.mxu0 0.0
    %1441 = vmatprep.subr.mxu0 0.0
    %1442 = vmatpush1.xpose.msra.mxu0 0.0
    %1443 = vmatprep.subr.mxu0 0.0
    %1444 = vmatpush1.xpose.msra.mxu0 0.0
    %1445 = vmatprep.subr.mxu0 0.0
    %1446 = vmatpush1.xpose.msra.mxu0 0.0
    %1447 = vmatprep.subr.mxu0 0.0
    %1448 = vmatpush1.xpose.msra.mxu0 0.0
    %1449 = vmatprep.subr.mxu0 0.0
    %1450 = vmatpush1.xpose.msra.mxu0 0.0
    %1451 = vmatprep.subr.mxu0 0.0
    %1452 = vmatpush1.xpose.msra.mxu0 0.0
    %1453 = vmatprep.subr.mxu0 0.0
    %1454 = vmatpush1.xpose.msra.mxu0 0.0
    %1455 = vmatprep.subr.mxu0 0.0
    %1456 = vmatpush1.xpose.msra.mxu0 0.0
    %1457 = vmatprep.subr.mxu0 0.0
    %1458 = vmatpush1.xpose.msra.mxu0 0.0
    %1459 = vmatprep.subr.mxu0 0.0
    %1460 = vmatpush1.xpose.msra.mxu0 0.0
    %1461 = vmatprep.subr.mxu0 0.0
    %1462 = vmatpush1.xpose.msra.mxu0 0.0
    %1463 = vmatprep.subr.mxu0 0.0
    %1464 = vmatpush1.xpose.msra.mxu0 0.0
    %1465 = vmatprep.subr.mxu0 0.0
    %1466 = vmatpush1.xpose.msra.mxu0 0.0
    %1467 = vmatprep.subr.mxu0 0.0
    %1468 = vmatpush1.xpose.msra.mxu0 0.0
    %1469 = vmatprep.subr.mxu0 0.0
    %1470 = vmatpush1.xpose.msra.mxu0 0.0
    %1471 = vmatprep.subr.mxu0 0.0
    %1472 = vmatpush1.xpose.msra.mxu0 0.0
    %1473 = vmatprep.subr.mxu0 0.0
    %1474 = vmatpush1.xpose.msra.mxu0 0.0
    %1475 = vmatprep.subr.mxu0 0.0
    %1476 = vmatpush1.xpose.msra.mxu0 0.0
    %1477 = vmatprep.subr.mxu0 0.0
    %1478 = vmatpush1.xpose.msra.mxu0 0.0
    %1479 = vmatprep.subr.mxu0 0.0
    %1480 = vmatpush1.xpose.msra.mxu0 0.0
    %1481 = vmatprep.subr.mxu0 0.0
    %1482 = vmatpush1.xpose.msra.mxu0 0.0
    %1483 = vmatprep.subr.mxu0 0.0
    %1484 = vmatpush1.xpose.msra.mxu0 0.0
    %1485 = vmatprep.subr.mxu0 0.0
    %1486 = vmatpush1.xpose.msra.mxu0 0.0
    %1487 = vmatprep.subr.mxu0 0.0
    %1488 = vmatpush1.xpose.msra.mxu0 0.0
    %1489 = vmatprep.subr.mxu0 0.0
    %1490 = vmatpush1.xpose.msra.mxu0 0.0
    %1491 = vmatprep.subr.mxu0 0.0
    %1492 = vmatpush1.xpose.msra.mxu0 0.0
    %1493 = vmatprep.subr.mxu0 0.0
    %1494 = vmatpush1.xpose.msra.mxu0 0.0
    %1495 = vmatprep.mubr.f32.mxu0 0.0
    %1496 = vmatmul.mubr.f32.gmra.mrb[0].mxu0 %v1427
    %v1497 = vpop.f32.mrb[0].mxu0
    %v1498 = vadd.f32 0.0, %v1497
    %v1499 = vpop.f32.mrb[0].mxu0
    %1500 = vdwg.mxu0
    %1501 = vrot.lane.b32.xlu0 %v329, 100
    %v1502 = vpop.permute.xlu0 %1501
    %1503 = vrot.lane.b32.xlu0 %v329, 68
    %v1504 = vpop.permute.xlu0 %1503
    %v1505 = vsel %vm335, %v1502, 0
    %v1507 = vsel %vm335, %v1504, 0
    %1509 = vmatprep.subr.mxu0 0.0
    %1510 = vmatpush1.xpose.msra.mxu0 %v1507
    %1511 = vmatprep.subr.mxu0 0.0
    %1512 = vmatpush1.xpose.msra.mxu0 0.0
    %1513 = vmatprep.subr.mxu0 0.0
    %1514 = vmatpush1.xpose.msra.mxu0 0.0
    %1515 = vmatprep.subr.mxu0 0.0
    %1516 = vmatpush1.xpose.msra.mxu0 0.0
    %1517 = vmatprep.subr.mxu0 0.0
    %1518 = vmatpush1.xpose.msra.mxu0 0.0
    %1519 = vmatprep.subr.mxu0 0.0
    %1520 = vmatpush1.xpose.msra.mxu0 0.0
    %1521 = vmatprep.subr.mxu0 0.0
    %1522 = vmatpush1.xpose.msra.mxu0 0.0
    %1523 = vmatprep.subr.mxu0 0.0
    %1524 = vmatpush1.xpose.msra.mxu0 0.0
    %1525 = vmatprep.subr.mxu0 0.0
    %1526 = vmatpush1.xpose.msra.mxu0 0.0
    %1527 = vmatprep.subr.mxu0 0.0
    %1528 = vmatpush1.xpose.msra.mxu0 0.0
    %1529 = vmatprep.subr.mxu0 0.0
    %1530 = vmatpush1.xpose.msra.mxu0 0.0
    %1531 = vmatprep.subr.mxu0 0.0
    %1532 = vmatpush1.xpose.msra.mxu0 0.0
    %1533 = vmatprep.subr.mxu0 0.0
    %1534 = vmatpush1.xpose.msra.mxu0 0.0
    %1535 = vmatprep.subr.mxu0 0.0
    %1536 = vmatpush1.xpose.msra.mxu0 0.0
    %1537 = vmatprep.subr.mxu0 0.0
    %1538 = vmatpush1.xpose.msra.mxu0 0.0
    %1539 = vmatprep.subr.mxu0 0.0
    %1540 = vmatpush1.xpose.msra.mxu0 0.0
    %1541 = vmatprep.subr.mxu0 0.0
    %1542 = vmatpush1.xpose.msra.mxu0 0.0
    %1543 = vmatprep.subr.mxu0 0.0
    %1544 = vmatpush1.xpose.msra.mxu0 0.0
    %1545 = vmatprep.subr.mxu0 0.0
    %1546 = vmatpush1.xpose.msra.mxu0 0.0
    %1547 = vmatprep.subr.mxu0 0.0
    %1548 = vmatpush1.xpose.msra.mxu0 0.0
    %1549 = vmatprep.subr.mxu0 0.0
    %1550 = vmatpush1.xpose.msra.mxu0 0.0
    %1551 = vmatprep.subr.mxu0 0.0
    %1552 = vmatpush1.xpose.msra.mxu0 0.0
    %1553 = vmatprep.subr.mxu0 0.0
    %1554 = vmatpush1.xpose.msra.mxu0 0.0
    %1555 = vmatprep.subr.mxu0 0.0
    %1556 = vmatpush1.xpose.msra.mxu0 0.0
    %1557 = vmatprep.subr.mxu0 0.0
    %1558 = vmatpush1.xpose.msra.mxu0 0.0
    %1559 = vmatprep.subr.mxu0 0.0
    %1560 = vmatpush1.xpose.msra.mxu0 0.0
    %1561 = vmatprep.subr.mxu0 0.0
    %1562 = vmatpush1.xpose.msra.mxu0 0.0
    %1563 = vmatprep.subr.mxu0 0.0
    %1564 = vmatpush1.xpose.msra.mxu0 0.0
    %1565 = vmatprep.subr.mxu0 0.0
    %1566 = vmatpush1.xpose.msra.mxu0 0.0
    %1567 = vmatprep.subr.mxu0 0.0
    %1568 = vmatpush1.xpose.msra.mxu0 0.0
    %1569 = vmatprep.subr.mxu0 0.0
    %1570 = vmatpush1.xpose.msra.mxu0 0.0
    %1571 = vmatprep.subr.mxu0 0.0
    %1572 = vmatpush1.xpose.msra.mxu0 0.0
    %1573 = vmatprep.mubr.f32.mxu0 0.0
    %1574 = vmatmul.mubr.f32.gmra.mrb[0].mxu0 %v1505
    %v1575 = vpop.f32.mrb[0].mxu0
    %v1576 = vadd.f32 0.0, %v1575
    %v1577 = vpop.f32.mrb[0].mxu0
    %1578 = vdwg.mxu0
    %v1579 = vmul.f32 %v407, 0.5
    %v1580 = vmul.f32 %v485, 0.5
    %v1581 = vmul.f32 %v563, 0.5
    %v1582 = vmul.f32 %v641, 0.5
    %v1583 = vmul.f32 %v719, 0.5
    %v1584 = vmul.f32 %v797, 0.5
    %v1585 = vmul.f32 %v875, 0.5
    %v1586 = vmul.f32 %v953, 0.5
    %v1587 = vmul.f32 %v1030, 0.5
    %v1588 = vmul.f32 %v1108, 0.5
    %v1589 = vmul.f32 %v1186, 0.5
    %v1590 = vmul.f32 %v1264, 0.5
    %v1591 = vmul.f32 %v1342, 0.5
    %v1592 = vmul.f32 %v1420, 0.5
    %v1593 = vmul.f32 %v1498, 0.5
    %v1594 = vmul.f32 %v1576, 0.5
    %vm1595 = vcmask 64512
    %v1596 = vsel %vm1595, %v1579, -inf
    %1597 = vmax.xlane.f32.xlu0 %v1596
    %v1598 = vpop.xlane.xlu0 %1597
    %v1599 = vsel %vm1595, %v1580, -inf
    %1600 = vmax.xlane.f32.xlu0 %v1599
    %v1601 = vpop.xlane.xlu0 %1600
    %v1602 = vsel %vm1595, %v1581, -inf
    %1603 = vmax.xlane.f32.xlu0 %v1602
    %v1604 = vpop.xlane.xlu0 %1603
    %v1605 = vsel %vm1595, %v1582, -inf
    %1606 = vmax.xlane.f32.xlu0 %v1605
    %v1607 = vpop.xlane.xlu0 %1606
    %v1608 = vsel %vm1595, %v1583, -inf
    %1609 = vmax.xlane.f32.xlu0 %v1608
    %v1610 = vpop.xlane.xlu0 %1609
    %v1611 = vsel %vm1595, %v1584, -inf
    %1612 = vmax.xlane.f32.xlu0 %v1611
    %v1613 = vpop.xlane.xlu0 %1612
    %v1614 = vsel %vm1595, %v1585, -inf
    %1615 = vmax.xlane.f32.xlu0 %v1614
    %v1616 = vpop.xlane.xlu0 %1615
    %v1617 = vsel %vm1595, %v1586, -inf
    %1618 = vmax.xlane.f32.xlu0 %v1617
    %v1619 = vpop.xlane.xlu0 %1618
    %v1620 = vsel %vm1595, %v1587, -inf
    %1621 = vmax.xlane.f32.xlu0 %v1620
    %v1622 = vpop.xlane.xlu0 %1621
    %v1623 = vsel %vm1595, %v1588, -inf
    %1624 = vmax.xlane.f32.xlu0 %v1623
    %v1625 = vpop.xlane.xlu0 %1624
    %v1626 = vsel %vm1595, %v1589, -inf
    %1627 = vmax.xlane.f32.xlu0 %v1626
    %v1628 = vpop.xlane.xlu0 %1627
    %v1629 = vsel %vm1595, %v1590, -inf
    %1630 = vmax.xlane.f32.xlu0 %v1629
    %v1631 = vpop.xlane.xlu0 %1630
    %v1632 = vsel %vm1595, %v1591, -inf
    %1633 = vmax.xlane.f32.xlu0 %v1632
    %v1634 = vpop.xlane.xlu0 %1633
    %v1635 = vsel %vm1595, %v1592, -inf
    %1636 = vmax.xlane.f32.xlu0 %v1635
    %v1637 = vpop.xlane.xlu0 %1636
    %v1638 = vsel %vm1595, %v1593, -inf
    %1639 = vmax.xlane.f32.xlu0 %v1638
    %v1640 = vpop.xlane.xlu0 %1639
    %v1641 = vsel %vm1595, %v1594, -inf
    %1642 = vmax.xlane.f32.xlu0 %v1641
    %v1643 = vpop.xlane.xlu0 %1642
    %v1644 = vsub.f32 %v1579, %v1598
    %v1645 = vsub.f32 %v1580, %v1601
    %v1646 = vsub.f32 %v1581, %v1604
    %v1647 = vsub.f32 %v1582, %v1607
    %v1648 = vsub.f32 %v1583, %v1610
    %v1649 = vsub.f32 %v1584, %v1613
    %v1650 = vsub.f32 %v1585, %v1616
    %v1651 = vsub.f32 %v1586, %v1619
    %v1652 = vsub.f32 %v1587, %v1622
    %v1653 = vsub.f32 %v1588, %v1625
    %v1654 = vsub.f32 %v1589, %v1628
    %v1655 = vsub.f32 %v1590, %v1631
    %v1656 = vsub.f32 %v1591, %v1634
    %v1657 = vsub.f32 %v1592, %v1637
    %v1658 = vsub.f32 %v1593, %v1640
    %v1659 = vsub.f32 %v1594, %v1643
    %v1660 = vmul.f32 %v1644, 1.442695
    %v1661 = vpow.pop %v1660
    %v1662 = vmul.f32 %v1645, 1.442695
    %v1663 = vpow.pop %v1662
    %v1664 = vmul.f32 %v1646, 1.442695
    %v1665 = vpow.pop %v1664
    %v1666 = vmul.f32 %v1647, 1.442695
    %v1667 = vpow.pop %v1666
    %v1668 = vmul.f32 %v1648, 1.442695
    %v1669 = vpow.pop %v1668
    %v1670 = vmul.f32 %v1649, 1.442695
    %v1671 = vpow.pop %v1670
    %v1672 = vmul.f32 %v1650, 1.442695
    %v1673 = vpow.pop %v1672
    %v1674 = vmul.f32 %v1651, 1.442695
    %v1675 = vpow.pop %v1674
    %v1676 = vmul.f32 %v1652, 1.442695
    %v1677 = vpow.pop %v1676
    %v1678 = vmul.f32 %v1653, 1.442695
    %v1679 = vpow.pop %v1678
    %v1680 = vmul.f32 %v1654, 1.442695
    %v1681 = vpow.pop %v1680
    %v1682 = vmul.f32 %v1655, 1.442695
    %v1683 = vpow.pop %v1682
    %v1684 = vmul.f32 %v1656, 1.442695
    %v1685 = vpow.pop %v1684
    %v1686 = vmul.f32 %v1657, 1.442695
    %v1687 = vpow.pop %v1686
    %v1688 = vmul.f32 %v1658, 1.442695
    %v1689 = vpow.pop %v1688
    %v1690 = vmul.f32 %v1659, 1.442695
    %v1691 = vpow.pop %v1690
    %v1692 = vsel %vm1595, %v1661, 0.0
    %1693 = vadd.xlane.f32.xlu0 %v1692
    %v1694 = vpop.xlane.xlu0 %1693
    %v1695 = vsel %vm1595, %v1663, 0.0
    %1696 = vadd.xlane.f32.xlu0 %v1695
    %v1697 = vpop.xlane.xlu0 %1696
    %v1698 = vsel %vm1595, %v1665, 0.0
    %1699 = vadd.xlane.f32.xlu0 %v1698
    %v1700 = vpop.xlane.xlu0 %1699
    %v1701 = vsel %vm1595, %v1667, 0.0
    %1702 = vadd.xlane.f32.xlu0 %v1701
    %v1703 = vpop.xlane.xlu0 %1702
    %v1704 = vsel %vm1595, %v1669, 0.0
    %1705 = vadd.xlane.f32.xlu0 %v1704
    %v1706 = vpop.xlane.xlu0 %1705
    %v1707 = vsel %vm1595, %v1671, 0.0
    %1708 = vadd.xlane.f32.xlu0 %v1707
    %v1709 = vpop.xlane.xlu0 %1708
    %v1710 = vsel %vm1595, %v1673, 0.0
    %1711 = vadd.xlane.f32.xlu0 %v1710
    %v1712 = vpop.xlane.xlu0 %1711
    %v1713 = vsel %vm1595, %v1675, 0.0
    %1714 = vadd.xlane.f32.xlu0 %v1713
    %v1715 = vpop.xlane.xlu0 %1714
    %v1716 = vsel %vm1595, %v1677, 0.0
    %1717 = vadd.xlane.f32.xlu0 %v1716
    %v1718 = vpop.xlane.xlu0 %1717
    %v1719 = vsel %vm1595, %v1679, 0.0
    %1720 = vadd.xlane.f32.xlu0 %v1719
    %v1721 = vpop.xlane.xlu0 %1720
    %v1722 = vsel %vm1595, %v1681, 0.0
    %1723 = vadd.xlane.f32.xlu0 %v1722
    %v1724 = vpop.xlane.xlu0 %1723
    %v1725 = vsel %vm1595, %v1683, 0.0
    %1726 = vadd.xlane.f32.xlu0 %v1725
    %v1727 = vpop.xlane.xlu0 %1726
    %v1728 = vsel %vm1595, %v1685, 0.0
    %1729 = vadd.xlane.f32.xlu0 %v1728
    %v1730 = vpop.xlane.xlu0 %1729
    %v1731 = vsel %vm1595, %v1687, 0.0
    %1732 = vadd.xlane.f32.xlu0 %v1731
    %v1733 = vpop.xlane.xlu0 %1732
    %v1734 = vsel %vm1595, %v1689, 0.0
    %1735 = vadd.xlane.f32.xlu0 %v1734
    %v1736 = vpop.xlane.xlu0 %1735
    %v1737 = vsel %vm1595, %v1691, 0.0
    %1738 = vadd.xlane.f32.xlu0 %v1737
    %v1739 = vpop.xlane.xlu0 %1738
    %v1740 = vrcp.pop %v1694
    %v1741 = vrcp.pop %v1697
    %v1742 = vrcp.pop %v1700
    %v1743 = vrcp.pop %v1703
    %v1744 = vrcp.pop %v1706
    %v1745 = vrcp.pop %v1709
    %v1746 = vrcp.pop %v1712
    %v1747 = vrcp.pop %v1715
    %v1748 = vrcp.pop %v1718
    %v1749 = vrcp.pop %v1721
    %v1750 = vrcp.pop %v1724
    %v1751 = vrcp.pop %v1727
    %v1752 = vrcp.pop %v1730
    %v1753 = vrcp.pop %v1733
    %v1754 = vrcp.pop %v1736
    %v1755 = vrcp.pop %v1739
    %v1756 = vmul.f32 %v1661, %v1740
    %v1757 = vmul.f32 %v1663, %v1741
    %v1758 = vmul.f32 %v1665, %v1742
    %v1759 = vmul.f32 %v1667, %v1743
    %v1760 = vmul.f32 %v1669, %v1744
    %v1761 = vmul.f32 %v1671, %v1745
    %v1762 = vmul.f32 %v1673, %v1746
    %v1763 = vmul.f32 %v1675, %v1747
    %v1764 = vmul.f32 %v1677, %v1748
    %v1765 = vmul.f32 %v1679, %v1749
    %v1766 = vmul.f32 %v1681, %v1750
    %v1767 = vmul.f32 %v1683, %v1751
    %v1768 = vmul.f32 %v1685, %v1752
    %v1769 = vmul.f32 %v1687, %v1753
    %v1770 = vmul.f32 %v1689, %v1754
    %v1771 = vmul.f32 %v1691, %v1755
    %1772 = vrot.lane.b32.xlu0 %v324, 64
    %v1773 = vpop.permute.xlu0 %1772
    %v1776 = vsel %vm1595, %v1756, 0
    %1778 = vmatprep.subr.mxu0 0.0
    %1779 = vmatpush1.msra.mxu0 %v1773
    %1780 = vmatprep.subr.mxu0 0.0
    %1781 = vmatpush1.msra.mxu0 0.0
    %1782 = vmatprep.subr.mxu0 0.0
    %1783 = vmatpush1.msra.mxu0 0.0
    %1784 = vmatprep.subr.mxu0 0.0
    %1785 = vmatpush1.msra.mxu0 0.0
    %1786 = vmatprep.subr.mxu0 0.0
    %1787 = vmatpush1.msra.mxu0 0.0
    %1788 = vmatprep.subr.mxu0 0.0
    %1789 = vmatpush1.msra.mxu0 0.0
    %1790 = vmatprep.subr.mxu0 0.0
    %1791 = vmatpush1.msra.mxu0 0.0
    %1792 = vmatprep.subr.mxu0 0.0
    %1793 = vmatpush1.msra.mxu0 0.0
    %1794 = vmatprep.subr.mxu0 0.0
    %1795 = vmatpush1.msra.mxu0 0.0
    %1796 = vmatprep.subr.mxu0 0.0
    %1797 = vmatpush1.msra.mxu0 0.0
    %1798 = vmatprep.subr.mxu0 0.0
    %1799 = vmatpush1.msra.mxu0 0.0
    %1800 = vmatprep.subr.mxu0 0.0
    %1801 = vmatpush1.msra.mxu0 0.0
    %1802 = vmatprep.subr.mxu0 0.0
    %1803 = vmatpush1.msra.mxu0 0.0
    %1804 = vmatprep.subr.mxu0 0.0
    %1805 = vmatpush1.msra.mxu0 0.0
    %1806 = vmatprep.subr.mxu0 0.0
    %1807 = vmatpush1.msra.mxu0 0.0
    %1808 = vmatprep.subr.mxu0 0.0
    %1809 = vmatpush1.msra.mxu0 0.0
    %1810 = vmatprep.subr.mxu0 0.0
    %1811 = vmatpush1.msra.mxu0 0.0
    %1812 = vmatprep.subr.mxu0 0.0
    %1813 = vmatpush1.msra.mxu0 0.0
    %1814 = vmatprep.subr.mxu0 0.0
    %1815 = vmatpush1.msra.mxu0 0.0
    %1816 = vmatprep.subr.mxu0 0.0
    %1817 = vmatpush1.msra.mxu0 0.0
    %1818 = vmatprep.subr.mxu0 0.0
    %1819 = vmatpush1.msra.mxu0 0.0
    %1820 = vmatprep.subr.mxu0 0.0
    %1821 = vmatpush1.msra.mxu0 0.0
    %1822 = vmatprep.subr.mxu0 0.0
    %1823 = vmatpush1.msra.mxu0 0.0
    %1824 = vmatprep.subr.mxu0 0.0
    %1825 = vmatpush1.msra.mxu0 0.0
    %1826 = vmatprep.subr.mxu0 0.0
    %1827 = vmatpush1.msra.mxu0 0.0
    %1828 = vmatprep.subr.mxu0 0.0
    %1829 = vmatpush1.msra.mxu0 0.0
    %1830 = vmatprep.subr.mxu0 0.0
    %1831 = vmatpush1.msra.mxu0 0.0
    %1832 = vmatprep.subr.mxu0 0.0
    %1833 = vmatpush1.msra.mxu0 0.0
    %1834 = vmatprep.subr.mxu0 0.0
    %1835 = vmatpush1.msra.mxu0 0.0
    %1836 = vmatprep.subr.mxu0 0.0
    %1837 = vmatpush1.msra.mxu0 0.0
    %1838 = vmatprep.subr.mxu0 0.0
    %1839 = vmatpush1.msra.mxu0 0.0
    %1840 = vmatprep.subr.mxu0 0.0
    %1841 = vmatpush1.msra.mxu0 0.0
    %1842 = vmatprep.mubr.f32.mxu0 0.0
    %1843 = vmatmul.mubr.f32.gmra.mrb[0].mxu0 %v1776
    %v1844 = vpop.f32.mrb[0].mxu0
    %v1845 = vadd.f32 0.0, %v1844
    %v1846 = vpop.f32.mrb[0].mxu0
    %1847 = vdwg.mxu0
    %1848 = vrot.lane.b32.xlu0 %v324, 60
    %v1849 = vpop.permute.xlu0 %1848
    %v1852 = vsel %vm1595, %v1757, 0
    %1854 = vmatprep.subr.mxu0 0.0
    %1855 = vmatpush1.msra.mxu0 %v1849
    %1856 = vmatprep.subr.mxu0 0.0
    %1857 = vmatpush1.msra.mxu0 0.0
    %1858 = vmatprep.subr.mxu0 0.0
    %1859 = vmatpush1.msra.mxu0 0.0
    %1860 = vmatprep.subr.mxu0 0.0
    %1861 = vmatpush1.msra.mxu0 0.0
    %1862 = vmatprep.subr.mxu0 0.0
    %1863 = vmatpush1.msra.mxu0 0.0
    %1864 = vmatprep.subr.mxu0 0.0
    %1865 = vmatpush1.msra.mxu0 0.0
    %1866 = vmatprep.subr.mxu0 0.0
    %1867 = vmatpush1.msra.mxu0 0.0
    %1868 = vmatprep.subr.mxu0 0.0
    %1869 = vmatpush1.msra.mxu0 0.0
    %1870 = vmatprep.subr.mxu0 0.0
    %1871 = vmatpush1.msra.mxu0 0.0
    %1872 = vmatprep.subr.mxu0 0.0
    %1873 = vmatpush1.msra.mxu0 0.0
    %1874 = vmatprep.subr.mxu0 0.0
    %1875 = vmatpush1.msra.mxu0 0.0
    %1876 = vmatprep.subr.mxu0 0.0
    %1877 = vmatpush1.msra.mxu0 0.0
    %1878 = vmatprep.subr.mxu0 0.0
    %1879 = vmatpush1.msra.mxu0 0.0
    %1880 = vmatprep.subr.mxu0 0.0
    %1881 = vmatpush1.msra.mxu0 0.0
    %1882 = vmatprep.subr.mxu0 0.0
    %1883 = vmatpush1.msra.mxu0 0.0
    %1884 = vmatprep.subr.mxu0 0.0
    %1885 = vmatpush1.msra.mxu0 0.0
    %1886 = vmatprep.subr.mxu0 0.0
    %1887 = vmatpush1.msra.mxu0 0.0
    %1888 = vmatprep.subr.mxu0 0.0
    %1889 = vmatpush1.msra.mxu0 0.0
    %1890 = vmatprep.subr.mxu0 0.0
    %1891 = vmatpush1.msra.mxu0 0.0
    %1892 = vmatprep.subr.mxu0 0.0
    %1893 = vmatpush1.msra.mxu0 0.0
    %1894 = vmatprep.subr.mxu0 0.0
    %1895 = vmatpush1.msra.mxu0 0.0
    %1896 = vmatprep.subr.mxu0 0.0
    %1897 = vmatpush1.msra.mxu0 0.0
    %1898 = vmatprep.subr.mxu0 0.0
    %1899 = vmatpush1.msra.mxu0 0.0
    %1900 = vmatprep.subr.mxu0 0.0
    %1901 = vmatpush1.msra.mxu0 0.0
    %1902 = vmatprep.subr.mxu0 0.0
    %1903 = vmatpush1.msra.mxu0 0.0
    %1904 = vmatprep.subr.mxu0 0.0
    %1905 = vmatpush1.msra.mxu0 0.0
    %1906 = vmatprep.subr.mxu0 0.0
    %1907 = vmatpush1.msra.mxu0 0.0
    %1908 = vmatprep.subr.mxu0 0.0
    %1909 = vmatpush1.msra.mxu0 0.0
    %1910 = vmatprep.subr.mxu0 0.0
    %1911 = vmatpush1.msra.mxu0 0.0
    %1912 = vmatprep.subr.mxu0 0.0
    %1913 = vmatpush1.msra.mxu0 0.0
    %1914 = vmatprep.subr.mxu0 0.0
    %1915 = vmatpush1.msra.mxu0 0.0
    %1916 = vmatprep.subr.mxu0 0.0
    %1917 = vmatpush1.msra.mxu0 0.0
    %1918 = vmatprep.mubr.f32.mxu0 0.0
    %1919 = vmatmul.mubr.f32.gmra.mrb[0].mxu0 %v1852
    %v1920 = vpop.f32.mrb[0].mxu0
    %v1921 = vadd.f32 0.0, %v1920
    %v1922 = vpop.f32.mrb[0].mxu0
    %1923 = vdwg.mxu0
    %1924 = vrot.lane.b32.xlu0 %v324, 56
    %v1925 = vpop.permute.xlu0 %1924
    %v1928 = vsel %vm1595, %v1758, 0
    %1930 = vmatprep.subr.mxu0 0.0
    %1931 = vmatpush1.msra.mxu0 %v1925
    %1932 = vmatprep.subr.mxu0 0.0
    %1933 = vmatpush1.msra.mxu0 0.0
    %1934 = vmatprep.subr.mxu0 0.0
    %1935 = vmatpush1.msra.mxu0 0.0
    %1936 = vmatprep.subr.mxu0 0.0
    %1937 = vmatpush1.msra.mxu0 0.0
    %1938 = vmatprep.subr.mxu0 0.0
    %1939 = vmatpush1.msra.mxu0 0.0
    %1940 = vmatprep.subr.mxu0 0.0
    %1941 = vmatpush1.msra.mxu0 0.0
    %1942 = vmatprep.subr.mxu0 0.0
    %1943 = vmatpush1.msra.mxu0 0.0
    %1944 = vmatprep.subr.mxu0 0.0
    %1945 = vmatpush1.msra.mxu0 0.0
    %1946 = vmatprep.subr.mxu0 0.0
    %1947 = vmatpush1.msra.mxu0 0.0
    %1948 = vmatprep.subr.mxu0 0.0
    %1949 = vmatpush1.msra.mxu0 0.0
    %1950 = vmatprep.subr.mxu0 0.0
    %1951 = vmatpush1.msra.mxu0 0.0
    %1952 = vmatprep.subr.mxu0 0.0
    %1953 = vmatpush1.msra.mxu0 0.0
    %1954 = vmatprep.subr.mxu0 0.0
    %1955 = vmatpush1.msra.mxu0 0.0
    %1956 = vmatprep.subr.mxu0 0.0
    %1957 = vmatpush1.msra.mxu0 0.0
    %1958 = vmatprep.subr.mxu0 0.0
    %1959 = vmatpush1.msra.mxu0 0.0
    %1960 = vmatprep.subr.mxu0 0.0
    %1961 = vmatpush1.msra.mxu0 0.0
    %1962 = vmatprep.subr.mxu0 0.0
    %1963 = vmatpush1.msra.mxu0 0.0
    %1964 = vmatprep.subr.mxu0 0.0
    %1965 = vmatpush1.msra.mxu0 0.0
    %1966 = vmatprep.subr.mxu0 0.0
    %1967 = vmatpush1.msra.mxu0 0.0
    %1968 = vmatprep.subr.mxu0 0.0
    %1969 = vmatpush1.msra.mxu0 0.0
    %1970 = vmatprep.subr.mxu0 0.0
    %1971 = vmatpush1.msra.mxu0 0.0
    %1972 = vmatprep.subr.mxu0 0.0
    %1973 = vmatpush1.msra.mxu0 0.0
    %1974 = vmatprep.subr.mxu0 0.0
    %1975 = vmatpush1.msra.mxu0 0.0
    %1976 = vmatprep.subr.mxu0 0.0
    %1977 = vmatpush1.msra.mxu0 0.0
    %1978 = vmatprep.subr.mxu0 0.0
    %1979 = vmatpush1.msra.mxu0 0.0
    %1980 = vmatprep.subr.mxu0 0.0
    %1981 = vmatpush1.msra.mxu0 0.0
    %1982 = vmatprep.subr.mxu0 0.0
    %1983 = vmatpush1.msra.mxu0 0.0
    %1984 = vmatprep.subr.mxu0 0.0
    %1985 = vmatpush1.msra.mxu0 0.0
    %1986 = vmatprep.subr.mxu0 0.0
    %1987 = vmatpush1.msra.mxu0 0.0
    %1988 = vmatprep.subr.mxu0 0.0
    %1989 = vmatpush1.msra.mxu0 0.0
    %1990 = vmatprep.subr.mxu0 0.0
    %1991 = vmatpush1.msra.mxu0 0.0
    %1992 = vmatprep.subr.mxu0 0.0
    %1993 = vmatpush1.msra.mxu0 0.0
    %1994 = vmatprep.mubr.f32.mxu0 0.0
    %1995 = vmatmul.mubr.f32.gmra.mrb[0].mxu0 %v1928
    %v1996 = vpop.f32.mrb[0].mxu0
    %v1997 = vadd.f32 0.0, %v1996
    %v1998 = vpop.f32.mrb[0].mxu0
    %1999 = vdwg.mxu0
    %2000 = vrot.lane.b32.xlu0 %v324, 52
    %v2001 = vpop.permute.xlu0 %2000
    %v2004 = vsel %vm1595, %v1759, 0
    %2006 = vmatprep.subr.mxu0 0.0
    %2007 = vmatpush1.msra.mxu0 %v2001
    %2008 = vmatprep.subr.mxu0 0.0
    %2009 = vmatpush1.msra.mxu0 0.0
    %2010 = vmatprep.subr.mxu0 0.0
    %2011 = vmatpush1.msra.mxu0 0.0
    %2012 = vmatprep.subr.mxu0 0.0
    %2013 = vmatpush1.msra.mxu0 0.0
    %2014 = vmatprep.subr.mxu0 0.0
    %2015 = vmatpush1.msra.mxu0 0.0
    %2016 = vmatprep.subr.mxu0 0.0
    %2017 = vmatpush1.msra.mxu0 0.0
    %2018 = vmatprep.subr.mxu0 0.0
    %2019 = vmatpush1.msra.mxu0 0.0
    %2020 = vmatprep.subr.mxu0 0.0
    %2021 = vmatpush1.msra.mxu0 0.0
    %2022 = vmatprep.subr.mxu0 0.0
    %2023 = vmatpush1.msra.mxu0 0.0
    %2024 = vmatprep.subr.mxu0 0.0
    %2025 = vmatpush1.msra.mxu0 0.0
    %2026 = vmatprep.subr.mxu0 0.0
    %2027 = vmatpush1.msra.mxu0 0.0
    %2028 = vmatprep.subr.mxu0 0.0
    %2029 = vmatpush1.msra.mxu0 0.0
    %2030 = vmatprep.subr.mxu0 0.0
    %2031 = vmatpush1.msra.mxu0 0.0
    %2032 = vmatprep.subr.mxu0 0.0
    %2033 = vmatpush1.msra.mxu0 0.0
    %2034 = vmatprep.subr.mxu0 0.0
    %2035 = vmatpush1.msra.mxu0 0.0
    %2036 = vmatprep.subr.mxu0 0.0
    %2037 = vmatpush1.msra.mxu0 0.0
    %2038 = vmatprep.subr.mxu0 0.0
    %2039 = vmatpush1.msra.mxu0 0.0
    %2040 = vmatprep.subr.mxu0 0.0
    %2041 = vmatpush1.msra.mxu0 0.0
    %2042 = vmatprep.subr.mxu0 0.0
    %2043 = vmatpush1.msra.mxu0 0.0
    %2044 = vmatprep.subr.mxu0 0.0
    %2045 = vmatpush1.msra.mxu0 0.0
    %2046 = vmatprep.subr.mxu0 0.0
    %2047 = vmatpush1.msra.mxu0 0.0
    %2048 = vmatprep.subr.mxu0 0.0
    %2049 = vmatpush1.msra.mxu0 0.0
    %2050 = vmatprep.subr.mxu0 0.0
    %2051 = vmatpush1.msra.mxu0 0.0
    %2052 = vmatprep.subr.mxu0 0.0
    %2053 = vmatpush1.msra.mxu0 0.0
    %2054 = vmatprep.subr.mxu0 0.0
    %2055 = vmatpush1.msra.mxu0 0.0
    %2056 = vmatprep.subr.mxu0 0.0
    %2057 = vmatpush1.msra.mxu0 0.0
    %2058 = vmatprep.subr.mxu0 0.0
    %2059 = vmatpush1.msra.mxu0 0.0
    %2060 = vmatprep.subr.mxu0 0.0
    %2061 = vmatpush1.msra.mxu0 0.0
    %2062 = vmatprep.subr.mxu0 0.0
    %2063 = vmatpush1.msra.mxu0 0.0
    %2064 = vmatprep.subr.mxu0 0.0
    %2065 = vmatpush1.msra.mxu0 0.0
    %2066 = vmatprep.subr.mxu0 0.0
    %2067 = vmatpush1.msra.mxu0 0.0
    %2068 = vmatprep.subr.mxu0 0.0
    %2069 = vmatpush1.msra.mxu0 0.0
    %2070 = vmatprep.mubr.f32.mxu0 0.0
    %2071 = vmatmul.mubr.f32.gmra.mrb[0].mxu0 %v2004
    %v2072 = vpop.f32.mrb[0].mxu0
    %v2073 = vadd.f32 0.0, %v2072
    %v2074 = vpop.f32.mrb[0].mxu0
    %2075 = vdwg.mxu0
    %2076 = vrot.lane.b32.xlu0 %v324, 48
    %v2077 = vpop.permute.xlu0 %2076
    %v2080 = vsel %vm1595, %v1760, 0
    %2082 = vmatprep.subr.mxu0 0.0
    %2083 = vmatpush1.msra.mxu0 %v2077
    %2084 = vmatprep.subr.mxu0 0.0
    %2085 = vmatpush1.msra.mxu0 0.0
    %2086 = vmatprep.subr.mxu0 0.0
    %2087 = vmatpush1.msra.mxu0 0.0
    %2088 = vmatprep.subr.mxu0 0.0
    %2089 = vmatpush1.msra.mxu0 0.0
    %2090 = vmatprep.subr.mxu0 0.0
    %2091 = vmatpush1.msra.mxu0 0.0
    %2092 = vmatprep.subr.mxu0 0.0
    %2093 = vmatpush1.msra.mxu0 0.0
    %2094 = vmatprep.subr.mxu0 0.0
    %2095 = vmatpush1.msra.mxu0 0.0
    %2096 = vmatprep.subr.mxu0 0.0
    %2097 = vmatpush1.msra.mxu0 0.0
    %2098 = vmatprep.subr.mxu0 0.0
    %2099 = vmatpush1.msra.mxu0 0.0
    %2100 = vmatprep.subr.mxu0 0.0
    %2101 = vmatpush1.msra.mxu0 0.0
    %2102 = vmatprep.subr.mxu0 0.0
    %2103 = vmatpush1.msra.mxu0 0.0
    %2104 = vmatprep.subr.mxu0 0.0
    %2105 = vmatpush1.msra.mxu0 0.0
    %2106 = vmatprep.subr.mxu0 0.0
    %2107 = vmatpush1.msra.mxu0 0.0
    %2108 = vmatprep.subr.mxu0 0.0
    %2109 = vmatpush1.msra.mxu0 0.0
    %2110 = vmatprep.subr.mxu0 0.0
    %2111 = vmatpush1.msra.mxu0 0.0
    %2112 = vmatprep.subr.mxu0 0.0
    %2113 = vmatpush1.msra.mxu0 0.0
    %2114 = vmatprep.subr.mxu0 0.0
    %2115 = vmatpush1.msra.mxu0 0.0
    %2116 = vmatprep.subr.mxu0 0.0
    %2117 = vmatpush1.msra.mxu0 0.0
    %2118 = vmatprep.subr.mxu0 0.0
    %2119 = vmatpush1.msra.mxu0 0.0
    %2120 = vmatprep.subr.mxu0 0.0
    %2121 = vmatpush1.msra.mxu0 0.0
    %2122 = vmatprep.subr.mxu0 0.0
    %2123 = vmatpush1.msra.mxu0 0.0
    %2124 = vmatprep.subr.mxu0 0.0
    %2125 = vmatpush1.msra.mxu0 0.0
    %2126 = vmatprep.subr.mxu0 0.0
    %2127 = vmatpush1.msra.mxu0 0.0
    %2128 = vmatprep.subr.mxu0 0.0
    %2129 = vmatpush1.msra.mxu0 0.0
    %2130 = vmatprep.subr.mxu0 0.0
    %2131 = vmatpush1.msra.mxu0 0.0
    %2132 = vmatprep.subr.mxu0 0.0
    %2133 = vmatpush1.msra.mxu0 0.0
    %2134 = vmatprep.subr.mxu0 0.0
    %2135 = vmatpush1.msra.mxu0 0.0
    %2136 = vmatprep.subr.mxu0 0.0
    %2137 = vmatpush1.msra.mxu0 0.0
    %2138 = vmatprep.subr.mxu0 0.0
    %2139 = vmatpush1.msra.mxu0 0.0
    %2140 = vmatprep.subr.mxu0 0.0
    %2141 = vmatpush1.msra.mxu0 0.0
    %2142 = vmatprep.subr.mxu0 0.0
    %2143 = vmatpush1.msra.mxu0 0.0
    %2144 = vmatprep.subr.mxu0 0.0
    %2145 = vmatpush1.msra.mxu0 0.0
    %2146 = vmatprep.mubr.f32.mxu0 0.0
    %2147 = vmatmul.mubr.f32.gmra.mrb[0].mxu0 %v2080
    %v2148 = vpop.f32.mrb[0].mxu0
    %v2149 = vadd.f32 0.0, %v2148
    %v2150 = vpop.f32.mrb[0].mxu0
    %2151 = vdwg.mxu0
    %2152 = vrot.lane.b32.xlu0 %v324, 44
    %v2153 = vpop.permute.xlu0 %2152
    %v2156 = vsel %vm1595, %v1761, 0
    %2158 = vmatprep.subr.mxu0 0.0
    %2159 = vmatpush1.msra.mxu0 %v2153
    %2160 = vmatprep.subr.mxu0 0.0
    %2161 = vmatpush1.msra.mxu0 0.0
    %2162 = vmatprep.subr.mxu0 0.0
    %2163 = vmatpush1.msra.mxu0 0.0
    %2164 = vmatprep.subr.mxu0 0.0
    %2165 = vmatpush1.msra.mxu0 0.0
    %2166 = vmatprep.subr.mxu0 0.0
    %2167 = vmatpush1.msra.mxu0 0.0
    %2168 = vmatprep.subr.mxu0 0.0
    %2169 = vmatpush1.msra.mxu0 0.0
    %2170 = vmatprep.subr.mxu0 0.0
    %2171 = vmatpush1.msra.mxu0 0.0
    %2172 = vmatprep.subr.mxu0 0.0
    %2173 = vmatpush1.msra.mxu0 0.0
    %2174 = vmatprep.subr.mxu0 0.0
    %2175 = vmatpush1.msra.mxu0 0.0
    %2176 = vmatprep.subr.mxu0 0.0
    %2177 = vmatpush1.msra.mxu0 0.0
    %2178 = vmatprep.subr.mxu0 0.0
    %2179 = vmatpush1.msra.mxu0 0.0
    %2180 = vmatprep.subr.mxu0 0.0
    %2181 = vmatpush1.msra.mxu0 0.0
    %2182 = vmatprep.subr.mxu0 0.0
    %2183 = vmatpush1.msra.mxu0 0.0
    %2184 = vmatprep.subr.mxu0 0.0
    %2185 = vmatpush1.msra.mxu0 0.0
    %2186 = vmatprep.subr.mxu0 0.0
    %2187 = vmatpush1.msra.mxu0 0.0
    %2188 = vmatprep.subr.mxu0 0.0
    %2189 = vmatpush1.msra.mxu0 0.0
    %2190 = vmatprep.subr.mxu0 0.0
    %2191 = vmatpush1.msra.mxu0 0.0
    %2192 = vmatprep.subr.mxu0 0.0
    %2193 = vmatpush1.msra.mxu0 0.0
    %2194 = vmatprep.subr.mxu0 0.0
    %2195 = vmatpush1.msra.mxu0 0.0
    %2196 = vmatprep.subr.mxu0 0.0
    %2197 = vmatpush1.msra.mxu0 0.0
    %2198 = vmatprep.subr.mxu0 0.0
    %2199 = vmatpush1.msra.mxu0 0.0
    %2200 = vmatprep.subr.mxu0 0.0
    %2201 = vmatpush1.msra.mxu0 0.0
    %2202 = vmatprep.subr.mxu0 0.0
    %2203 = vmatpush1.msra.mxu0 0.0
    %2204 = vmatprep.subr.mxu0 0.0
    %2205 = vmatpush1.msra.mxu0 0.0
    %2206 = vmatprep.subr.mxu0 0.0
    %2207 = vmatpush1.msra.mxu0 0.0
    %2208 = vmatprep.subr.mxu0 0.0
    %2209 = vmatpush1.msra.mxu0 0.0
    %2210 = vmatprep.subr.mxu0 0.0
    %2211 = vmatpush1.msra.mxu0 0.0
    %2212 = vmatprep.subr.mxu0 0.0
    %2213 = vmatpush1.msra.mxu0 0.0
    %2214 = vmatprep.subr.mxu0 0.0
    %2215 = vmatpush1.msra.mxu0 0.0
    %2216 = vmatprep.subr.mxu0 0.0
    %2217 = vmatpush1.msra.mxu0 0.0
    %2218 = vmatprep.subr.mxu0 0.0
    %2219 = vmatpush1.msra.mxu0 0.0
    %2220 = vmatprep.subr.mxu0 0.0
    %2221 = vmatpush1.msra.mxu0 0.0
    %2222 = vmatprep.mubr.f32.mxu0 0.0
    %2223 = vmatmul.mubr.f32.gmra.mrb[0].mxu0 %v2156
    %v2224 = vpop.f32.mrb[0].mxu0
    %v2225 = vadd.f32 0.0, %v2224
    %v2226 = vpop.f32.mrb[0].mxu0
    %2227 = vdwg.mxu0
    %2228 = vrot.lane.b32.xlu0 %v324, 40
    %v2229 = vpop.permute.xlu0 %2228
    %v2232 = vsel %vm1595, %v1762, 0
    %2234 = vmatprep.subr.mxu0 0.0
    %2235 = vmatpush1.msra.mxu0 %v2229
    %2236 = vmatprep.subr.mxu0 0.0
    %2237 = vmatpush1.msra.mxu0 0.0
    %2238 = vmatprep.subr.mxu0 0.0
    %2239 = vmatpush1.msra.mxu0 0.0
    %2240 = vmatprep.subr.mxu0 0.0
    %2241 = vmatpush1.msra.mxu0 0.0
    %2242 = vmatprep.subr.mxu0 0.0
    %2243 = vmatpush1.msra.mxu0 0.0
    %2244 = vmatprep.subr.mxu0 0.0
    %2245 = vmatpush1.msra.mxu0 0.0
    %2246 = vmatprep.subr.mxu0 0.0
    %2247 = vmatpush1.msra.mxu0 0.0
    %2248 = vmatprep.subr.mxu0 0.0
    %2249 = vmatpush1.msra.mxu0 0.0
    %2250 = vmatprep.subr.mxu0 0.0
    %2251 = vmatpush1.msra.mxu0 0.0
    %2252 = vmatprep.subr.mxu0 0.0
    %2253 = vmatpush1.msra.mxu0 0.0
    %2254 = vmatprep.subr.mxu0 0.0
    %2255 = vmatpush1.msra.mxu0 0.0
    %2256 = vmatprep.subr.mxu0 0.0
    %2257 = vmatpush1.msra.mxu0 0.0
    %2258 = vmatprep.subr.mxu0 0.0
    %2259 = vmatpush1.msra.mxu0 0.0
    %2260 = vmatprep.subr.mxu0 0.0
    %2261 = vmatpush1.msra.mxu0 0.0
    %2262 = vmatprep.subr.mxu0 0.0
    %2263 = vmatpush1.msra.mxu0 0.0
    %2264 = vmatprep.subr.mxu0 0.0
    %2265 = vmatpush1.msra.mxu0 0.0
    %2266 = vmatprep.subr.mxu0 0.0
    %2267 = vmatpush1.msra.mxu0 0.0
    %2268 = vmatprep.subr.mxu0 0.0
    %2269 = vmatpush1.msra.mxu0 0.0
    %2270 = vmatprep.subr.mxu0 0.0
    %2271 = vmatpush1.msra.mxu0 0.0
    %2272 = vmatprep.subr.mxu0 0.0
    %2273 = vmatpush1.msra.mxu0 0.0
    %2274 = vmatprep.subr.mxu0 0.0
    %2275 = vmatpush1.msra.mxu0 0.0
    %2276 = vmatprep.subr.mxu0 0.0
    %2277 = vmatpush1.msra.mxu0 0.0
    %2278 = vmatprep.subr.mxu0 0.0
    %2279 = vmatpush1.msra.mxu0 0.0
    %2280 = vmatprep.subr.mxu0 0.0
    %2281 = vmatpush1.msra.mxu0 0.0
    %2282 = vmatprep.subr.mxu0 0.0
    %2283 = vmatpush1.msra.mxu0 0.0
    %2284 = vmatprep.subr.mxu0 0.0
    %2285 = vmatpush1.msra.mxu0 0.0
    %2286 = vmatprep.subr.mxu0 0.0
    %2287 = vmatpush1.msra.mxu0 0.0
    %2288 = vmatprep.subr.mxu0 0.0
    %2289 = vmatpush1.msra.mxu0 0.0
    %2290 = vmatprep.subr.mxu0 0.0
    %2291 = vmatpush1.msra.mxu0 0.0
    %2292 = vmatprep.subr.mxu0 0.0
    %2293 = vmatpush1.msra.mxu0 0.0
    %2294 = vmatprep.subr.mxu0 0.0
    %2295 = vmatpush1.msra.mxu0 0.0
    %2296 = vmatprep.subr.mxu0 0.0
    %2297 = vmatpush1.msra.mxu0 0.0
    %2298 = vmatprep.mubr.f32.mxu0 0.0
    %2299 = vmatmul.mubr.f32.gmra.mrb[0].mxu0 %v2232
    %v2300 = vpop.f32.mrb[0].mxu0
    %v2301 = vadd.f32 0.0, %v2300
    %v2302 = vpop.f32.mrb[0].mxu0
    %2303 = vdwg.mxu0
    %2304 = vrot.lane.b32.xlu0 %v324, 36
    %v2305 = vpop.permute.xlu0 %2304
    %v2308 = vsel %vm1595, %v1763, 0
    %2310 = vmatprep.subr.mxu0 0.0
    %2311 = vmatpush1.msra.mxu0 %v2305
    %2312 = vmatprep.subr.mxu0 0.0
    %2313 = vmatpush1.msra.mxu0 0.0
    %2314 = vmatprep.subr.mxu0 0.0
    %2315 = vmatpush1.msra.mxu0 0.0
    %2316 = vmatprep.subr.mxu0 0.0
    %2317 = vmatpush1.msra.mxu0 0.0
    %2318 = vmatprep.subr.mxu0 0.0
    %2319 = vmatpush1.msra.mxu0 0.0
    %2320 = vmatprep.subr.mxu0 0.0
    %2321 = vmatpush1.msra.mxu0 0.0
    %2322 = vmatprep.subr.mxu0 0.0
    %2323 = vmatpush1.msra.mxu0 0.0
    %2324 = vmatprep.subr.mxu0 0.0
    %2325 = vmatpush1.msra.mxu0 0.0
    %2326 = vmatprep.subr.mxu0 0.0
    %2327 = vmatpush1.msra.mxu0 0.0
    %2328 = vmatprep.subr.mxu0 0.0
    %2329 = vmatpush1.msra.mxu0 0.0
    %2330 = vmatprep.subr.mxu0 0.0
    %2331 = vmatpush1.msra.mxu0 0.0
    %2332 = vmatprep.subr.mxu0 0.0
    %2333 = vmatpush1.msra.mxu0 0.0
    %2334 = vmatprep.subr.mxu0 0.0
    %2335 = vmatpush1.msra.mxu0 0.0
    %2336 = vmatprep.subr.mxu0 0.0
    %2337 = vmatpush1.msra.mxu0 0.0
    %2338 = vmatprep.subr.mxu0 0.0
    %2339 = vmatpush1.msra.mxu0 0.0
    %2340 = vmatprep.subr.mxu0 0.0
    %2341 = vmatpush1.msra.mxu0 0.0
    %2342 = vmatprep.subr.mxu0 0.0
    %2343 = vmatpush1.msra.mxu0 0.0
    %2344 = vmatprep.subr.mxu0 0.0
    %2345 = vmatpush1.msra.mxu0 0.0
    %2346 = vmatprep.subr.mxu0 0.0
    %2347 = vmatpush1.msra.mxu0 0.0
    %2348 = vmatprep.subr.mxu0 0.0
    %2349 = vmatpush1.msra.mxu0 0.0
    %2350 = vmatprep.subr.mxu0 0.0
    %2351 = vmatpush1.msra.mxu0 0.0
    %2352 = vmatprep.subr.mxu0 0.0
    %2353 = vmatpush1.msra.mxu0 0.0
    %2354 = vmatprep.subr.mxu0 0.0
    %2355 = vmatpush1.msra.mxu0 0.0
    %2356 = vmatprep.subr.mxu0 0.0
    %2357 = vmatpush1.msra.mxu0 0.0
    %2358 = vmatprep.subr.mxu0 0.0
    %2359 = vmatpush1.msra.mxu0 0.0
    %2360 = vmatprep.subr.mxu0 0.0
    %2361 = vmatpush1.msra.mxu0 0.0
    %2362 = vmatprep.subr.mxu0 0.0
    %2363 = vmatpush1.msra.mxu0 0.0
    %2364 = vmatprep.subr.mxu0 0.0
    %2365 = vmatpush1.msra.mxu0 0.0
    %2366 = vmatprep.subr.mxu0 0.0
    %2367 = vmatpush1.msra.mxu0 0.0
    %2368 = vmatprep.subr.mxu0 0.0
    %2369 = vmatpush1.msra.mxu0 0.0
    %2370 = vmatprep.subr.mxu0 0.0
    %2371 = vmatpush1.msra.mxu0 0.0
    %2372 = vmatprep.subr.mxu0 0.0
    %2373 = vmatpush1.msra.mxu0 0.0
    %2374 = vmatprep.mubr.f32.mxu0 0.0
    %2375 = vmatmul.mubr.f32.gmra.mrb[0].mxu0 %v2308
    %v2376 = vpop.f32.mrb[0].mxu0
    %v2377 = vadd.f32 0.0, %v2376
    %v2378 = vpop.f32.mrb[0].mxu0
    %2379 = vdwg.mxu0
    %2381 = vrot.lane.b32.xlu0 %v1921, 4
    %v2382 = vpop.permute.xlu0 %2381
    %2385 = vrot.lane.b32.xlu0 %v1997, 8
    %v2386 = vpop.permute.xlu0 %2385
    %2389 = vrot.lane.b32.xlu0 %v2073, 12
    %v2390 = vpop.permute.xlu0 %2389
    %2393 = vrot.lane.b32.xlu0 %v2149, 16
    %v2394 = vpop.permute.xlu0 %2393
    %2397 = vrot.lane.b32.xlu0 %v2225, 20
    %v2398 = vpop.permute.xlu0 %2397
    %2401 = vrot.lane.b32.xlu0 %v2301, 24
    %v2402 = vpop.permute.xlu0 %2401
    %2405 = vrot.lane.b32.xlu0 %v2377, 28
    %v2406 = vpop.permute.xlu0 %2405
    %v2408 = vsel %vm335, %v1845, %v2382
    %v2409 = vsel %vm1595, %v2408, %v2386
    %vm2410 = vcmask 97280
    %v2411 = vsel %vm2410, %v2409, %v2390
    %vm2412 = vcmask 130048
    %v2413 = vsel %vm2412, %v2411, %v2394
    %vm2414 = vcmask 162816
    %v2415 = vsel %vm2414, %v2413, %v2398
    %vm2416 = vcmask 195584
    %v2417 = vsel %vm2416, %v2415, %v2402
    %vm2418 = vcmask 228352
    %v2419 = vsel %vm2418, %v2417, %v2406
    %2420 = vrot.lane.b32.xlu0 %v329, 64
    %v2421 = vpop.permute.xlu0 %2420
    %v2424 = vsel %vm1595, %v1764, 0
    %2426 = vmatprep.subr.mxu0 0.0
    %2427 = vmatpush1.msra.mxu0 %v2421
    %2428 = vmatprep.subr.mxu0 0.0
    %2429 = vmatpush1.msra.mxu0 0.0
    %2430 = vmatprep.subr.mxu0 0.0
    %2431 = vmatpush1.msra.mxu0 0.0
    %2432 = vmatprep.subr.mxu0 0.0
    %2433 = vmatpush1.msra.mxu0 0.0
    %2434 = vmatprep.subr.mxu0 0.0
    %2435 = vmatpush1.msra.mxu0 0.0
    %2436 = vmatprep.subr.mxu0 0.0
    %2437 = vmatpush1.msra.mxu0 0.0
    %2438 = vmatprep.subr.mxu0 0.0
    %2439 = vmatpush1.msra.mxu0 0.0
    %2440 = vmatprep.subr.mxu0 0.0
    %2441 = vmatpush1.msra.mxu0 0.0
    %2442 = vmatprep.subr.mxu0 0.0
    %2443 = vmatpush1.msra.mxu0 0.0
    %2444 = vmatprep.subr.mxu0 0.0
    %2445 = vmatpush1.msra.mxu0 0.0
    %2446 = vmatprep.subr.mxu0 0.0
    %2447 = vmatpush1.msra.mxu0 0.0
    %2448 = vmatprep.subr.mxu0 0.0
    %2449 = vmatpush1.msra.mxu0 0.0
    %2450 = vmatprep.subr.mxu0 0.0
    %2451 = vmatpush1.msra.mxu0 0.0
    %2452 = vmatprep.subr.mxu0 0.0
    %2453 = vmatpush1.msra.mxu0 0.0
    %2454 = vmatprep.subr.mxu0 0.0
    %2455 = vmatpush1.msra.mxu0 0.0
    %2456 = vmatprep.subr.mxu0 0.0
    %2457 = vmatpush1.msra.mxu0 0.0
    %2458 = vmatprep.subr.mxu0 0.0
    %2459 = vmatpush1.msra.mxu0 0.0
    %2460 = vmatprep.subr.mxu0 0.0
    %2461 = vmatpush1.msra.mxu0 0.0
    %2462 = vmatprep.subr.mxu0 0.0
    %2463 = vmatpush1.msra.mxu0 0.0
    %2464 = vmatprep.subr.mxu0 0.0
    %2465 = vmatpush1.msra.mxu0 0.0
    %2466 = vmatprep.subr.mxu0 0.0
    %2467 = vmatpush1.msra.mxu0 0.0
    %2468 = vmatprep.subr.mxu0 0.0
    %2469 = vmatpush1.msra.mxu0 0.0
    %2470 = vmatprep.subr.mxu0 0.0
    %2471 = vmatpush1.msra.mxu0 0.0
    %2472 = vmatprep.subr.mxu0 0.0
    %2473 = vmatpush1.msra.mxu0 0.0
    %2474 = vmatprep.subr.mxu0 0.0
    %2475 = vmatpush1.msra.mxu0 0.0
    %2476 = vmatprep.subr.mxu0 0.0
    %2477 = vmatpush1.msra.mxu0 0.0
    %2478 = vmatprep.subr.mxu0 0.0
    %2479 = vmatpush1.msra.mxu0 0.0
    %2480 = vmatprep.subr.mxu0 0.0
    %2481 = vmatpush1.msra.mxu0 0.0
    %2482 = vmatprep.subr.mxu0 0.0
    %2483 = vmatpush1.msra.mxu0 0.0
    %2484 = vmatprep.subr.mxu0 0.0
    %2485 = vmatpush1.msra.mxu0 0.0
    %2486 = vmatprep.subr.mxu0 0.0
    %2487 = vmatpush1.msra.mxu0 0.0
    %2488 = vmatprep.subr.mxu0 0.0
    %2489 = vmatpush1.msra.mxu0 0.0
    %2490 = vmatprep.mubr.f32.mxu0 0.0
    %2491 = vmatmul.mubr.f32.gmra.mrb[0].mxu0 %v2424
    %v2492 = vpop.f32.mrb[0].mxu0
    %v2493 = vadd.f32 0.0, %v2492
    %v2494 = vpop.f32.mrb[0].mxu0
    %2495 = vdwg.mxu0
    %2496 = vrot.lane.b32.xlu0 %v329, 60
    %v2497 = vpop.permute.xlu0 %2496
    %v2500 = vsel %vm1595, %v1765, 0
    %2502 = vmatprep.subr.mxu0 0.0
    %2503 = vmatpush1.msra.mxu0 %v2497
    %2504 = vmatprep.subr.mxu0 0.0
    %2505 = vmatpush1.msra.mxu0 0.0
    %2506 = vmatprep.subr.mxu0 0.0
    %2507 = vmatpush1.msra.mxu0 0.0
    %2508 = vmatprep.subr.mxu0 0.0
    %2509 = vmatpush1.msra.mxu0 0.0
    %2510 = vmatprep.subr.mxu0 0.0
    %2511 = vmatpush1.msra.mxu0 0.0
    %2512 = vmatprep.subr.mxu0 0.0
    %2513 = vmatpush1.msra.mxu0 0.0
    %2514 = vmatprep.subr.mxu0 0.0
    %2515 = vmatpush1.msra.mxu0 0.0
    %2516 = vmatprep.subr.mxu0 0.0
    %2517 = vmatpush1.msra.mxu0 0.0
    %2518 = vmatprep.subr.mxu0 0.0
    %2519 = vmatpush1.msra.mxu0 0.0
    %2520 = vmatprep.subr.mxu0 0.0
    %2521 = vmatpush1.msra.mxu0 0.0
    %2522 = vmatprep.subr.mxu0 0.0
    %2523 = vmatpush1.msra.mxu0 0.0
    %2524 = vmatprep.subr.mxu0 0.0
    %2525 = vmatpush1.msra.mxu0 0.0
    %2526 = vmatprep.subr.mxu0 0.0
    %2527 = vmatpush1.msra.mxu0 0.0
    %2528 = vmatprep.subr.mxu0 0.0
    %2529 = vmatpush1.msra.mxu0 0.0
    %2530 = vmatprep.subr.mxu0 0.0
    %2531 = vmatpush1.msra.mxu0 0.0
    %2532 = vmatprep.subr.mxu0 0.0
    %2533 = vmatpush1.msra.mxu0 0.0
    %2534 = vmatprep.subr.mxu0 0.0
    %2535 = vmatpush1.msra.mxu0 0.0
    %2536 = vmatprep.subr.mxu0 0.0
    %2537 = vmatpush1.msra.mxu0 0.0
    %2538 = vmatprep.subr.mxu0 0.0
    %2539 = vmatpush1.msra.mxu0 0.0
    %2540 = vmatprep.subr.mxu0 0.0
    %2541 = vmatpush1.msra.mxu0 0.0
    %2542 = vmatprep.subr.mxu0 0.0
    %2543 = vmatpush1.msra.mxu0 0.0
    %2544 = vmatprep.subr.mxu0 0.0
    %2545 = vmatpush1.msra.mxu0 0.0
    %2546 = vmatprep.subr.mxu0 0.0
    %2547 = vmatpush1.msra.mxu0 0.0
    %2548 = vmatprep.subr.mxu0 0.0
    %2549 = vmatpush1.msra.mxu0 0.0
    %2550 = vmatprep.subr.mxu0 0.0
    %2551 = vmatpush1.msra.mxu0 0.0
    %2552 = vmatprep.subr.mxu0 0.0
    %2553 = vmatpush1.msra.mxu0 0.0
    %2554 = vmatprep.subr.mxu0 0.0
    %2555 = vmatpush1.msra.mxu0 0.0
    %2556 = vmatprep.subr.mxu0 0.0
    %2557 = vmatpush1.msra.mxu0 0.0
    %2558 = vmatprep.subr.mxu0 0.0
    %2559 = vmatpush1.msra.mxu0 0.0
    %2560 = vmatprep.subr.mxu0 0.0
    %2561 = vmatpush1.msra.mxu0 0.0
    %2562 = vmatprep.subr.mxu0 0.0
    %2563 = vmatpush1.msra.mxu0 0.0
    %2564 = vmatprep.subr.mxu0 0.0
    %2565 = vmatpush1.msra.mxu0 0.0
    %2566 = vmatprep.mubr.f32.mxu0 0.0
    %2567 = vmatmul.mubr.f32.gmra.mrb[0].mxu0 %v2500
    %v2568 = vpop.f32.mrb[0].mxu0
    %v2569 = vadd.f32 0.0, %v2568
    %v2570 = vpop.f32.mrb[0].mxu0
    %2571 = vdwg.mxu0
    %2572 = vrot.lane.b32.xlu0 %v329, 56
    %v2573 = vpop.permute.xlu0 %2572
    %v2576 = vsel %vm1595, %v1766, 0
    %2578 = vmatprep.subr.mxu0 0.0
    %2579 = vmatpush1.msra.mxu0 %v2573
    %2580 = vmatprep.subr.mxu0 0.0
    %2581 = vmatpush1.msra.mxu0 0.0
    %2582 = vmatprep.subr.mxu0 0.0
    %2583 = vmatpush1.msra.mxu0 0.0
    %2584 = vmatprep.subr.mxu0 0.0
    %2585 = vmatpush1.msra.mxu0 0.0
    %2586 = vmatprep.subr.mxu0 0.0
    %2587 = vmatpush1.msra.mxu0 0.0
    %2588 = vmatprep.subr.mxu0 0.0
    %2589 = vmatpush1.msra.mxu0 0.0
    %2590 = vmatprep.subr.mxu0 0.0
    %2591 = vmatpush1.msra.mxu0 0.0
    %2592 = vmatprep.subr.mxu0 0.0
    %2593 = vmatpush1.msra.mxu0 0.0
    %2594 = vmatprep.subr.mxu0 0.0
    %2595 = vmatpush1.msra.mxu0 0.0
    %2596 = vmatprep.subr.mxu0 0.0
    %2597 = vmatpush1.msra.mxu0 0.0
    %2598 = vmatprep.subr.mxu0 0.0
    %2599 = vmatpush1.msra.mxu0 0.0
    %2600 = vmatprep.subr.mxu0 0.0
    %2601 = vmatpush1.msra.mxu0 0.0
    %2602 = vmatprep.subr.mxu0 0.0
    %2603 = vmatpush1.msra.mxu0 0.0
    %2604 = vmatprep.subr.mxu0 0.0
    %2605 = vmatpush1.msra.mxu0 0.0
    %2606 = vmatprep.subr.mxu0 0.0
    %2607 = vmatpush1.msra.mxu0 0.0
    %2608 = vmatprep.subr.mxu0 0.0
    %2609 = vmatpush1.msra.mxu0 0.0
    %2610 = vmatprep.subr.mxu0 0.0
    %2611 = vmatpush1.msra.mxu0 0.0
    %2612 = vmatprep.subr.mxu0 0.0
    %2613 = vmatpush1.msra.mxu0 0.0
    %2614 = vmatprep.subr.mxu0 0.0
    %2615 = vmatpush1.msra.mxu0 0.0
    %2616 = vmatprep.subr.mxu0 0.0
    %2617 = vmatpush1.msra.mxu0 0.0
    %2618 = vmatprep.subr.mxu0 0.0
    %2619 = vmatpush1.msra.mxu0 0.0
    %2620 = vmatprep.subr.mxu0 0.0
    %2621 = vmatpush1.msra.mxu0 0.0
    %2622 = vmatprep.subr.mxu0 0.0
    %2623 = vmatpush1.msra.mxu0 0.0
    %2624 = vmatprep.subr.mxu0 0.0
    %2625 = vmatpush1.msra.mxu0 0.0
    %2626 = vmatprep.subr.mxu0 0.0
    %2627 = vmatpush1.msra.mxu0 0.0
    %2628 = vmatprep.subr.mxu0 0.0
    %2629 = vmatpush1.msra.mxu0 0.0
    %2630 = vmatprep.subr.mxu0 0.0
    %2631 = vmatpush1.msra.mxu0 0.0
    %2632 = vmatprep.subr.mxu0 0.0
    %2633 = vmatpush1.msra.mxu0 0.0
    %2634 = vmatprep.subr.mxu0 0.0
    %2635 = vmatpush1.msra.mxu0 0.0
    %2636 = vmatprep.subr.mxu0 0.0
    %2637 = vmatpush1.msra.mxu0 0.0
    %2638 = vmatprep.subr.mxu0 0.0
    %2639 = vmatpush1.msra.mxu0 0.0
    %2640 = vmatprep.subr.mxu0 0.0
    %2641 = vmatpush1.msra.mxu0 0.0
    %2642 = vmatprep.mubr.f32.mxu0 0.0
    %2643 = vmatmul.mubr.f32.gmra.mrb[0].mxu0 %v2576
    %v2644 = vpop.f32.mrb[0].mxu0
    %v2645 = vadd.f32 0.0, %v2644
    %v2646 = vpop.f32.mrb[0].mxu0
    %2647 = vdwg.mxu0
    %2648 = vrot.lane.b32.xlu0 %v329, 52
    %v2649 = vpop.permute.xlu0 %2648
    %v2652 = vsel %vm1595, %v1767, 0
    %2654 = vmatprep.subr.mxu0 0.0
    %2655 = vmatpush1.msra.mxu0 %v2649
    %2656 = vmatprep.subr.mxu0 0.0
    %2657 = vmatpush1.msra.mxu0 0.0
    %2658 = vmatprep.subr.mxu0 0.0
    %2659 = vmatpush1.msra.mxu0 0.0
    %2660 = vmatprep.subr.mxu0 0.0
    %2661 = vmatpush1.msra.mxu0 0.0
    %2662 = vmatprep.subr.mxu0 0.0
    %2663 = vmatpush1.msra.mxu0 0.0
    %2664 = vmatprep.subr.mxu0 0.0
    %2665 = vmatpush1.msra.mxu0 0.0
    %2666 = vmatprep.subr.mxu0 0.0
    %2667 = vmatpush1.msra.mxu0 0.0
    %2668 = vmatprep.subr.mxu0 0.0
    %2669 = vmatpush1.msra.mxu0 0.0
    %2670 = vmatprep.subr.mxu0 0.0
    %2671 = vmatpush1.msra.mxu0 0.0
    %2672 = vmatprep.subr.mxu0 0.0
    %2673 = vmatpush1.msra.mxu0 0.0
    %2674 = vmatprep.subr.mxu0 0.0
    %2675 = vmatpush1.msra.mxu0 0.0
    %2676 = vmatprep.subr.mxu0 0.0
    %2677 = vmatpush1.msra.mxu0 0.0
    %2678 = vmatprep.subr.mxu0 0.0
    %2679 = vmatpush1.msra.mxu0 0.0
    %2680 = vmatprep.subr.mxu0 0.0
    %2681 = vmatpush1.msra.mxu0 0.0
    %2682 = vmatprep.subr.mxu0 0.0
    %2683 = vmatpush1.msra.mxu0 0.0
    %2684 = vmatprep.subr.mxu0 0.0
    %2685 = vmatpush1.msra.mxu0 0.0
    %2686 = vmatprep.subr.mxu0 0.0
    %2687 = vmatpush1.msra.mxu0 0.0
    %2688 = vmatprep.subr.mxu0 0.0
    %2689 = vmatpush1.msra.mxu0 0.0
    %2690 = vmatprep.subr.mxu0 0.0
    %2691 = vmatpush1.msra.mxu0 0.0
    %2692 = vmatprep.subr.mxu0 0.0
    %2693 = vmatpush1.msra.mxu0 0.0
    %2694 = vmatprep.subr.mxu0 0.0
    %2695 = vmatpush1.msra.mxu0 0.0
    %2696 = vmatprep.subr.mxu0 0.0
    %2697 = vmatpush1.msra.mxu0 0.0
    %2698 = vmatprep.subr.mxu0 0.0
    %2699 = vmatpush1.msra.mxu0 0.0
    %2700 = vmatprep.subr.mxu0 0.0
    %2701 = vmatpush1.msra.mxu0 0.0
    %2702 = vmatprep.subr.mxu0 0.0
    %2703 = vmatpush1.msra.mxu0 0.0
    %2704 = vmatprep.subr.mxu0 0.0
    %2705 = vmatpush1.msra.mxu0 0.0
    %2706 = vmatprep.subr.mxu0 0.0
    %2707 = vmatpush1.msra.mxu0 0.0
    %2708 = vmatprep.subr.mxu0 0.0
    %2709 = vmatpush1.msra.mxu0 0.0
    %2710 = vmatprep.subr.mxu0 0.0
    %2711 = vmatpush1.msra.mxu0 0.0
    %2712 = vmatprep.subr.mxu0 0.0
    %2713 = vmatpush1.msra.mxu0 0.0
    %2714 = vmatprep.subr.mxu0 0.0
    %2715 = vmatpush1.msra.mxu0 0.0
    %2716 = vmatprep.subr.mxu0 0.0
    %2717 = vmatpush1.msra.mxu0 0.0
    %2718 = vmatprep.mubr.f32.mxu0 0.0
    %2719 = vmatmul.mubr.f32.gmra.mrb[0].mxu0 %v2652
    %v2720 = vpop.f32.mrb[0].mxu0
    %v2721 = vadd.f32 0.0, %v2720
    %v2722 = vpop.f32.mrb[0].mxu0
    %2723 = vdwg.mxu0
    %2724 = vrot.lane.b32.xlu0 %v329, 48
    %v2725 = vpop.permute.xlu0 %2724
    %v2728 = vsel %vm1595, %v1768, 0
    %2730 = vmatprep.subr.mxu0 0.0
    %2731 = vmatpush1.msra.mxu0 %v2725
    %2732 = vmatprep.subr.mxu0 0.0
    %2733 = vmatpush1.msra.mxu0 0.0
    %2734 = vmatprep.subr.mxu0 0.0
    %2735 = vmatpush1.msra.mxu0 0.0
    %2736 = vmatprep.subr.mxu0 0.0
    %2737 = vmatpush1.msra.mxu0 0.0
    %2738 = vmatprep.subr.mxu0 0.0
    %2739 = vmatpush1.msra.mxu0 0.0
    %2740 = vmatprep.subr.mxu0 0.0
    %2741 = vmatpush1.msra.mxu0 0.0
    %2742 = vmatprep.subr.mxu0 0.0
    %2743 = vmatpush1.msra.mxu0 0.0
    %2744 = vmatprep.subr.mxu0 0.0
    %2745 = vmatpush1.msra.mxu0 0.0
    %2746 = vmatprep.subr.mxu0 0.0
    %2747 = vmatpush1.msra.mxu0 0.0
    %2748 = vmatprep.subr.mxu0 0.0
    %2749 = vmatpush1.msra.mxu0 0.0
    %2750 = vmatprep.subr.mxu0 0.0
    %2751 = vmatpush1.msra.mxu0 0.0
    %2752 = vmatprep.subr.mxu0 0.0
    %2753 = vmatpush1.msra.mxu0 0.0
    %2754 = vmatprep.subr.mxu0 0.0
    %2755 = vmatpush1.msra.mxu0 0.0
    %2756 = vmatprep.subr.mxu0 0.0
    %2757 = vmatpush1.msra.mxu0 0.0
    %2758 = vmatprep.subr.mxu0 0.0
    %2759 = vmatpush1.msra.mxu0 0.0
    %2760 = vmatprep.subr.mxu0 0.0
    %2761 = vmatpush1.msra.mxu0 0.0
    %2762 = vmatprep.subr.mxu0 0.0
    %2763 = vmatpush1.msra.mxu0 0.0
    %2764 = vmatprep.subr.mxu0 0.0
    %2765 = vmatpush1.msra.mxu0 0.0
    %2766 = vmatprep.subr.mxu0 0.0
    %2767 = vmatpush1.msra.mxu0 0.0
    %2768 = vmatprep.subr.mxu0 0.0
    %2769 = vmatpush1.msra.mxu0 0.0
    %2770 = vmatprep.subr.mxu0 0.0
    %2771 = vmatpush1.msra.mxu0 0.0
    %2772 = vmatprep.subr.mxu0 0.0
    %2773 = vmatpush1.msra.mxu0 0.0
    %2774 = vmatprep.subr.mxu0 0.0
    %2775 = vmatpush1.msra.mxu0 0.0
    %2776 = vmatprep.subr.mxu0 0.0
    %2777 = vmatpush1.msra.mxu0 0.0
    %2778 = vmatprep.subr.mxu0 0.0
    %2779 = vmatpush1.msra.mxu0 0.0
    %2780 = vmatprep.subr.mxu0 0.0
    %2781 = vmatpush1.msra.mxu0 0.0
    %2782 = vmatprep.subr.mxu0 0.0
    %2783 = vmatpush1.msra.mxu0 0.0
    %2784 = vmatprep.subr.mxu0 0.0
    %2785 = vmatpush1.msra.mxu0 0.0
    %2786 = vmatprep.subr.mxu0 0.0
    %2787 = vmatpush1.msra.mxu0 0.0
    %2788 = vmatprep.subr.mxu0 0.0
    %2789 = vmatpush1.msra.mxu0 0.0
    %2790 = vmatprep.subr.mxu0 0.0
    %2791 = vmatpush1.msra.mxu0 0.0
    %2792 = vmatprep.subr.mxu0 0.0
    %2793 = vmatpush1.msra.mxu0 0.0
    %2794 = vmatprep.mubr.f32.mxu0 0.0
    %2795 = vmatmul.mubr.f32.gmra.mrb[0].mxu0 %v2728
    %v2796 = vpop.f32.mrb[0].mxu0
    %v2797 = vadd.f32 0.0, %v2796
    %v2798 = vpop.f32.mrb[0].mxu0
    %2799 = vdwg.mxu0
    %2800 = vrot.lane.b32.xlu0 %v329, 44
    %v2801 = vpop.permute.xlu0 %2800
    %v2804 = vsel %vm1595, %v1769, 0
    %2806 = vmatprep.subr.mxu0 0.0
    %2807 = vmatpush1.msra.mxu0 %v2801
    %2808 = vmatprep.subr.mxu0 0.0
    %2809 = vmatpush1.msra.mxu0 0.0
    %2810 = vmatprep.subr.mxu0 0.0
    %2811 = vmatpush1.msra.mxu0 0.0
    %2812 = vmatprep.subr.mxu0 0.0
    %2813 = vmatpush1.msra.mxu0 0.0
    %2814 = vmatprep.subr.mxu0 0.0
    %2815 = vmatpush1.msra.mxu0 0.0
    %2816 = vmatprep.subr.mxu0 0.0
    %2817 = vmatpush1.msra.mxu0 0.0
    %2818 = vmatprep.subr.mxu0 0.0
    %2819 = vmatpush1.msra.mxu0 0.0
    %2820 = vmatprep.subr.mxu0 0.0
    %2821 = vmatpush1.msra.mxu0 0.0
    %2822 = vmatprep.subr.mxu0 0.0
    %2823 = vmatpush1.msra.mxu0 0.0
    %2824 = vmatprep.subr.mxu0 0.0
    %2825 = vmatpush1.msra.mxu0 0.0
    %2826 = vmatprep.subr.mxu0 0.0
    %2827 = vmatpush1.msra.mxu0 0.0
    %2828 = vmatprep.subr.mxu0 0.0
    %2829 = vmatpush1.msra.mxu0 0.0
    %2830 = vmatprep.subr.mxu0 0.0
    %2831 = vmatpush1.msra.mxu0 0.0
    %2832 = vmatprep.subr.mxu0 0.0
    %2833 = vmatpush1.msra.mxu0 0.0
    %2834 = vmatprep.subr.mxu0 0.0
    %2835 = vmatpush1.msra.mxu0 0.0
    %2836 = vmatprep.subr.mxu0 0.0
    %2837 = vmatpush1.msra.mxu0 0.0
    %2838 = vmatprep.subr.mxu0 0.0
    %2839 = vmatpush1.msra.mxu0 0.0
    %2840 = vmatprep.subr.mxu0 0.0
    %2841 = vmatpush1.msra.mxu0 0.0
    %2842 = vmatprep.subr.mxu0 0.0
    %2843 = vmatpush1.msra.mxu0 0.0
    %2844 = vmatprep.subr.mxu0 0.0
    %2845 = vmatpush1.msra.mxu0 0.0
    %2846 = vmatprep.subr.mxu0 0.0
    %2847 = vmatpush1.msra.mxu0 0.0
    %2848 = vmatprep.subr.mxu0 0.0
    %2849 = vmatpush1.msra.mxu0 0.0
    %2850 = vmatprep.subr.mxu0 0.0
    %2851 = vmatpush1.msra.mxu0 0.0
    %2852 = vmatprep.subr.mxu0 0.0
    %2853 = vmatpush1.msra.mxu0 0.0
    %2854 = vmatprep.subr.mxu0 0.0
    %2855 = vmatpush1.msra.mxu0 0.0
    %2856 = vmatprep.subr.mxu0 0.0
    %2857 = vmatpush1.msra.mxu0 0.0
    %2858 = vmatprep.subr.mxu0 0.0
    %2859 = vmatpush1.msra.mxu0 0.0
    %2860 = vmatprep.subr.mxu0 0.0
    %2861 = vmatpush1.msra.mxu0 0.0
    %2862 = vmatprep.subr.mxu0 0.0
    %2863 = vmatpush1.msra.mxu0 0.0
    %2864 = vmatprep.subr.mxu0 0.0
    %2865 = vmatpush1.msra.mxu0 0.0
    %2866 = vmatprep.subr.mxu0 0.0
    %2867 = vmatpush1.msra.mxu0 0.0
    %2868 = vmatprep.subr.mxu0 0.0
    %2869 = vmatpush1.msra.mxu0 0.0
    %2870 = vmatprep.mubr.f32.mxu0 0.0
    %2871 = vmatmul.mubr.f32.gmra.mrb[0].mxu0 %v2804
    %v2872 = vpop.f32.mrb[0].mxu0
    %v2873 = vadd.f32 0.0, %v2872
    %v2874 = vpop.f32.mrb[0].mxu0
    %2875 = vdwg.mxu0
    %2876 = vrot.lane.b32.xlu0 %v329, 40
    %v2877 = vpop.permute.xlu0 %2876
    %v2880 = vsel %vm1595, %v1770, 0
    %2882 = vmatprep.subr.mxu0 0.0
    %2883 = vmatpush1.msra.mxu0 %v2877
    %2884 = vmatprep.subr.mxu0 0.0
    %2885 = vmatpush1.msra.mxu0 0.0
    %2886 = vmatprep.subr.mxu0 0.0
    %2887 = vmatpush1.msra.mxu0 0.0
    %2888 = vmatprep.subr.mxu0 0.0
    %2889 = vmatpush1.msra.mxu0 0.0
    %2890 = vmatprep.subr.mxu0 0.0
    %2891 = vmatpush1.msra.mxu0 0.0
    %2892 = vmatprep.subr.mxu0 0.0
    %2893 = vmatpush1.msra.mxu0 0.0
    %2894 = vmatprep.subr.mxu0 0.0
    %2895 = vmatpush1.msra.mxu0 0.0
    %2896 = vmatprep.subr.mxu0 0.0
    %2897 = vmatpush1.msra.mxu0 0.0
    %2898 = vmatprep.subr.mxu0 0.0
    %2899 = vmatpush1.msra.mxu0 0.0
    %2900 = vmatprep.subr.mxu0 0.0
    %2901 = vmatpush1.msra.mxu0 0.0
    %2902 = vmatprep.subr.mxu0 0.0
    %2903 = vmatpush1.msra.mxu0 0.0
    %2904 = vmatprep.subr.mxu0 0.0
    %2905 = vmatpush1.msra.mxu0 0.0
    %2906 = vmatprep.subr.mxu0 0.0
    %2907 = vmatpush1.msra.mxu0 0.0
    %2908 = vmatprep.subr.mxu0 0.0
    %2909 = vmatpush1.msra.mxu0 0.0
    %2910 = vmatprep.subr.mxu0 0.0
    %2911 = vmatpush1.msra.mxu0 0.0
    %2912 = vmatprep.subr.mxu0 0.0
    %2913 = vmatpush1.msra.mxu0 0.0
    %2914 = vmatprep.subr.mxu0 0.0
    %2915 = vmatpush1.msra.mxu0 0.0
    %2916 = vmatprep.subr.mxu0 0.0
    %2917 = vmatpush1.msra.mxu0 0.0
    %2918 = vmatprep.subr.mxu0 0.0
    %2919 = vmatpush1.msra.mxu0 0.0
    %2920 = vmatprep.subr.mxu0 0.0
    %2921 = vmatpush1.msra.mxu0 0.0
    %2922 = vmatprep.subr.mxu0 0.0
    %2923 = vmatpush1.msra.mxu0 0.0
    %2924 = vmatprep.subr.mxu0 0.0
    %2925 = vmatpush1.msra.mxu0 0.0
    %2926 = vmatprep.subr.mxu0 0.0
    %2927 = vmatpush1.msra.mxu0 0.0
    %2928 = vmatprep.subr.mxu0 0.0
    %2929 = vmatpush1.msra.mxu0 0.0
    %2930 = vmatprep.subr.mxu0 0.0
    %2931 = vmatpush1.msra.mxu0 0.0
    %2932 = vmatprep.subr.mxu0 0.0
    %2933 = vmatpush1.msra.mxu0 0.0
    %2934 = vmatprep.subr.mxu0 0.0
    %2935 = vmatpush1.msra.mxu0 0.0
    %2936 = vmatprep.subr.mxu0 0.0
    %2937 = vmatpush1.msra.mxu0 0.0
    %2938 = vmatprep.subr.mxu0 0.0
    %2939 = vmatpush1.msra.mxu0 0.0
    %2940 = vmatprep.subr.mxu0 0.0
    %2941 = vmatpush1.msra.mxu0 0.0
    %2942 = vmatprep.subr.mxu0 0.0
    %2943 = vmatpush1.msra.mxu0 0.0
    %2944 = vmatprep.subr.mxu0 0.0
    %2945 = vmatpush1.msra.mxu0 0.0
    %2946 = vmatprep.mubr.f32.mxu0 0.0
    %2947 = vmatmul.mubr.f32.gmra.mrb[0].mxu0 %v2880
    %v2948 = vpop.f32.mrb[0].mxu0
    %v2949 = vadd.f32 0.0, %v2948
    %v2950 = vpop.f32.mrb[0].mxu0
    %2951 = vdwg.mxu0
    %2952 = vrot.lane.b32.xlu0 %v329, 36
    %v2953 = vpop.permute.xlu0 %2952
    %v2956 = vsel %vm1595, %v1771, 0
    %2958 = vmatprep.subr.mxu0 0.0
    %2959 = vmatpush1.msra.mxu0 %v2953
    %2960 = vmatprep.subr.mxu0 0.0
    %2961 = vmatpush1.msra.mxu0 0.0
    %2962 = vmatprep.subr.mxu0 0.0
    %2963 = vmatpush1.msra.mxu0 0.0
    %2964 = vmatprep.subr.mxu0 0.0
    %2965 = vmatpush1.msra.mxu0 0.0
    %2966 = vmatprep.subr.mxu0 0.0
    %2967 = vmatpush1.msra.mxu0 0.0
    %2968 = vmatprep.subr.mxu0 0.0
    %2969 = vmatpush1.msra.mxu0 0.0
    %2970 = vmatprep.subr.mxu0 0.0
    %2971 = vmatpush1.msra.mxu0 0.0
    %2972 = vmatprep.subr.mxu0 0.0
    %2973 = vmatpush1.msra.mxu0 0.0
    %2974 = vmatprep.subr.mxu0 0.0
    %2975 = vmatpush1.msra.mxu0 0.0
    %2976 = vmatprep.subr.mxu0 0.0
    %2977 = vmatpush1.msra.mxu0 0.0
    %2978 = vmatprep.subr.mxu0 0.0
    %2979 = vmatpush1.msra.mxu0 0.0
    %2980 = vmatprep.subr.mxu0 0.0
    %2981 = vmatpush1.msra.mxu0 0.0
    %2982 = vmatprep.subr.mxu0 0.0
    %2983 = vmatpush1.msra.mxu0 0.0
    %2984 = vmatprep.subr.mxu0 0.0
    %2985 = vmatpush1.msra.mxu0 0.0
    %2986 = vmatprep.subr.mxu0 0.0
    %2987 = vmatpush1.msra.mxu0 0.0
    %2988 = vmatprep.subr.mxu0 0.0
    %2989 = vmatpush1.msra.mxu0 0.0
    %2990 = vmatprep.subr.mxu0 0.0
    %2991 = vmatpush1.msra.mxu0 0.0
    %2992 = vmatprep.subr.mxu0 0.0
    %2993 = vmatpush1.msra.mxu0 0.0
    %2994 = vmatprep.subr.mxu0 0.0
    %2995 = vmatpush1.msra.mxu0 0.0
    %2996 = vmatprep.subr.mxu0 0.0
    %2997 = vmatpush1.msra.mxu0 0.0
    %2998 = vmatprep.subr.mxu0 0.0
    %2999 = vmatpush1.msra.mxu0 0.0
    %3000 = vmatprep.subr.mxu0 0.0
    %3001 = vmatpush1.msra.mxu0 0.0
    %3002 = vmatprep.subr.mxu0 0.0
    %3003 = vmatpush1.msra.mxu0 0.0
    %3004 = vmatprep.subr.mxu0 0.0
    %3005 = vmatpush1.msra.mxu0 0.0
    %3006 = vmatprep.subr.mxu0 0.0
    %3007 = vmatpush1.msra.mxu0 0.0
    %3008 = vmatprep.subr.mxu0 0.0
    %3009 = vmatpush1.msra.mxu0 0.0
    %3010 = vmatprep.subr.mxu0 0.0
    %3011 = vmatpush1.msra.mxu0 0.0
    %3012 = vmatprep.subr.mxu0 0.0
    %3013 = vmatpush1.msra.mxu0 0.0
    %3014 = vmatprep.subr.mxu0 0.0
    %3015 = vmatpush1.msra.mxu0 0.0
    %3016 = vmatprep.subr.mxu0 0.0
    %3017 = vmatpush1.msra.mxu0 0.0
    %3018 = vmatprep.subr.mxu0 0.0
    %3019 = vmatpush1.msra.mxu0 0.0
    %3020 = vmatprep.subr.mxu0 0.0
    %3021 = vmatpush1.msra.mxu0 0.0
    %3022 = vmatprep.mubr.f32.mxu0 0.0
    %3023 = vmatmul.mubr.f32.gmra.mrb[0].mxu0 %v2956
    %v3024 = vpop.f32.mrb[0].mxu0
    %v3025 = vadd.f32 0.0, %v3024
    %v3026 = vpop.f32.mrb[0].mxu0
    %3027 = vdwg.mxu0
    %3029 = vrot.lane.b32.xlu0 %v2569, 4
    %v3030 = vpop.permute.xlu0 %3029
    %3033 = vrot.lane.b32.xlu0 %v2645, 8
    %v3034 = vpop.permute.xlu0 %3033
    %3037 = vrot.lane.b32.xlu0 %v2721, 12
    %v3038 = vpop.permute.xlu0 %3037
    %3041 = vrot.lane.b32.xlu0 %v2797, 16
    %v3042 = vpop.permute.xlu0 %3041
    %3045 = vrot.lane.b32.xlu0 %v2873, 20
    %v3046 = vpop.permute.xlu0 %3045
    %3049 = vrot.lane.b32.xlu0 %v2949, 24
    %v3050 = vpop.permute.xlu0 %3049
    %3053 = vrot.lane.b32.xlu0 %v3025, 28
    %v3054 = vpop.permute.xlu0 %3053
    %v3056 = vsel %vm335, %v2493, %v3030
    %v3057 = vsel %vm1595, %v3056, %v3034
    %v3058 = vsel %vm2410, %v3057, %v3038
    %v3059 = vsel %vm2412, %v3058, %v3042
    %v3060 = vsel %vm2414, %v3059, %v3046
    %v3061 = vsel %vm2416, %v3060, %v3050
    %v3062 = vsel %vm2418, %v3061, %v3054
    %v3063 = vlaneseq
    %v3064 = vshrl.u32 %v3063, 7
    %v3065 = vsub.s32 0, %v3064
    %v3066 = vrot.slane %v240, %v3065
    %v3068 = vsel %vm48, %v2419, 0
    %v3071 = vsel %vm48, %v3062, 0
    %3073 = vmatprep.subr.mxu0 0.0
    %3074 = vmatpush1.msra.mxu0 %v223
    %3075 = vmatprep.subr.mxu0 0.0
    %3076 = vmatpush1.msra.mxu0 %v224
    %3077 = vmatprep.subr.mxu0 0.0
    %3078 = vmatpush1.msra.mxu0 %v225
    %3079 = vmatprep.subr.mxu0 0.0
    %3080 = vmatpush1.msra.mxu0 %v226
    %3081 = vmatprep.subr.mxu0 0.0
    %3082 = vmatpush1.msra.mxu0 0.0
    %3083 = vmatprep.subr.mxu0 0.0
    %3084 = vmatpush1.msra.mxu0 0.0
    %3085 = vmatprep.subr.mxu0 0.0
    %3086 = vmatpush1.msra.mxu0 0.0
    %3087 = vmatprep.subr.mxu0 0.0
    %3088 = vmatpush1.msra.mxu0 0.0
    %3089 = vmatprep.subr.mxu0 0.0
    %3090 = vmatpush1.msra.mxu0 0.0
    %3091 = vmatprep.subr.mxu0 0.0
    %3092 = vmatpush1.msra.mxu0 0.0
    %3093 = vmatprep.subr.mxu0 0.0
    %3094 = vmatpush1.msra.mxu0 0.0
    %3095 = vmatprep.subr.mxu0 0.0
    %3096 = vmatpush1.msra.mxu0 0.0
    %3097 = vmatprep.subr.mxu0 0.0
    %3098 = vmatpush1.msra.mxu0 0.0
    %3099 = vmatprep.subr.mxu0 0.0
    %3100 = vmatpush1.msra.mxu0 0.0
    %3101 = vmatprep.subr.mxu0 0.0
    %3102 = vmatpush1.msra.mxu0 0.0
    %3103 = vmatprep.subr.mxu0 0.0
    %3104 = vmatpush1.msra.mxu0 0.0
    %3105 = vmatprep.subr.mxu0 0.0
    %3106 = vmatpush1.msra.mxu0 0.0
    %3107 = vmatprep.subr.mxu0 0.0
    %3108 = vmatpush1.msra.mxu0 0.0
    %3109 = vmatprep.subr.mxu0 0.0
    %3110 = vmatpush1.msra.mxu0 0.0
    %3111 = vmatprep.subr.mxu0 0.0
    %3112 = vmatpush1.msra.mxu0 0.0
    %3113 = vmatprep.subr.mxu0 0.0
    %3114 = vmatpush1.msra.mxu0 0.0
    %3115 = vmatprep.subr.mxu0 0.0
    %3116 = vmatpush1.msra.mxu0 0.0
    %3117 = vmatprep.subr.mxu0 0.0
    %3118 = vmatpush1.msra.mxu0 0.0
    %3119 = vmatprep.subr.mxu0 0.0
    %3120 = vmatpush1.msra.mxu0 0.0
    %3121 = vmatprep.subr.mxu0 0.0
    %3122 = vmatpush1.msra.mxu0 0.0
    %3123 = vmatprep.subr.mxu0 0.0
    %3124 = vmatpush1.msra.mxu0 0.0
    %3125 = vmatprep.subr.mxu0 0.0
    %3126 = vmatpush1.msra.mxu0 0.0
    %3127 = vmatprep.subr.mxu0 0.0
    %3128 = vmatpush1.msra.mxu0 0.0
    %3129 = vmatprep.subr.mxu0 0.0
    %3130 = vmatpush1.msra.mxu0 0.0
    %3131 = vmatprep.subr.mxu0 0.0
    %3132 = vmatpush1.msra.mxu0 0.0
    %3133 = vmatprep.subr.mxu0 0.0
    %3134 = vmatpush1.msra.mxu0 0.0
    %3135 = vmatprep.subr.mxu0 0.0
    %3136 = vmatpush1.msra.mxu0 0.0
    %3137 = vmatprep.mubr.f32.mxu0 0.0
    %3138 = vmatmul.mubr.f32.gmra.mrb[0].mxu0 %v3068
    %v3139 = vpop.f32.mrb[0].mxu0
    %v3140 = vadd.f32 %v3066, %v3139
    %v3141 = vpop.f32.mrb[0].mxu0
    %3142 = vmatprep.mubr.f32.mxu0 0.0
    %3143 = vmatmul.mubr.f32.gmra.mrb[0].mxu0 %v3071
    %v3144 = vpop.f32.mrb[0].mxu0
    %v3145 = vadd.f32 %v3066, %v3144
    %v3146 = vpop.f32.mrb[0].mxu0
    %3147 = vdwg.mxu0
    %v3148 = vadd.f32 %v217, %v3140
    %v3149 = vadd.f32 %v218, %v3145
    %v3150 = vsel %vm48, %v3148, 0.0
    %3151 = vadd.xlane.f32.xlu0 %v3150
    %v3152 = vpop.xlane.xlu0 %3151
    %v3153 = vsel %vm48, %v3149, 0.0
    %3154 = vadd.xlane.f32.xlu0 %v3153
    %v3155 = vpop.xlane.xlu0 %3154
    %v3156 = vrcp.pop 32.0
    %v3157 = vmul.f32 %v3152, %v3156
    %v3158 = vmul.f32 %v3155, %v3156
    %v3159 = vsub.f32 %v3148, %v3157
    %v3160 = vsub.f32 %v3149, %v3158
    %v3161 = vmul.f32 %v3159, %v3159
    %v3162 = vmul.f32 %v3160, %v3160
    %v3163 = vsel %vm48, %v3161, 0.0
    %3164 = vadd.xlane.f32.xlu0 %v3163
    %v3165 = vpop.xlane.xlu0 %3164
    %v3166 = vsel %vm48, %v3162, 0.0
    %3167 = vadd.xlane.f32.xlu0 %v3166
    %v3168 = vpop.xlane.xlu0 %3167
    %v3169 = vmul.f32 %v3165, %v3156
    %v3170 = vmul.f32 %v3168, %v3156
    %v3171 = vadd.f32 %v3169, 1e-05
    %v3172 = vadd.f32 %v3170, 1e-05
    %v3173 = vrsqrt.pop %v3171
    %v3174 = vrsqrt.pop %v3172
    %v3175 = vmul.f32 %v3159, %v3173
    %v3176 = vmul.f32 %v3160, %v3174
    %v3177 = vlaneseq
    %v3178 = vshrl.u32 %v3177, 7
    %v3179 = vsub.s32 0, %v3178
    %v3180 = vrot.slane %v241, %v3179
    %v3181 = vmul.f32 %v3175, %v3180
    %v3182 = vmul.f32 %v3176, %v3180
    %v3183 = vlaneseq
    %v3184 = vshrl.u32 %v3183, 7
    %v3185 = vsub.s32 0, %v3184
    %v3186 = vrot.slane %v242, %v3185
    %v3187 = vadd.f32 %v3181, %v3186
    %v3188 = vadd.f32 %v3182, %v3186
    %v3189 = vlaneseq
    %v3190 = vshrl.u32 %v3189, 7
    %v3191 = vsub.s32 0, %v3190
    %v3192 = vrot.slane %v245, %v3191
    %v3194 = vsel %vm48, %v3187, 0
    %v3197 = vsel %vm48, %v3188, 0
    %3199 = vmatprep.subr.mxu0 0.0
    %3200 = vmatpush1.msra.mxu0 %v227
    %3201 = vmatprep.subr.mxu0 0.0
    %3202 = vmatpush1.msra.mxu0 %v228
    %3203 = vmatprep.subr.mxu0 0.0
    %3204 = vmatpush1.msra.mxu0 %v229
    %3205 = vmatprep.subr.mxu0 0.0
    %3206 = vmatpush1.msra.mxu0 %v230
    %3207 = vmatprep.subr.mxu0 0.0
    %3208 = vmatpush1.msra.mxu0 0.0
    %3209 = vmatprep.subr.mxu0 0.0
    %3210 = vmatpush1.msra.mxu0 0.0
    %3211 = vmatprep.subr.mxu0 0.0
    %3212 = vmatpush1.msra.mxu0 0.0
    %3213 = vmatprep.subr.mxu0 0.0
    %3214 = vmatpush1.msra.mxu0 0.0
    %3215 = vmatprep.subr.mxu0 0.0
    %3216 = vmatpush1.msra.mxu0 0.0
    %3217 = vmatprep.subr.mxu0 0.0
    %3218 = vmatpush1.msra.mxu0 0.0
    %3219 = vmatprep.subr.mxu0 0.0
    %3220 = vmatpush1.msra.mxu0 0.0
    %3221 = vmatprep.subr.mxu0 0.0
    %3222 = vmatpush1.msra.mxu0 0.0
    %3223 = vmatprep.subr.mxu0 0.0
    %3224 = vmatpush1.msra.mxu0 0.0
    %3225 = vmatprep.subr.mxu0 0.0
    %3226 = vmatpush1.msra.mxu0 0.0
    %3227 = vmatprep.subr.mxu0 0.0
    %3228 = vmatpush1.msra.mxu0 0.0
    %3229 = vmatprep.subr.mxu0 0.0
    %3230 = vmatpush1.msra.mxu0 0.0
    %3231 = vmatprep.subr.mxu0 0.0
    %3232 = vmatpush1.msra.mxu0 0.0
    %3233 = vmatprep.subr.mxu0 0.0
    %3234 = vmatpush1.msra.mxu0 0.0
    %3235 = vmatprep.subr.mxu0 0.0
    %3236 = vmatpush1.msra.mxu0 0.0
    %3237 = vmatprep.subr.mxu0 0.0
    %3238 = vmatpush1.msra.mxu0 0.0
    %3239 = vmatprep.subr.mxu0 0.0
    %3240 = vmatpush1.msra.mxu0 0.0
    %3241 = vmatprep.subr.mxu0 0.0
    %3242 = vmatpush1.msra.mxu0 0.0
    %3243 = vmatprep.subr.mxu0 0.0
    %3244 = vmatpush1.msra.mxu0 0.0
    %3245 = vmatprep.subr.mxu0 0.0
    %3246 = vmatpush1.msra.mxu0 0.0
    %3247 = vmatprep.subr.mxu0 0.0
    %3248 = vmatpush1.msra.mxu0 0.0
    %3249 = vmatprep.subr.mxu0 0.0
    %3250 = vmatpush1.msra.mxu0 0.0
    %3251 = vmatprep.subr.mxu0 0.0
    %3252 = vmatpush1.msra.mxu0 0.0
    %3253 = vmatprep.subr.mxu0 0.0
    %3254 = vmatpush1.msra.mxu0 0.0
    %3255 = vmatprep.subr.mxu0 0.0
    %3256 = vmatpush1.msra.mxu0 0.0
    %3257 = vmatprep.subr.mxu0 0.0
    %3258 = vmatpush1.msra.mxu0 0.0
    %3259 = vmatprep.subr.mxu0 0.0
    %3260 = vmatpush1.msra.mxu0 0.0
    %3261 = vmatprep.subr.mxu0 0.0
    %3262 = vmatpush1.msra.mxu0 0.0
    %3263 = vmatprep.mubr.f32.mxu0 0.0
    %3264 = vmatmul.mubr.f32.gmra.mrb[0].mxu0 %v3194
    %v3265 = vpop.f32.mrb[0].mxu0
    %v3266 = vadd.f32 %v3192, %v3265
    %v3267 = vpop.f32.mrb[0].mxu0
    %3268 = vmatprep.mubr.f32.mxu0 0.0
    %3269 = vmatmul.mubr.f32.gmra.mrb[0].mxu0 %v3197
    %v3270 = vpop.f32.mrb[0].mxu0
    %v3271 = vadd.f32 %v3192, %v3270
    %v3272 = vpop.f32.mrb[0].mxu0
    %3273 = vdwg.mxu0
    %v3274 = vmax.f32 %v3266, 0.0
    %v3275 = vmax.f32 %v3271, 0.0
    %v3276 = vlaneseq
    %v3277 = vshrl.u32 %v3276, 7
    %v3278 = vsub.s32 0, %v3277
    %v3279 = vrot.slane %v246, %v3278
    %vm3280 = vcmask 523264
    %v3282 = vsel %vm3280, %v3274, 0
    %v3285 = vsel %vm3280, %v3275, 0
    %3287 = vmatprep.subr.mxu0 0.0
    %3288 = vmatpush1.msra.mxu0 %v231
    %3289 = vmatprep.subr.mxu0 0.0
    %3290 = vmatpush1.msra.mxu0 %v232
    %3291 = vmatprep.subr.mxu0 0.0
    %3292 = vmatpush1.msra.mxu0 %v233
    %3293 = vmatprep.subr.mxu0 0.0
    %3294 = vmatpush1.msra.mxu0 %v234
    %3295 = vmatprep.subr.mxu0 0.0
    %3296 = vmatpush1.msra.mxu0 %v235
    %3297 = vmatprep.subr.mxu0 0.0
    %3298 = vmatpush1.msra.mxu0 %v236
    %3299 = vmatprep.subr.mxu0 0.0
    %3300 = vmatpush1.msra.mxu0 %v237
    %3301 = vmatprep.subr.mxu0 0.0
    %3302 = vmatpush1.msra.mxu0 %v238
    %3303 = vmatprep.subr.mxu0 0.0
    %3304 = vmatpush1.msra.mxu0 0.0
    %3305 = vmatprep.subr.mxu0 0.0
    %3306 = vmatpush1.msra.mxu0 0.0
    %3307 = vmatprep.subr.mxu0 0.0
    %3308 = vmatpush1.msra.mxu0 0.0
    %3309 = vmatprep.subr.mxu0 0.0
    %3310 = vmatpush1.msra.mxu0 0.0
    %3311 = vmatprep.subr.mxu0 0.0
    %3312 = vmatpush1.msra.mxu0 0.0
    %3313 = vmatprep.subr.mxu0 0.0
    %3314 = vmatpush1.msra.mxu0 0.0
    %3315 = vmatprep.subr.mxu0 0.0
    %3316 = vmatpush1.msra.mxu0 0.0
    %3317 = vmatprep.subr.mxu0 0.0
    %3318 = vmatpush1.msra.mxu0 0.0
    %3319 = vmatprep.subr.mxu0 0.0
    %3320 = vmatpush1.msra.mxu0 0.0
    %3321 = vmatprep.subr.mxu0 0.0
    %3322 = vmatpush1.msra.mxu0 0.0
    %3323 = vmatprep.subr.mxu0 0.0
    %3324 = vmatpush1.msra.mxu0 0.0
    %3325 = vmatprep.subr.mxu0 0.0
    %3326 = vmatpush1.msra.mxu0 0.0
    %3327 = vmatprep.subr.mxu0 0.0
    %3328 = vmatpush1.msra.mxu0 0.0
    %3329 = vmatprep.subr.mxu0 0.0
    %3330 = vmatpush1.msra.mxu0 0.0
    %3331 = vmatprep.subr.mxu0 0.0
    %3332 = vmatpush1.msra.mxu0 0.0
    %3333 = vmatprep.subr.mxu0 0.0
    %3334 = vmatpush1.msra.mxu0 0.0
    %3335 = vmatprep.subr.mxu0 0.0
    %3336 = vmatpush1.msra.mxu0 0.0
    %3337 = vmatprep.subr.mxu0 0.0
    %3338 = vmatpush1.msra.mxu0 0.0
    %3339 = vmatprep.subr.mxu0 0.0
    %3340 = vmatpush1.msra.mxu0 0.0
    %3341 = vmatprep.subr.mxu0 0.0
    %3342 = vmatpush1.msra.mxu0 0.0
    %3343 = vmatprep.subr.mxu0 0.0
    %3344 = vmatpush1.msra.mxu0 0.0
    %3345 = vmatprep.subr.mxu0 0.0
    %3346 = vmatpush1.msra.mxu0 0.0
    %3347 = vmatprep.subr.mxu0 0.0
    %3348 = vmatpush1.msra.mxu0 0.0
    %3349 = vmatprep.subr.mxu0 0.0
    %3350 = vmatpush1.msra.mxu0 0.0
    %3351 = vmatprep.mubr.f32.mxu0 0.0
    %3352 = vmatmul.mubr.f32.gmra.mrb[0].mxu0 %v3282
    %v3353 = vpop.f32.mrb[0].mxu0
    %v3354 = vadd.f32 %v3279, %v3353
    %v3355 = vpop.f32.mrb[0].mxu0
    %3356 = vmatprep.mubr.f32.mxu0 0.0
    %3357 = vmatmul.mubr.f32.gmra.mrb[0].mxu0 %v3285
    %v3358 = vpop.f32.mrb[0].mxu0
    %v3359 = vadd.f32 %v3279, %v3358
    %v3360 = vpop.f32.mrb[0].mxu0
    %3361 = vdwg.mxu0
    %v3362 = vadd.f32 %v3187, %v3354
    %v3363 = vadd.f32 %v3188, %v3359
    %v3364 = vsel %vm48, %v3362, 0.0
    %3365 = vadd.xlane.f32.xlu0 %v3364
    %v3366 = vpop.xlane.xlu0 %3365
    %v3367 = vsel %vm48, %v3363, 0.0
    %3368 = vadd.xlane.f32.xlu0 %v3367
    %v3369 = vpop.xlane.xlu0 %3368
    %v3370 = vmul.f32 %v3366, %v3156
    %v3371 = vmul.f32 %v3369, %v3156
    %v3372 = vsub.f32 %v3362, %v3370
    %v3373 = vsub.f32 %v3363, %v3371
    %v3374 = vmul.f32 %v3372, %v3372
    %v3375 = vmul.f32 %v3373, %v3373
    %v3376 = vsel %vm48, %v3374, 0.0
    %3377 = vadd.xlane.f32.xlu0 %v3376
    %v3378 = vpop.xlane.xlu0 %3377
    %v3379 = vsel %vm48, %v3375, 0.0
    %3380 = vadd.xlane.f32.xlu0 %v3379
    %v3381 = vpop.xlane.xlu0 %3380
    %v3382 = vmul.f32 %v3378, %v3156
    %v3383 = vmul.f32 %v3381, %v3156
    %v3384 = vadd.f32 %v3382, 1e-05
    %v3385 = vadd.f32 %v3383, 1e-05
    %v3386 = vrsqrt.pop %v3384
    %v3387 = vrsqrt.pop %v3385
    %v3388 = vmul.f32 %v3372, %v3386
    %v3389 = vmul.f32 %v3373, %v3387
    %v3390 = vlaneseq
    %v3391 = vshrl.u32 %v3390, 7
    %v3392 = vsub.s32 0, %v3391
    %v3393 = vrot.slane %v243, %v3392
    %v3394 = vmul.f32 %v3388, %v3393
    %v3395 = vmul.f32 %v3389, %v3393
    %v3396 = vlaneseq
    %v3397 = vshrl.u32 %v3396, 7
    %v3398 = vsub.s32 0, %v3397
    %v3399 = vrot.slane %v244, %v3398
    %v3400 = vadd.f32 %v3394, %v3399
    %v3401 = vadd.f32 %v3395, %v3399
    %s3402 = scalar_lea.vmem [#allocation2], 160
    %v3403 = vld [vmem:[%s3402] sm:$0xff]
    %v3404 = vld [vmem:[%s3402 + $0x8] sm:$0xff]
    %v3405 = vld [vmem:[%s3402 + $0x10] sm:$0xff]
    %v3406 = vld [vmem:[%s3402 + $0x18] sm:$0xff]
    %v3407 = vld [vmem:[%s3402 + $0x20] sm:$0xff]
    %v3408 = vld [vmem:[%s3402 + $0x28] sm:$0xff]
    %v3409 = vld [vmem:[%s3402 + $0x30] sm:$0xff]
    %v3410 = vld [vmem:[%s3402 + $0x38] sm:$0xff]
    %v3411 = vld [vmem:[%s3402 + $0x40] sm:$0xff]
    %v3412 = vld [vmem:[%s3402 + $0x48] sm:$0xff]
    %v3413 = vld [vmem:[%s3402 + $0x50] sm:$0xff]
    %v3414 = vld [vmem:[%s3402 + $0x58] sm:$0xff]
    %v3415 = vld [vmem:[%s3402 + $0x60] sm:$0xff]
    %v3416 = vld [vmem:[%s3402 + $0x68] sm:$0xff]
    %v3417 = vld [vmem:[%s3402 + $0x70] sm:$0xff]
    %v3418 = vld [vmem:[%s3402 + $0x78] sm:$0xff]
    %v3419 = vld [vmem:[%s3402 + $0x80] sm:$0xff]
    %v3420 = vld [vmem:[%s3402 + $0x88] sm:$0xff]
    %v3421 = vld [vmem:[%s3402 + $0x90] sm:$0xff]
    %v3422 = vld [vmem:[%s3402 + $0x98] sm:$0xff]
    %s3423 = scalar_lea.vmem %s3, 8
    %v3424 = vld [vmem:[%s3423] sm:$0x1]
    %v3425 = vld [vmem:[%s3423 + $0x1] sm:$0x1]
    %v3426 = vld [vmem:[%s3423 + $0x2] sm:$0x1]
    %v3427 = vld [vmem:[%s3423 + $0x3] sm:$0x1]
    %v3428 = vld [vmem:[%s3423 + $0x4] sm:$0x1]
    %v3429 = vld [vmem:[%s3423 + $0x5] sm:$0x1]
    %v3430 = vld [vmem:[%s3423 + $0x6] sm:$0x1]
    %v3431 = vld [vmem:[%s3423 + $0x7] sm:$0x1]
    %v3432 = vlaneseq
    %v3433 = vshrl.u32 %v3432, 7
    %v3434 = vsub.s32 0, %v3433
    %v3435 = vrot.slane %v3424, %v3434
    %v3437 = vsel %vm48, %v3400, 0
    %v3440 = vsel %vm48, %v3401, 0
    %3442 = vmatprep.subr.mxu0 0.0
    %3443 = vmatpush1.msra.mxu0 %v3403
    %3444 = vmatprep.subr.mxu0 0.0
    %3445 = vmatpush1.msra.mxu0 %v3404
    %3446 = vmatprep.subr.mxu0 0.0
    %3447 = vmatpush1.msra.mxu0 %v3405
    %3448 = vmatprep.subr.mxu0 0.0
    %3449 = vmatpush1.msra.mxu0 %v3406
    %3450 = vmatprep.subr.mxu0 0.0
    %3451 = vmatpush1.msra.mxu0 0.0
    %3452 = vmatprep.subr.mxu0 0.0
    %3453 = vmatpush1.msra.mxu0 0.0
    %3454 = vmatprep.subr.mxu0 0.0
    %3455 = vmatpush1.msra.mxu0 0.0
    %3456 = vmatprep.subr.mxu0 0.0
    %3457 = vmatpush1.msra.mxu0 0.0
    %3458 = vmatprep.subr.mxu0 0.0
    %3459 = vmatpush1.msra.mxu0 0.0
    %3460 = vmatprep.subr.mxu0 0.0
    %3461 = vmatpush1.msra.mxu0 0.0
    %3462 = vmatprep.subr.mxu0 0.0
    %3463 = vmatpush1.msra.mxu0 0.0
    %3464 = vmatprep.subr.mxu0 0.0
    %3465 = vmatpush1.msra.mxu0 0.0
    %3466 = vmatprep.subr.mxu0 0.0
    %3467 = vmatpush1.msra.mxu0 0.0
    %3468 = vmatprep.subr.mxu0 0.0
    %3469 = vmatpush1.msra.mxu0 0.0
    %3470 = vmatprep.subr.mxu0 0.0
    %3471 = vmatpush1.msra.mxu0 0.0
    %3472 = vmatprep.subr.mxu0 0.0
    %3473 = vmatpush1.msra.mxu0 0.0
    %3474 = vmatprep.subr.mxu0 0.0
    %3475 = vmatpush1.msra.mxu0 0.0
    %3476 = vmatprep.subr.mxu0 0.0
    %3477 = vmatpush1.msra.mxu0 0.0
    %3478 = vmatprep.subr.mxu0 0.0
    %3479 = vmatpush1.msra.mxu0 0.0
    %3480 = vmatprep.subr.mxu0 0.0
    %3481 = vmatpush1.msra.mxu0 0.0
    %3482 = vmatprep.subr.mxu0 0.0
    %3483 = vmatpush1.msra.mxu0 0.0
    %3484 = vmatprep.subr.mxu0 0.0
    %3485 = vmatpush1.msra.mxu0 0.0
    %3486 = vmatprep.subr.mxu0 0.0
    %3487 = vmatpush1.msra.mxu0 0.0
    %3488 = vmatprep.subr.mxu0 0.0
    %3489 = vmatpush1.msra.mxu0 0.0
    %3490 = vmatprep.subr.mxu0 0.0
    %3491 = vmatpush1.msra.mxu0 0.0
    %3492 = vmatprep.subr.mxu0 0.0
    %3493 = vmatpush1.msra.mxu0 0.0
    %3494 = vmatprep.subr.mxu0 0.0
    %3495 = vmatpush1.msra.mxu0 0.0
    %3496 = vmatprep.subr.mxu0 0.0
    %3497 = vmatpush1.msra.mxu0 0.0
    %3498 = vmatprep.subr.mxu0 0.0
    %3499 = vmatpush1.msra.mxu0 0.0
    %3500 = vmatprep.subr.mxu0 0.0
    %3501 = vmatpush1.msra.mxu0 0.0
    %3502 = vmatprep.subr.mxu0 0.0
    %3503 = vmatpush1.msra.mxu0 0.0
    %3504 = vmatprep.subr.mxu0 0.0
    %3505 = vmatpush1.msra.mxu0 0.0
    %3506 = vmatprep.mubr.f32.mxu0 0.0
    %3507 = vmatmul.mubr.f32.gmra.mrb[0].mxu0 %v3437
    %v3508 = vpop.f32.mrb[0].mxu0
    %v3509 = vadd.f32 %v3435, %v3508
    %v3510 = vpop.f32.mrb[0].mxu0
    %3511 = vmatprep.mubr.f32.mxu0 0.0
    %3512 = vmatmul.mubr.f32.gmra.mrb[0].mxu0 %v3440
    %v3513 = vpop.f32.mrb[0].mxu0
    %v3514 = vadd.f32 %v3435, %v3513
    %v3515 = vpop.f32.mrb[0].mxu0
    %3516 = vdwg.mxu0
    %3518 = vrot.lane.b32.xlu0 %v3509, 96
    %v3519 = vpop.permute.xlu0 %3518
    %v3520 = vsel %vm335, %v3509, 0
    %v3522 = vsel %vm335, %v3519, 0
    %3524 = vmatprep.subr.mxu0 0.0
    %3525 = vmatpush1.xpose.msra.mxu0 %v3522
    %3526 = vmatprep.subr.mxu0 0.0
    %3527 = vmatpush1.xpose.msra.mxu0 0.0
    %3528 = vmatprep.subr.mxu0 0.0
    %3529 = vmatpush1.xpose.msra.mxu0 0.0
    %3530 = vmatprep.subr.mxu0 0.0
    %3531 = vmatpush1.xpose.msra.mxu0 0.0
    %3532 = vmatprep.subr.mxu0 0.0
    %3533 = vmatpush1.xpose.msra.mxu0 0.0
    %3534 = vmatprep.subr.mxu0 0.0
    %3535 = vmatpush1.xpose.msra.mxu0 0.0
    %3536 = vmatprep.subr.mxu0 0.0
    %3537 = vmatpush1.xpose.msra.mxu0 0.0
    %3538 = vmatprep.subr.mxu0 0.0
    %3539 = vmatpush1.xpose.msra.mxu0 0.0
    %3540 = vmatprep.subr.mxu0 0.0
    %3541 = vmatpush1.xpose.msra.mxu0 0.0
    %3542 = vmatprep.subr.mxu0 0.0
    %3543 = vmatpush1.xpose.msra.mxu0 0.0
    %3544 = vmatprep.subr.mxu0 0.0
    %3545 = vmatpush1.xpose.msra.mxu0 0.0
    %3546 = vmatprep.subr.mxu0 0.0
    %3547 = vmatpush1.xpose.msra.mxu0 0.0
    %3548 = vmatprep.subr.mxu0 0.0
    %3549 = vmatpush1.xpose.msra.mxu0 0.0
    %3550 = vmatprep.subr.mxu0 0.0
    %3551 = vmatpush1.xpose.msra.mxu0 0.0
    %3552 = vmatprep.subr.mxu0 0.0
    %3553 = vmatpush1.xpose.msra.mxu0 0.0
    %3554 = vmatprep.subr.mxu0 0.0
    %3555 = vmatpush1.xpose.msra.mxu0 0.0
    %3556 = vmatprep.subr.mxu0 0.0
    %3557 = vmatpush1.xpose.msra.mxu0 0.0
    %3558 = vmatprep.subr.mxu0 0.0
    %3559 = vmatpush1.xpose.msra.mxu0 0.0
    %3560 = vmatprep.subr.mxu0 0.0
    %3561 = vmatpush1.xpose.msra.mxu0 0.0
    %3562 = vmatprep.subr.mxu0 0.0
    %3563 = vmatpush1.xpose.msra.mxu0 0.0
    %3564 = vmatprep.subr.mxu0 0.0
    %3565 = vmatpush1.xpose.msra.mxu0 0.0
    %3566 = vmatprep.subr.mxu0 0.0
    %3567 = vmatpush1.xpose.msra.mxu0 0.0
    %3568 = vmatprep.subr.mxu0 0.0
    %3569 = vmatpush1.xpose.msra.mxu0 0.0
    %3570 = vmatprep.subr.mxu0 0.0
    %3571 = vmatpush1.xpose.msra.mxu0 0.0
    %3572 = vmatprep.subr.mxu0 0.0
    %3573 = vmatpush1.xpose.msra.mxu0 0.0
    %3574 = vmatprep.subr.mxu0 0.0
    %3575 = vmatpush1.xpose.msra.mxu0 0.0
    %3576 = vmatprep.subr.mxu0 0.0
    %3577 = vmatpush1.xpose.msra.mxu0 0.0
    %3578 = vmatprep.subr.mxu0 0.0
    %3579 = vmatpush1.xpose.msra.mxu0 0.0
    %3580 = vmatprep.subr.mxu0 0.0
    %3581 = vmatpush1.xpose.msra.mxu0 0.0
    %3582 = vmatprep.subr.mxu0 0.0
    %3583 = vmatpush1.xpose.msra.mxu0 0.0
    %3584 = vmatprep.subr.mxu0 0.0
    %3585 = vmatpush1.xpose.msra.mxu0 0.0
    %3586 = vmatprep.subr.mxu0 0.0
    %3587 = vmatpush1.xpose.msra.mxu0 0.0
    %3588 = vmatprep.mubr.f32.mxu0 0.0
    %3589 = vmatmul.mubr.f32.gmra.mrb[0].mxu0 %v3520
    %v3590 = vpop.f32.mrb[0].mxu0
    %v3591 = vadd.f32 0.0, %v3590
    %v3592 = vpop.f32.mrb[0].mxu0
    %3593 = vdwg.mxu0
    %3594 = vrot.lane.b32.xlu0 %v3509, 124
    %v3595 = vpop.permute.xlu0 %3594
    %3596 = vrot.lane.b32.xlu0 %v3509, 92
    %v3597 = vpop.permute.xlu0 %3596
    %v3598 = vsel %vm335, %v3595, 0
    %v3600 = vsel %vm335, %v3597, 0
    %3602 = vmatprep.subr.mxu0 0.0
    %3603 = vmatpush1.xpose.msra.mxu0 %v3600
    %3604 = vmatprep.subr.mxu0 0.0
    %3605 = vmatpush1.xpose.msra.mxu0 0.0
    %3606 = vmatprep.subr.mxu0 0.0
    %3607 = vmatpush1.xpose.msra.mxu0 0.0
    %3608 = vmatprep.subr.mxu0 0.0
    %3609 = vmatpush1.xpose.msra.mxu0 0.0
    %3610 = vmatprep.subr.mxu0 0.0
    %3611 = vmatpush1.xpose.msra.mxu0 0.0
    %3612 = vmatprep.subr.mxu0 0.0
    %3613 = vmatpush1.xpose.msra.mxu0 0.0
    %3614 = vmatprep.subr.mxu0 0.0
    %3615 = vmatpush1.xpose.msra.mxu0 0.0
    %3616 = vmatprep.subr.mxu0 0.0
    %3617 = vmatpush1.xpose.msra.mxu0 0.0
    %3618 = vmatprep.subr.mxu0 0.0
    %3619 = vmatpush1.xpose.msra.mxu0 0.0
    %3620 = vmatprep.subr.mxu0 0.0
    %3621 = vmatpush1.xpose.msra.mxu0 0.0
    %3622 = vmatprep.subr.mxu0 0.0
    %3623 = vmatpush1.xpose.msra.mxu0 0.0
    %3624 = vmatprep.subr.mxu0 0.0
    %3625 = vmatpush1.xpose.msra.mxu0 0.0
    %3626 = vmatprep.subr.mxu0 0.0
    %3627 = vmatpush1.xpose.msra.mxu0 0.0
    %3628 = vmatprep.subr.mxu0 0.0
    %3629 = vmatpush1.xpose.msra.mxu0 0.0
    %3630 = vmatprep.subr.mxu0 0.0
    %3631 = vmatpush1.xpose.msra.mxu0 0.0
    %3632 = vmatprep.subr.mxu0 0.0
    %3633 = vmatpush1.xpose.msra.mxu0 0.0
    %3634 = vmatprep.subr.mxu0 0.0
    %3635 = vmatpush1.xpose.msra.mxu0 0.0
    %3636 = vmatprep.subr.mxu0 0.0
    %3637 = vmatpush1.xpose.msra.mxu0 0.0
    %3638 = vmatprep.subr.mxu0 0.0
    %3639 = vmatpush1.xpose.msra.mxu0 0.0
    %3640 = vmatprep.subr.mxu0 0.0
    %3641 = vmatpush1.xpose.msra.mxu0 0.0
    %3642 = vmatprep.subr.mxu0 0.0
    %3643 = vmatpush1.xpose.msra.mxu0 0.0
    %3644 = vmatprep.subr.mxu0 0.0
    %3645 = vmatpush1.xpose.msra.mxu0 0.0
    %3646 = vmatprep.subr.mxu0 0.0
    %3647 = vmatpush1.xpose.msra.mxu0 0.0
    %3648 = vmatprep.subr.mxu0 0.0
    %3649 = vmatpush1.xpose.msra.mxu0 0.0
    %3650 = vmatprep.subr.mxu0 0.0
    %3651 = vmatpush1.xpose.msra.mxu0 0.0
    %3652 = vmatprep.subr.mxu0 0.0
    %3653 = vmatpush1.xpose.msra.mxu0 0.0
    %3654 = vmatprep.subr.mxu0 0.0
    %3655 = vmatpush1.xpose.msra.mxu0 0.0
    %3656 = vmatprep.subr.mxu0 0.0
    %3657 = vmatpush1.xpose.msra.mxu0 0.0
    %3658 = vmatprep.subr.mxu0 0.0
    %3659 = vmatpush1.xpose.msra.mxu0 0.0
    %3660 = vmatprep.subr.mxu0 0.0
    %3661 = vmatpush1.xpose.msra.mxu0 0.0
    %3662 = vmatprep.subr.mxu0 0.0
    %3663 = vmatpush1.xpose.msra.mxu0 0.0
    %3664 = vmatprep.subr.mxu0 0.0
    %3665 = vmatpush1.xpose.msra.mxu0 0.0
    %3666 = vmatprep.mubr.f32.mxu0 0.0
    %3667 = vmatmul.mubr.f32.gmra.mrb[0].mxu0 %v3598
    %v3668 = vpop.f32.mrb[0].mxu0
    %v3669 = vadd.f32 0.0, %v3668
    %v3670 = vpop.f32.mrb[0].mxu0
    %3671 = vdwg.mxu0
    %3672 = vrot.lane.b32.xlu0 %v3509, 120
    %v3673 = vpop.permute.xlu0 %3672
    %3674 = vrot.lane.b32.xlu0 %v3509, 88
    %v3675 = vpop.permute.xlu0 %3674
    %v3676 = vsel %vm335, %v3673, 0
    %v3678 = vsel %vm335, %v3675, 0
    %3680 = vmatprep.subr.mxu0 0.0
    %3681 = vmatpush1.xpose.msra.mxu0 %v3678
    %3682 = vmatprep.subr.mxu0 0.0
    %3683 = vmatpush1.xpose.msra.mxu0 0.0
    %3684 = vmatprep.subr.mxu0 0.0
    %3685 = vmatpush1.xpose.msra.mxu0 0.0
    %3686 = vmatprep.subr.mxu0 0.0
    %3687 = vmatpush1.xpose.msra.mxu0 0.0
    %3688 = vmatprep.subr.mxu0 0.0
    %3689 = vmatpush1.xpose.msra.mxu0 0.0
    %3690 = vmatprep.subr.mxu0 0.0
    %3691 = vmatpush1.xpose.msra.mxu0 0.0
    %3692 = vmatprep.subr.mxu0 0.0
    %3693 = vmatpush1.xpose.msra.mxu0 0.0
    %3694 = vmatprep.subr.mxu0 0.0
    %3695 = vmatpush1.xpose.msra.mxu0 0.0
    %3696 = vmatprep.subr.mxu0 0.0
    %3697 = vmatpush1.xpose.msra.mxu0 0.0
    %3698 = vmatprep.subr.mxu0 0.0
    %3699 = vmatpush1.xpose.msra.mxu0 0.0
    %3700 = vmatprep.subr.mxu0 0.0
    %3701 = vmatpush1.xpose.msra.mxu0 0.0
    %3702 = vmatprep.subr.mxu0 0.0
    %3703 = vmatpush1.xpose.msra.mxu0 0.0
    %3704 = vmatprep.subr.mxu0 0.0
    %3705 = vmatpush1.xpose.msra.mxu0 0.0
    %3706 = vmatprep.subr.mxu0 0.0
    %3707 = vmatpush1.xpose.msra.mxu0 0.0
    %3708 = vmatprep.subr.mxu0 0.0
    %3709 = vmatpush1.xpose.msra.mxu0 0.0
    %3710 = vmatprep.subr.mxu0 0.0
    %3711 = vmatpush1.xpose.msra.mxu0 0.0
    %3712 = vmatprep.subr.mxu0 0.0
    %3713 = vmatpush1.xpose.msra.mxu0 0.0
    %3714 = vmatprep.subr.mxu0 0.0
    %3715 = vmatpush1.xpose.msra.mxu0 0.0
    %3716 = vmatprep.subr.mxu0 0.0
    %3717 = vmatpush1.xpose.msra.mxu0 0.0
    %3718 = vmatprep.subr.mxu0 0.0
    %3719 = vmatpush1.xpose.msra.mxu0 0.0
    %3720 = vmatprep.subr.mxu0 0.0
    %3721 = vmatpush1.xpose.msra.mxu0 0.0
    %3722 = vmatprep.subr.mxu0 0.0
    %3723 = vmatpush1.xpose.msra.mxu0 0.0
    %3724 = vmatprep.subr.mxu0 0.0
    %3725 = vmatpush1.xpose.msra.mxu0 0.0
    %3726 = vmatprep.subr.mxu0 0.0
    %3727 = vmatpush1.xpose.msra.mxu0 0.0
    %3728 = vmatprep.subr.mxu0 0.0
    %3729 = vmatpush1.xpose.msra.mxu0 0.0
    %3730 = vmatprep.subr.mxu0 0.0
    %3731 = vmatpush1.xpose.msra.mxu0 0.0
    %3732 = vmatprep.subr.mxu0 0.0
    %3733 = vmatpush1.xpose.msra.mxu0 0.0
    %3734 = vmatprep.subr.mxu0 0.0
    %3735 = vmatpush1.xpose.msra.mxu0 0.0
    %3736 = vmatprep.subr.mxu0 0.0
    %3737 = vmatpush1.xpose.msra.mxu0 0.0
    %3738 = vmatprep.subr.mxu0 0.0
    %3739 = vmatpush1.xpose.msra.mxu0 0.0
    %3740 = vmatprep.subr.mxu0 0.0
    %3741 = vmatpush1.xpose.msra.mxu0 0.0
    %3742 = vmatprep.subr.mxu0 0.0
    %3743 = vmatpush1.xpose.msra.mxu0 0.0
    %3744 = vmatprep.mubr.f32.mxu0 0.0
    %3745 = vmatmul.mubr.f32.gmra.mrb[0].mxu0 %v3676
    %v3746 = vpop.f32.mrb[0].mxu0
    %v3747 = vadd.f32 0.0, %v3746
    %v3748 = vpop.f32.mrb[0].mxu0
    %3749 = vdwg.mxu0
    %3750 = vrot.lane.b32.xlu0 %v3509, 116
    %v3751 = vpop.permute.xlu0 %3750
    %3752 = vrot.lane.b32.xlu0 %v3509, 84
    %v3753 = vpop.permute.xlu0 %3752
    %v3754 = vsel %vm335, %v3751, 0
    %v3756 = vsel %vm335, %v3753, 0
    %3758 = vmatprep.subr.mxu0 0.0
    %3759 = vmatpush1.xpose.msra.mxu0 %v3756
    %3760 = vmatprep.subr.mxu0 0.0
    %3761 = vmatpush1.xpose.msra.mxu0 0.0
    %3762 = vmatprep.subr.mxu0 0.0
    %3763 = vmatpush1.xpose.msra.mxu0 0.0
    %3764 = vmatprep.subr.mxu0 0.0
    %3765 = vmatpush1.xpose.msra.mxu0 0.0
    %3766 = vmatprep.subr.mxu0 0.0
    %3767 = vmatpush1.xpose.msra.mxu0 0.0
    %3768 = vmatprep.subr.mxu0 0.0
    %3769 = vmatpush1.xpose.msra.mxu0 0.0
    %3770 = vmatprep.subr.mxu0 0.0
    %3771 = vmatpush1.xpose.msra.mxu0 0.0
    %3772 = vmatprep.subr.mxu0 0.0
    %3773 = vmatpush1.xpose.msra.mxu0 0.0
    %3774 = vmatprep.subr.mxu0 0.0
    %3775 = vmatpush1.xpose.msra.mxu0 0.0
    %3776 = vmatprep.subr.mxu0 0.0
    %3777 = vmatpush1.xpose.msra.mxu0 0.0
    %3778 = vmatprep.subr.mxu0 0.0
    %3779 = vmatpush1.xpose.msra.mxu0 0.0
    %3780 = vmatprep.subr.mxu0 0.0
    %3781 = vmatpush1.xpose.msra.mxu0 0.0
    %3782 = vmatprep.subr.mxu0 0.0
    %3783 = vmatpush1.xpose.msra.mxu0 0.0
    %3784 = vmatprep.subr.mxu0 0.0
    %3785 = vmatpush1.xpose.msra.mxu0 0.0
    %3786 = vmatprep.subr.mxu0 0.0
    %3787 = vmatpush1.xpose.msra.mxu0 0.0
    %3788 = vmatprep.subr.mxu0 0.0
    %3789 = vmatpush1.xpose.msra.mxu0 0.0
    %3790 = vmatprep.subr.mxu0 0.0
    %3791 = vmatpush1.xpose.msra.mxu0 0.0
    %3792 = vmatprep.subr.mxu0 0.0
    %3793 = vmatpush1.xpose.msra.mxu0 0.0
    %3794 = vmatprep.subr.mxu0 0.0
    %3795 = vmatpush1.xpose.msra.mxu0 0.0
    %3796 = vmatprep.subr.mxu0 0.0
    %3797 = vmatpush1.xpose.msra.mxu0 0.0
    %3798 = vmatprep.subr.mxu0 0.0
    %3799 = vmatpush1.xpose.msra.mxu0 0.0
    %3800 = vmatprep.subr.mxu0 0.0
    %3801 = vmatpush1.xpose.msra.mxu0 0.0
    %3802 = vmatprep.subr.mxu0 0.0
    %3803 = vmatpush1.xpose.msra.mxu0 0.0
    %3804 = vmatprep.subr.mxu0 0.0
    %3805 = vmatpush1.xpose.msra.mxu0 0.0
    %3806 = vmatprep.subr.mxu0 0.0
    %3807 = vmatpush1.xpose.msra.mxu0 0.0
    %3808 = vmatprep.subr.mxu0 0.0
    %3809 = vmatpush1.xpose.msra.mxu0 0.0
    %3810 = vmatprep.subr.mxu0 0.0
    %3811 = vmatpush1.xpose.msra.mxu0 0.0
    %3812 = vmatprep.subr.mxu0 0.0
    %3813 = vmatpush1.xpose.msra.mxu0 0.0
    %3814 = vmatprep.subr.mxu0 0.0
    %3815 = vmatpush1.xpose.msra.mxu0 0.0
    %3816 = vmatprep.subr.mxu0 0.0
    %3817 = vmatpush1.xpose.msra.mxu0 0.0
    %3818 = vmatprep.subr.mxu0 0.0
    %3819 = vmatpush1.xpose.msra.mxu0 0.0
    %3820 = vmatprep.subr.mxu0 0.0
    %3821 = vmatpush1.xpose.msra.mxu0 0.0
    %3822 = vmatprep.mubr.f32.mxu0 0.0
    %3823 = vmatmul.mubr.f32.gmra.mrb[0].mxu0 %v3754
    %v3824 = vpop.f32.mrb[0].mxu0
    %v3825 = vadd.f32 0.0, %v3824
    %v3826 = vpop.f32.mrb[0].mxu0
    %3827 = vdwg.mxu0
    %3828 = vrot.lane.b32.xlu0 %v3509, 112
    %v3829 = vpop.permute.xlu0 %3828
    %3830 = vrot.lane.b32.xlu0 %v3509, 80
    %v3831 = vpop.permute.xlu0 %3830
    %v3832 = vsel %vm335, %v3829, 0
    %v3834 = vsel %vm335, %v3831, 0
    %3836 = vmatprep.subr.mxu0 0.0
    %3837 = vmatpush1.xpose.msra.mxu0 %v3834
    %3838 = vmatprep.subr.mxu0 0.0
    %3839 = vmatpush1.xpose.msra.mxu0 0.0
    %3840 = vmatprep.subr.mxu0 0.0
    %3841 = vmatpush1.xpose.msra.mxu0 0.0
    %3842 = vmatprep.subr.mxu0 0.0
    %3843 = vmatpush1.xpose.msra.mxu0 0.0
    %3844 = vmatprep.subr.mxu0 0.0
    %3845 = vmatpush1.xpose.msra.mxu0 0.0
    %3846 = vmatprep.subr.mxu0 0.0
    %3847 = vmatpush1.xpose.msra.mxu0 0.0
    %3848 = vmatprep.subr.mxu0 0.0
    %3849 = vmatpush1.xpose.msra.mxu0 0.0
    %3850 = vmatprep.subr.mxu0 0.0
    %3851 = vmatpush1.xpose.msra.mxu0 0.0
    %3852 = vmatprep.subr.mxu0 0.0
    %3853 = vmatpush1.xpose.msra.mxu0 0.0
    %3854 = vmatprep.subr.mxu0 0.0
    %3855 = vmatpush1.xpose.msra.mxu0 0.0
    %3856 = vmatprep.subr.mxu0 0.0
    %3857 = vmatpush1.xpose.msra.mxu0 0.0
    %3858 = vmatprep.subr.mxu0 0.0
    %3859 = vmatpush1.xpose.msra.mxu0 0.0
    %3860 = vmatprep.subr.mxu0 0.0
    %3861 = vmatpush1.xpose.msra.mxu0 0.0
    %3862 = vmatprep.subr.mxu0 0.0
    %3863 = vmatpush1.xpose.msra.mxu0 0.0
    %3864 = vmatprep.subr.mxu0 0.0
    %3865 = vmatpush1.xpose.msra.mxu0 0.0
    %3866 = vmatprep.subr.mxu0 0.0
    %3867 = vmatpush1.xpose.msra.mxu0 0.0
    %3868 = vmatprep.subr.mxu0 0.0
    %3869 = vmatpush1.xpose.msra.mxu0 0.0
    %3870 = vmatprep.subr.mxu0 0.0
    %3871 = vmatpush1.xpose.msra.mxu0 0.0
    %3872 = vmatprep.subr.mxu0 0.0
    %3873 = vmatpush1.xpose.msra.mxu0 0.0
    %3874 = vmatprep.subr.mxu0 0.0
    %3875 = vmatpush1.xpose.msra.mxu0 0.0
    %3876 = vmatprep.subr.mxu0 0.0
    %3877 = vmatpush1.xpose.msra.mxu0 0.0
    %3878 = vmatprep.subr.mxu0 0.0
    %3879 = vmatpush1.xpose.msra.mxu0 0.0
    %3880 = vmatprep.subr.mxu0 0.0
    %3881 = vmatpush1.xpose.msra.mxu0 0.0
    %3882 = vmatprep.subr.mxu0 0.0
    %3883 = vmatpush1.xpose.msra.mxu0 0.0
    %3884 = vmatprep.subr.mxu0 0.0
    %3885 = vmatpush1.xpose.msra.mxu0 0.0
    %3886 = vmatprep.subr.mxu0 0.0
    %3887 = vmatpush1.xpose.msra.mxu0 0.0
    %3888 = vmatprep.subr.mxu0 0.0
    %3889 = vmatpush1.xpose.msra.mxu0 0.0
    %3890 = vmatprep.subr.mxu0 0.0
    %3891 = vmatpush1.xpose.msra.mxu0 0.0
    %3892 = vmatprep.subr.mxu0 0.0
    %3893 = vmatpush1.xpose.msra.mxu0 0.0
    %3894 = vmatprep.subr.mxu0 0.0
    %3895 = vmatpush1.xpose.msra.mxu0 0.0
    %3896 = vmatprep.subr.mxu0 0.0
    %3897 = vmatpush1.xpose.msra.mxu0 0.0
    %3898 = vmatprep.subr.mxu0 0.0
    %3899 = vmatpush1.xpose.msra.mxu0 0.0
    %3900 = vmatprep.mubr.f32.mxu0 0.0
    %3901 = vmatmul.mubr.f32.gmra.mrb[0].mxu0 %v3832
    %v3902 = vpop.f32.mrb[0].mxu0
    %v3903 = vadd.f32 0.0, %v3902
    %v3904 = vpop.f32.mrb[0].mxu0
    %3905 = vdwg.mxu0
    %3906 = vrot.lane.b32.xlu0 %v3509, 108
    %v3907 = vpop.permute.xlu0 %3906
    %3908 = vrot.lane.b32.xlu0 %v3509, 76
    %v3909 = vpop.permute.xlu0 %3908
    %v3910 = vsel %vm335, %v3907, 0
    %v3912 = vsel %vm335, %v3909, 0
    %3914 = vmatprep.subr.mxu0 0.0
    %3915 = vmatpush1.xpose.msra.mxu0 %v3912
    %3916 = vmatprep.subr.mxu0 0.0
    %3917 = vmatpush1.xpose.msra.mxu0 0.0
    %3918 = vmatprep.subr.mxu0 0.0
    %3919 = vmatpush1.xpose.msra.mxu0 0.0
    %3920 = vmatprep.subr.mxu0 0.0
    %3921 = vmatpush1.xpose.msra.mxu0 0.0
    %3922 = vmatprep.subr.mxu0 0.0
    %3923 = vmatpush1.xpose.msra.mxu0 0.0
    %3924 = vmatprep.subr.mxu0 0.0
    %3925 = vmatpush1.xpose.msra.mxu0 0.0
    %3926 = vmatprep.subr.mxu0 0.0
    %3927 = vmatpush1.xpose.msra.mxu0 0.0
    %3928 = vmatprep.subr.mxu0 0.0
    %3929 = vmatpush1.xpose.msra.mxu0 0.0
    %3930 = vmatprep.subr.mxu0 0.0
    %3931 = vmatpush1.xpose.msra.mxu0 0.0
    %3932 = vmatprep.subr.mxu0 0.0
    %3933 = vmatpush1.xpose.msra.mxu0 0.0
    %3934 = vmatprep.subr.mxu0 0.0
    %3935 = vmatpush1.xpose.msra.mxu0 0.0
    %3936 = vmatprep.subr.mxu0 0.0
    %3937 = vmatpush1.xpose.msra.mxu0 0.0
    %3938 = vmatprep.subr.mxu0 0.0
    %3939 = vmatpush1.xpose.msra.mxu0 0.0
    %3940 = vmatprep.subr.mxu0 0.0
    %3941 = vmatpush1.xpose.msra.mxu0 0.0
    %3942 = vmatprep.subr.mxu0 0.0
    %3943 = vmatpush1.xpose.msra.mxu0 0.0
    %3944 = vmatprep.subr.mxu0 0.0
    %3945 = vmatpush1.xpose.msra.mxu0 0.0
    %3946 = vmatprep.subr.mxu0 0.0
    %3947 = vmatpush1.xpose.msra.mxu0 0.0
    %3948 = vmatprep.subr.mxu0 0.0
    %3949 = vmatpush1.xpose.msra.mxu0 0.0
    %3950 = vmatprep.subr.mxu0 0.0
    %3951 = vmatpush1.xpose.msra.mxu0 0.0
    %3952 = vmatprep.subr.mxu0 0.0
    %3953 = vmatpush1.xpose.msra.mxu0 0.0
    %3954 = vmatprep.subr.mxu0 0.0
    %3955 = vmatpush1.xpose.msra.mxu0 0.0
    %3956 = vmatprep.subr.mxu0 0.0
    %3957 = vmatpush1.xpose.msra.mxu0 0.0
    %3958 = vmatprep.subr.mxu0 0.0
    %3959 = vmatpush1.xpose.msra.mxu0 0.0
    %3960 = vmatprep.subr.mxu0 0.0
    %3961 = vmatpush1.xpose.msra.mxu0 0.0
    %3962 = vmatprep.subr.mxu0 0.0
    %3963 = vmatpush1.xpose.msra.mxu0 0.0
    %3964 = vmatprep.subr.mxu0 0.0
    %3965 = vmatpush1.xpose.msra.mxu0 0.0
    %3966 = vmatprep.subr.mxu0 0.0
    %3967 = vmatpush1.xpose.msra.mxu0 0.0
    %3968 = vmatprep.subr.mxu0 0.0
    %3969 = vmatpush1.xpose.msra.mxu0 0.0
    %3970 = vmatprep.subr.mxu0 0.0
    %3971 = vmatpush1.xpose.msra.mxu0 0.0
    %3972 = vmatprep.subr.mxu0 0.0
    %3973 = vmatpush1.xpose.msra.mxu0 0.0
    %3974 = vmatprep.subr.mxu0 0.0
    %3975 = vmatpush1.xpose.msra.mxu0 0.0
    %3976 = vmatprep.subr.mxu0 0.0
    %3977 = vmatpush1.xpose.msra.mxu0 0.0
    %3978 = vmatprep.mubr.f32.mxu0 0.0
    %3979 = vmatmul.mubr.f32.gmra.mrb[0].mxu0 %v3910
    %v3980 = vpop.f32.mrb[0].mxu0
    %v3981 = vadd.f32 0.0, %v3980
    %v3982 = vpop.f32.mrb[0].mxu0
    %3983 = vdwg.mxu0
    %3984 = vrot.lane.b32.xlu0 %v3509, 104
    %v3985 = vpop.permute.xlu0 %3984
    %3986 = vrot.lane.b32.xlu0 %v3509, 72
    %v3987 = vpop.permute.xlu0 %3986
    %v3988 = vsel %vm335, %v3985, 0
    %v3990 = vsel %vm335, %v3987, 0
    %3992 = vmatprep.subr.mxu0 0.0
    %3993 = vmatpush1.xpose.msra.mxu0 %v3990
    %3994 = vmatprep.subr.mxu0 0.0
    %3995 = vmatpush1.xpose.msra.mxu0 0.0
    %3996 = vmatprep.subr.mxu0 0.0
    %3997 = vmatpush1.xpose.msra.mxu0 0.0
    %3998 = vmatprep.subr.mxu0 0.0
    %3999 = vmatpush1.xpose.msra.mxu0 0.0
    %4000 = vmatprep.subr.mxu0 0.0
    %4001 = vmatpush1.xpose.msra.mxu0 0.0
    %4002 = vmatprep.subr.mxu0 0.0
    %4003 = vmatpush1.xpose.msra.mxu0 0.0
    %4004 = vmatprep.subr.mxu0 0.0
    %4005 = vmatpush1.xpose.msra.mxu0 0.0
    %4006 = vmatprep.subr.mxu0 0.0
    %4007 = vmatpush1.xpose.msra.mxu0 0.0
    %4008 = vmatprep.subr.mxu0 0.0
    %4009 = vmatpush1.xpose.msra.mxu0 0.0
    %4010 = vmatprep.subr.mxu0 0.0
    %4011 = vmatpush1.xpose.msra.mxu0 0.0
    %4012 = vmatprep.subr.mxu0 0.0
    %4013 = vmatpush1.xpose.msra.mxu0 0.0
    %4014 = vmatprep.subr.mxu0 0.0
    %4015 = vmatpush1.xpose.msra.mxu0 0.0
    %4016 = vmatprep.subr.mxu0 0.0
    %4017 = vmatpush1.xpose.msra.mxu0 0.0
    %4018 = vmatprep.subr.mxu0 0.0
    %4019 = vmatpush1.xpose.msra.mxu0 0.0
    %4020 = vmatprep.subr.mxu0 0.0
    %4021 = vmatpush1.xpose.msra.mxu0 0.0
    %4022 = vmatprep.subr.mxu0 0.0
    %4023 = vmatpush1.xpose.msra.mxu0 0.0
    %4024 = vmatprep.subr.mxu0 0.0
    %4025 = vmatpush1.xpose.msra.mxu0 0.0
    %4026 = vmatprep.subr.mxu0 0.0
    %4027 = vmatpush1.xpose.msra.mxu0 0.0
    %4028 = vmatprep.subr.mxu0 0.0
    %4029 = vmatpush1.xpose.msra.mxu0 0.0
    %4030 = vmatprep.subr.mxu0 0.0
    %4031 = vmatpush1.xpose.msra.mxu0 0.0
    %4032 = vmatprep.subr.mxu0 0.0
    %4033 = vmatpush1.xpose.msra.mxu0 0.0
    %4034 = vmatprep.subr.mxu0 0.0
    %4035 = vmatpush1.xpose.msra.mxu0 0.0
    %4036 = vmatprep.subr.mxu0 0.0
    %4037 = vmatpush1.xpose.msra.mxu0 0.0
    %4038 = vmatprep.subr.mxu0 0.0
    %4039 = vmatpush1.xpose.msra.mxu0 0.0
    %4040 = vmatprep.subr.mxu0 0.0
    %4041 = vmatpush1.xpose.msra.mxu0 0.0
    %4042 = vmatprep.subr.mxu0 0.0
    %4043 = vmatpush1.xpose.msra.mxu0 0.0
    %4044 = vmatprep.subr.mxu0 0.0
    %4045 = vmatpush1.xpose.msra.mxu0 0.0
    %4046 = vmatprep.subr.mxu0 0.0
    %4047 = vmatpush1.xpose.msra.mxu0 0.0
    %4048 = vmatprep.subr.mxu0 0.0
    %4049 = vmatpush1.xpose.msra.mxu0 0.0
    %4050 = vmatprep.subr.mxu0 0.0
    %4051 = vmatpush1.xpose.msra.mxu0 0.0
    %4052 = vmatprep.subr.mxu0 0.0
    %4053 = vmatpush1.xpose.msra.mxu0 0.0
    %4054 = vmatprep.subr.mxu0 0.0
    %4055 = vmatpush1.xpose.msra.mxu0 0.0
    %4056 = vmatprep.mubr.f32.mxu0 0.0
    %4057 = vmatmul.mubr.f32.gmra.mrb[0].mxu0 %v3988
    %v4058 = vpop.f32.mrb[0].mxu0
    %v4059 = vadd.f32 0.0, %v4058
    %v4060 = vpop.f32.mrb[0].mxu0
    %4061 = vdwg.mxu0
    %4062 = vrot.lane.b32.xlu0 %v3509, 100
    %v4063 = vpop.permute.xlu0 %4062
    %4064 = vrot.lane.b32.xlu0 %v3509, 68
    %v4065 = vpop.permute.xlu0 %4064
    %v4066 = vsel %vm335, %v4063, 0
    %v4068 = vsel %vm335, %v4065, 0
    %4070 = vmatprep.subr.mxu0 0.0
    %4071 = vmatpush1.xpose.msra.mxu0 %v4068
    %4072 = vmatprep.subr.mxu0 0.0
    %4073 = vmatpush1.xpose.msra.mxu0 0.0
    %4074 = vmatprep.subr.mxu0 0.0
    %4075 = vmatpush1.xpose.msra.mxu0 0.0
    %4076 = vmatprep.subr.mxu0 0.0
    %4077 = vmatpush1.xpose.msra.mxu0 0.0
    %4078 = vmatprep.subr.mxu0 0.0
    %4079 = vmatpush1.xpose.msra.mxu0 0.0
    %4080 = vmatprep.subr.mxu0 0.0
    %4081 = vmatpush1.xpose.msra.mxu0 0.0
    %4082 = vmatprep.subr.mxu0 0.0
    %4083 = vmatpush1.xpose.msra.mxu0 0.0
    %4084 = vmatprep.subr.mxu0 0.0
    %4085 = vmatpush1.xpose.msra.mxu0 0.0
    %4086 = vmatprep.subr.mxu0 0.0
    %4087 = vmatpush1.xpose.msra.mxu0 0.0
    %4088 = vmatprep.subr.mxu0 0.0
    %4089 = vmatpush1.xpose.msra.mxu0 0.0
    %4090 = vmatprep.subr.mxu0 0.0
    %4091 = vmatpush1.xpose.msra.mxu0 0.0
    %4092 = vmatprep.subr.mxu0 0.0
    %4093 = vmatpush1.xpose.msra.mxu0 0.0
    %4094 = vmatprep.subr.mxu0 0.0
    %4095 = vmatpush1.xpose.msra.mxu0 0.0
    %4096 = vmatprep.subr.mxu0 0.0
    %4097 = vmatpush1.xpose.msra.mxu0 0.0
    %4098 = vmatprep.subr.mxu0 0.0
    %4099 = vmatpush1.xpose.msra.mxu0 0.0
    %4100 = vmatprep.subr.mxu0 0.0
    %4101 = vmatpush1.xpose.msra.mxu0 0.0
    %4102 = vmatprep.subr.mxu0 0.0
    %4103 = vmatpush1.xpose.msra.mxu0 0.0
    %4104 = vmatprep.subr.mxu0 0.0
    %4105 = vmatpush1.xpose.msra.mxu0 0.0
    %4106 = vmatprep.subr.mxu0 0.0
    %4107 = vmatpush1.xpose.msra.mxu0 0.0
    %4108 = vmatprep.subr.mxu0 0.0
    %4109 = vmatpush1.xpose.msra.mxu0 0.0
    %4110 = vmatprep.subr.mxu0 0.0
    %4111 = vmatpush1.xpose.msra.mxu0 0.0
    %4112 = vmatprep.subr.mxu0 0.0
    %4113 = vmatpush1.xpose.msra.mxu0 0.0
    %4114 = vmatprep.subr.mxu0 0.0
    %4115 = vmatpush1.xpose.msra.mxu0 0.0
    %4116 = vmatprep.subr.mxu0 0.0
    %4117 = vmatpush1.xpose.msra.mxu0 0.0
    %4118 = vmatprep.subr.mxu0 0.0
    %4119 = vmatpush1.xpose.msra.mxu0 0.0
    %4120 = vmatprep.subr.mxu0 0.0
    %4121 = vmatpush1.xpose.msra.mxu0 0.0
    %4122 = vmatprep.subr.mxu0 0.0
    %4123 = vmatpush1.xpose.msra.mxu0 0.0
    %4124 = vmatprep.subr.mxu0 0.0
    %4125 = vmatpush1.xpose.msra.mxu0 0.0
    %4126 = vmatprep.subr.mxu0 0.0
    %4127 = vmatpush1.xpose.msra.mxu0 0.0
    %4128 = vmatprep.subr.mxu0 0.0
    %4129 = vmatpush1.xpose.msra.mxu0 0.0
    %4130 = vmatprep.subr.mxu0 0.0
    %4131 = vmatpush1.xpose.msra.mxu0 0.0
    %4132 = vmatprep.subr.mxu0 0.0
    %4133 = vmatpush1.xpose.msra.mxu0 0.0
    %4134 = vmatprep.mubr.f32.mxu0 0.0
    %4135 = vmatmul.mubr.f32.gmra.mrb[0].mxu0 %v4066
    %v4136 = vpop.f32.mrb[0].mxu0
    %v4137 = vadd.f32 0.0, %v4136
    %v4138 = vpop.f32.mrb[0].mxu0
    %4139 = vdwg.mxu0
    %4141 = vrot.lane.b32.xlu0 %v3514, 96
    %v4142 = vpop.permute.xlu0 %4141
    %v4143 = vsel %vm335, %v3514, 0
    %v4145 = vsel %vm335, %v4142, 0
    %4147 = vmatprep.subr.mxu0 0.0
    %4148 = vmatpush1.xpose.msra.mxu0 %v4145
    %4149 = vmatprep.subr.mxu0 0.0
    %4150 = vmatpush1.xpose.msra.mxu0 0.0
    %4151 = vmatprep.subr.mxu0 0.0
    %4152 = vmatpush1.xpose.msra.mxu0 0.0
    %4153 = vmatprep.subr.mxu0 0.0
    %4154 = vmatpush1.xpose.msra.mxu0 0.0
    %4155 = vmatprep.subr.mxu0 0.0
    %4156 = vmatpush1.xpose.msra.mxu0 0.0
    %4157 = vmatprep.subr.mxu0 0.0
    %4158 = vmatpush1.xpose.msra.mxu0 0.0
    %4159 = vmatprep.subr.mxu0 0.0
    %4160 = vmatpush1.xpose.msra.mxu0 0.0
    %4161 = vmatprep.subr.mxu0 0.0
    %4162 = vmatpush1.xpose.msra.mxu0 0.0
    %4163 = vmatprep.subr.mxu0 0.0
    %4164 = vmatpush1.xpose.msra.mxu0 0.0
    %4165 = vmatprep.subr.mxu0 0.0
    %4166 = vmatpush1.xpose.msra.mxu0 0.0
    %4167 = vmatprep.subr.mxu0 0.0
    %4168 = vmatpush1.xpose.msra.mxu0 0.0
    %4169 = vmatprep.subr.mxu0 0.0
    %4170 = vmatpush1.xpose.msra.mxu0 0.0
    %4171 = vmatprep.subr.mxu0 0.0
    %4172 = vmatpush1.xpose.msra.mxu0 0.0
    %4173 = vmatprep.subr.mxu0 0.0
    %4174 = vmatpush1.xpose.msra.mxu0 0.0
    %4175 = vmatprep.subr.mxu0 0.0
    %4176 = vmatpush1.xpose.msra.mxu0 0.0
    %4177 = vmatprep.subr.mxu0 0.0
    %4178 = vmatpush1.xpose.msra.mxu0 0.0
    %4179 = vmatprep.subr.mxu0 0.0
    %4180 = vmatpush1.xpose.msra.mxu0 0.0
    %4181 = vmatprep.subr.mxu0 0.0
    %4182 = vmatpush1.xpose.msra.mxu0 0.0
    %4183 = vmatprep.subr.mxu0 0.0
    %4184 = vmatpush1.xpose.msra.mxu0 0.0
    %4185 = vmatprep.subr.mxu0 0.0
    %4186 = vmatpush1.xpose.msra.mxu0 0.0
    %4187 = vmatprep.subr.mxu0 0.0
    %4188 = vmatpush1.xpose.msra.mxu0 0.0
    %4189 = vmatprep.subr.mxu0 0.0
    %4190 = vmatpush1.xpose.msra.mxu0 0.0
    %4191 = vmatprep.subr.mxu0 0.0
    %4192 = vmatpush1.xpose.msra.mxu0 0.0
    %4193 = vmatprep.subr.mxu0 0.0
    %4194 = vmatpush1.xpose.msra.mxu0 0.0
    %4195 = vmatprep.subr.mxu0 0.0
    %4196 = vmatpush1.xpose.msra.mxu0 0.0
    %4197 = vmatprep.subr.mxu0 0.0
    %4198 = vmatpush1.xpose.msra.mxu0 0.0
    %4199 = vmatprep.subr.mxu0 0.0
    %4200 = vmatpush1.xpose.msra.mxu0 0.0
    %4201 = vmatprep.subr.mxu0 0.0
    %4202 = vmatpush1.xpose.msra.mxu0 0.0
    %4203 = vmatprep.subr.mxu0 0.0
    %4204 = vmatpush1.xpose.msra.mxu0 0.0
    %4205 = vmatprep.subr.mxu0 0.0
    %4206 = vmatpush1.xpose.msra.mxu0 0.0
    %4207 = vmatprep.subr.mxu0 0.0
    %4208 = vmatpush1.xpose.msra.mxu0 0.0
    %4209 = vmatprep.subr.mxu0 0.0
    %4210 = vmatpush1.xpose.msra.mxu0 0.0
    %4211 = vmatprep.mubr.f32.mxu0 0.0
    %4212 = vmatmul.mubr.f32.gmra.mrb[0].mxu0 %v4143
    %v4213 = vpop.f32.mrb[0].mxu0
    %v4214 = vadd.f32 0.0, %v4213
    %v4215 = vpop.f32.mrb[0].mxu0
    %4216 = vdwg.mxu0
    %4217 = vrot.lane.b32.xlu0 %v3514, 124
    %v4218 = vpop.permute.xlu0 %4217
    %4219 = vrot.lane.b32.xlu0 %v3514, 92
    %v4220 = vpop.permute.xlu0 %4219
    %v4221 = vsel %vm335, %v4218, 0
    %v4223 = vsel %vm335, %v4220, 0
    %4225 = vmatprep.subr.mxu0 0.0
    %4226 = vmatpush1.xpose.msra.mxu0 %v4223
    %4227 = vmatprep.subr.mxu0 0.0
    %4228 = vmatpush1.xpose.msra.mxu0 0.0
    %4229 = vmatprep.subr.mxu0 0.0
    %4230 = vmatpush1.xpose.msra.mxu0 0.0
    %4231 = vmatprep.subr.mxu0 0.0
    %4232 = vmatpush1.xpose.msra.mxu0 0.0
    %4233 = vmatprep.subr.mxu0 0.0
    %4234 = vmatpush1.xpose.msra.mxu0 0.0
    %4235 = vmatprep.subr.mxu0 0.0
    %4236 = vmatpush1.xpose.msra.mxu0 0.0
    %4237 = vmatprep.subr.mxu0 0.0
    %4238 = vmatpush1.xpose.msra.mxu0 0.0
    %4239 = vmatprep.subr.mxu0 0.0
    %4240 = vmatpush1.xpose.msra.mxu0 0.0
    %4241 = vmatprep.subr.mxu0 0.0
    %4242 = vmatpush1.xpose.msra.mxu0 0.0
    %4243 = vmatprep.subr.mxu0 0.0
    %4244 = vmatpush1.xpose.msra.mxu0 0.0
    %4245 = vmatprep.subr.mxu0 0.0
    %4246 = vmatpush1.xpose.msra.mxu0 0.0
    %4247 = vmatprep.subr.mxu0 0.0
    %4248 = vmatpush1.xpose.msra.mxu0 0.0
    %4249 = vmatprep.subr.mxu0 0.0
    %4250 = vmatpush1.xpose.msra.mxu0 0.0
    %4251 = vmatprep.subr.mxu0 0.0
    %4252 = vmatpush1.xpose.msra.mxu0 0.0
    %4253 = vmatprep.subr.mxu0 0.0
    %4254 = vmatpush1.xpose.msra.mxu0 0.0
    %4255 = vmatprep.subr.mxu0 0.0
    %4256 = vmatpush1.xpose.msra.mxu0 0.0
    %4257 = vmatprep.subr.mxu0 0.0
    %4258 = vmatpush1.xpose.msra.mxu0 0.0
    %4259 = vmatprep.subr.mxu0 0.0
    %4260 = vmatpush1.xpose.msra.mxu0 0.0
    %4261 = vmatprep.subr.mxu0 0.0
    %4262 = vmatpush1.xpose.msra.mxu0 0.0
    %4263 = vmatprep.subr.mxu0 0.0
    %4264 = vmatpush1.xpose.msra.mxu0 0.0
    %4265 = vmatprep.subr.mxu0 0.0
    %4266 = vmatpush1.xpose.msra.mxu0 0.0
    %4267 = vmatprep.subr.mxu0 0.0
    %4268 = vmatpush1.xpose.msra.mxu0 0.0
    %4269 = vmatprep.subr.mxu0 0.0
    %4270 = vmatpush1.xpose.msra.mxu0 0.0
    %4271 = vmatprep.subr.mxu0 0.0
    %4272 = vmatpush1.xpose.msra.mxu0 0.0
    %4273 = vmatprep.subr.mxu0 0.0
    %4274 = vmatpush1.xpose.msra.mxu0 0.0
    %4275 = vmatprep.subr.mxu0 0.0
    %4276 = vmatpush1.xpose.msra.mxu0 0.0
    %4277 = vmatprep.subr.mxu0 0.0
    %4278 = vmatpush1.xpose.msra.mxu0 0.0
    %4279 = vmatprep.subr.mxu0 0.0
    %4280 = vmatpush1.xpose.msra.mxu0 0.0
    %4281 = vmatprep.subr.mxu0 0.0
    %4282 = vmatpush1.xpose.msra.mxu0 0.0
    %4283 = vmatprep.subr.mxu0 0.0
    %4284 = vmatpush1.xpose.msra.mxu0 0.0
    %4285 = vmatprep.subr.mxu0 0.0
    %4286 = vmatpush1.xpose.msra.mxu0 0.0
    %4287 = vmatprep.subr.mxu0 0.0
    %4288 = vmatpush1.xpose.msra.mxu0 0.0
    %4289 = vmatprep.mubr.f32.mxu0 0.0
    %4290 = vmatmul.mubr.f32.gmra.mrb[0].mxu0 %v4221
    %v4291 = vpop.f32.mrb[0].mxu0
    %v4292 = vadd.f32 0.0, %v4291
    %v4293 = vpop.f32.mrb[0].mxu0
    %4294 = vdwg.mxu0
    %4295 = vrot.lane.b32.xlu0 %v3514, 120
    %v4296 = vpop.permute.xlu0 %4295
    %4297 = vrot.lane.b32.xlu0 %v3514, 88
    %v4298 = vpop.permute.xlu0 %4297
    %v4299 = vsel %vm335, %v4296, 0
    %v4301 = vsel %vm335, %v4298, 0
    %4303 = vmatprep.subr.mxu0 0.0
    %4304 = vmatpush1.xpose.msra.mxu0 %v4301
    %4305 = vmatprep.subr.mxu0 0.0
    %4306 = vmatpush1.xpose.msra.mxu0 0.0
    %4307 = vmatprep.subr.mxu0 0.0
    %4308 = vmatpush1.xpose.msra.mxu0 0.0
    %4309 = vmatprep.subr.mxu0 0.0
    %4310 = vmatpush1.xpose.msra.mxu0 0.0
    %4311 = vmatprep.subr.mxu0 0.0
    %4312 = vmatpush1.xpose.msra.mxu0 0.0
    %4313 = vmatprep.subr.mxu0 0.0
    %4314 = vmatpush1.xpose.msra.mxu0 0.0
    %4315 = vmatprep.subr.mxu0 0.0
    %4316 = vmatpush1.xpose.msra.mxu0 0.0
    %4317 = vmatprep.subr.mxu0 0.0
    %4318 = vmatpush1.xpose.msra.mxu0 0.0
    %4319 = vmatprep.subr.mxu0 0.0
    %4320 = vmatpush1.xpose.msra.mxu0 0.0
    %4321 = vmatprep.subr.mxu0 0.0
    %4322 = vmatpush1.xpose.msra.mxu0 0.0
    %4323 = vmatprep.subr.mxu0 0.0
    %4324 = vmatpush1.xpose.msra.mxu0 0.0
    %4325 = vmatprep.subr.mxu0 0.0
    %4326 = vmatpush1.xpose.msra.mxu0 0.0
    %4327 = vmatprep.subr.mxu0 0.0
    %4328 = vmatpush1.xpose.msra.mxu0 0.0
    %4329 = vmatprep.subr.mxu0 0.0
    %4330 = vmatpush1.xpose.msra.mxu0 0.0
    %4331 = vmatprep.subr.mxu0 0.0
    %4332 = vmatpush1.xpose.msra.mxu0 0.0
    %4333 = vmatprep.subr.mxu0 0.0
    %4334 = vmatpush1.xpose.msra.mxu0 0.0
    %4335 = vmatprep.subr.mxu0 0.0
    %4336 = vmatpush1.xpose.msra.mxu0 0.0
    %4337 = vmatprep.subr.mxu0 0.0
    %4338 = vmatpush1.xpose.msra.mxu0 0.0
    %4339 = vmatprep.subr.mxu0 0.0
    %4340 = vmatpush1.xpose.msra.mxu0 0.0
    %4341 = vmatprep.subr.mxu0 0.0
    %4342 = vmatpush1.xpose.msra.mxu0 0.0
    %4343 = vmatprep.subr.mxu0 0.0
    %4344 = vmatpush1.xpose.msra.mxu0 0.0
    %4345 = vmatprep.subr.mxu0 0.0
    %4346 = vmatpush1.xpose.msra.mxu0 0.0
    %4347 = vmatprep.subr.mxu0 0.0
    %4348 = vmatpush1.xpose.msra.mxu0 0.0
    %4349 = vmatprep.subr.mxu0 0.0
    %4350 = vmatpush1.xpose.msra.mxu0 0.0
    %4351 = vmatprep.subr.mxu0 0.0
    %4352 = vmatpush1.xpose.msra.mxu0 0.0
    %4353 = vmatprep.subr.mxu0 0.0
    %4354 = vmatpush1.xpose.msra.mxu0 0.0
    %4355 = vmatprep.subr.mxu0 0.0
    %4356 = vmatpush1.xpose.msra.mxu0 0.0
    %4357 = vmatprep.subr.mxu0 0.0
    %4358 = vmatpush1.xpose.msra.mxu0 0.0
    %4359 = vmatprep.subr.mxu0 0.0
    %4360 = vmatpush1.xpose.msra.mxu0 0.0
    %4361 = vmatprep.subr.mxu0 0.0
    %4362 = vmatpush1.xpose.msra.mxu0 0.0
    %4363 = vmatprep.subr.mxu0 0.0
    %4364 = vmatpush1.xpose.msra.mxu0 0.0
    %4365 = vmatprep.subr.mxu0 0.0
    %4366 = vmatpush1.xpose.msra.mxu0 0.0
    %4367 = vmatprep.mubr.f32.mxu0 0.0
    %4368 = vmatmul.mubr.f32.gmra.mrb[0].mxu0 %v4299
    %v4369 = vpop.f32.mrb[0].mxu0
    %v4370 = vadd.f32 0.0, %v4369
    %v4371 = vpop.f32.mrb[0].mxu0
    %4372 = vdwg.mxu0
    %4373 = vrot.lane.b32.xlu0 %v3514, 116
    %v4374 = vpop.permute.xlu0 %4373
    %4375 = vrot.lane.b32.xlu0 %v3514, 84
    %v4376 = vpop.permute.xlu0 %4375
    %v4377 = vsel %vm335, %v4374, 0
    %v4379 = vsel %vm335, %v4376, 0
    %4381 = vmatprep.subr.mxu0 0.0
    %4382 = vmatpush1.xpose.msra.mxu0 %v4379
    %4383 = vmatprep.subr.mxu0 0.0
    %4384 = vmatpush1.xpose.msra.mxu0 0.0
    %4385 = vmatprep.subr.mxu0 0.0
    %4386 = vmatpush1.xpose.msra.mxu0 0.0
    %4387 = vmatprep.subr.mxu0 0.0
    %4388 = vmatpush1.xpose.msra.mxu0 0.0
    %4389 = vmatprep.subr.mxu0 0.0
    %4390 = vmatpush1.xpose.msra.mxu0 0.0
    %4391 = vmatprep.subr.mxu0 0.0
    %4392 = vmatpush1.xpose.msra.mxu0 0.0
    %4393 = vmatprep.subr.mxu0 0.0
    %4394 = vmatpush1.xpose.msra.mxu0 0.0
    %4395 = vmatprep.subr.mxu0 0.0
    %4396 = vmatpush1.xpose.msra.mxu0 0.0
    %4397 = vmatprep.subr.mxu0 0.0
    %4398 = vmatpush1.xpose.msra.mxu0 0.0
    %4399 = vmatprep.subr.mxu0 0.0
    %4400 = vmatpush1.xpose.msra.mxu0 0.0
    %4401 = vmatprep.subr.mxu0 0.0
    %4402 = vmatpush1.xpose.msra.mxu0 0.0
    %4403 = vmatprep.subr.mxu0 0.0
    %4404 = vmatpush1.xpose.msra.mxu0 0.0
    %4405 = vmatprep.subr.mxu0 0.0
    %4406 = vmatpush1.xpose.msra.mxu0 0.0
    %4407 = vmatprep.subr.mxu0 0.0
    %4408 = vmatpush1.xpose.msra.mxu0 0.0
    %4409 = vmatprep.subr.mxu0 0.0
    %4410 = vmatpush1.xpose.msra.mxu0 0.0
    %4411 = vmatprep.subr.mxu0 0.0
    %4412 = vmatpush1.xpose.msra.mxu0 0.0
    %4413 = vmatprep.subr.mxu0 0.0
    %4414 = vmatpush1.xpose.msra.mxu0 0.0
    %4415 = vmatprep.subr.mxu0 0.0
    %4416 = vmatpush1.xpose.msra.mxu0 0.0
    %4417 = vmatprep.subr.mxu0 0.0
    %4418 = vmatpush1.xpose.msra.mxu0 0.0
    %4419 = vmatprep.subr.mxu0 0.0
    %4420 = vmatpush1.xpose.msra.mxu0 0.0
    %4421 = vmatprep.subr.mxu0 0.0
    %4422 = vmatpush1.xpose.msra.mxu0 0.0
    %4423 = vmatprep.subr.mxu0 0.0
    %4424 = vmatpush1.xpose.msra.mxu0 0.0
    %4425 = vmatprep.subr.mxu0 0.0
    %4426 = vmatpush1.xpose.msra.mxu0 0.0
    %4427 = vmatprep.subr.mxu0 0.0
    %4428 = vmatpush1.xpose.msra.mxu0 0.0
    %4429 = vmatprep.subr.mxu0 0.0
    %4430 = vmatpush1.xpose.msra.mxu0 0.0
    %4431 = vmatprep.subr.mxu0 0.0
    %4432 = vmatpush1.xpose.msra.mxu0 0.0
    %4433 = vmatprep.subr.mxu0 0.0
    %4434 = vmatpush1.xpose.msra.mxu0 0.0
    %4435 = vmatprep.subr.mxu0 0.0
    %4436 = vmatpush1.xpose.msra.mxu0 0.0
    %4437 = vmatprep.subr.mxu0 0.0
    %4438 = vmatpush1.xpose.msra.mxu0 0.0
    %4439 = vmatprep.subr.mxu0 0.0
    %4440 = vmatpush1.xpose.msra.mxu0 0.0
    %4441 = vmatprep.subr.mxu0 0.0
    %4442 = vmatpush1.xpose.msra.mxu0 0.0
    %4443 = vmatprep.subr.mxu0 0.0
    %4444 = vmatpush1.xpose.msra.mxu0 0.0
    %4445 = vmatprep.mubr.f32.mxu0 0.0
    %4446 = vmatmul.mubr.f32.gmra.mrb[0].mxu0 %v4377
    %v4447 = vpop.f32.mrb[0].mxu0
    %v4448 = vadd.f32 0.0, %v4447
    %v4449 = vpop.f32.mrb[0].mxu0
    %4450 = vdwg.mxu0
    %4451 = vrot.lane.b32.xlu0 %v3514, 112
    %v4452 = vpop.permute.xlu0 %4451
    %4453 = vrot.lane.b32.xlu0 %v3514, 80
    %v4454 = vpop.permute.xlu0 %4453
    %v4455 = vsel %vm335, %v4452, 0
    %v4457 = vsel %vm335, %v4454, 0
    %4459 = vmatprep.subr.mxu0 0.0
    %4460 = vmatpush1.xpose.msra.mxu0 %v4457
    %4461 = vmatprep.subr.mxu0 0.0
    %4462 = vmatpush1.xpose.msra.mxu0 0.0
    %4463 = vmatprep.subr.mxu0 0.0
    %4464 = vmatpush1.xpose.msra.mxu0 0.0
    %4465 = vmatprep.subr.mxu0 0.0
    %4466 = vmatpush1.xpose.msra.mxu0 0.0
    %4467 = vmatprep.subr.mxu0 0.0
    %4468 = vmatpush1.xpose.msra.mxu0 0.0
    %4469 = vmatprep.subr.mxu0 0.0
    %4470 = vmatpush1.xpose.msra.mxu0 0.0
    %4471 = vmatprep.subr.mxu0 0.0
    %4472 = vmatpush1.xpose.msra.mxu0 0.0
    %4473 = vmatprep.subr.mxu0 0.0
    %4474 = vmatpush1.xpose.msra.mxu0 0.0
    %4475 = vmatprep.subr.mxu0 0.0
    %4476 = vmatpush1.xpose.msra.mxu0 0.0
    %4477 = vmatprep.subr.mxu0 0.0
    %4478 = vmatpush1.xpose.msra.mxu0 0.0
    %4479 = vmatprep.subr.mxu0 0.0
    %4480 = vmatpush1.xpose.msra.mxu0 0.0
    %4481 = vmatprep.subr.mxu0 0.0
    %4482 = vmatpush1.xpose.msra.mxu0 0.0
    %4483 = vmatprep.subr.mxu0 0.0
    %4484 = vmatpush1.xpose.msra.mxu0 0.0
    %4485 = vmatprep.subr.mxu0 0.0
    %4486 = vmatpush1.xpose.msra.mxu0 0.0
    %4487 = vmatprep.subr.mxu0 0.0
    %4488 = vmatpush1.xpose.msra.mxu0 0.0
    %4489 = vmatprep.subr.mxu0 0.0
    %4490 = vmatpush1.xpose.msra.mxu0 0.0
    %4491 = vmatprep.subr.mxu0 0.0
    %4492 = vmatpush1.xpose.msra.mxu0 0.0
    %4493 = vmatprep.subr.mxu0 0.0
    %4494 = vmatpush1.xpose.msra.mxu0 0.0
    %4495 = vmatprep.subr.mxu0 0.0
    %4496 = vmatpush1.xpose.msra.mxu0 0.0
    %4497 = vmatprep.subr.mxu0 0.0
    %4498 = vmatpush1.xpose.msra.mxu0 0.0
    %4499 = vmatprep.subr.mxu0 0.0
    %4500 = vmatpush1.xpose.msra.mxu0 0.0
    %4501 = vmatprep.subr.mxu0 0.0
    %4502 = vmatpush1.xpose.msra.mxu0 0.0
    %4503 = vmatprep.subr.mxu0 0.0
    %4504 = vmatpush1.xpose.msra.mxu0 0.0
    %4505 = vmatprep.subr.mxu0 0.0
    %4506 = vmatpush1.xpose.msra.mxu0 0.0
    %4507 = vmatprep.subr.mxu0 0.0
    %4508 = vmatpush1.xpose.msra.mxu0 0.0
    %4509 = vmatprep.subr.mxu0 0.0
    %4510 = vmatpush1.xpose.msra.mxu0 0.0
    %4511 = vmatprep.subr.mxu0 0.0
    %4512 = vmatpush1.xpose.msra.mxu0 0.0
    %4513 = vmatprep.subr.mxu0 0.0
    %4514 = vmatpush1.xpose.msra.mxu0 0.0
    %4515 = vmatprep.subr.mxu0 0.0
    %4516 = vmatpush1.xpose.msra.mxu0 0.0
    %4517 = vmatprep.subr.mxu0 0.0
    %4518 = vmatpush1.xpose.msra.mxu0 0.0
    %4519 = vmatprep.subr.mxu0 0.0
    %4520 = vmatpush1.xpose.msra.mxu0 0.0
    %4521 = vmatprep.subr.mxu0 0.0
    %4522 = vmatpush1.xpose.msra.mxu0 0.0
    %4523 = vmatprep.mubr.f32.mxu0 0.0
    %4524 = vmatmul.mubr.f32.gmra.mrb[0].mxu0 %v4455
    %v4525 = vpop.f32.mrb[0].mxu0
    %v4526 = vadd.f32 0.0, %v4525
    %v4527 = vpop.f32.mrb[0].mxu0
    %4528 = vdwg.mxu0
    %4529 = vrot.lane.b32.xlu0 %v3514, 108
    %v4530 = vpop.permute.xlu0 %4529
    %4531 = vrot.lane.b32.xlu0 %v3514, 76
    %v4532 = vpop.permute.xlu0 %4531
    %v4533 = vsel %vm335, %v4530, 0
    %v4535 = vsel %vm335, %v4532, 0
    %4537 = vmatprep.subr.mxu0 0.0
    %4538 = vmatpush1.xpose.msra.mxu0 %v4535
    %4539 = vmatprep.subr.mxu0 0.0
    %4540 = vmatpush1.xpose.msra.mxu0 0.0
    %4541 = vmatprep.subr.mxu0 0.0
    %4542 = vmatpush1.xpose.msra.mxu0 0.0
    %4543 = vmatprep.subr.mxu0 0.0
    %4544 = vmatpush1.xpose.msra.mxu0 0.0
    %4545 = vmatprep.subr.mxu0 0.0
    %4546 = vmatpush1.xpose.msra.mxu0 0.0
    %4547 = vmatprep.subr.mxu0 0.0
    %4548 = vmatpush1.xpose.msra.mxu0 0.0
    %4549 = vmatprep.subr.mxu0 0.0
    %4550 = vmatpush1.xpose.msra.mxu0 0.0
    %4551 = vmatprep.subr.mxu0 0.0
    %4552 = vmatpush1.xpose.msra.mxu0 0.0
    %4553 = vmatprep.subr.mxu0 0.0
    %4554 = vmatpush1.xpose.msra.mxu0 0.0
    %4555 = vmatprep.subr.mxu0 0.0
    %4556 = vmatpush1.xpose.msra.mxu0 0.0
    %4557 = vmatprep.subr.mxu0 0.0
    %4558 = vmatpush1.xpose.msra.mxu0 0.0
    %4559 = vmatprep.subr.mxu0 0.0
    %4560 = vmatpush1.xpose.msra.mxu0 0.0
    %4561 = vmatprep.subr.mxu0 0.0
    %4562 = vmatpush1.xpose.msra.mxu0 0.0
    %4563 = vmatprep.subr.mxu0 0.0
    %4564 = vmatpush1.xpose.msra.mxu0 0.0
    %4565 = vmatprep.subr.mxu0 0.0
    %4566 = vmatpush1.xpose.msra.mxu0 0.0
    %4567 = vmatprep.subr.mxu0 0.0
    %4568 = vmatpush1.xpose.msra.mxu0 0.0
    %4569 = vmatprep.subr.mxu0 0.0
    %4570 = vmatpush1.xpose.msra.mxu0 0.0
    %4571 = vmatprep.subr.mxu0 0.0
    %4572 = vmatpush1.xpose.msra.mxu0 0.0
    %4573 = vmatprep.subr.mxu0 0.0
    %4574 = vmatpush1.xpose.msra.mxu0 0.0
    %4575 = vmatprep.subr.mxu0 0.0
    %4576 = vmatpush1.xpose.msra.mxu0 0.0
    %4577 = vmatprep.subr.mxu0 0.0
    %4578 = vmatpush1.xpose.msra.mxu0 0.0
    %4579 = vmatprep.subr.mxu0 0.0
    %4580 = vmatpush1.xpose.msra.mxu0 0.0
    %4581 = vmatprep.subr.mxu0 0.0
    %4582 = vmatpush1.xpose.msra.mxu0 0.0
    %4583 = vmatprep.subr.mxu0 0.0
    %4584 = vmatpush1.xpose.msra.mxu0 0.0
    %4585 = vmatprep.subr.mxu0 0.0
    %4586 = vmatpush1.xpose.msra.mxu0 0.0
    %4587 = vmatprep.subr.mxu0 0.0
    %4588 = vmatpush1.xpose.msra.mxu0 0.0
    %4589 = vmatprep.subr.mxu0 0.0
    %4590 = vmatpush1.xpose.msra.mxu0 0.0
    %4591 = vmatprep.subr.mxu0 0.0
    %4592 = vmatpush1.xpose.msra.mxu0 0.0
    %4593 = vmatprep.subr.mxu0 0.0
    %4594 = vmatpush1.xpose.msra.mxu0 0.0
    %4595 = vmatprep.subr.mxu0 0.0
    %4596 = vmatpush1.xpose.msra.mxu0 0.0
    %4597 = vmatprep.subr.mxu0 0.0
    %4598 = vmatpush1.xpose.msra.mxu0 0.0
    %4599 = vmatprep.subr.mxu0 0.0
    %4600 = vmatpush1.xpose.msra.mxu0 0.0
    %4601 = vmatprep.mubr.f32.mxu0 0.0
    %4602 = vmatmul.mubr.f32.gmra.mrb[0].mxu0 %v4533
    %v4603 = vpop.f32.mrb[0].mxu0
    %v4604 = vadd.f32 0.0, %v4603
    %v4605 = vpop.f32.mrb[0].mxu0
    %4606 = vdwg.mxu0
    %4607 = vrot.lane.b32.xlu0 %v3514, 104
    %v4608 = vpop.permute.xlu0 %4607
    %4609 = vrot.lane.b32.xlu0 %v3514, 72
    %v4610 = vpop.permute.xlu0 %4609
    %v4611 = vsel %vm335, %v4608, 0
    %v4613 = vsel %vm335, %v4610, 0
    %4615 = vmatprep.subr.mxu0 0.0
    %4616 = vmatpush1.xpose.msra.mxu0 %v4613
    %4617 = vmatprep.subr.mxu0 0.0
    %4618 = vmatpush1.xpose.msra.mxu0 0.0
    %4619 = vmatprep.subr.mxu0 0.0
    %4620 = vmatpush1.xpose.msra.mxu0 0.0
    %4621 = vmatprep.subr.mxu0 0.0
    %4622 = vmatpush1.xpose.msra.mxu0 0.0
    %4623 = vmatprep.subr.mxu0 0.0
    %4624 = vmatpush1.xpose.msra.mxu0 0.0
    %4625 = vmatprep.subr.mxu0 0.0
    %4626 = vmatpush1.xpose.msra.mxu0 0.0
    %4627 = vmatprep.subr.mxu0 0.0
    %4628 = vmatpush1.xpose.msra.mxu0 0.0
    %4629 = vmatprep.subr.mxu0 0.0
    %4630 = vmatpush1.xpose.msra.mxu0 0.0
    %4631 = vmatprep.subr.mxu0 0.0
    %4632 = vmatpush1.xpose.msra.mxu0 0.0
    %4633 = vmatprep.subr.mxu0 0.0
    %4634 = vmatpush1.xpose.msra.mxu0 0.0
    %4635 = vmatprep.subr.mxu0 0.0
    %4636 = vmatpush1.xpose.msra.mxu0 0.0
    %4637 = vmatprep.subr.mxu0 0.0
    %4638 = vmatpush1.xpose.msra.mxu0 0.0
    %4639 = vmatprep.subr.mxu0 0.0
    %4640 = vmatpush1.xpose.msra.mxu0 0.0
    %4641 = vmatprep.subr.mxu0 0.0
    %4642 = vmatpush1.xpose.msra.mxu0 0.0
    %4643 = vmatprep.subr.mxu0 0.0
    %4644 = vmatpush1.xpose.msra.mxu0 0.0
    %4645 = vmatprep.subr.mxu0 0.0
    %4646 = vmatpush1.xpose.msra.mxu0 0.0
    %4647 = vmatprep.subr.mxu0 0.0
    %4648 = vmatpush1.xpose.msra.mxu0 0.0
    %4649 = vmatprep.subr.mxu0 0.0
    %4650 = vmatpush1.xpose.msra.mxu0 0.0
    %4651 = vmatprep.subr.mxu0 0.0
    %4652 = vmatpush1.xpose.msra.mxu0 0.0
    %4653 = vmatprep.subr.mxu0 0.0
    %4654 = vmatpush1.xpose.msra.mxu0 0.0
    %4655 = vmatprep.subr.mxu0 0.0
    %4656 = vmatpush1.xpose.msra.mxu0 0.0
    %4657 = vmatprep.subr.mxu0 0.0
    %4658 = vmatpush1.xpose.msra.mxu0 0.0
    %4659 = vmatprep.subr.mxu0 0.0
    %4660 = vmatpush1.xpose.msra.mxu0 0.0
    %4661 = vmatprep.subr.mxu0 0.0
    %4662 = vmatpush1.xpose.msra.mxu0 0.0
    %4663 = vmatprep.subr.mxu0 0.0
    %4664 = vmatpush1.xpose.msra.mxu0 0.0
    %4665 = vmatprep.subr.mxu0 0.0
    %4666 = vmatpush1.xpose.msra.mxu0 0.0
    %4667 = vmatprep.subr.mxu0 0.0
    %4668 = vmatpush1.xpose.msra.mxu0 0.0
    %4669 = vmatprep.subr.mxu0 0.0
    %4670 = vmatpush1.xpose.msra.mxu0 0.0
    %4671 = vmatprep.subr.mxu0 0.0
    %4672 = vmatpush1.xpose.msra.mxu0 0.0
    %4673 = vmatprep.subr.mxu0 0.0
    %4674 = vmatpush1.xpose.msra.mxu0 0.0
    %4675 = vmatprep.subr.mxu0 0.0
    %4676 = vmatpush1.xpose.msra.mxu0 0.0
    %4677 = vmatprep.subr.mxu0 0.0
    %4678 = vmatpush1.xpose.msra.mxu0 0.0
    %4679 = vmatprep.mubr.f32.mxu0 0.0
    %4680 = vmatmul.mubr.f32.gmra.mrb[0].mxu0 %v4611
    %v4681 = vpop.f32.mrb[0].mxu0
    %v4682 = vadd.f32 0.0, %v4681
    %v4683 = vpop.f32.mrb[0].mxu0
    %4684 = vdwg.mxu0
    %4685 = vrot.lane.b32.xlu0 %v3514, 100
    %v4686 = vpop.permute.xlu0 %4685
    %4687 = vrot.lane.b32.xlu0 %v3514, 68
    %v4688 = vpop.permute.xlu0 %4687
    %v4689 = vsel %vm335, %v4686, 0
    %v4691 = vsel %vm335, %v4688, 0
    %4693 = vmatprep.subr.mxu0 0.0
    %4694 = vmatpush1.xpose.msra.mxu0 %v4691
    %4695 = vmatprep.subr.mxu0 0.0
    %4696 = vmatpush1.xpose.msra.mxu0 0.0
    %4697 = vmatprep.subr.mxu0 0.0
    %4698 = vmatpush1.xpose.msra.mxu0 0.0
    %4699 = vmatprep.subr.mxu0 0.0
    %4700 = vmatpush1.xpose.msra.mxu0 0.0
    %4701 = vmatprep.subr.mxu0 0.0
    %4702 = vmatpush1.xpose.msra.mxu0 0.0
    %4703 = vmatprep.subr.mxu0 0.0
    %4704 = vmatpush1.xpose.msra.mxu0 0.0
    %4705 = vmatprep.subr.mxu0 0.0
    %4706 = vmatpush1.xpose.msra.mxu0 0.0
    %4707 = vmatprep.subr.mxu0 0.0
    %4708 = vmatpush1.xpose.msra.mxu0 0.0
    %4709 = vmatprep.subr.mxu0 0.0
    %4710 = vmatpush1.xpose.msra.mxu0 0.0
    %4711 = vmatprep.subr.mxu0 0.0
    %4712 = vmatpush1.xpose.msra.mxu0 0.0
    %4713 = vmatprep.subr.mxu0 0.0
    %4714 = vmatpush1.xpose.msra.mxu0 0.0
    %4715 = vmatprep.subr.mxu0 0.0
    %4716 = vmatpush1.xpose.msra.mxu0 0.0
    %4717 = vmatprep.subr.mxu0 0.0
    %4718 = vmatpush1.xpose.msra.mxu0 0.0
    %4719 = vmatprep.subr.mxu0 0.0
    %4720 = vmatpush1.xpose.msra.mxu0 0.0
    %4721 = vmatprep.subr.mxu0 0.0
    %4722 = vmatpush1.xpose.msra.mxu0 0.0
    %4723 = vmatprep.subr.mxu0 0.0
    %4724 = vmatpush1.xpose.msra.mxu0 0.0
    %4725 = vmatprep.subr.mxu0 0.0
    %4726 = vmatpush1.xpose.msra.mxu0 0.0
    %4727 = vmatprep.subr.mxu0 0.0
    %4728 = vmatpush1.xpose.msra.mxu0 0.0
    %4729 = vmatprep.subr.mxu0 0.0
    %4730 = vmatpush1.xpose.msra.mxu0 0.0
    %4731 = vmatprep.subr.mxu0 0.0
    %4732 = vmatpush1.xpose.msra.mxu0 0.0
    %4733 = vmatprep.subr.mxu0 0.0
    %4734 = vmatpush1.xpose.msra.mxu0 0.0
    %4735 = vmatprep.subr.mxu0 0.0
    %4736 = vmatpush1.xpose.msra.mxu0 0.0
    %4737 = vmatprep.subr.mxu0 0.0
    %4738 = vmatpush1.xpose.msra.mxu0 0.0
    %4739 = vmatprep.subr.mxu0 0.0
    %4740 = vmatpush1.xpose.msra.mxu0 0.0
    %4741 = vmatprep.subr.mxu0 0.0
    %4742 = vmatpush1.xpose.msra.mxu0 0.0
    %4743 = vmatprep.subr.mxu0 0.0
    %4744 = vmatpush1.xpose.msra.mxu0 0.0
    %4745 = vmatprep.subr.mxu0 0.0
    %4746 = vmatpush1.xpose.msra.mxu0 0.0
    %4747 = vmatprep.subr.mxu0 0.0
    %4748 = vmatpush1.xpose.msra.mxu0 0.0
    %4749 = vmatprep.subr.mxu0 0.0
    %4750 = vmatpush1.xpose.msra.mxu0 0.0
    %4751 = vmatprep.subr.mxu0 0.0
    %4752 = vmatpush1.xpose.msra.mxu0 0.0
    %4753 = vmatprep.subr.mxu0 0.0
    %4754 = vmatpush1.xpose.msra.mxu0 0.0
    %4755 = vmatprep.subr.mxu0 0.0
    %4756 = vmatpush1.xpose.msra.mxu0 0.0
    %4757 = vmatprep.mubr.f32.mxu0 0.0
    %4758 = vmatmul.mubr.f32.gmra.mrb[0].mxu0 %v4689
    %v4759 = vpop.f32.mrb[0].mxu0
    %v4760 = vadd.f32 0.0, %v4759
    %v4761 = vpop.f32.mrb[0].mxu0
    %4762 = vdwg.mxu0
    %v4763 = vmul.f32 %v3591, 0.5
    %v4764 = vmul.f32 %v3669, 0.5
    %v4765 = vmul.f32 %v3747, 0.5
    %v4766 = vmul.f32 %v3825, 0.5
    %v4767 = vmul.f32 %v3903, 0.5
    %v4768 = vmul.f32 %v3981, 0.5
    %v4769 = vmul.f32 %v4059, 0.5
    %v4770 = vmul.f32 %v4137, 0.5
    %v4771 = vmul.f32 %v4214, 0.5
    %v4772 = vmul.f32 %v4292, 0.5
    %v4773 = vmul.f32 %v4370, 0.5
    %v4774 = vmul.f32 %v4448, 0.5
    %v4775 = vmul.f32 %v4526, 0.5
    %v4776 = vmul.f32 %v4604, 0.5
    %v4777 = vmul.f32 %v4682, 0.5
    %v4778 = vmul.f32 %v4760, 0.5
    %v4779 = vsel %vm1595, %v4763, -inf
    %4780 = vmax.xlane.f32.xlu0 %v4779
    %v4781 = vpop.xlane.xlu0 %4780
    %v4782 = vsel %vm1595, %v4764, -inf
    %4783 = vmax.xlane.f32.xlu0 %v4782
    %v4784 = vpop.xlane.xlu0 %4783
    %v4785 = vsel %vm1595, %v4765, -inf
    %4786 = vmax.xlane.f32.xlu0 %v4785
    %v4787 = vpop.xlane.xlu0 %4786
    %v4788 = vsel %vm1595, %v4766, -inf
    %4789 = vmax.xlane.f32.xlu0 %v4788
    %v4790 = vpop.xlane.xlu0 %4789
    %v4791 = vsel %vm1595, %v4767, -inf
    %4792 = vmax.xlane.f32.xlu0 %v4791
    %v4793 = vpop.xlane.xlu0 %4792
    %v4794 = vsel %vm1595, %v4768, -inf
    %4795 = vmax.xlane.f32.xlu0 %v4794
    %v4796 = vpop.xlane.xlu0 %4795
    %v4797 = vsel %vm1595, %v4769, -inf
    %4798 = vmax.xlane.f32.xlu0 %v4797
    %v4799 = vpop.xlane.xlu0 %4798
    %v4800 = vsel %vm1595, %v4770, -inf
    %4801 = vmax.xlane.f32.xlu0 %v4800
    %v4802 = vpop.xlane.xlu0 %4801
    %v4803 = vsel %vm1595, %v4771, -inf
    %4804 = vmax.xlane.f32.xlu0 %v4803
    %v4805 = vpop.xlane.xlu0 %4804
    %v4806 = vsel %vm1595, %v4772, -inf
    %4807 = vmax.xlane.f32.xlu0 %v4806
    %v4808 = vpop.xlane.xlu0 %4807
    %v4809 = vsel %vm1595, %v4773, -inf
    %4810 = vmax.xlane.f32.xlu0 %v4809
    %v4811 = vpop.xlane.xlu0 %4810
    %v4812 = vsel %vm1595, %v4774, -inf
    %4813 = vmax.xlane.f32.xlu0 %v4812
    %v4814 = vpop.xlane.xlu0 %4813
    %v4815 = vsel %vm1595, %v4775, -inf
    %4816 = vmax.xlane.f32.xlu0 %v4815
    %v4817 = vpop.xlane.xlu0 %4816
    %v4818 = vsel %vm1595, %v4776, -inf
    %4819 = vmax.xlane.f32.xlu0 %v4818
    %v4820 = vpop.xlane.xlu0 %4819
    %v4821 = vsel %vm1595, %v4777, -inf
    %4822 = vmax.xlane.f32.xlu0 %v4821
    %v4823 = vpop.xlane.xlu0 %4822
    %v4824 = vsel %vm1595, %v4778, -inf
    %4825 = vmax.xlane.f32.xlu0 %v4824
    %v4826 = vpop.xlane.xlu0 %4825
    %v4827 = vsub.f32 %v4763, %v4781
    %v4828 = vsub.f32 %v4764, %v4784
    %v4829 = vsub.f32 %v4765, %v4787
    %v4830 = vsub.f32 %v4766, %v4790
    %v4831 = vsub.f32 %v4767, %v4793
    %v4832 = vsub.f32 %v4768, %v4796
    %v4833 = vsub.f32 %v4769, %v4799
    %v4834 = vsub.f32 %v4770, %v4802
    %v4835 = vsub.f32 %v4771, %v4805
    %v4836 = vsub.f32 %v4772, %v4808
    %v4837 = vsub.f32 %v4773, %v4811
    %v4838 = vsub.f32 %v4774, %v4814
    %v4839 = vsub.f32 %v4775, %v4817
    %v4840 = vsub.f32 %v4776, %v4820
    %v4841 = vsub.f32 %v4777, %v4823
    %v4842 = vsub.f32 %v4778, %v4826
    %v4843 = vmul.f32 %v4827, 1.442695
    %v4844 = vpow.pop %v4843
    %v4845 = vmul.f32 %v4828, 1.442695
    %v4846 = vpow.pop %v4845
    %v4847 = vmul.f32 %v4829, 1.442695
    %v4848 = vpow.pop %v4847
    %v4849 = vmul.f32 %v4830, 1.442695
    %v4850 = vpow.pop %v4849
    %v4851 = vmul.f32 %v4831, 1.442695
    %v4852 = vpow.pop %v4851
    %v4853 = vmul.f32 %v4832, 1.442695
    %v4854 = vpow.pop %v4853
    %v4855 = vmul.f32 %v4833, 1.442695
    %v4856 = vpow.pop %v4855
    %v4857 = vmul.f32 %v4834, 1.442695
    %v4858 = vpow.pop %v4857
    %v4859 = vmul.f32 %v4835, 1.442695
    %v4860 = vpow.pop %v4859
    %v4861 = vmul.f32 %v4836, 1.442695
    %v4862 = vpow.pop %v4861
    %v4863 = vmul.f32 %v4837, 1.442695
    %v4864 = vpow.pop %v4863
    %v4865 = vmul.f32 %v4838, 1.442695
    %v4866 = vpow.pop %v4865
    %v4867 = vmul.f32 %v4839, 1.442695
    %v4868 = vpow.pop %v4867
    %v4869 = vmul.f32 %v4840, 1.442695
    %v4870 = vpow.pop %v4869
    %v4871 = vmul.f32 %v4841, 1.442695
    %v4872 = vpow.pop %v4871
    %v4873 = vmul.f32 %v4842, 1.442695
    %v4874 = vpow.pop %v4873
    %v4875 = vsel %vm1595, %v4844, 0.0
    %4876 = vadd.xlane.f32.xlu0 %v4875
    %v4877 = vpop.xlane.xlu0 %4876
    %v4878 = vsel %vm1595, %v4846, 0.0
    %4879 = vadd.xlane.f32.xlu0 %v4878
    %v4880 = vpop.xlane.xlu0 %4879
    %v4881 = vsel %vm1595, %v4848, 0.0
    %4882 = vadd.xlane.f32.xlu0 %v4881
    %v4883 = vpop.xlane.xlu0 %4882
    %v4884 = vsel %vm1595, %v4850, 0.0
    %4885 = vadd.xlane.f32.xlu0 %v4884
    %v4886 = vpop.xlane.xlu0 %4885
    %v4887 = vsel %vm1595, %v4852, 0.0
    %4888 = vadd.xlane.f32.xlu0 %v4887
    %v4889 = vpop.xlane.xlu0 %4888
    %v4890 = vsel %vm1595, %v4854, 0.0
    %4891 = vadd.xlane.f32.xlu0 %v4890
    %v4892 = vpop.xlane.xlu0 %4891
    %v4893 = vsel %vm1595, %v4856, 0.0
    %4894 = vadd.xlane.f32.xlu0 %v4893
    %v4895 = vpop.xlane.xlu0 %4894
    %v4896 = vsel %vm1595, %v4858, 0.0
    %4897 = vadd.xlane.f32.xlu0 %v4896
    %v4898 = vpop.xlane.xlu0 %4897
    %v4899 = vsel %vm1595, %v4860, 0.0
    %4900 = vadd.xlane.f32.xlu0 %v4899
    %v4901 = vpop.xlane.xlu0 %4900
    %v4902 = vsel %vm1595, %v4862, 0.0
    %4903 = vadd.xlane.f32.xlu0 %v4902
    %v4904 = vpop.xlane.xlu0 %4903
    %v4905 = vsel %vm1595, %v4864, 0.0
    %4906 = vadd.xlane.f32.xlu0 %v4905
    %v4907 = vpop.xlane.xlu0 %4906
    %v4908 = vsel %vm1595, %v4866, 0.0
    %4909 = vadd.xlane.f32.xlu0 %v4908
    %v4910 = vpop.xlane.xlu0 %4909
    %v4911 = vsel %vm1595, %v4868, 0.0
    %4912 = vadd.xlane.f32.xlu0 %v4911
    %v4913 = vpop.xlane.xlu0 %4912
    %v4914 = vsel %vm1595, %v4870, 0.0
    %4915 = vadd.xlane.f32.xlu0 %v4914
    %v4916 = vpop.xlane.xlu0 %4915
    %v4917 = vsel %vm1595, %v4872, 0.0
    %4918 = vadd.xlane.f32.xlu0 %v4917
    %v4919 = vpop.xlane.xlu0 %4918
    %v4920 = vsel %vm1595, %v4874, 0.0
    %4921 = vadd.xlane.f32.xlu0 %v4920
    %v4922 = vpop.xlane.xlu0 %4921
    %v4923 = vrcp.pop %v4877
    %v4924 = vrcp.pop %v4880
    %v4925 = vrcp.pop %v4883
    %v4926 = vrcp.pop %v4886
    %v4927 = vrcp.pop %v4889
    %v4928 = vrcp.pop %v4892
    %v4929 = vrcp.pop %v4895
    %v4930 = vrcp.pop %v4898
    %v4931 = vrcp.pop %v4901
    %v4932 = vrcp.pop %v4904
    %v4933 = vrcp.pop %v4907
    %v4934 = vrcp.pop %v4910
    %v4935 = vrcp.pop %v4913
    %v4936 = vrcp.pop %v4916
    %v4937 = vrcp.pop %v4919
    %v4938 = vrcp.pop %v4922
    %v4939 = vmul.f32 %v4844, %v4923
    %v4940 = vmul.f32 %v4846, %v4924
    %v4941 = vmul.f32 %v4848, %v4925
    %v4942 = vmul.f32 %v4850, %v4926
    %v4943 = vmul.f32 %v4852, %v4927
    %v4944 = vmul.f32 %v4854, %v4928
    %v4945 = vmul.f32 %v4856, %v4929
    %v4946 = vmul.f32 %v4858, %v4930
    %v4947 = vmul.f32 %v4860, %v4931
    %v4948 = vmul.f32 %v4862, %v4932
    %v4949 = vmul.f32 %v4864, %v4933
    %v4950 = vmul.f32 %v4866, %v4934
    %v4951 = vmul.f32 %v4868, %v4935
    %v4952 = vmul.f32 %v4870, %v4936
    %v4953 = vmul.f32 %v4872, %v4937
    %v4954 = vmul.f32 %v4874, %v4938
    %4955 = vrot.lane.b32.xlu0 %v3509, 64
    %v4956 = vpop.permute.xlu0 %4955
    %v4959 = vsel %vm1595, %v4939, 0
    %4961 = vmatprep.subr.mxu0 0.0
    %4962 = vmatpush1.msra.mxu0 %v4956
    %4963 = vmatprep.subr.mxu0 0.0
    %4964 = vmatpush1.msra.mxu0 0.0
    %4965 = vmatprep.subr.mxu0 0.0
    %4966 = vmatpush1.msra.mxu0 0.0
    %4967 = vmatprep.subr.mxu0 0.0
    %4968 = vmatpush1.msra.mxu0 0.0
    %4969 = vmatprep.subr.mxu0 0.0
    %4970 = vmatpush1.msra.mxu0 0.0
    %4971 = vmatprep.subr.mxu0 0.0
    %4972 = vmatpush1.msra.mxu0 0.0
    %4973 = vmatprep.subr.mxu0 0.0
    %4974 = vmatpush1.msra.mxu0 0.0
    %4975 = vmatprep.subr.mxu0 0.0
    %4976 = vmatpush1.msra.mxu0 0.0
    %4977 = vmatprep.subr.mxu0 0.0
    %4978 = vmatpush1.msra.mxu0 0.0
    %4979 = vmatprep.subr.mxu0 0.0
    %4980 = vmatpush1.msra.mxu0 0.0
    %4981 = vmatprep.subr.mxu0 0.0
    %4982 = vmatpush1.msra.mxu0 0.0
    %4983 = vmatprep.subr.mxu0 0.0
    %4984 = vmatpush1.msra.mxu0 0.0
    %4985 = vmatprep.subr.mxu0 0.0
    %4986 = vmatpush1.msra.mxu0 0.0
    %4987 = vmatprep.subr.mxu0 0.0
    %4988 = vmatpush1.msra.mxu0 0.0
    %4989 = vmatprep.subr.mxu0 0.0
    %4990 = vmatpush1.msra.mxu0 0.0
    %4991 = vmatprep.subr.mxu0 0.0
    %4992 = vmatpush1.msra.mxu0 0.0
    %4993 = vmatprep.subr.mxu0 0.0
    %4994 = vmatpush1.msra.mxu0 0.0
    %4995 = vmatprep.subr.mxu0 0.0
    %4996 = vmatpush1.msra.mxu0 0.0
    %4997 = vmatprep.subr.mxu0 0.0
    %4998 = vmatpush1.msra.mxu0 0.0
    %4999 = vmatprep.subr.mxu0 0.0
    %5000 = vmatpush1.msra.mxu0 0.0
    %5001 = vmatprep.subr.mxu0 0.0
    %5002 = vmatpush1.msra.mxu0 0.0
    %5003 = vmatprep.subr.mxu0 0.0
    %5004 = vmatpush1.msra.mxu0 0.0
    %5005 = vmatprep.subr.mxu0 0.0
    %5006 = vmatpush1.msra.mxu0 0.0
    %5007 = vmatprep.subr.mxu0 0.0
    %5008 = vmatpush1.msra.mxu0 0.0
    %5009 = vmatprep.subr.mxu0 0.0
    %5010 = vmatpush1.msra.mxu0 0.0
    %5011 = vmatprep.subr.mxu0 0.0
    %5012 = vmatpush1.msra.mxu0 0.0
    %5013 = vmatprep.subr.mxu0 0.0
    %5014 = vmatpush1.msra.mxu0 0.0
    %5015 = vmatprep.subr.mxu0 0.0
    %5016 = vmatpush1.msra.mxu0 0.0
    %5017 = vmatprep.subr.mxu0 0.0
    %5018 = vmatpush1.msra.mxu0 0.0
    %5019 = vmatprep.subr.mxu0 0.0
    %5020 = vmatpush1.msra.mxu0 0.0
    %5021 = vmatprep.subr.mxu0 0.0
    %5022 = vmatpush1.msra.mxu0 0.0
    %5023 = vmatprep.subr.mxu0 0.0
    %5024 = vmatpush1.msra.mxu0 0.0
    %5025 = vmatprep.mubr.f32.mxu0 0.0
    %5026 = vmatmul.mubr.f32.gmra.mrb[0].mxu0 %v4959
    %v5027 = vpop.f32.mrb[0].mxu0
    %v5028 = vadd.f32 0.0, %v5027
    %v5029 = vpop.f32.mrb[0].mxu0
    %5030 = vdwg.mxu0
    %5031 = vrot.lane.b32.xlu0 %v3509, 60
    %v5032 = vpop.permute.xlu0 %5031
    %v5035 = vsel %vm1595, %v4940, 0
    %5037 = vmatprep.subr.mxu0 0.0
    %5038 = vmatpush1.msra.mxu0 %v5032
    %5039 = vmatprep.subr.mxu0 0.0
    %5040 = vmatpush1.msra.mxu0 0.0
    %5041 = vmatprep.subr.mxu0 0.0
    %5042 = vmatpush1.msra.mxu0 0.0
    %5043 = vmatprep.subr.mxu0 0.0
    %5044 = vmatpush1.msra.mxu0 0.0
    %5045 = vmatprep.subr.mxu0 0.0
    %5046 = vmatpush1.msra.mxu0 0.0
    %5047 = vmatprep.subr.mxu0 0.0
    %5048 = vmatpush1.msra.mxu0 0.0
    %5049 = vmatprep.subr.mxu0 0.0
    %5050 = vmatpush1.msra.mxu0 0.0
    %5051 = vmatprep.subr.mxu0 0.0
    %5052 = vmatpush1.msra.mxu0 0.0
    %5053 = vmatprep.subr.mxu0 0.0
    %5054 = vmatpush1.msra.mxu0 0.0
    %5055 = vmatprep.subr.mxu0 0.0
    %5056 = vmatpush1.msra.mxu0 0.0
    %5057 = vmatprep.subr.mxu0 0.0
    %5058 = vmatpush1.msra.mxu0 0.0
    %5059 = vmatprep.subr.mxu0 0.0
    %5060 = vmatpush1.msra.mxu0 0.0
    %5061 = vmatprep.subr.mxu0 0.0
    %5062 = vmatpush1.msra.mxu0 0.0
    %5063 = vmatprep.subr.mxu0 0.0
    %5064 = vmatpush1.msra.mxu0 0.0
    %5065 = vmatprep.subr.mxu0 0.0
    %5066 = vmatpush1.msra.mxu0 0.0
    %5067 = vmatprep.subr.mxu0 0.0
    %5068 = vmatpush1.msra.mxu0 0.0
    %5069 = vmatprep.subr.mxu0 0.0
    %5070 = vmatpush1.msra.mxu0 0.0
    %5071 = vmatprep.subr.mxu0 0.0
    %5072 = vmatpush1.msra.mxu0 0.0
    %5073 = vmatprep.subr.mxu0 0.0
    %5074 = vmatpush1.msra.mxu0 0.0
    %5075 = vmatprep.subr.mxu0 0.0
    %5076 = vmatpush1.msra.mxu0 0.0
    %5077 = vmatprep.subr.mxu0 0.0
    %5078 = vmatpush1.msra.mxu0 0.0
    %5079 = vmatprep.subr.mxu0 0.0
    %5080 = vmatpush1.msra.mxu0 0.0
    %5081 = vmatprep.subr.mxu0 0.0
    %5082 = vmatpush1.msra.mxu0 0.0
    %5083 = vmatprep.subr.mxu0 0.0
    %5084 = vmatpush1.msra.mxu0 0.0
    %5085 = vmatprep.subr.mxu0 0.0
    %5086 = vmatpush1.msra.mxu0 0.0
    %5087 = vmatprep.subr.mxu0 0.0
    %5088 = vmatpush1.msra.mxu0 0.0
    %5089 = vmatprep.subr.mxu0 0.0
    %5090 = vmatpush1.msra.mxu0 0.0
    %5091 = vmatprep.subr.mxu0 0.0
    %5092 = vmatpush1.msra.mxu0 0.0
    %5093 = vmatprep.subr.mxu0 0.0
    %5094 = vmatpush1.msra.mxu0 0.0
    %5095 = vmatprep.subr.mxu0 0.0
    %5096 = vmatpush1.msra.mxu0 0.0
    %5097 = vmatprep.subr.mxu0 0.0
    %5098 = vmatpush1.msra.mxu0 0.0
    %5099 = vmatprep.subr.mxu0 0.0
    %5100 = vmatpush1.msra.mxu0 0.0
    %5101 = vmatprep.mubr.f32.mxu0 0.0
    %5102 = vmatmul.mubr.f32.gmra.mrb[0].mxu0 %v5035
    %v5103 = vpop.f32.mrb[0].mxu0
    %v5104 = vadd.f32 0.0, %v5103
    %v5105 = vpop.f32.mrb[0].mxu0
    %5106 = vdwg.mxu0
    %5107 = vrot.lane.b32.xlu0 %v3509, 56
    %v5108 = vpop.permute.xlu0 %5107
    %v5111 = vsel %vm1595, %v4941, 0
    %5113 = vmatprep.subr.mxu0 0.0
    %5114 = vmatpush1.msra.mxu0 %v5108
    %5115 = vmatprep.subr.mxu0 0.0
    %5116 = vmatpush1.msra.mxu0 0.0
    %5117 = vmatprep.subr.mxu0 0.0
    %5118 = vmatpush1.msra.mxu0 0.0
    %5119 = vmatprep.subr.mxu0 0.0
    %5120 = vmatpush1.msra.mxu0 0.0
    %5121 = vmatprep.subr.mxu0 0.0
    %5122 = vmatpush1.msra.mxu0 0.0
    %5123 = vmatprep.subr.mxu0 0.0
    %5124 = vmatpush1.msra.mxu0 0.0
    %5125 = vmatprep.subr.mxu0 0.0
    %5126 = vmatpush1.msra.mxu0 0.0
    %5127 = vmatprep.subr.mxu0 0.0
    %5128 = vmatpush1.msra.mxu0 0.0
    %5129 = vmatprep.subr.mxu0 0.0
    %5130 = vmatpush1.msra.mxu0 0.0
    %5131 = vmatprep.subr.mxu0 0.0
    %5132 = vmatpush1.msra.mxu0 0.0
    %5133 = vmatprep.subr.mxu0 0.0
    %5134 = vmatpush1.msra.mxu0 0.0
    %5135 = vmatprep.subr.mxu0 0.0
    %5136 = vmatpush1.msra.mxu0 0.0
    %5137 = vmatprep.subr.mxu0 0.0
    %5138 = vmatpush1.msra.mxu0 0.0
    %5139 = vmatprep.subr.mxu0 0.0
    %5140 = vmatpush1.msra.mxu0 0.0
    %5141 = vmatprep.subr.mxu0 0.0
    %5142 = vmatpush1.msra.mxu0 0.0
    %5143 = vmatprep.subr.mxu0 0.0
    %5144 = vmatpush1.msra.mxu0 0.0
    %5145 = vmatprep.subr.mxu0 0.0
    %5146 = vmatpush1.msra.mxu0 0.0
    %5147 = vmatprep.subr.mxu0 0.0
    %5148 = vmatpush1.msra.mxu0 0.0
    %5149 = vmatprep.subr.mxu0 0.0
    %5150 = vmatpush1.msra.mxu0 0.0
    %5151 = vmatprep.subr.mxu0 0.0
    %5152 = vmatpush1.msra.mxu0 0.0
    %5153 = vmatprep.subr.mxu0 0.0
    %5154 = vmatpush1.msra.mxu0 0.0
    %5155 = vmatprep.subr.mxu0 0.0
    %5156 = vmatpush1.msra.mxu0 0.0
    %5157 = vmatprep.subr.mxu0 0.0
    %5158 = vmatpush1.msra.mxu0 0.0
    %5159 = vmatprep.subr.mxu0 0.0
    %5160 = vmatpush1.msra.mxu0 0.0
    %5161 = vmatprep.subr.mxu0 0.0
    %5162 = vmatpush1.msra.mxu0 0.0
    %5163 = vmatprep.subr.mxu0 0.0
    %5164 = vmatpush1.msra.mxu0 0.0
    %5165 = vmatprep.subr.mxu0 0.0
    %5166 = vmatpush1.msra.mxu0 0.0
    %5167 = vmatprep.subr.mxu0 0.0
    %5168 = vmatpush1.msra.mxu0 0.0
    %5169 = vmatprep.subr.mxu0 0.0
    %5170 = vmatpush1.msra.mxu0 0.0
    %5171 = vmatprep.subr.mxu0 0.0
    %5172 = vmatpush1.msra.mxu0 0.0
    %5173 = vmatprep.subr.mxu0 0.0
    %5174 = vmatpush1.msra.mxu0 0.0
    %5175 = vmatprep.subr.mxu0 0.0
    %5176 = vmatpush1.msra.mxu0 0.0
    %5177 = vmatprep.mubr.f32.mxu0 0.0
    %5178 = vmatmul.mubr.f32.gmra.mrb[0].mxu0 %v5111
    %v5179 = vpop.f32.mrb[0].mxu0
    %v5180 = vadd.f32 0.0, %v5179
    %v5181 = vpop.f32.mrb[0].mxu0
    %5182 = vdwg.mxu0
    %5183 = vrot.lane.b32.xlu0 %v3509, 52
    %v5184 = vpop.permute.xlu0 %5183
    %v5187 = vsel %vm1595, %v4942, 0
    %5189 = vmatprep.subr.mxu0 0.0
    %5190 = vmatpush1.msra.mxu0 %v5184
    %5191 = vmatprep.subr.mxu0 0.0
    %5192 = vmatpush1.msra.mxu0 0.0
    %5193 = vmatprep.subr.mxu0 0.0
    %5194 = vmatpush1.msra.mxu0 0.0
    %5195 = vmatprep.subr.mxu0 0.0
    %5196 = vmatpush1.msra.mxu0 0.0
    %5197 = vmatprep.subr.mxu0 0.0
    %5198 = vmatpush1.msra.mxu0 0.0
    %5199 = vmatprep.subr.mxu0 0.0
    %5200 = vmatpush1.msra.mxu0 0.0
    %5201 = vmatprep.subr.mxu0 0.0
    %5202 = vmatpush1.msra.mxu0 0.0
    %5203 = vmatprep.subr.mxu0 0.0
    %5204 = vmatpush1.msra.mxu0 0.0
    %5205 = vmatprep.subr.mxu0 0.0
    %5206 = vmatpush1.msra.mxu0 0.0
    %5207 = vmatprep.subr.mxu0 0.0
    %5208 = vmatpush1.msra.mxu0 0.0
    %5209 = vmatprep.subr.mxu0 0.0
    %5210 = vmatpush1.msra.mxu0 0.0
    %5211 = vmatprep.subr.mxu0 0.0
    %5212 = vmatpush1.msra.mxu0 0.0
    %5213 = vmatprep.subr.mxu0 0.0
    %5214 = vmatpush1.msra.mxu0 0.0
    %5215 = vmatprep.subr.mxu0 0.0
    %5216 = vmatpush1.msra.mxu0 0.0
    %5217 = vmatprep.subr.mxu0 0.0
    %5218 = vmatpush1.msra.mxu0 0.0
    %5219 = vmatprep.subr.mxu0 0.0
    %5220 = vmatpush1.msra.mxu0 0.0
    %5221 = vmatprep.subr.mxu0 0.0
    %5222 = vmatpush1.msra.mxu0 0.0
    %5223 = vmatprep.subr.mxu0 0.0
    %5224 = vmatpush1.msra.mxu0 0.0
    %5225 = vmatprep.subr.mxu0 0.0
    %5226 = vmatpush1.msra.mxu0 0.0
    %5227 = vmatprep.subr.mxu0 0.0
    %5228 = vmatpush1.msra.mxu0 0.0
    %5229 = vmatprep.subr.mxu0 0.0
    %5230 = vmatpush1.msra.mxu0 0.0
    %5231 = vmatprep.subr.mxu0 0.0
    %5232 = vmatpush1.msra.mxu0 0.0
    %5233 = vmatprep.subr.mxu0 0.0
    %5234 = vmatpush1.msra.mxu0 0.0
    %5235 = vmatprep.subr.mxu0 0.0
    %5236 = vmatpush1.msra.mxu0 0.0
    %5237 = vmatprep.subr.mxu0 0.0
    %5238 = vmatpush1.msra.mxu0 0.0
    %5239 = vmatprep.subr.mxu0 0.0
    %5240 = vmatpush1.msra.mxu0 0.0
    %5241 = vmatprep.subr.mxu0 0.0
    %5242 = vmatpush1.msra.mxu0 0.0
    %5243 = vmatprep.subr.mxu0 0.0
    %5244 = vmatpush1.msra.mxu0 0.0
    %5245 = vmatprep.subr.mxu0 0.0
    %5246 = vmatpush1.msra.mxu0 0.0
    %5247 = vmatprep.subr.mxu0 0.0
    %5248 = vmatpush1.msra.mxu0 0.0
    %5249 = vmatprep.subr.mxu0 0.0
    %5250 = vmatpush1.msra.mxu0 0.0
    %5251 = vmatprep.subr.mxu0 0.0
    %5252 = vmatpush1.msra.mxu0 0.0
    %5253 = vmatprep.mubr.f32.mxu0 0.0
    %5254 = vmatmul.mubr.f32.gmra.mrb[0].mxu0 %v5187
    %v5255 = vpop.f32.mrb[0].mxu0
    %v5256 = vadd.f32 0.0, %v5255
    %v5257 = vpop.f32.mrb[0].mxu0
    %5258 = vdwg.mxu0
    %5259 = vrot.lane.b32.xlu0 %v3509, 48
    %v5260 = vpop.permute.xlu0 %5259
    %v5263 = vsel %vm1595, %v4943, 0
    %5265 = vmatprep.subr.mxu0 0.0
    %5266 = vmatpush1.msra.mxu0 %v5260
    %5267 = vmatprep.subr.mxu0 0.0
    %5268 = vmatpush1.msra.mxu0 0.0
    %5269 = vmatprep.subr.mxu0 0.0
    %5270 = vmatpush1.msra.mxu0 0.0
    %5271 = vmatprep.subr.mxu0 0.0
    %5272 = vmatpush1.msra.mxu0 0.0
    %5273 = vmatprep.subr.mxu0 0.0
    %5274 = vmatpush1.msra.mxu0 0.0
    %5275 = vmatprep.subr.mxu0 0.0
    %5276 = vmatpush1.msra.mxu0 0.0
    %5277 = vmatprep.subr.mxu0 0.0
    %5278 = vmatpush1.msra.mxu0 0.0
    %5279 = vmatprep.subr.mxu0 0.0
    %5280 = vmatpush1.msra.mxu0 0.0
    %5281 = vmatprep.subr.mxu0 0.0
    %5282 = vmatpush1.msra.mxu0 0.0
    %5283 = vmatprep.subr.mxu0 0.0
    %5284 = vmatpush1.msra.mxu0 0.0
    %5285 = vmatprep.subr.mxu0 0.0
    %5286 = vmatpush1.msra.mxu0 0.0
    %5287 = vmatprep.subr.mxu0 0.0
    %5288 = vmatpush1.msra.mxu0 0.0
    %5289 = vmatprep.subr.mxu0 0.0
    %5290 = vmatpush1.msra.mxu0 0.0
    %5291 = vmatprep.subr.mxu0 0.0
    %5292 = vmatpush1.msra.mxu0 0.0
    %5293 = vmatprep.subr.mxu0 0.0
    %5294 = vmatpush1.msra.mxu0 0.0
    %5295 = vmatprep.subr.mxu0 0.0
    %5296 = vmatpush1.msra.mxu0 0.0
    %5297 = vmatprep.subr.mxu0 0.0
    %5298 = vmatpush1.msra.mxu0 0.0
    %5299 = vmatprep.subr.mxu0 0.0
    %5300 = vmatpush1.msra.mxu0 0.0
    %5301 = vmatprep.subr.mxu0 0.0
    %5302 = vmatpush1.msra.mxu0 0.0
    %5303 = vmatprep.subr.mxu0 0.0
    %5304 = vmatpush1.msra.mxu0 0.0
    %5305 = vmatprep.subr.mxu0 0.0
    %5306 = vmatpush1.msra.mxu0 0.0
    %5307 = vmatprep.subr.mxu0 0.0
    %5308 = vmatpush1.msra.mxu0 0.0
    %5309 = vmatprep.subr.mxu0 0.0
    %5310 = vmatpush1.msra.mxu0 0.0
    %5311 = vmatprep.subr.mxu0 0.0
    %5312 = vmatpush1.msra.mxu0 0.0
    %5313 = vmatprep.subr.mxu0 0.0
    %5314 = vmatpush1.msra.mxu0 0.0
    %5315 = vmatprep.subr.mxu0 0.0
    %5316 = vmatpush1.msra.mxu0 0.0
    %5317 = vmatprep.subr.mxu0 0.0
    %5318 = vmatpush1.msra.mxu0 0.0
    %5319 = vmatprep.subr.mxu0 0.0
    %5320 = vmatpush1.msra.mxu0 0.0
    %5321 = vmatprep.subr.mxu0 0.0
    %5322 = vmatpush1.msra.mxu0 0.0
    %5323 = vmatprep.subr.mxu0 0.0
    %5324 = vmatpush1.msra.mxu0 0.0
    %5325 = vmatprep.subr.mxu0 0.0
    %5326 = vmatpush1.msra.mxu0 0.0
    %5327 = vmatprep.subr.mxu0 0.0
    %5328 = vmatpush1.msra.mxu0 0.0
    %5329 = vmatprep.mubr.f32.mxu0 0.0
    %5330 = vmatmul.mubr.f32.gmra.mrb[0].mxu0 %v5263
    %v5331 = vpop.f32.mrb[0].mxu0
    %v5332 = vadd.f32 0.0, %v5331
    %v5333 = vpop.f32.mrb[0].mxu0
    %5334 = vdwg.mxu0
    %5335 = vrot.lane.b32.xlu0 %v3509, 44
    %v5336 = vpop.permute.xlu0 %5335
    %v5339 = vsel %vm1595, %v4944, 0
    %5341 = vmatprep.subr.mxu0 0.0
    %5342 = vmatpush1.msra.mxu0 %v5336
    %5343 = vmatprep.subr.mxu0 0.0
    %5344 = vmatpush1.msra.mxu0 0.0
    %5345 = vmatprep.subr.mxu0 0.0
    %5346 = vmatpush1.msra.mxu0 0.0
    %5347 = vmatprep.subr.mxu0 0.0
    %5348 = vmatpush1.msra.mxu0 0.0
    %5349 = vmatprep.subr.mxu0 0.0
    %5350 = vmatpush1.msra.mxu0 0.0
    %5351 = vmatprep.subr.mxu0 0.0
    %5352 = vmatpush1.msra.mxu0 0.0
    %5353 = vmatprep.subr.mxu0 0.0
    %5354 = vmatpush1.msra.mxu0 0.0
    %5355 = vmatprep.subr.mxu0 0.0
    %5356 = vmatpush1.msra.mxu0 0.0
    %5357 = vmatprep.subr.mxu0 0.0
    %5358 = vmatpush1.msra.mxu0 0.0
    %5359 = vmatprep.subr.mxu0 0.0
    %5360 = vmatpush1.msra.mxu0 0.0
    %5361 = vmatprep.subr.mxu0 0.0
    %5362 = vmatpush1.msra.mxu0 0.0
    %5363 = vmatprep.subr.mxu0 0.0
    %5364 = vmatpush1.msra.mxu0 0.0
    %5365 = vmatprep.subr.mxu0 0.0
    %5366 = vmatpush1.msra.mxu0 0.0
    %5367 = vmatprep.subr.mxu0 0.0
    %5368 = vmatpush1.msra.mxu0 0.0
    %5369 = vmatprep.subr.mxu0 0.0
    %5370 = vmatpush1.msra.mxu0 0.0
    %5371 = vmatprep.subr.mxu0 0.0
    %5372 = vmatpush1.msra.mxu0 0.0
    %5373 = vmatprep.subr.mxu0 0.0
    %5374 = vmatpush1.msra.mxu0 0.0
    %5375 = vmatprep.subr.mxu0 0.0
    %5376 = vmatpush1.msra.mxu0 0.0
    %5377 = vmatprep.subr.mxu0 0.0
    %5378 = vmatpush1.msra.mxu0 0.0
    %5379 = vmatprep.subr.mxu0 0.0
    %5380 = vmatpush1.msra.mxu0 0.0
    %5381 = vmatprep.subr.mxu0 0.0
    %5382 = vmatpush1.msra.mxu0 0.0
    %5383 = vmatprep.subr.mxu0 0.0
    %5384 = vmatpush1.msra.mxu0 0.0
    %5385 = vmatprep.subr.mxu0 0.0
    %5386 = vmatpush1.msra.mxu0 0.0
    %5387 = vmatprep.subr.mxu0 0.0
    %5388 = vmatpush1.msra.mxu0 0.0
    %5389 = vmatprep.subr.mxu0 0.0
    %5390 = vmatpush1.msra.mxu0 0.0
    %5391 = vmatprep.subr.mxu0 0.0
    %5392 = vmatpush1.msra.mxu0 0.0
    %5393 = vmatprep.subr.mxu0 0.0
    %5394 = vmatpush1.msra.mxu0 0.0
    %5395 = vmatprep.subr.mxu0 0.0
    %5396 = vmatpush1.msra.mxu0 0.0
    %5397 = vmatprep.subr.mxu0 0.0
    %5398 = vmatpush1.msra.mxu0 0.0
    %5399 = vmatprep.subr.mxu0 0.0
    %5400 = vmatpush1.msra.mxu0 0.0
    %5401 = vmatprep.subr.mxu0 0.0
    %5402 = vmatpush1.msra.mxu0 0.0
    %5403 = vmatprep.subr.mxu0 0.0
    %5404 = vmatpush1.msra.mxu0 0.0
    %5405 = vmatprep.mubr.f32.mxu0 0.0
    %5406 = vmatmul.mubr.f32.gmra.mrb[0].mxu0 %v5339
    %v5407 = vpop.f32.mrb[0].mxu0
    %v5408 = vadd.f32 0.0, %v5407
    %v5409 = vpop.f32.mrb[0].mxu0
    %5410 = vdwg.mxu0
    %5411 = vrot.lane.b32.xlu0 %v3509, 40
    %v5412 = vpop.permute.xlu0 %5411
    %v5415 = vsel %vm1595, %v4945, 0
    %5417 = vmatprep.subr.mxu0 0.0
    %5418 = vmatpush1.msra.mxu0 %v5412
    %5419 = vmatprep.subr.mxu0 0.0
    %5420 = vmatpush1.msra.mxu0 0.0
    %5421 = vmatprep.subr.mxu0 0.0
    %5422 = vmatpush1.msra.mxu0 0.0
    %5423 = vmatprep.subr.mxu0 0.0
    %5424 = vmatpush1.msra.mxu0 0.0
    %5425 = vmatprep.subr.mxu0 0.0
    %5426 = vmatpush1.msra.mxu0 0.0
    %5427 = vmatprep.subr.mxu0 0.0
    %5428 = vmatpush1.msra.mxu0 0.0
    %5429 = vmatprep.subr.mxu0 0.0
    %5430 = vmatpush1.msra.mxu0 0.0
    %5431 = vmatprep.subr.mxu0 0.0
    %5432 = vmatpush1.msra.mxu0 0.0
    %5433 = vmatprep.subr.mxu0 0.0
    %5434 = vmatpush1.msra.mxu0 0.0
    %5435 = vmatprep.subr.mxu0 0.0
    %5436 = vmatpush1.msra.mxu0 0.0
    %5437 = vmatprep.subr.mxu0 0.0
    %5438 = vmatpush1.msra.mxu0 0.0
    %5439 = vmatprep.subr.mxu0 0.0
    %5440 = vmatpush1.msra.mxu0 0.0
    %5441 = vmatprep.subr.mxu0 0.0
    %5442 = vmatpush1.msra.mxu0 0.0
    %5443 = vmatprep.subr.mxu0 0.0
    %5444 = vmatpush1.msra.mxu0 0.0
    %5445 = vmatprep.subr.mxu0 0.0
    %5446 = vmatpush1.msra.mxu0 0.0
    %5447 = vmatprep.subr.mxu0 0.0
    %5448 = vmatpush1.msra.mxu0 0.0
    %5449 = vmatprep.subr.mxu0 0.0
    %5450 = vmatpush1.msra.mxu0 0.0
    %5451 = vmatprep.subr.mxu0 0.0
    %5452 = vmatpush1.msra.mxu0 0.0
    %5453 = vmatprep.subr.mxu0 0.0
    %5454 = vmatpush1.msra.mxu0 0.0
    %5455 = vmatprep.subr.mxu0 0.0
    %5456 = vmatpush1.msra.mxu0 0.0
    %5457 = vmatprep.subr.mxu0 0.0
    %5458 = vmatpush1.msra.mxu0 0.0
    %5459 = vmatprep.subr.mxu0 0.0
    %5460 = vmatpush1.msra.mxu0 0.0
    %5461 = vmatprep.subr.mxu0 0.0
    %5462 = vmatpush1.msra.mxu0 0.0
    %5463 = vmatprep.subr.mxu0 0.0
    %5464 = vmatpush1.msra.mxu0 0.0
    %5465 = vmatprep.subr.mxu0 0.0
    %5466 = vmatpush1.msra.mxu0 0.0
    %5467 = vmatprep.subr.mxu0 0.0
    %5468 = vmatpush1.msra.mxu0 0.0
    %5469 = vmatprep.subr.mxu0 0.0
    %5470 = vmatpush1.msra.mxu0 0.0
    %5471 = vmatprep.subr.mxu0 0.0
    %5472 = vmatpush1.msra.mxu0 0.0
    %5473 = vmatprep.subr.mxu0 0.0
    %5474 = vmatpush1.msra.mxu0 0.0
    %5475 = vmatprep.subr.mxu0 0.0
    %5476 = vmatpush1.msra.mxu0 0.0
    %5477 = vmatprep.subr.mxu0 0.0
    %5478 = vmatpush1.msra.mxu0 0.0
    %5479 = vmatprep.subr.mxu0 0.0
    %5480 = vmatpush1.msra.mxu0 0.0
    %5481 = vmatprep.mubr.f32.mxu0 0.0
    %5482 = vmatmul.mubr.f32.gmra.mrb[0].mxu0 %v5415
    %v5483 = vpop.f32.mrb[0].mxu0
    %v5484 = vadd.f32 0.0, %v5483
    %v5485 = vpop.f32.mrb[0].mxu0
    %5486 = vdwg.mxu0
    %5487 = vrot.lane.b32.xlu0 %v3509, 36
    %v5488 = vpop.permute.xlu0 %5487
    %v5491 = vsel %vm1595, %v4946, 0
    %5493 = vmatprep.subr.mxu0 0.0
    %5494 = vmatpush1.msra.mxu0 %v5488
    %5495 = vmatprep.subr.mxu0 0.0
    %5496 = vmatpush1.msra.mxu0 0.0
    %5497 = vmatprep.subr.mxu0 0.0
    %5498 = vmatpush1.msra.mxu0 0.0
    %5499 = vmatprep.subr.mxu0 0.0
    %5500 = vmatpush1.msra.mxu0 0.0
    %5501 = vmatprep.subr.mxu0 0.0
    %5502 = vmatpush1.msra.mxu0 0.0
    %5503 = vmatprep.subr.mxu0 0.0
    %5504 = vmatpush1.msra.mxu0 0.0
    %5505 = vmatprep.subr.mxu0 0.0
    %5506 = vmatpush1.msra.mxu0 0.0
    %5507 = vmatprep.subr.mxu0 0.0
    %5508 = vmatpush1.msra.mxu0 0.0
    %5509 = vmatprep.subr.mxu0 0.0
    %5510 = vmatpush1.msra.mxu0 0.0
    %5511 = vmatprep.subr.mxu0 0.0
    %5512 = vmatpush1.msra.mxu0 0.0
    %5513 = vmatprep.subr.mxu0 0.0
    %5514 = vmatpush1.msra.mxu0 0.0
    %5515 = vmatprep.subr.mxu0 0.0
    %5516 = vmatpush1.msra.mxu0 0.0
    %5517 = vmatprep.subr.mxu0 0.0
    %5518 = vmatpush1.msra.mxu0 0.0
    %5519 = vmatprep.subr.mxu0 0.0
    %5520 = vmatpush1.msra.mxu0 0.0
    %5521 = vmatprep.subr.mxu0 0.0
    %5522 = vmatpush1.msra.mxu0 0.0
    %5523 = vmatprep.subr.mxu0 0.0
    %5524 = vmatpush1.msra.mxu0 0.0
    %5525 = vmatprep.subr.mxu0 0.0
    %5526 = vmatpush1.msra.mxu0 0.0
    %5527 = vmatprep.subr.mxu0 0.0
    %5528 = vmatpush1.msra.mxu0 0.0
    %5529 = vmatprep.subr.mxu0 0.0
    %5530 = vmatpush1.msra.mxu0 0.0
    %5531 = vmatprep.subr.mxu0 0.0
    %5532 = vmatpush1.msra.mxu0 0.0
    %5533 = vmatprep.subr.mxu0 0.0
    %5534 = vmatpush1.msra.mxu0 0.0
    %5535 = vmatprep.subr.mxu0 0.0
    %5536 = vmatpush1.msra.mxu0 0.0
    %5537 = vmatprep.subr.mxu0 0.0
    %5538 = vmatpush1.msra.mxu0 0.0
    %5539 = vmatprep.subr.mxu0 0.0
    %5540 = vmatpush1.msra.mxu0 0.0
    %5541 = vmatprep.subr.mxu0 0.0
    %5542 = vmatpush1.msra.mxu0 0.0
    %5543 = vmatprep.subr.mxu0 0.0
    %5544 = vmatpush1.msra.mxu0 0.0
    %5545 = vmatprep.subr.mxu0 0.0
    %5546 = vmatpush1.msra.mxu0 0.0
    %5547 = vmatprep.subr.mxu0 0.0
    %5548 = vmatpush1.msra.mxu0 0.0
    %5549 = vmatprep.subr.mxu0 0.0
    %5550 = vmatpush1.msra.mxu0 0.0
    %5551 = vmatprep.subr.mxu0 0.0
    %5552 = vmatpush1.msra.mxu0 0.0
    %5553 = vmatprep.subr.mxu0 0.0
    %5554 = vmatpush1.msra.mxu0 0.0
    %5555 = vmatprep.subr.mxu0 0.0
    %5556 = vmatpush1.msra.mxu0 0.0
    %5557 = vmatprep.mubr.f32.mxu0 0.0
    %5558 = vmatmul.mubr.f32.gmra.mrb[0].mxu0 %v5491
    %v5559 = vpop.f32.mrb[0].mxu0
    %v5560 = vadd.f32 0.0, %v5559
    %v5561 = vpop.f32.mrb[0].mxu0
    %5562 = vdwg.mxu0
    %5564 = vrot.lane.b32.xlu0 %v5104, 4
    %v5565 = vpop.permute.xlu0 %5564
    %5568 = vrot.lane.b32.xlu0 %v5180, 8
    %v5569 = vpop.permute.xlu0 %5568
    %5572 = vrot.lane.b32.xlu0 %v5256, 12
    %v5573 = vpop.permute.xlu0 %5572
    %5576 = vrot.lane.b32.xlu0 %v5332, 16
    %v5577 = vpop.permute.xlu0 %5576
    %5580 = vrot.lane.b32.xlu0 %v5408, 20
    %v5581 = vpop.permute.xlu0 %5580
    %5584 = vrot.lane.b32.xlu0 %v5484, 24
    %v5585 = vpop.permute.xlu0 %5584
    %5588 = vrot.lane.b32.xlu0 %v5560, 28
    %v5589 = vpop.permute.xlu0 %5588
    %v5591 = vsel %vm335, %v5028, %v5565
    %v5592 = vsel %vm1595, %v5591, %v5569
    %v5593 = vsel %vm2410, %v5592, %v5573
    %v5594 = vsel %vm2412, %v5593, %v5577
    %v5595 = vsel %vm2414, %v5594, %v5581
    %v5596 = vsel %vm2416, %v5595, %v5585
    %v5597 = vsel %vm2418, %v5596, %v5589
    %5598 = vrot.lane.b32.xlu0 %v3514, 64
    %v5599 = vpop.permute.xlu0 %5598
    %v5602 = vsel %vm1595, %v4947, 0
    %5604 = vmatprep.subr.mxu0 0.0
    %5605 = vmatpush1.msra.mxu0 %v5599
    %5606 = vmatprep.subr.mxu0 0.0
    %5607 = vmatpush1.msra.mxu0 0.0
    %5608 = vmatprep.subr.mxu0 0.0
    %5609 = vmatpush1.msra.mxu0 0.0
    %5610 = vmatprep.subr.mxu0 0.0
    %5611 = vmatpush1.msra.mxu0 0.0
    %5612 = vmatprep.subr.mxu0 0.0
    %5613 = vmatpush1.msra.mxu0 0.0
    %5614 = vmatprep.subr.mxu0 0.0
    %5615 = vmatpush1.msra.mxu0 0.0
    %5616 = vmatprep.subr.mxu0 0.0
    %5617 = vmatpush1.msra.mxu0 0.0
    %5618 = vmatprep.subr.mxu0 0.0
    %5619 = vmatpush1.msra.mxu0 0.0
    %5620 = vmatprep.subr.mxu0 0.0
    %5621 = vmatpush1.msra.mxu0 0.0
    %5622 = vmatprep.subr.mxu0 0.0
    %5623 = vmatpush1.msra.mxu0 0.0
    %5624 = vmatprep.subr.mxu0 0.0
    %5625 = vmatpush1.msra.mxu0 0.0
    %5626 = vmatprep.subr.mxu0 0.0
    %5627 = vmatpush1.msra.mxu0 0.0
    %5628 = vmatprep.subr.mxu0 0.0
    %5629 = vmatpush1.msra.mxu0 0.0
    %5630 = vmatprep.subr.mxu0 0.0
    %5631 = vmatpush1.msra.mxu0 0.0
    %5632 = vmatprep.subr.mxu0 0.0
    %5633 = vmatpush1.msra.mxu0 0.0
    %5634 = vmatprep.subr.mxu0 0.0
    %5635 = vmatpush1.msra.mxu0 0.0
    %5636 = vmatprep.subr.mxu0 0.0
    %5637 = vmatpush1.msra.mxu0 0.0
    %5638 = vmatprep.subr.mxu0 0.0
    %5639 = vmatpush1.msra.mxu0 0.0
    %5640 = vmatprep.subr.mxu0 0.0
    %5641 = vmatpush1.msra.mxu0 0.0
    %5642 = vmatprep.subr.mxu0 0.0
    %5643 = vmatpush1.msra.mxu0 0.0
    %5644 = vmatprep.subr.mxu0 0.0
    %5645 = vmatpush1.msra.mxu0 0.0
    %5646 = vmatprep.subr.mxu0 0.0
    %5647 = vmatpush1.msra.mxu0 0.0
    %5648 = vmatprep.subr.mxu0 0.0
    %5649 = vmatpush1.msra.mxu0 0.0
    %5650 = vmatprep.subr.mxu0 0.0
    %5651 = vmatpush1.msra.mxu0 0.0
    %5652 = vmatprep.subr.mxu0 0.0
    %5653 = vmatpush1.msra.mxu0 0.0
    %5654 = vmatprep.subr.mxu0 0.0
    %5655 = vmatpush1.msra.mxu0 0.0
    %5656 = vmatprep.subr.mxu0 0.0
    %5657 = vmatpush1.msra.mxu0 0.0
    %5658 = vmatprep.subr.mxu0 0.0
    %5659 = vmatpush1.msra.mxu0 0.0
    %5660 = vmatprep.subr.mxu0 0.0
    %5661 = vmatpush1.msra.mxu0 0.0
    %5662 = vmatprep.subr.mxu0 0.0
    %5663 = vmatpush1.msra.mxu0 0.0
    %5664 = vmatprep.subr.mxu0 0.0
    %5665 = vmatpush1.msra.mxu0 0.0
    %5666 = vmatprep.subr.mxu0 0.0
    %5667 = vmatpush1.msra.mxu0 0.0
    %5668 = vmatprep.mubr.f32.mxu0 0.0
    %5669 = vmatmul.mubr.f32.gmra.mrb[0].mxu0 %v5602
    %v5670 = vpop.f32.mrb[0].mxu0
    %v5671 = vadd.f32 0.0, %v5670
    %v5672 = vpop.f32.mrb[0].mxu0
    %5673 = vdwg.mxu0
    %5674 = vrot.lane.b32.xlu0 %v3514, 60
    %v5675 = vpop.permute.xlu0 %5674
    %v5678 = vsel %vm1595, %v4948, 0
    %5680 = vmatprep.subr.mxu0 0.0
    %5681 = vmatpush1.msra.mxu0 %v5675
    %5682 = vmatprep.subr.mxu0 0.0
    %5683 = vmatpush1.msra.mxu0 0.0
    %5684 = vmatprep.subr.mxu0 0.0
    %5685 = vmatpush1.msra.mxu0 0.0
    %5686 = vmatprep.subr.mxu0 0.0
    %5687 = vmatpush1.msra.mxu0 0.0
    %5688 = vmatprep.subr.mxu0 0.0
    %5689 = vmatpush1.msra.mxu0 0.0
    %5690 = vmatprep.subr.mxu0 0.0
    %5691 = vmatpush1.msra.mxu0 0.0
    %5692 = vmatprep.subr.mxu0 0.0
    %5693 = vmatpush1.msra.mxu0 0.0
    %5694 = vmatprep.subr.mxu0 0.0
    %5695 = vmatpush1.msra.mxu0 0.0
    %5696 = vmatprep.subr.mxu0 0.0
    %5697 = vmatpush1.msra.mxu0 0.0
    %5698 = vmatprep.subr.mxu0 0.0
    %5699 = vmatpush1.msra.mxu0 0.0
    %5700 = vmatprep.subr.mxu0 0.0
    %5701 = vmatpush1.msra.mxu0 0.0
    %5702 = vmatprep.subr.mxu0 0.0
    %5703 = vmatpush1.msra.mxu0 0.0
    %5704 = vmatprep.subr.mxu0 0.0
    %5705 = vmatpush1.msra.mxu0 0.0
    %5706 = vmatprep.subr.mxu0 0.0
    %5707 = vmatpush1.msra.mxu0 0.0
    %5708 = vmatprep.subr.mxu0 0.0
    %5709 = vmatpush1.msra.mxu0 0.0
    %5710 = vmatprep.subr.mxu0 0.0
    %5711 = vmatpush1.msra.mxu0 0.0
    %5712 = vmatprep.subr.mxu0 0.0
    %5713 = vmatpush1.msra.mxu0 0.0
    %5714 = vmatprep.subr.mxu0 0.0
    %5715 = vmatpush1.msra.mxu0 0.0
    %5716 = vmatprep.subr.mxu0 0.0
    %5717 = vmatpush1.msra.mxu0 0.0
    %5718 = vmatprep.subr.mxu0 0.0
    %5719 = vmatpush1.msra.mxu0 0.0
    %5720 = vmatprep.subr.mxu0 0.0
    %5721 = vmatpush1.msra.mxu0 0.0
    %5722 = vmatprep.subr.mxu0 0.0
    %5723 = vmatpush1.msra.mxu0 0.0
    %5724 = vmatprep.subr.mxu0 0.0
    %5725 = vmatpush1.msra.mxu0 0.0
    %5726 = vmatprep.subr.mxu0 0.0
    %5727 = vmatpush1.msra.mxu0 0.0
    %5728 = vmatprep.subr.mxu0 0.0
    %5729 = vmatpush1.msra.mxu0 0.0
    %5730 = vmatprep.subr.mxu0 0.0
    %5731 = vmatpush1.msra.mxu0 0.0
    %5732 = vmatprep.subr.mxu0 0.0
    %5733 = vmatpush1.msra.mxu0 0.0
    %5734 = vmatprep.subr.mxu0 0.0
    %5735 = vmatpush1.msra.mxu0 0.0
    %5736 = vmatprep.subr.mxu0 0.0
    %5737 = vmatpush1.msra.mxu0 0.0
    %5738 = vmatprep.subr.mxu0 0.0
    %5739 = vmatpush1.msra.mxu0 0.0
    %5740 = vmatprep.subr.mxu0 0.0
    %5741 = vmatpush1.msra.mxu0 0.0
    %5742 = vmatprep.subr.mxu0 0.0
    %5743 = vmatpush1.msra.mxu0 0.0
    %5744 = vmatprep.mubr.f32.mxu0 0.0
    %5745 = vmatmul.mubr.f32.gmra.mrb[0].mxu0 %v5678
    %v5746 = vpop.f32.mrb[0].mxu0
    %v5747 = vadd.f32 0.0, %v5746
    %v5748 = vpop.f32.mrb[0].mxu0
    %5749 = vdwg.mxu0
    %5750 = vrot.lane.b32.xlu0 %v3514, 56
    %v5751 = vpop.permute.xlu0 %5750
    %v5754 = vsel %vm1595, %v4949, 0
    %5756 = vmatprep.subr.mxu0 0.0
    %5757 = vmatpush1.msra.mxu0 %v5751
    %5758 = vmatprep.subr.mxu0 0.0
    %5759 = vmatpush1.msra.mxu0 0.0
    %5760 = vmatprep.subr.mxu0 0.0
    %5761 = vmatpush1.msra.mxu0 0.0
    %5762 = vmatprep.subr.mxu0 0.0
    %5763 = vmatpush1.msra.mxu0 0.0
    %5764 = vmatprep.subr.mxu0 0.0
    %5765 = vmatpush1.msra.mxu0 0.0
    %5766 = vmatprep.subr.mxu0 0.0
    %5767 = vmatpush1.msra.mxu0 0.0
    %5768 = vmatprep.subr.mxu0 0.0
    %5769 = vmatpush1.msra.mxu0 0.0
    %5770 = vmatprep.subr.mxu0 0.0
    %5771 = vmatpush1.msra.mxu0 0.0
    %5772 = vmatprep.subr.mxu0 0.0
    %5773 = vmatpush1.msra.mxu0 0.0
    %5774 = vmatprep.subr.mxu0 0.0
    %5775 = vmatpush1.msra.mxu0 0.0
    %5776 = vmatprep.subr.mxu0 0.0
    %5777 = vmatpush1.msra.mxu0 0.0
    %5778 = vmatprep.subr.mxu0 0.0
    %5779 = vmatpush1.msra.mxu0 0.0
    %5780 = vmatprep.subr.mxu0 0.0
    %5781 = vmatpush1.msra.mxu0 0.0
    %5782 = vmatprep.subr.mxu0 0.0
    %5783 = vmatpush1.msra.mxu0 0.0
    %5784 = vmatprep.subr.mxu0 0.0
    %5785 = vmatpush1.msra.mxu0 0.0
    %5786 = vmatprep.subr.mxu0 0.0
    %5787 = vmatpush1.msra.mxu0 0.0
    %5788 = vmatprep.subr.mxu0 0.0
    %5789 = vmatpush1.msra.mxu0 0.0
    %5790 = vmatprep.subr.mxu0 0.0
    %5791 = vmatpush1.msra.mxu0 0.0
    %5792 = vmatprep.subr.mxu0 0.0
    %5793 = vmatpush1.msra.mxu0 0.0
    %5794 = vmatprep.subr.mxu0 0.0
    %5795 = vmatpush1.msra.mxu0 0.0
    %5796 = vmatprep.subr.mxu0 0.0
    %5797 = vmatpush1.msra.mxu0 0.0
    %5798 = vmatprep.subr.mxu0 0.0
    %5799 = vmatpush1.msra.mxu0 0.0
    %5800 = vmatprep.subr.mxu0 0.0
    %5801 = vmatpush1.msra.mxu0 0.0
    %5802 = vmatprep.subr.mxu0 0.0
    %5803 = vmatpush1.msra.mxu0 0.0
    %5804 = vmatprep.subr.mxu0 0.0
    %5805 = vmatpush1.msra.mxu0 0.0
    %5806 = vmatprep.subr.mxu0 0.0
    %5807 = vmatpush1.msra.mxu0 0.0
    %5808 = vmatprep.subr.mxu0 0.0
    %5809 = vmatpush1.msra.mxu0 0.0
    %5810 = vmatprep.subr.mxu0 0.0
    %5811 = vmatpush1.msra.mxu0 0.0
    %5812 = vmatprep.subr.mxu0 0.0
    %5813 = vmatpush1.msra.mxu0 0.0
    %5814 = vmatprep.subr.mxu0 0.0
    %5815 = vmatpush1.msra.mxu0 0.0
    %5816 = vmatprep.subr.mxu0 0.0
    %5817 = vmatpush1.msra.mxu0 0.0
    %5818 = vmatprep.subr.mxu0 0.0
    %5819 = vmatpush1.msra.mxu0 0.0
    %5820 = vmatprep.mubr.f32.mxu0 0.0
    %5821 = vmatmul.mubr.f32.gmra.mrb[0].mxu0 %v5754
    %v5822 = vpop.f32.mrb[0].mxu0
    %v5823 = vadd.f32 0.0, %v5822
    %v5824 = vpop.f32.mrb[0].mxu0
    %5825 = vdwg.mxu0
    %5826 = vrot.lane.b32.xlu0 %v3514, 52
    %v5827 = vpop.permute.xlu0 %5826
    %v5830 = vsel %vm1595, %v4950, 0
    %5832 = vmatprep.subr.mxu0 0.0
    %5833 = vmatpush1.msra.mxu0 %v5827
    %5834 = vmatprep.subr.mxu0 0.0
    %5835 = vmatpush1.msra.mxu0 0.0
    %5836 = vmatprep.subr.mxu0 0.0
    %5837 = vmatpush1.msra.mxu0 0.0
    %5838 = vmatprep.subr.mxu0 0.0
    %5839 = vmatpush1.msra.mxu0 0.0
    %5840 = vmatprep.subr.mxu0 0.0
    %5841 = vmatpush1.msra.mxu0 0.0
    %5842 = vmatprep.subr.mxu0 0.0
    %5843 = vmatpush1.msra.mxu0 0.0
    %5844 = vmatprep.subr.mxu0 0.0
    %5845 = vmatpush1.msra.mxu0 0.0
    %5846 = vmatprep.subr.mxu0 0.0
    %5847 = vmatpush1.msra.mxu0 0.0
    %5848 = vmatprep.subr.mxu0 0.0
    %5849 = vmatpush1.msra.mxu0 0.0
    %5850 = vmatprep.subr.mxu0 0.0
    %5851 = vmatpush1.msra.mxu0 0.0
    %5852 = vmatprep.subr.mxu0 0.0
    %5853 = vmatpush1.msra.mxu0 0.0
    %5854 = vmatprep.subr.mxu0 0.0
    %5855 = vmatpush1.msra.mxu0 0.0
    %5856 = vmatprep.subr.mxu0 0.0
    %5857 = vmatpush1.msra.mxu0 0.0
    %5858 = vmatprep.subr.mxu0 0.0
    %5859 = vmatpush1.msra.mxu0 0.0
    %5860 = vmatprep.subr.mxu0 0.0
    %5861 = vmatpush1.msra.mxu0 0.0
    %5862 = vmatprep.subr.mxu0 0.0
    %5863 = vmatpush1.msra.mxu0 0.0
    %5864 = vmatprep.subr.mxu0 0.0
    %5865 = vmatpush1.msra.mxu0 0.0
    %5866 = vmatprep.subr.mxu0 0.0
    %5867 = vmatpush1.msra.mxu0 0.0
    %5868 = vmatprep.subr.mxu0 0.0
    %5869 = vmatpush1.msra.mxu0 0.0
    %5870 = vmatprep.subr.mxu0 0.0
    %5871 = vmatpush1.msra.mxu0 0.0
    %5872 = vmatprep.subr.mxu0 0.0
    %5873 = vmatpush1.msra.mxu0 0.0
    %5874 = vmatprep.subr.mxu0 0.0
    %5875 = vmatpush1.msra.mxu0 0.0
    %5876 = vmatprep.subr.mxu0 0.0
    %5877 = vmatpush1.msra.mxu0 0.0
    %5878 = vmatprep.subr.mxu0 0.0
    %5879 = vmatpush1.msra.mxu0 0.0
    %5880 = vmatprep.subr.mxu0 0.0
    %5881 = vmatpush1.msra.mxu0 0.0
    %5882 = vmatprep.subr.mxu0 0.0
    %5883 = vmatpush1.msra.mxu0 0.0
    %5884 = vmatprep.subr.mxu0 0.0
    %5885 = vmatpush1.msra.mxu0 0.0
    %5886 = vmatprep.subr.mxu0 0.0
    %5887 = vmatpush1.msra.mxu0 0.0
    %5888 = vmatprep.subr.mxu0 0.0
    %5889 = vmatpush1.msra.mxu0 0.0
    %5890 = vmatprep.subr.mxu0 0.0
    %5891 = vmatpush1.msra.mxu0 0.0
    %5892 = vmatprep.subr.mxu0 0.0
    %5893 = vmatpush1.msra.mxu0 0.0
    %5894 = vmatprep.subr.mxu0 0.0
    %5895 = vmatpush1.msra.mxu0 0.0
    %5896 = vmatprep.mubr.f32.mxu0 0.0
    %5897 = vmatmul.mubr.f32.gmra.mrb[0].mxu0 %v5830
    %v5898 = vpop.f32.mrb[0].mxu0
    %v5899 = vadd.f32 0.0, %v5898
    %v5900 = vpop.f32.mrb[0].mxu0
    %5901 = vdwg.mxu0
    %5902 = vrot.lane.b32.xlu0 %v3514, 48
    %v5903 = vpop.permute.xlu0 %5902
    %v5906 = vsel %vm1595, %v4951, 0
    %5908 = vmatprep.subr.mxu0 0.0
    %5909 = vmatpush1.msra.mxu0 %v5903
    %5910 = vmatprep.subr.mxu0 0.0
    %5911 = vmatpush1.msra.mxu0 0.0
    %5912 = vmatprep.subr.mxu0 0.0
    %5913 = vmatpush1.msra.mxu0 0.0
    %5914 = vmatprep.subr.mxu0 0.0
    %5915 = vmatpush1.msra.mxu0 0.0
    %5916 = vmatprep.subr.mxu0 0.0
    %5917 = vmatpush1.msra.mxu0 0.0
    %5918 = vmatprep.subr.mxu0 0.0
    %5919 = vmatpush1.msra.mxu0 0.0
    %5920 = vmatprep.subr.mxu0 0.0
    %5921 = vmatpush1.msra.mxu0 0.0
    %5922 = vmatprep.subr.mxu0 0.0
    %5923 = vmatpush1.msra.mxu0 0.0
    %5924 = vmatprep.subr.mxu0 0.0
    %5925 = vmatpush1.msra.mxu0 0.0
    %5926 = vmatprep.subr.mxu0 0.0
    %5927 = vmatpush1.msra.mxu0 0.0
    %5928 = vmatprep.subr.mxu0 0.0
    %5929 = vmatpush1.msra.mxu0 0.0
    %5930 = vmatprep.subr.mxu0 0.0
    %5931 = vmatpush1.msra.mxu0 0.0
    %5932 = vmatprep.subr.mxu0 0.0
    %5933 = vmatpush1.msra.mxu0 0.0
    %5934 = vmatprep.subr.mxu0 0.0
    %5935 = vmatpush1.msra.mxu0 0.0
    %5936 = vmatprep.subr.mxu0 0.0
    %5937 = vmatpush1.msra.mxu0 0.0
    %5938 = vmatprep.subr.mxu0 0.0
    %5939 = vmatpush1.msra.mxu0 0.0
    %5940 = vmatprep.subr.mxu0 0.0
    %5941 = vmatpush1.msra.mxu0 0.0
    %5942 = vmatprep.subr.mxu0 0.0
    %5943 = vmatpush1.msra.mxu0 0.0
    %5944 = vmatprep.subr.mxu0 0.0
    %5945 = vmatpush1.msra.mxu0 0.0
    %5946 = vmatprep.subr.mxu0 0.0
    %5947 = vmatpush1.msra.mxu0 0.0
    %5948 = vmatprep.subr.mxu0 0.0
    %5949 = vmatpush1.msra.mxu0 0.0
    %5950 = vmatprep.subr.mxu0 0.0
    %5951 = vmatpush1.msra.mxu0 0.0
    %5952 = vmatprep.subr.mxu0 0.0
    %5953 = vmatpush1.msra.mxu0 0.0
    %5954 = vmatprep.subr.mxu0 0.0
    %5955 = vmatpush1.msra.mxu0 0.0
    %5956 = vmatprep.subr.mxu0 0.0
    %5957 = vmatpush1.msra.mxu0 0.0
    %5958 = vmatprep.subr.mxu0 0.0
    %5959 = vmatpush1.msra.mxu0 0.0
    %5960 = vmatprep.subr.mxu0 0.0
    %5961 = vmatpush1.msra.mxu0 0.0
    %5962 = vmatprep.subr.mxu0 0.0
    %5963 = vmatpush1.msra.mxu0 0.0
    %5964 = vmatprep.subr.mxu0 0.0
    %5965 = vmatpush1.msra.mxu0 0.0
    %5966 = vmatprep.subr.mxu0 0.0
    %5967 = vmatpush1.msra.mxu0 0.0
    %5968 = vmatprep.subr.mxu0 0.0
    %5969 = vmatpush1.msra.mxu0 0.0
    %5970 = vmatprep.subr.mxu0 0.0
    %5971 = vmatpush1.msra.mxu0 0.0
    %5972 = vmatprep.mubr.f32.mxu0 0.0
    %5973 = vmatmul.mubr.f32.gmra.mrb[0].mxu0 %v5906
    %v5974 = vpop.f32.mrb[0].mxu0
    %v5975 = vadd.f32 0.0, %v5974
    %v5976 = vpop.f32.mrb[0].mxu0
    %5977 = vdwg.mxu0
    %5978 = vrot.lane.b32.xlu0 %v3514, 44
    %v5979 = vpop.permute.xlu0 %5978
    %v5982 = vsel %vm1595, %v4952, 0
    %5984 = vmatprep.subr.mxu0 0.0
    %5985 = vmatpush1.msra.mxu0 %v5979
    %5986 = vmatprep.subr.mxu0 0.0
    %5987 = vmatpush1.msra.mxu0 0.0
    %5988 = vmatprep.subr.mxu0 0.0
    %5989 = vmatpush1.msra.mxu0 0.0
    %5990 = vmatprep.subr.mxu0 0.0
    %5991 = vmatpush1.msra.mxu0 0.0
    %5992 = vmatprep.subr.mxu0 0.0
    %5993 = vmatpush1.msra.mxu0 0.0
    %5994 = vmatprep.subr.mxu0 0.0
    %5995 = vmatpush1.msra.mxu0 0.0
    %5996 = vmatprep.subr.mxu0 0.0
    %5997 = vmatpush1.msra.mxu0 0.0
    %5998 = vmatprep.subr.mxu0 0.0
    %5999 = vmatpush1.msra.mxu0 0.0
    %6000 = vmatprep.subr.mxu0 0.0
    %6001 = vmatpush1.msra.mxu0 0.0
    %6002 = vmatprep.subr.mxu0 0.0
    %6003 = vmatpush1.msra.mxu0 0.0
    %6004 = vmatprep.subr.mxu0 0.0
    %6005 = vmatpush1.msra.mxu0 0.0
    %6006 = vmatprep.subr.mxu0 0.0
    %6007 = vmatpush1.msra.mxu0 0.0
    %6008 = vmatprep.subr.mxu0 0.0
    %6009 = vmatpush1.msra.mxu0 0.0
    %6010 = vmatprep.subr.mxu0 0.0
    %6011 = vmatpush1.msra.mxu0 0.0
    %6012 = vmatprep.subr.mxu0 0.0
    %6013 = vmatpush1.msra.mxu0 0.0
    %6014 = vmatprep.subr.mxu0 0.0
    %6015 = vmatpush1.msra.mxu0 0.0
    %6016 = vmatprep.subr.mxu0 0.0
    %6017 = vmatpush1.msra.mxu0 0.0
    %6018 = vmatprep.subr.mxu0 0.0
    %6019 = vmatpush1.msra.mxu0 0.0
    %6020 = vmatprep.subr.mxu0 0.0
    %6021 = vmatpush1.msra.mxu0 0.0
    %6022 = vmatprep.subr.mxu0 0.0
    %6023 = vmatpush1.msra.mxu0 0.0
    %6024 = vmatprep.subr.mxu0 0.0
    %6025 = vmatpush1.msra.mxu0 0.0
    %6026 = vmatprep.subr.mxu0 0.0
    %6027 = vmatpush1.msra.mxu0 0.0
    %6028 = vmatprep.subr.mxu0 0.0
    %6029 = vmatpush1.msra.mxu0 0.0
    %6030 = vmatprep.subr.mxu0 0.0
    %6031 = vmatpush1.msra.mxu0 0.0
    %6032 = vmatprep.subr.mxu0 0.0
    %6033 = vmatpush1.msra.mxu0 0.0
    %6034 = vmatprep.subr.mxu0 0.0
    %6035 = vmatpush1.msra.mxu0 0.0
    %6036 = vmatprep.subr.mxu0 0.0
    %6037 = vmatpush1.msra.mxu0 0.0
    %6038 = vmatprep.subr.mxu0 0.0
    %6039 = vmatpush1.msra.mxu0 0.0
    %6040 = vmatprep.subr.mxu0 0.0
    %6041 = vmatpush1.msra.mxu0 0.0
    %6042 = vmatprep.subr.mxu0 0.0
    %6043 = vmatpush1.msra.mxu0 0.0
    %6044 = vmatprep.subr.mxu0 0.0
    %6045 = vmatpush1.msra.mxu0 0.0
    %6046 = vmatprep.subr.mxu0 0.0
    %6047 = vmatpush1.msra.mxu0 0.0
    %6048 = vmatprep.mubr.f32.mxu0 0.0
    %6049 = vmatmul.mubr.f32.gmra.mrb[0].mxu0 %v5982
    %v6050 = vpop.f32.mrb[0].mxu0
    %v6051 = vadd.f32 0.0, %v6050
    %v6052 = vpop.f32.mrb[0].mxu0
    %6053 = vdwg.mxu0
    %6054 = vrot.lane.b32.xlu0 %v3514, 40
    %v6055 = vpop.permute.xlu0 %6054
    %v6058 = vsel %vm1595, %v4953, 0
    %6060 = vmatprep.subr.mxu0 0.0
    %6061 = vmatpush1.msra.mxu0 %v6055
    %6062 = vmatprep.subr.mxu0 0.0
    %6063 = vmatpush1.msra.mxu0 0.0
    %6064 = vmatprep.subr.mxu0 0.0
    %6065 = vmatpush1.msra.mxu0 0.0
    %6066 = vmatprep.subr.mxu0 0.0
    %6067 = vmatpush1.msra.mxu0 0.0
    %6068 = vmatprep.subr.mxu0 0.0
    %6069 = vmatpush1.msra.mxu0 0.0
    %6070 = vmatprep.subr.mxu0 0.0
    %6071 = vmatpush1.msra.mxu0 0.0
    %6072 = vmatprep.subr.mxu0 0.0
    %6073 = vmatpush1.msra.mxu0 0.0
    %6074 = vmatprep.subr.mxu0 0.0
    %6075 = vmatpush1.msra.mxu0 0.0
    %6076 = vmatprep.subr.mxu0 0.0
    %6077 = vmatpush1.msra.mxu0 0.0
    %6078 = vmatprep.subr.mxu0 0.0
    %6079 = vmatpush1.msra.mxu0 0.0
    %6080 = vmatprep.subr.mxu0 0.0
    %6081 = vmatpush1.msra.mxu0 0.0
    %6082 = vmatprep.subr.mxu0 0.0
    %6083 = vmatpush1.msra.mxu0 0.0
    %6084 = vmatprep.subr.mxu0 0.0
    %6085 = vmatpush1.msra.mxu0 0.0
    %6086 = vmatprep.subr.mxu0 0.0
    %6087 = vmatpush1.msra.mxu0 0.0
    %6088 = vmatprep.subr.mxu0 0.0
    %6089 = vmatpush1.msra.mxu0 0.0
    %6090 = vmatprep.subr.mxu0 0.0
    %6091 = vmatpush1.msra.mxu0 0.0
    %6092 = vmatprep.subr.mxu0 0.0
    %6093 = vmatpush1.msra.mxu0 0.0
    %6094 = vmatprep.subr.mxu0 0.0
    %6095 = vmatpush1.msra.mxu0 0.0
    %6096 = vmatprep.subr.mxu0 0.0
    %6097 = vmatpush1.msra.mxu0 0.0
    %6098 = vmatprep.subr.mxu0 0.0
    %6099 = vmatpush1.msra.mxu0 0.0
    %6100 = vmatprep.subr.mxu0 0.0
    %6101 = vmatpush1.msra.mxu0 0.0
    %6102 = vmatprep.subr.mxu0 0.0
    %6103 = vmatpush1.msra.mxu0 0.0
    %6104 = vmatprep.subr.mxu0 0.0
    %6105 = vmatpush1.msra.mxu0 0.0
    %6106 = vmatprep.subr.mxu0 0.0
    %6107 = vmatpush1.msra.mxu0 0.0
    %6108 = vmatprep.subr.mxu0 0.0
    %6109 = vmatpush1.msra.mxu0 0.0
    %6110 = vmatprep.subr.mxu0 0.0
    %6111 = vmatpush1.msra.mxu0 0.0
    %6112 = vmatprep.subr.mxu0 0.0
    %6113 = vmatpush1.msra.mxu0 0.0
    %6114 = vmatprep.subr.mxu0 0.0
    %6115 = vmatpush1.msra.mxu0 0.0
    %6116 = vmatprep.subr.mxu0 0.0
    %6117 = vmatpush1.msra.mxu0 0.0
    %6118 = vmatprep.subr.mxu0 0.0
    %6119 = vmatpush1.msra.mxu0 0.0
    %6120 = vmatprep.subr.mxu0 0.0
    %6121 = vmatpush1.msra.mxu0 0.0
    %6122 = vmatprep.subr.mxu0 0.0
    %6123 = vmatpush1.msra.mxu0 0.0
    %6124 = vmatprep.mubr.f32.mxu0 0.0
    %6125 = vmatmul.mubr.f32.gmra.mrb[0].mxu0 %v6058
    %v6126 = vpop.f32.mrb[0].mxu0
    %v6127 = vadd.f32 0.0, %v6126
    %v6128 = vpop.f32.mrb[0].mxu0
    %6129 = vdwg.mxu0
    %6130 = vrot.lane.b32.xlu0 %v3514, 36
    %v6131 = vpop.permute.xlu0 %6130
    %v6134 = vsel %vm1595, %v4954, 0
    %6136 = vmatprep.subr.mxu0 0.0
    %6137 = vmatpush1.msra.mxu0 %v6131
    %6138 = vmatprep.subr.mxu0 0.0
    %6139 = vmatpush1.msra.mxu0 0.0
    %6140 = vmatprep.subr.mxu0 0.0
    %6141 = vmatpush1.msra.mxu0 0.0
    %6142 = vmatprep.subr.mxu0 0.0
    %6143 = vmatpush1.msra.mxu0 0.0
    %6144 = vmatprep.subr.mxu0 0.0
    %6145 = vmatpush1.msra.mxu0 0.0
    %6146 = vmatprep.subr.mxu0 0.0
    %6147 = vmatpush1.msra.mxu0 0.0
    %6148 = vmatprep.subr.mxu0 0.0
    %6149 = vmatpush1.msra.mxu0 0.0
    %6150 = vmatprep.subr.mxu0 0.0
    %6151 = vmatpush1.msra.mxu0 0.0
    %6152 = vmatprep.subr.mxu0 0.0
    %6153 = vmatpush1.msra.mxu0 0.0
    %6154 = vmatprep.subr.mxu0 0.0
    %6155 = vmatpush1.msra.mxu0 0.0
    %6156 = vmatprep.subr.mxu0 0.0
    %6157 = vmatpush1.msra.mxu0 0.0
    %6158 = vmatprep.subr.mxu0 0.0
    %6159 = vmatpush1.msra.mxu0 0.0
    %6160 = vmatprep.subr.mxu0 0.0
    %6161 = vmatpush1.msra.mxu0 0.0
    %6162 = vmatprep.subr.mxu0 0.0
    %6163 = vmatpush1.msra.mxu0 0.0
    %6164 = vmatprep.subr.mxu0 0.0
    %6165 = vmatpush1.msra.mxu0 0.0
    %6166 = vmatprep.subr.mxu0 0.0
    %6167 = vmatpush1.msra.mxu0 0.0
    %6168 = vmatprep.subr.mxu0 0.0
    %6169 = vmatpush1.msra.mxu0 0.0
    %6170 = vmatprep.subr.mxu0 0.0
    %6171 = vmatpush1.msra.mxu0 0.0
    %6172 = vmatprep.subr.mxu0 0.0
    %6173 = vmatpush1.msra.mxu0 0.0
    %6174 = vmatprep.subr.mxu0 0.0
    %6175 = vmatpush1.msra.mxu0 0.0
    %6176 = vmatprep.subr.mxu0 0.0
    %6177 = vmatpush1.msra.mxu0 0.0
    %6178 = vmatprep.subr.mxu0 0.0
    %6179 = vmatpush1.msra.mxu0 0.0
    %6180 = vmatprep.subr.mxu0 0.0
    %6181 = vmatpush1.msra.mxu0 0.0
    %6182 = vmatprep.subr.mxu0 0.0
    %6183 = vmatpush1.msra.mxu0 0.0
    %6184 = vmatprep.subr.mxu0 0.0
    %6185 = vmatpush1.msra.mxu0 0.0
    %6186 = vmatprep.subr.mxu0 0.0
    %6187 = vmatpush1.msra.mxu0 0.0
    %6188 = vmatprep.subr.mxu0 0.0
    %6189 = vmatpush1.msra.mxu0 0.0
    %6190 = vmatprep.subr.mxu0 0.0
    %6191 = vmatpush1.msra.mxu0 0.0
    %6192 = vmatprep.subr.mxu0 0.0
    %6193 = vmatpush1.msra.mxu0 0.0
    %6194 = vmatprep.subr.mxu0 0.0
    %6195 = vmatpush1.msra.mxu0 0.0
    %6196 = vmatprep.subr.mxu0 0.0
    %6197 = vmatpush1.msra.mxu0 0.0
    %6198 = vmatprep.subr.mxu0 0.0
    %6199 = vmatpush1.msra.mxu0 0.0
    %6200 = vmatprep.mubr.f32.mxu0 0.0
    %6201 = vmatmul.mubr.f32.gmra.mrb[0].mxu0 %v6134
    %v6202 = vpop.f32.mrb[0].mxu0
    %v6203 = vadd.f32 0.0, %v6202
    %v6204 = vpop.f32.mrb[0].mxu0
    %6205 = vdwg.mxu0
    %6207 = vrot.lane.b32.xlu0 %v5747, 4
    %v6208 = vpop.permute.xlu0 %6207
    %6211 = vrot.lane.b32.xlu0 %v5823, 8
    %v6212 = vpop.permute.xlu0 %6211
    %6215 = vrot.lane.b32.xlu0 %v5899, 12
    %v6216 = vpop.permute.xlu0 %6215
    %6219 = vrot.lane.b32.xlu0 %v5975, 16
    %v6220 = vpop.permute.xlu0 %6219
    %6223 = vrot.lane.b32.xlu0 %v6051, 20
    %v6224 = vpop.permute.xlu0 %6223
    %6227 = vrot.lane.b32.xlu0 %v6127, 24
    %v6228 = vpop.permute.xlu0 %6227
    %6231 = vrot.lane.b32.xlu0 %v6203, 28
    %v6232 = vpop.permute.xlu0 %6231
    %v6234 = vsel %vm335, %v5671, %v6208
    %v6235 = vsel %vm1595, %v6234, %v6212
    %v6236 = vsel %vm2410, %v6235, %v6216
    %v6237 = vsel %vm2412, %v6236, %v6220
    %v6238 = vsel %vm2414, %v6237, %v6224
    %v6239 = vsel %vm2416, %v6238, %v6228
    %v6240 = vsel %vm2418, %v6239, %v6232
    %v6241 = vlaneseq
    %v6242 = vshrl.u32 %v6241, 7
    %v6243 = vsub.s32 0, %v6242
    %v6244 = vrot.slane %v3425, %v6243
    %v6246 = vsel %vm48, %v5597, 0
    %v6249 = vsel %vm48, %v6240, 0
    %6251 = vmatprep.subr.mxu0 0.0
    %6252 = vmatpush1.msra.mxu0 %v3407
    %6253 = vmatprep.subr.mxu0 0.0
    %6254 = vmatpush1.msra.mxu0 %v3408
    %6255 = vmatprep.subr.mxu0 0.0
    %6256 = vmatpush1.msra.mxu0 %v3409
    %6257 = vmatprep.subr.mxu0 0.0
    %6258 = vmatpush1.msra.mxu0 %v3410
    %6259 = vmatprep.subr.mxu0 0.0
    %6260 = vmatpush1.msra.mxu0 0.0
    %6261 = vmatprep.subr.mxu0 0.0
    %6262 = vmatpush1.msra.mxu0 0.0
    %6263 = vmatprep.subr.mxu0 0.0
    %6264 = vmatpush1.msra.mxu0 0.0
    %6265 = vmatprep.subr.mxu0 0.0
    %6266 = vmatpush1.msra.mxu0 0.0
    %6267 = vmatprep.subr.mxu0 0.0
    %6268 = vmatpush1.msra.mxu0 0.0
    %6269 = vmatprep.subr.mxu0 0.0
    %6270 = vmatpush1.msra.mxu0 0.0
    %6271 = vmatprep.subr.mxu0 0.0
    %6272 = vmatpush1.msra.mxu0 0.0
    %6273 = vmatprep.subr.mxu0 0.0
    %6274 = vmatpush1.msra.mxu0 0.0
    %6275 = vmatprep.subr.mxu0 0.0
    %6276 = vmatpush1.msra.mxu0 0.0
    %6277 = vmatprep.subr.mxu0 0.0
    %6278 = vmatpush1.msra.mxu0 0.0
    %6279 = vmatprep.subr.mxu0 0.0
    %6280 = vmatpush1.msra.mxu0 0.0
    %6281 = vmatprep.subr.mxu0 0.0
    %6282 = vmatpush1.msra.mxu0 0.0
    %6283 = vmatprep.subr.mxu0 0.0
    %6284 = vmatpush1.msra.mxu0 0.0
    %6285 = vmatprep.subr.mxu0 0.0
    %6286 = vmatpush1.msra.mxu0 0.0
    %6287 = vmatprep.subr.mxu0 0.0
    %6288 = vmatpush1.msra.mxu0 0.0
    %6289 = vmatprep.subr.mxu0 0.0
    %6290 = vmatpush1.msra.mxu0 0.0
    %6291 = vmatprep.subr.mxu0 0.0
    %6292 = vmatpush1.msra.mxu0 0.0
    %6293 = vmatprep.subr.mxu0 0.0
    %6294 = vmatpush1.msra.mxu0 0.0
    %6295 = vmatprep.subr.mxu0 0.0
    %6296 = vmatpush1.msra.mxu0 0.0
    %6297 = vmatprep.subr.mxu0 0.0
    %6298 = vmatpush1.msra.mxu0 0.0
    %6299 = vmatprep.subr.mxu0 0.0
    %6300 = vmatpush1.msra.mxu0 0.0
    %6301 = vmatprep.subr.mxu0 0.0
    %6302 = vmatpush1.msra.mxu0 0.0
    %6303 = vmatprep.subr.mxu0 0.0
    %6304 = vmatpush1.msra.mxu0 0.0
    %6305 = vmatprep.subr.mxu0 0.0
    %6306 = vmatpush1.msra.mxu0 0.0
    %6307 = vmatprep.subr.mxu0 0.0
    %6308 = vmatpush1.msra.mxu0 0.0
    %6309 = vmatprep.subr.mxu0 0.0
    %6310 = vmatpush1.msra.mxu0 0.0
    %6311 = vmatprep.subr.mxu0 0.0
    %6312 = vmatpush1.msra.mxu0 0.0
    %6313 = vmatprep.subr.mxu0 0.0
    %6314 = vmatpush1.msra.mxu0 0.0
    %6315 = vmatprep.mubr.f32.mxu0 0.0
    %6316 = vmatmul.mubr.f32.gmra.mrb[0].mxu0 %v6246
    %v6317 = vpop.f32.mrb[0].mxu0
    %v6318 = vadd.f32 %v6244, %v6317
    %v6319 = vpop.f32.mrb[0].mxu0
    %6320 = vmatprep.mubr.f32.mxu0 0.0
    %6321 = vmatmul.mubr.f32.gmra.mrb[0].mxu0 %v6249
    %v6322 = vpop.f32.mrb[0].mxu0
    %v6323 = vadd.f32 %v6244, %v6322
    %v6324 = vpop.f32.mrb[0].mxu0
    %6325 = vdwg.mxu0
    %v6326 = vadd.f32 %v3400, %v6318
    %v6327 = vadd.f32 %v3401, %v6323
    %v6328 = vsel %vm48, %v6326, 0.0
    %6329 = vadd.xlane.f32.xlu0 %v6328
    %v6330 = vpop.xlane.xlu0 %6329
    %v6331 = vsel %vm48, %v6327, 0.0
    %6332 = vadd.xlane.f32.xlu0 %v6331
    %v6333 = vpop.xlane.xlu0 %6332
    %v6334 = vmul.f32 %v6330, %v3156
    %v6335 = vmul.f32 %v6333, %v3156
    %v6336 = vsub.f32 %v6326, %v6334
    %v6337 = vsub.f32 %v6327, %v6335
    %v6338 = vmul.f32 %v6336, %v6336
    %v6339 = vmul.f32 %v6337, %v6337
    %v6340 = vsel %vm48, %v6338, 0.0
    %6341 = vadd.xlane.f32.xlu0 %v6340
    %v6342 = vpop.xlane.xlu0 %6341
    %v6343 = vsel %vm48, %v6339, 0.0
    %6344 = vadd.xlane.f32.xlu0 %v6343
    %v6345 = vpop.xlane.xlu0 %6344
    %v6346 = vmul.f32 %v6342, %v3156
    %v6347 = vmul.f32 %v6345, %v3156
    %v6348 = vadd.f32 %v6346, 1e-05
    %v6349 = vadd.f32 %v6347, 1e-05
    %v6350 = vrsqrt.pop %v6348
    %v6351 = vrsqrt.pop %v6349
    %v6352 = vmul.f32 %v6336, %v6350
    %v6353 = vmul.f32 %v6337, %v6351
    %v6354 = vlaneseq
    %v6355 = vshrl.u32 %v6354, 7
    %v6356 = vsub.s32 0, %v6355
    %v6357 = vrot.slane %v3426, %v6356
    %v6358 = vmul.f32 %v6352, %v6357
    %v6359 = vmul.f32 %v6353, %v6357
    %v6360 = vlaneseq
    %v6361 = vshrl.u32 %v6360, 7
    %v6362 = vsub.s32 0, %v6361
    %v6363 = vrot.slane %v3427, %v6362
    %v6364 = vadd.f32 %v6358, %v6363
    %v6365 = vadd.f32 %v6359, %v6363
    %v6366 = vlaneseq
    %v6367 = vshrl.u32 %v6366, 7
    %v6368 = vsub.s32 0, %v6367
    %v6369 = vrot.slane %v3430, %v6368
    %v6371 = vsel %vm48, %v6364, 0
    %v6374 = vsel %vm48, %v6365, 0
    %6376 = vmatprep.subr.mxu0 0.0
    %6377 = vmatpush1.msra.mxu0 %v3411
    %6378 = vmatprep.subr.mxu0 0.0
    %6379 = vmatpush1.msra.mxu0 %v3412
    %6380 = vmatprep.subr.mxu0 0.0
    %6381 = vmatpush1.msra.mxu0 %v3413
    %6382 = vmatprep.subr.mxu0 0.0
    %6383 = vmatpush1.msra.mxu0 %v3414
    %6384 = vmatprep.subr.mxu0 0.0
    %6385 = vmatpush1.msra.mxu0 0.0
    %6386 = vmatprep.subr.mxu0 0.0
    %6387 = vmatpush1.msra.mxu0 0.0
    %6388 = vmatprep.subr.mxu0 0.0
    %6389 = vmatpush1.msra.mxu0 0.0
    %6390 = vmatprep.subr.mxu0 0.0
    %6391 = vmatpush1.msra.mxu0 0.0
    %6392 = vmatprep.subr.mxu0 0.0
    %6393 = vmatpush1.msra.mxu0 0.0
    %6394 = vmatprep.subr.mxu0 0.0
    %6395 = vmatpush1.msra.mxu0 0.0
    %6396 = vmatprep.subr.mxu0 0.0
    %6397 = vmatpush1.msra.mxu0 0.0
    %6398 = vmatprep.subr.mxu0 0.0
    %6399 = vmatpush1.msra.mxu0 0.0
    %6400 = vmatprep.subr.mxu0 0.0
    %6401 = vmatpush1.msra.mxu0 0.0
    %6402 = vmatprep.subr.mxu0 0.0
    %6403 = vmatpush1.msra.mxu0 0.0
    %6404 = vmatprep.subr.mxu0 0.0
    %6405 = vmatpush1.msra.mxu0 0.0
    %6406 = vmatprep.subr.mxu0 0.0
    %6407 = vmatpush1.msra.mxu0 0.0
    %6408 = vmatprep.subr.mxu0 0.0
    %6409 = vmatpush1.msra.mxu0 0.0
    %6410 = vmatprep.subr.mxu0 0.0
    %6411 = vmatpush1.msra.mxu0 0.0
    %6412 = vmatprep.subr.mxu0 0.0
    %6413 = vmatpush1.msra.mxu0 0.0
    %6414 = vmatprep.subr.mxu0 0.0
    %6415 = vmatpush1.msra.mxu0 0.0
    %6416 = vmatprep.subr.mxu0 0.0
    %6417 = vmatpush1.msra.mxu0 0.0
    %6418 = vmatprep.subr.mxu0 0.0
    %6419 = vmatpush1.msra.mxu0 0.0
    %6420 = vmatprep.subr.mxu0 0.0
    %6421 = vmatpush1.msra.mxu0 0.0
    %6422 = vmatprep.subr.mxu0 0.0
    %6423 = vmatpush1.msra.mxu0 0.0
    %6424 = vmatprep.subr.mxu0 0.0
    %6425 = vmatpush1.msra.mxu0 0.0
    %6426 = vmatprep.subr.mxu0 0.0
    %6427 = vmatpush1.msra.mxu0 0.0
    %6428 = vmatprep.subr.mxu0 0.0
    %6429 = vmatpush1.msra.mxu0 0.0
    %6430 = vmatprep.subr.mxu0 0.0
    %6431 = vmatpush1.msra.mxu0 0.0
    %6432 = vmatprep.subr.mxu0 0.0
    %6433 = vmatpush1.msra.mxu0 0.0
    %6434 = vmatprep.subr.mxu0 0.0
    %6435 = vmatpush1.msra.mxu0 0.0
    %6436 = vmatprep.subr.mxu0 0.0
    %6437 = vmatpush1.msra.mxu0 0.0
    %6438 = vmatprep.subr.mxu0 0.0
    %6439 = vmatpush1.msra.mxu0 0.0
    %6440 = vmatprep.mubr.f32.mxu0 0.0
    %6441 = vmatmul.mubr.f32.gmra.mrb[0].mxu0 %v6371
    %v6442 = vpop.f32.mrb[0].mxu0
    %v6443 = vadd.f32 %v6369, %v6442
    %v6444 = vpop.f32.mrb[0].mxu0
    %6445 = vmatprep.mubr.f32.mxu0 0.0
    %6446 = vmatmul.mubr.f32.gmra.mrb[0].mxu0 %v6374
    %v6447 = vpop.f32.mrb[0].mxu0
    %v6448 = vadd.f32 %v6369, %v6447
    %v6449 = vpop.f32.mrb[0].mxu0
    %6450 = vdwg.mxu0
    %v6451 = vmax.f32 %v6443, 0.0
    %v6452 = vmax.f32 %v6448, 0.0
    %v6453 = vlaneseq
    %v6454 = vshrl.u32 %v6453, 7
    %v6455 = vsub.s32 0, %v6454
    %v6456 = vrot.slane %v3431, %v6455
    %v6458 = vsel %vm3280, %v6451, 0
    %v6461 = vsel %vm3280, %v6452, 0
    %6463 = vmatprep.subr.mxu0 0.0
    %6464 = vmatpush1.msra.mxu0 %v3415
    %6465 = vmatprep.subr.mxu0 0.0
    %6466 = vmatpush1.msra.mxu0 %v3416
    %6467 = vmatprep.subr.mxu0 0.0
    %6468 = vmatpush1.msra.mxu0 %v3417
    %6469 = vmatprep.subr.mxu0 0.0
    %6470 = vmatpush1.msra.mxu0 %v3418
    %6471 = vmatprep.subr.mxu0 0.0
    %6472 = vmatpush1.msra.mxu0 %v3419
    %6473 = vmatprep.subr.mxu0 0.0
    %6474 = vmatpush1.msra.mxu0 %v3420
    %6475 = vmatprep.subr.mxu0 0.0
    %6476 = vmatpush1.msra.mxu0 %v3421
    %6477 = vmatprep.subr.mxu0 0.0
    %6478 = vmatpush1.msra.mxu0 %v3422
    %6479 = vmatprep.subr.mxu0 0.0
    %6480 = vmatpush1.msra.mxu0 0.0
    %6481 = vmatprep.subr.mxu0 0.0
    %6482 = vmatpush1.msra.mxu0 0.0
    %6483 = vmatprep.subr.mxu0 0.0
    %6484 = vmatpush1.msra.mxu0 0.0
    %6485 = vmatprep.subr.mxu0 0.0
    %6486 = vmatpush1.msra.mxu0 0.0
    %6487 = vmatprep.subr.mxu0 0.0
    %6488 = vmatpush1.msra.mxu0 0.0
    %6489 = vmatprep.subr.mxu0 0.0
    %6490 = vmatpush1.msra.mxu0 0.0
    %6491 = vmatprep.subr.mxu0 0.0
    %6492 = vmatpush1.msra.mxu0 0.0
    %6493 = vmatprep.subr.mxu0 0.0
    %6494 = vmatpush1.msra.mxu0 0.0
    %6495 = vmatprep.subr.mxu0 0.0
    %6496 = vmatpush1.msra.mxu0 0.0
    %6497 = vmatprep.subr.mxu0 0.0
    %6498 = vmatpush1.msra.mxu0 0.0
    %6499 = vmatprep.subr.mxu0 0.0
    %6500 = vmatpush1.msra.mxu0 0.0
    %6501 = vmatprep.subr.mxu0 0.0
    %6502 = vmatpush1.msra.mxu0 0.0
    %6503 = vmatprep.subr.mxu0 0.0
    %6504 = vmatpush1.msra.mxu0 0.0
    %6505 = vmatprep.subr.mxu0 0.0
    %6506 = vmatpush1.msra.mxu0 0.0
    %6507 = vmatprep.subr.mxu0 0.0
    %6508 = vmatpush1.msra.mxu0 0.0
    %6509 = vmatprep.subr.mxu0 0.0
    %6510 = vmatpush1.msra.mxu0 0.0
    %6511 = vmatprep.subr.mxu0 0.0
    %6512 = vmatpush1.msra.mxu0 0.0
    %6513 = vmatprep.subr.mxu0 0.0
    %6514 = vmatpush1.msra.mxu0 0.0
    %6515 = vmatprep.subr.mxu0 0.0
    %6516 = vmatpush1.msra.mxu0 0.0
    %6517 = vmatprep.subr.mxu0 0.0
    %6518 = vmatpush1.msra.mxu0 0.0
    %6519 = vmatprep.subr.mxu0 0.0
    %6520 = vmatpush1.msra.mxu0 0.0
    %6521 = vmatprep.subr.mxu0 0.0
    %6522 = vmatpush1.msra.mxu0 0.0
    %6523 = vmatprep.subr.mxu0 0.0
    %6524 = vmatpush1.msra.mxu0 0.0
    %6525 = vmatprep.subr.mxu0 0.0
    %6526 = vmatpush1.msra.mxu0 0.0
    %6527 = vmatprep.mubr.f32.mxu0 0.0
    %6528 = vmatmul.mubr.f32.gmra.mrb[0].mxu0 %v6458
    %v6529 = vpop.f32.mrb[0].mxu0
    %v6530 = vadd.f32 %v6456, %v6529
    %v6531 = vpop.f32.mrb[0].mxu0
    %6532 = vmatprep.mubr.f32.mxu0 0.0
    %6533 = vmatmul.mubr.f32.gmra.mrb[0].mxu0 %v6461
    %v6534 = vpop.f32.mrb[0].mxu0
    %v6535 = vadd.f32 %v6456, %v6534
    %v6536 = vpop.f32.mrb[0].mxu0
    %6537 = vdwg.mxu0
    %v6538 = vadd.f32 %v6364, %v6530
    %v6539 = vadd.f32 %v6365, %v6535
    %v6540 = vsel %vm48, %v6538, 0.0
    %6541 = vadd.xlane.f32.xlu0 %v6540
    %v6542 = vpop.xlane.xlu0 %6541
    %v6543 = vsel %vm48, %v6539, 0.0
    %6544 = vadd.xlane.f32.xlu0 %v6543
    %v6545 = vpop.xlane.xlu0 %6544
    %v6546 = vmul.f32 %v6542, %v3156
    %v6547 = vmul.f32 %v6545, %v3156
    %v6548 = vsub.f32 %v6538, %v6546
    %v6549 = vsub.f32 %v6539, %v6547
    %v6550 = vmul.f32 %v6548, %v6548
    %v6551 = vmul.f32 %v6549, %v6549
    %v6552 = vsel %vm48, %v6550, 0.0
    %6553 = vadd.xlane.f32.xlu0 %v6552
    %v6554 = vpop.xlane.xlu0 %6553
    %v6555 = vsel %vm48, %v6551, 0.0
    %6556 = vadd.xlane.f32.xlu0 %v6555
    %v6557 = vpop.xlane.xlu0 %6556
    %v6558 = vmul.f32 %v6554, %v3156
    %v6559 = vmul.f32 %v6557, %v3156
    %v6560 = vadd.f32 %v6558, 1e-05
    %v6561 = vadd.f32 %v6559, 1e-05
    %v6562 = vrsqrt.pop %v6560
    %v6563 = vrsqrt.pop %v6561
    %v6564 = vmul.f32 %v6548, %v6562
    %v6565 = vmul.f32 %v6549, %v6563
    %v6566 = vlaneseq
    %v6567 = vshrl.u32 %v6566, 7
    %v6568 = vsub.s32 0, %v6567
    %v6569 = vrot.slane %v3428, %v6568
    %v6570 = vmul.f32 %v6564, %v6569
    %v6571 = vmul.f32 %v6565, %v6569
    %v6572 = vlaneseq
    %v6573 = vshrl.u32 %v6572, 7
    %v6574 = vsub.s32 0, %v6573
    %v6575 = vrot.slane %v3429, %v6574
    %v6576 = vadd.f32 %v6570, %v6575
    %v6577 = vadd.f32 %v6571, %v6575
    %s6578 = scalar_lea.vmem [#allocation2], 320
    %v6579 = vld [vmem:[%s6578] sm:$0xff]
    %v6580 = vld [vmem:[%s6578 + $0x8] sm:$0xff]
    %v6581 = vld [vmem:[%s6578 + $0x10] sm:$0xff]
    %v6582 = vld [vmem:[%s6578 + $0x18] sm:$0xff]
    %v6583 = vld [vmem:[%s6578 + $0x20] sm:$0xff]
    %v6584 = vld [vmem:[%s6578 + $0x28] sm:$0xff]
    %v6585 = vld [vmem:[%s6578 + $0x30] sm:$0xff]
    %v6586 = vld [vmem:[%s6578 + $0x38] sm:$0xff]
    %v6587 = vld [vmem:[%s6578 + $0x40] sm:$0xff]
    %v6588 = vld [vmem:[%s6578 + $0x48] sm:$0xff]
    %v6589 = vld [vmem:[%s6578 + $0x50] sm:$0xff]
    %v6590 = vld [vmem:[%s6578 + $0x58] sm:$0xff]
    %v6591 = vld [vmem:[%s6578 + $0x60] sm:$0xff]
    %v6592 = vld [vmem:[%s6578 + $0x68] sm:$0xff]
    %v6593 = vld [vmem:[%s6578 + $0x70] sm:$0xff]
    %v6594 = vld [vmem:[%s6578 + $0x78] sm:$0xff]
    %v6595 = vld [vmem:[%s6578 + $0x80] sm:$0xff]
    %v6596 = vld [vmem:[%s6578 + $0x88] sm:$0xff]
    %v6597 = vld [vmem:[%s6578 + $0x90] sm:$0xff]
    %v6598 = vld [vmem:[%s6578 + $0x98] sm:$0xff]
    %s6599 = scalar_lea.vmem %s3, 16
    %v6600 = vld [vmem:[%s6599] sm:$0x1]
    %v6601 = vld [vmem:[%s6599 + $0x1] sm:$0x1]
    %v6602 = vld [vmem:[%s6599 + $0x2] sm:$0x1]
    %v6603 = vld [vmem:[%s6599 + $0x3] sm:$0x1]
    %v6604 = vld [vmem:[%s6599 + $0x4] sm:$0x1]
    %v6605 = vld [vmem:[%s6599 + $0x5] sm:$0x1]
    %v6606 = vld [vmem:[%s6599 + $0x6] sm:$0x1]
    %v6607 = vld [vmem:[%s6599 + $0x7] sm:$0x1]
    %v6608 = vlaneseq
    %v6609 = vshrl.u32 %v6608, 7
    %v6610 = vsub.s32 0, %v6609
    %v6611 = vrot.slane %v6600, %v6610
    %v6613 = vsel %vm48, %v6576, 0
    %v6616 = vsel %vm48, %v6577, 0
    %6618 = vmatprep.subr.mxu0 0.0
    %6619 = vmatpush1.msra.mxu0 %v6579
    %6620 = vmatprep.subr.mxu0 0.0
    %6621 = vmatpush1.msra.mxu0 %v6580
    %6622 = vmatprep.subr.mxu0 0.0
    %6623 = vmatpush1.msra.mxu0 %v6581
    %6624 = vmatprep.subr.mxu0 0.0
    %6625 = vmatpush1.msra.mxu0 %v6582
    %6626 = vmatprep.subr.mxu0 0.0
    %6627 = vmatpush1.msra.mxu0 0.0
    %6628 = vmatprep.subr.mxu0 0.0
    %6629 = vmatpush1.msra.mxu0 0.0
    %6630 = vmatprep.subr.mxu0 0.0
    %6631 = vmatpush1.msra.mxu0 0.0
    %6632 = vmatprep.subr.mxu0 0.0
    %6633 = vmatpush1.msra.mxu0 0.0
    %6634 = vmatprep.subr.mxu0 0.0
    %6635 = vmatpush1.msra.mxu0 0.0
    %6636 = vmatprep.subr.mxu0 0.0
    %6637 = vmatpush1.msra.mxu0 0.0
    %6638 = vmatprep.subr.mxu0 0.0
    %6639 = vmatpush1.msra.mxu0 0.0
    %6640 = vmatprep.subr.mxu0 0.0
    %6641 = vmatpush1.msra.mxu0 0.0
    %6642 = vmatprep.subr.mxu0 0.0
    %6643 = vmatpush1.msra.mxu0 0.0
    %6644 = vmatprep.subr.mxu0 0.0
    %6645 = vmatpush1.msra.mxu0 0.0
    %6646 = vmatprep.subr.mxu0 0.0
    %6647 = vmatpush1.msra.mxu0 0.0
    %6648 = vmatprep.subr.mxu0 0.0
    %6649 = vmatpush1.msra.mxu0 0.0
    %6650 = vmatprep.subr.mxu0 0.0
    %6651 = vmatpush1.msra.mxu0 0.0
    %6652 = vmatprep.subr.mxu0 0.0
    %6653 = vmatpush1.msra.mxu0 0.0
    %6654 = vmatprep.subr.mxu0 0.0
    %6655 = vmatpush1.msra.mxu0 0.0
    %6656 = vmatprep.subr.mxu0 0.0
    %6657 = vmatpush1.msra.mxu0 0.0
    %6658 = vmatprep.subr.mxu0 0.0
    %6659 = vmatpush1.msra.mxu0 0.0
    %6660 = vmatprep.subr.mxu0 0.0
    %6661 = vmatpush1.msra.mxu0 0.0
    %6662 = vmatprep.subr.mxu0 0.0
    %6663 = vmatpush1.msra.mxu0 0.0
    %6664 = vmatprep.subr.mxu0 0.0
    %6665 = vmatpush1.msra.mxu0 0.0
    %6666 = vmatprep.subr.mxu0 0.0
    %6667 = vmatpush1.msra.mxu0 0.0
    %6668 = vmatprep.subr.mxu0 0.0
    %6669 = vmatpush1.msra.mxu0 0.0
    %6670 = vmatprep.subr.mxu0 0.0
    %6671 = vmatpush1.msra.mxu0 0.0
    %6672 = vmatprep.subr.mxu0 0.0
    %6673 = vmatpush1.msra.mxu0 0.0
    %6674 = vmatprep.subr.mxu0 0.0
    %6675 = vmatpush1.msra.mxu0 0.0
    %6676 = vmatprep.subr.mxu0 0.0
    %6677 = vmatpush1.msra.mxu0 0.0
    %6678 = vmatprep.subr.mxu0 0.0
    %6679 = vmatpush1.msra.mxu0 0.0
    %6680 = vmatprep.subr.mxu0 0.0
    %6681 = vmatpush1.msra.mxu0 0.0
    %6682 = vmatprep.mubr.f32.mxu0 0.0
    %6683 = vmatmul.mubr.f32.gmra.mrb[0].mxu0 %v6613
    %v6684 = vpop.f32.mrb[0].mxu0
    %v6685 = vadd.f32 %v6611, %v6684
    %v6686 = vpop.f32.mrb[0].mxu0
    %6687 = vmatprep.mubr.f32.mxu0 0.0
    %6688 = vmatmul.mubr.f32.gmra.mrb[0].mxu0 %v6616
    %v6689 = vpop.f32.mrb[0].mxu0
    %v6690 = vadd.f32 %v6611, %v6689
    %v6691 = vpop.f32.mrb[0].mxu0
    %6692 = vdwg.mxu0
    %6694 = vrot.lane.b32.xlu0 %v6685, 96
    %v6695 = vpop.permute.xlu0 %6694
    %v6696 = vsel %vm335, %v6685, 0
    %v6698 = vsel %vm335, %v6695, 0
    %6700 = vmatprep.subr.mxu0 0.0
    %6701 = vmatpush1.xpose.msra.mxu0 %v6698
    %6702 = vmatprep.subr.mxu0 0.0
    %6703 = vmatpush1.xpose.msra.mxu0 0.0
    %6704 = vmatprep.subr.mxu0 0.0
    %6705 = vmatpush1.xpose.msra.mxu0 0.0
    %6706 = vmatprep.subr.mxu0 0.0
    %6707 = vmatpush1.xpose.msra.mxu0 0.0
    %6708 = vmatprep.subr.mxu0 0.0
    %6709 = vmatpush1.xpose.msra.mxu0 0.0
    %6710 = vmatprep.subr.mxu0 0.0
    %6711 = vmatpush1.xpose.msra.mxu0 0.0
    %6712 = vmatprep.subr.mxu0 0.0
    %6713 = vmatpush1.xpose.msra.mxu0 0.0
    %6714 = vmatprep.subr.mxu0 0.0
    %6715 = vmatpush1.xpose.msra.mxu0 0.0
    %6716 = vmatprep.subr.mxu0 0.0
    %6717 = vmatpush1.xpose.msra.mxu0 0.0
    %6718 = vmatprep.subr.mxu0 0.0
    %6719 = vmatpush1.xpose.msra.mxu0 0.0
    %6720 = vmatprep.subr.mxu0 0.0
    %6721 = vmatpush1.xpose.msra.mxu0 0.0
    %6722 = vmatprep.subr.mxu0 0.0
    %6723 = vmatpush1.xpose.msra.mxu0 0.0
    %6724 = vmatprep.subr.mxu0 0.0
    %6725 = vmatpush1.xpose.msra.mxu0 0.0
    %6726 = vmatprep.subr.mxu0 0.0
    %6727 = vmatpush1.xpose.msra.mxu0 0.0
    %6728 = vmatprep.subr.mxu0 0.0
    %6729 = vmatpush1.xpose.msra.mxu0 0.0
    %6730 = vmatprep.subr.mxu0 0.0
    %6731 = vmatpush1.xpose.msra.mxu0 0.0
    %6732 = vmatprep.subr.mxu0 0.0
    %6733 = vmatpush1.xpose.msra.mxu0 0.0
    %6734 = vmatprep.subr.mxu0 0.0
    %6735 = vmatpush1.xpose.msra.mxu0 0.0
    %6736 = vmatprep.subr.mxu0 0.0
    %6737 = vmatpush1.xpose.msra.mxu0 0.0
    %6738 = vmatprep.subr.mxu0 0.0
    %6739 = vmatpush1.xpose.msra.mxu0 0.0
    %6740 = vmatprep.subr.mxu0 0.0
    %6741 = vmatpush1.xpose.msra.mxu0 0.0
    %6742 = vmatprep.subr.mxu0 0.0
    %6743 = vmatpush1.xpose.msra.mxu0 0.0
    %6744 = vmatprep.subr.mxu0 0.0
    %6745 = vmatpush1.xpose.msra.mxu0 0.0
    %6746 = vmatprep.subr.mxu0 0.0
    %6747 = vmatpush1.xpose.msra.mxu0 0.0
    %6748 = vmatprep.subr.mxu0 0.0
    %6749 = vmatpush1.xpose.msra.mxu0 0.0
    %6750 = vmatprep.subr.mxu0 0.0
    %6751 = vmatpush1.xpose.msra.mxu0 0.0
    %6752 = vmatprep.subr.mxu0 0.0
    %6753 = vmatpush1.xpose.msra.mxu0 0.0
    %6754 = vmatprep.subr.mxu0 0.0
    %6755 = vmatpush1.xpose.msra.mxu0 0.0
    %6756 = vmatprep.subr.mxu0 0.0
    %6757 = vmatpush1.xpose.msra.mxu0 0.0
    %6758 = vmatprep.subr.mxu0 0.0
    %6759 = vmatpush1.xpose.msra.mxu0 0.0
    %6760 = vmatprep.subr.mxu0 0.0
    %6761 = vmatpush1.xpose.msra.mxu0 0.0
    %6762 = vmatprep.subr.mxu0 0.0
    %6763 = vmatpush1.xpose.msra.mxu0 0.0
    %6764 = vmatprep.mubr.f32.mxu0 0.0
    %6765 = vmatmul.mubr.f32.gmra.mrb[0].mxu0 %v6696
    %v6766 = vpop.f32.mrb[0].mxu0
    %v6767 = vadd.f32 0.0, %v6766
    %v6768 = vpop.f32.mrb[0].mxu0
    %6769 = vdwg.mxu0
    %6770 = vrot.lane.b32.xlu0 %v6685, 124
    %v6771 = vpop.permute.xlu0 %6770
    %6772 = vrot.lane.b32.xlu0 %v6685, 92
    %v6773 = vpop.permute.xlu0 %6772
    %v6774 = vsel %vm335, %v6771, 0
    %v6776 = vsel %vm335, %v6773, 0
    %6778 = vmatprep.subr.mxu0 0.0
    %6779 = vmatpush1.xpose.msra.mxu0 %v6776
    %6780 = vmatprep.subr.mxu0 0.0
    %6781 = vmatpush1.xpose.msra.mxu0 0.0
    %6782 = vmatprep.subr.mxu0 0.0
    %6783 = vmatpush1.xpose.msra.mxu0 0.0
    %6784 = vmatprep.subr.mxu0 0.0
    %6785 = vmatpush1.xpose.msra.mxu0 0.0
    %6786 = vmatprep.subr.mxu0 0.0
    %6787 = vmatpush1.xpose.msra.mxu0 0.0
    %6788 = vmatprep.subr.mxu0 0.0
    %6789 = vmatpush1.xpose.msra.mxu0 0.0
    %6790 = vmatprep.subr.mxu0 0.0
    %6791 = vmatpush1.xpose.msra.mxu0 0.0
    %6792 = vmatprep.subr.mxu0 0.0
    %6793 = vmatpush1.xpose.msra.mxu0 0.0
    %6794 = vmatprep.subr.mxu0 0.0
    %6795 = vmatpush1.xpose.msra.mxu0 0.0
    %6796 = vmatprep.subr.mxu0 0.0
    %6797 = vmatpush1.xpose.msra.mxu0 0.0
    %6798 = vmatprep.subr.mxu0 0.0
    %6799 = vmatpush1.xpose.msra.mxu0 0.0
    %6800 = vmatprep.subr.mxu0 0.0
    %6801 = vmatpush1.xpose.msra.mxu0 0.0
    %6802 = vmatprep.subr.mxu0 0.0
    %6803 = vmatpush1.xpose.msra.mxu0 0.0
    %6804 = vmatprep.subr.mxu0 0.0
    %6805 = vmatpush1.xpose.msra.mxu0 0.0
    %6806 = vmatprep.subr.mxu0 0.0
    %6807 = vmatpush1.xpose.msra.mxu0 0.0
    %6808 = vmatprep.subr.mxu0 0.0
    %6809 = vmatpush1.xpose.msra.mxu0 0.0
    %6810 = vmatprep.subr.mxu0 0.0
    %6811 = vmatpush1.xpose.msra.mxu0 0.0
    %6812 = vmatprep.subr.mxu0 0.0
    %6813 = vmatpush1.xpose.msra.mxu0 0.0
    %6814 = vmatprep.subr.mxu0 0.0
    %6815 = vmatpush1.xpose.msra.mxu0 0.0
    %6816 = vmatprep.subr.mxu0 0.0
    %6817 = vmatpush1.xpose.msra.mxu0 0.0
    %6818 = vmatprep.subr.mxu0 0.0
    %6819 = vmatpush1.xpose.msra.mxu0 0.0
    %6820 = vmatprep.subr.mxu0 0.0
    %6821 = vmatpush1.xpose.msra.mxu0 0.0
    %6822 = vmatprep.subr.mxu0 0.0
    %6823 = vmatpush1.xpose.msra.mxu0 0.0
    %6824 = vmatprep.subr.mxu0 0.0
    %6825 = vmatpush1.xpose.msra.mxu0 0.0
    %6826 = vmatprep.subr.mxu0 0.0
    %6827 = vmatpush1.xpose.msra.mxu0 0.0
    %6828 = vmatprep.subr.mxu0 0.0
    %6829 = vmatpush1.xpose.msra.mxu0 0.0
    %6830 = vmatprep.subr.mxu0 0.0
    %6831 = vmatpush1.xpose.msra.mxu0 0.0
    %6832 = vmatprep.subr.mxu0 0.0
    %6833 = vmatpush1.xpose.msra.mxu0 0.0
    %6834 = vmatprep.subr.mxu0 0.0
    %6835 = vmatpush1.xpose.msra.mxu0 0.0
    %6836 = vmatprep.subr.mxu0 0.0
    %6837 = vmatpush1.xpose.msra.mxu0 0.0
    %6838 = vmatprep.subr.mxu0 0.0
    %6839 = vmatpush1.xpose.msra.mxu0 0.0
    %6840 = vmatprep.subr.mxu0 0.0
    %6841 = vmatpush1.xpose.msra.mxu0 0.0
    %6842 = vmatprep.mubr.f32.mxu0 0.0
    %6843 = vmatmul.mubr.f32.gmra.mrb[0].mxu0 %v6774
    %v6844 = vpop.f32.mrb[0].mxu0
    %v6845 = vadd.f32 0.0, %v6844
    %v6846 = vpop.f32.mrb[0].mxu0
    %6847 = vdwg.mxu0
    %6848 = vrot.lane.b32.xlu0 %v6685, 120
    %v6849 = vpop.permute.xlu0 %6848
    %6850 = vrot.lane.b32.xlu0 %v6685, 88
    %v6851 = vpop.permute.xlu0 %6850
    %v6852 = vsel %vm335, %v6849, 0
    %v6854 = vsel %vm335, %v6851, 0
    %6856 = vmatprep.subr.mxu0 0.0
    %6857 = vmatpush1.xpose.msra.mxu0 %v6854
    %6858 = vmatprep.subr.mxu0 0.0
    %6859 = vmatpush1.xpose.msra.mxu0 0.0
    %6860 = vmatprep.subr.mxu0 0.0
    %6861 = vmatpush1.xpose.msra.mxu0 0.0
    %6862 = vmatprep.subr.mxu0 0.0
    %6863 = vmatpush1.xpose.msra.mxu0 0.0
    %6864 = vmatprep.subr.mxu0 0.0
    %6865 = vmatpush1.xpose.msra.mxu0 0.0
    %6866 = vmatprep.subr.mxu0 0.0
    %6867 = vmatpush1.xpose.msra.mxu0 0.0
    %6868 = vmatprep.subr.mxu0 0.0
    %6869 = vmatpush1.xpose.msra.mxu0 0.0
    %6870 = vmatprep.subr.mxu0 0.0
    %6871 = vmatpush1.xpose.msra.mxu0 0.0
    %6872 = vmatprep.subr.mxu0 0.0
    %6873 = vmatpush1.xpose.msra.mxu0 0.0
    %6874 = vmatprep.subr.mxu0 0.0
    %6875 = vmatpush1.xpose.msra.mxu0 0.0
    %6876 = vmatprep.subr.mxu0 0.0
    %6877 = vmatpush1.xpose.msra.mxu0 0.0
    %6878 = vmatprep.subr.mxu0 0.0
    %6879 = vmatpush1.xpose.msra.mxu0 0.0
    %6880 = vmatprep.subr.mxu0 0.0
    %6881 = vmatpush1.xpose.msra.mxu0 0.0
    %6882 = vmatprep.subr.mxu0 0.0
    %6883 = vmatpush1.xpose.msra.mxu0 0.0
    %6884 = vmatprep.subr.mxu0 0.0
    %6885 = vmatpush1.xpose.msra.mxu0 0.0
    %6886 = vmatprep.subr.mxu0 0.0
    %6887 = vmatpush1.xpose.msra.mxu0 0.0
    %6888 = vmatprep.subr.mxu0 0.0
    %6889 = vmatpush1.xpose.msra.mxu0 0.0
    %6890 = vmatprep.subr.mxu0 0.0
    %6891 = vmatpush1.xpose.msra.mxu0 0.0
    %6892 = vmatprep.subr.mxu0 0.0
    %6893 = vmatpush1.xpose.msra.mxu0 0.0
    %6894 = vmatprep.subr.mxu0 0.0
    %6895 = vmatpush1.xpose.msra.mxu0 0.0
    %6896 = vmatprep.subr.mxu0 0.0
    %6897 = vmatpush1.xpose.msra.mxu0 0.0
    %6898 = vmatprep.subr.mxu0 0.0
    %6899 = vmatpush1.xpose.msra.mxu0 0.0
    %6900 = vmatprep.subr.mxu0 0.0
    %6901 = vmatpush1.xpose.msra.mxu0 0.0
    %6902 = vmatprep.subr.mxu0 0.0
    %6903 = vmatpush1.xpose.msra.mxu0 0.0
    %6904 = vmatprep.subr.mxu0 0.0
    %6905 = vmatpush1.xpose.msra.mxu0 0.0
    %6906 = vmatprep.subr.mxu0 0.0
    %6907 = vmatpush1.xpose.msra.mxu0 0.0
    %6908 = vmatprep.subr.mxu0 0.0
    %6909 = vmatpush1.xpose.msra.mxu0 0.0
    %6910 = vmatprep.subr.mxu0 0.0
    %6911 = vmatpush1.xpose.msra.mxu0 0.0
    %6912 = vmatprep.subr.mxu0 0.0
    %6913 = vmatpush1.xpose.msra.mxu0 0.0
    %6914 = vmatprep.subr.mxu0 0.0
    %6915 = vmatpush1.xpose.msra.mxu0 0.0
    %6916 = vmatprep.subr.mxu0 0.0
    %6917 = vmatpush1.xpose.msra.mxu0 0.0
    %6918 = vmatprep.subr.mxu0 0.0
    %6919 = vmatpush1.xpose.msra.mxu0 0.0
    %6920 = vmatprep.mubr.f32.mxu0 0.0
    %6921 = vmatmul.mubr.f32.gmra.mrb[0].mxu0 %v6852
    %v6922 = vpop.f32.mrb[0].mxu0
    %v6923 = vadd.f32 0.0, %v6922
    %v6924 = vpop.f32.mrb[0].mxu0
    %6925 = vdwg.mxu0
    %6926 = vrot.lane.b32.xlu0 %v6685, 116
    %v6927 = vpop.permute.xlu0 %6926
    %6928 = vrot.lane.b32.xlu0 %v6685, 84
    %v6929 = vpop.permute.xlu0 %6928
    %v6930 = vsel %vm335, %v6927, 0
    %v6932 = vsel %vm335, %v6929, 0
    %6934 = vmatprep.subr.mxu0 0.0
    %6935 = vmatpush1.xpose.msra.mxu0 %v6932
    %6936 = vmatprep.subr.mxu0 0.0
    %6937 = vmatpush1.xpose.msra.mxu0 0.0
    %6938 = vmatprep.subr.mxu0 0.0
    %6939 = vmatpush1.xpose.msra.mxu0 0.0
    %6940 = vmatprep.subr.mxu0 0.0
    %6941 = vmatpush1.xpose.msra.mxu0 0.0
    %6942 = vmatprep.subr.mxu0 0.0
    %6943 = vmatpush1.xpose.msra.mxu0 0.0
    %6944 = vmatprep.subr.mxu0 0.0
    %6945 = vmatpush1.xpose.msra.mxu0 0.0
    %6946 = vmatprep.subr.mxu0 0.0
    %6947 = vmatpush1.xpose.msra.mxu0 0.0
    %6948 = vmatprep.subr.mxu0 0.0
    %6949 = vmatpush1.xpose.msra.mxu0 0.0
    %6950 = vmatprep.subr.mxu0 0.0
    %6951 = vmatpush1.xpose.msra.mxu0 0.0
    %6952 = vmatprep.subr.mxu0 0.0
    %6953 = vmatpush1.xpose.msra.mxu0 0.0
    %6954 = vmatprep.subr.mxu0 0.0
    %6955 = vmatpush1.xpose.msra.mxu0 0.0
    %6956 = vmatprep.subr.mxu0 0.0
    %6957 = vmatpush1.xpose.msra.mxu0 0.0
    %6958 = vmatprep.subr.mxu0 0.0
    %6959 = vmatpush1.xpose.msra.mxu0 0.0
    %6960 = vmatprep.subr.mxu0 0.0
    %6961 = vmatpush1.xpose.msra.mxu0 0.0
    %6962 = vmatprep.subr.mxu0 0.0
    %6963 = vmatpush1.xpose.msra.mxu0 0.0
    %6964 = vmatprep.subr.mxu0 0.0
    %6965 = vmatpush1.xpose.msra.mxu0 0.0
    %6966 = vmatprep.subr.mxu0 0.0
    %6967 = vmatpush1.xpose.msra.mxu0 0.0
    %6968 = vmatprep.subr.mxu0 0.0
    %6969 = vmatpush1.xpose.msra.mxu0 0.0
    %6970 = vmatprep.subr.mxu0 0.0
    %6971 = vmatpush1.xpose.msra.mxu0 0.0
    %6972 = vmatprep.subr.mxu0 0.0
    %6973 = vmatpush1.xpose.msra.mxu0 0.0
    %6974 = vmatprep.subr.mxu0 0.0
    %6975 = vmatpush1.xpose.msra.mxu0 0.0
    %6976 = vmatprep.subr.mxu0 0.0
    %6977 = vmatpush1.xpose.msra.mxu0 0.0
    %6978 = vmatprep.subr.mxu0 0.0
    %6979 = vmatpush1.xpose.msra.mxu0 0.0
    %6980 = vmatprep.subr.mxu0 0.0
    %6981 = vmatpush1.xpose.msra.mxu0 0.0
    %6982 = vmatprep.subr.mxu0 0.0
    %6983 = vmatpush1.xpose.msra.mxu0 0.0
    %6984 = vmatprep.subr.mxu0 0.0
    %6985 = vmatpush1.xpose.msra.mxu0 0.0
    %6986 = vmatprep.subr.mxu0 0.0
    %6987 = vmatpush1.xpose.msra.mxu0 0.0
    %6988 = vmatprep.subr.mxu0 0.0
    %6989 = vmatpush1.xpose.msra.mxu0 0.0
    %6990 = vmatprep.subr.mxu0 0.0
    %6991 = vmatpush1.xpose.msra.mxu0 0.0
    %6992 = vmatprep.subr.mxu0 0.0
    %6993 = vmatpush1.xpose.msra.mxu0 0.0
    %6994 = vmatprep.subr.mxu0 0.0
    %6995 = vmatpush1.xpose.msra.mxu0 0.0
    %6996 = vmatprep.subr.mxu0 0.0
    %6997 = vmatpush1.xpose.msra.mxu0 0.0
    %6998 = vmatprep.mubr.f32.mxu0 0.0
    %6999 = vmatmul.mubr.f32.gmra.mrb[0].mxu0 %v6930
    %v7000 = vpop.f32.mrb[0].mxu0
    %v7001 = vadd.f32 0.0, %v7000
    %v7002 = vpop.f32.mrb[0].mxu0
    %7003 = vdwg.mxu0
    %7004 = vrot.lane.b32.xlu0 %v6685, 112
    %v7005 = vpop.permute.xlu0 %7004
    %7006 = vrot.lane.b32.xlu0 %v6685, 80
    %v7007 = vpop.permute.xlu0 %7006
    %v7008 = vsel %vm335, %v7005, 0
    %v7010 = vsel %vm335, %v7007, 0
    %7012 = vmatprep.subr.mxu0 0.0
    %7013 = vmatpush1.xpose.msra.mxu0 %v7010
    %7014 = vmatprep.subr.mxu0 0.0
    %7015 = vmatpush1.xpose.msra.mxu0 0.0
    %7016 = vmatprep.subr.mxu0 0.0
    %7017 = vmatpush1.xpose.msra.mxu0 0.0
    %7018 = vmatprep.subr.mxu0 0.0
    %7019 = vmatpush1.xpose.msra.mxu0 0.0
    %7020 = vmatprep.subr.mxu0 0.0
    %7021 = vmatpush1.xpose.msra.mxu0 0.0
    %7022 = vmatprep.subr.mxu0 0.0
    %7023 = vmatpush1.xpose.msra.mxu0 0.0
    %7024 = vmatprep.subr.mxu0 0.0
    %7025 = vmatpush1.xpose.msra.mxu0 0.0
    %7026 = vmatprep.subr.mxu0 0.0
    %7027 = vmatpush1.xpose.msra.mxu0 0.0
    %7028 = vmatprep.subr.mxu0 0.0
    %7029 = vmatpush1.xpose.msra.mxu0 0.0
    %7030 = vmatprep.subr.mxu0 0.0
    %7031 = vmatpush1.xpose.msra.mxu0 0.0
    %7032 = vmatprep.subr.mxu0 0.0
    %7033 = vmatpush1.xpose.msra.mxu0 0.0
    %7034 = vmatprep.subr.mxu0 0.0
    %7035 = vmatpush1.xpose.msra.mxu0 0.0
    %7036 = vmatprep.subr.mxu0 0.0
    %7037 = vmatpush1.xpose.msra.mxu0 0.0
    %7038 = vmatprep.subr.mxu0 0.0
    %7039 = vmatpush1.xpose.msra.mxu0 0.0
    %7040 = vmatprep.subr.mxu0 0.0
    %7041 = vmatpush1.xpose.msra.mxu0 0.0
    %7042 = vmatprep.subr.mxu0 0.0
    %7043 = vmatpush1.xpose.msra.mxu0 0.0
    %7044 = vmatprep.subr.mxu0 0.0
    %7045 = vmatpush1.xpose.msra.mxu0 0.0
    %7046 = vmatprep.subr.mxu0 0.0
    %7047 = vmatpush1.xpose.msra.mxu0 0.0
    %7048 = vmatprep.subr.mxu0 0.0
    %7049 = vmatpush1.xpose.msra.mxu0 0.0
    %7050 = vmatprep.subr.mxu0 0.0
    %7051 = vmatpush1.xpose.msra.mxu0 0.0
    %7052 = vmatprep.subr.mxu0 0.0
    %7053 = vmatpush1.xpose.msra.mxu0 0.0
    %7054 = vmatprep.subr.mxu0 0.0
    %7055 = vmatpush1.xpose.msra.mxu0 0.0
    %7056 = vmatprep.subr.mxu0 0.0
    %7057 = vmatpush1.xpose.msra.mxu0 0.0
    %7058 = vmatprep.subr.mxu0 0.0
    %7059 = vmatpush1.xpose.msra.mxu0 0.0
    %7060 = vmatprep.subr.mxu0 0.0
    %7061 = vmatpush1.xpose.msra.mxu0 0.0
    %7062 = vmatprep.subr.mxu0 0.0
    %7063 = vmatpush1.xpose.msra.mxu0 0.0
    %7064 = vmatprep.subr.mxu0 0.0
    %7065 = vmatpush1.xpose.msra.mxu0 0.0
    %7066 = vmatprep.subr.mxu0 0.0
    %7067 = vmatpush1.xpose.msra.mxu0 0.0
    %7068 = vmatprep.subr.mxu0 0.0
    %7069 = vmatpush1.xpose.msra.mxu0 0.0
    %7070 = vmatprep.subr.mxu0 0.0
    %7071 = vmatpush1.xpose.msra.mxu0 0.0
    %7072 = vmatprep.subr.mxu0 0.0
    %7073 = vmatpush1.xpose.msra.mxu0 0.0
    %7074 = vmatprep.subr.mxu0 0.0
    %7075 = vmatpush1.xpose.msra.mxu0 0.0
    %7076 = vmatprep.mubr.f32.mxu0 0.0
    %7077 = vmatmul.mubr.f32.gmra.mrb[0].mxu0 %v7008
    %v7078 = vpop.f32.mrb[0].mxu0
    %v7079 = vadd.f32 0.0, %v7078
    %v7080 = vpop.f32.mrb[0].mxu0
    %7081 = vdwg.mxu0
    %7082 = vrot.lane.b32.xlu0 %v6685, 108
    %v7083 = vpop.permute.xlu0 %7082
    %7084 = vrot.lane.b32.xlu0 %v6685, 76
    %v7085 = vpop.permute.xlu0 %7084
    %v7086 = vsel %vm335, %v7083, 0
    %v7088 = vsel %vm335, %v7085, 0
    %7090 = vmatprep.subr.mxu0 0.0
    %7091 = vmatpush1.xpose.msra.mxu0 %v7088
    %7092 = vmatprep.subr.mxu0 0.0
    %7093 = vmatpush1.xpose.msra.mxu0 0.0
    %7094 = vmatprep.subr.mxu0 0.0
    %7095 = vmatpush1.xpose.msra.mxu0 0.0
    %7096 = vmatprep.subr.mxu0 0.0
    %7097 = vmatpush1.xpose.msra.mxu0 0.0
    %7098 = vmatprep.subr.mxu0 0.0
    %7099 = vmatpush1.xpose.msra.mxu0 0.0
    %7100 = vmatprep.subr.mxu0 0.0
    %7101 = vmatpush1.xpose.msra.mxu0 0.0
    %7102 = vmatprep.subr.mxu0 0.0
    %7103 = vmatpush1.xpose.msra.mxu0 0.0
    %7104 = vmatprep.subr.mxu0 0.0
    %7105 = vmatpush1.xpose.msra.mxu0 0.0
    %7106 = vmatprep.subr.mxu0 0.0
    %7107 = vmatpush1.xpose.msra.mxu0 0.0
    %7108 = vmatprep.subr.mxu0 0.0
    %7109 = vmatpush1.xpose.msra.mxu0 0.0
    %7110 = vmatprep.subr.mxu0 0.0
    %7111 = vmatpush1.xpose.msra.mxu0 0.0
    %7112 = vmatprep.subr.mxu0 0.0
    %7113 = vmatpush1.xpose.msra.mxu0 0.0
    %7114 = vmatprep.subr.mxu0 0.0
    %7115 = vmatpush1.xpose.msra.mxu0 0.0
    %7116 = vmatprep.subr.mxu0 0.0
    %7117 = vmatpush1.xpose.msra.mxu0 0.0
    %7118 = vmatprep.subr.mxu0 0.0
    %7119 = vmatpush1.xpose.msra.mxu0 0.0
    %7120 = vmatprep.subr.mxu0 0.0
    %7121 = vmatpush1.xpose.msra.mxu0 0.0
    %7122 = vmatprep.subr.mxu0 0.0
    %7123 = vmatpush1.xpose.msra.mxu0 0.0
    %7124 = vmatprep.subr.mxu0 0.0
    %7125 = vmatpush1.xpose.msra.mxu0 0.0
    %7126 = vmatprep.subr.mxu0 0.0
    %7127 = vmatpush1.xpose.msra.mxu0 0.0
    %7128 = vmatprep.subr.mxu0 0.0
    %7129 = vmatpush1.xpose.msra.mxu0 0.0
    %7130 = vmatprep.subr.mxu0 0.0
    %7131 = vmatpush1.xpose.msra.mxu0 0.0
    %7132 = vmatprep.subr.mxu0 0.0
    %7133 = vmatpush1.xpose.msra.mxu0 0.0
    %7134 = vmatprep.subr.mxu0 0.0
    %7135 = vmatpush1.xpose.msra.mxu0 0.0
    %7136 = vmatprep.subr.mxu0 0.0
    %7137 = vmatpush1.xpose.msra.mxu0 0.0
    %7138 = vmatprep.subr.mxu0 0.0
    %7139 = vmatpush1.xpose.msra.mxu0 0.0
    %7140 = vmatprep.subr.mxu0 0.0
    %7141 = vmatpush1.xpose.msra.mxu0 0.0
    %7142 = vmatprep.subr.mxu0 0.0
    %7143 = vmatpush1.xpose.msra.mxu0 0.0
    %7144 = vmatprep.subr.mxu0 0.0
    %7145 = vmatpush1.xpose.msra.mxu0 0.0
    %7146 = vmatprep.subr.mxu0 0.0
    %7147 = vmatpush1.xpose.msra.mxu0 0.0
    %7148 = vmatprep.subr.mxu0 0.0
    %7149 = vmatpush1.xpose.msra.mxu0 0.0
    %7150 = vmatprep.subr.mxu0 0.0
    %7151 = vmatpush1.xpose.msra.mxu0 0.0
    %7152 = vmatprep.subr.mxu0 0.0
    %7153 = vmatpush1.xpose.msra.mxu0 0.0
    %7154 = vmatprep.mubr.f32.mxu0 0.0
    %7155 = vmatmul.mubr.f32.gmra.mrb[0].mxu0 %v7086
    %v7156 = vpop.f32.mrb[0].mxu0
    %v7157 = vadd.f32 0.0, %v7156
    %v7158 = vpop.f32.mrb[0].mxu0
    %7159 = vdwg.mxu0
    %7160 = vrot.lane.b32.xlu0 %v6685, 104
    %v7161 = vpop.permute.xlu0 %7160
    %7162 = vrot.lane.b32.xlu0 %v6685, 72
    %v7163 = vpop.permute.xlu0 %7162
    %v7164 = vsel %vm335, %v7161, 0
    %v7166 = vsel %vm335, %v7163, 0
    %7168 = vmatprep.subr.mxu0 0.0
    %7169 = vmatpush1.xpose.msra.mxu0 %v7166
    %7170 = vmatprep.subr.mxu0 0.0
    %7171 = vmatpush1.xpose.msra.mxu0 0.0
    %7172 = vmatprep.subr.mxu0 0.0
    %7173 = vmatpush1.xpose.msra.mxu0 0.0
    %7174 = vmatprep.subr.mxu0 0.0
    %7175 = vmatpush1.xpose.msra.mxu0 0.0
    %7176 = vmatprep.subr.mxu0 0.0
    %7177 = vmatpush1.xpose.msra.mxu0 0.0
    %7178 = vmatprep.subr.mxu0 0.0
    %7179 = vmatpush1.xpose.msra.mxu0 0.0
    %7180 = vmatprep.subr.mxu0 0.0
    %7181 = vmatpush1.xpose.msra.mxu0 0.0
    %7182 = vmatprep.subr.mxu0 0.0
    %7183 = vmatpush1.xpose.msra.mxu0 0.0
    %7184 = vmatprep.subr.mxu0 0.0
    %7185 = vmatpush1.xpose.msra.mxu0 0.0
    %7186 = vmatprep.subr.mxu0 0.0
    %7187 = vmatpush1.xpose.msra.mxu0 0.0
    %7188 = vmatprep.subr.mxu0 0.0
    %7189 = vmatpush1.xpose.msra.mxu0 0.0
    %7190 = vmatprep.subr.mxu0 0.0
    %7191 = vmatpush1.xpose.msra.mxu0 0.0
    %7192 = vmatprep.subr.mxu0 0.0
    %7193 = vmatpush1.xpose.msra.mxu0 0.0
    %7194 = vmatprep.subr.mxu0 0.0
    %7195 = vmatpush1.xpose.msra.mxu0 0.0
    %7196 = vmatprep.subr.mxu0 0.0
    %7197 = vmatpush1.xpose.msra.mxu0 0.0
    %7198 = vmatprep.subr.mxu0 0.0
    %7199 = vmatpush1.xpose.msra.mxu0 0.0
    %7200 = vmatprep.subr.mxu0 0.0
    %7201 = vmatpush1.xpose.msra.mxu0 0.0
    %7202 = vmatprep.subr.mxu0 0.0
    %7203 = vmatpush1.xpose.msra.mxu0 0.0
    %7204 = vmatprep.subr.mxu0 0.0
    %7205 = vmatpush1.xpose.msra.mxu0 0.0
    %7206 = vmatprep.subr.mxu0 0.0
    %7207 = vmatpush1.xpose.msra.mxu0 0.0
    %7208 = vmatprep.subr.mxu0 0.0
    %7209 = vmatpush1.xpose.msra.mxu0 0.0
    %7210 = vmatprep.subr.mxu0 0.0
    %7211 = vmatpush1.xpose.msra.mxu0 0.0
    %7212 = vmatprep.subr.mxu0 0.0
    %7213 = vmatpush1.xpose.msra.mxu0 0.0
    %7214 = vmatprep.subr.mxu0 0.0
    %7215 = vmatpush1.xpose.msra.mxu0 0.0
    %7216 = vmatprep.subr.mxu0 0.0
    %7217 = vmatpush1.xpose.msra.mxu0 0.0
    %7218 = vmatprep.subr.mxu0 0.0
    %7219 = vmatpush1.xpose.msra.mxu0 0.0
    %7220 = vmatprep.subr.mxu0 0.0
    %7221 = vmatpush1.xpose.msra.mxu0 0.0
    %7222 = vmatprep.subr.mxu0 0.0
    %7223 = vmatpush1.xpose.msra.mxu0 0.0
    %7224 = vmatprep.subr.mxu0 0.0
    %7225 = vmatpush1.xpose.msra.mxu0 0.0
    %7226 = vmatprep.subr.mxu0 0.0
    %7227 = vmatpush1.xpose.msra.mxu0 0.0
    %7228 = vmatprep.subr.mxu0 0.0
    %7229 = vmatpush1.xpose.msra.mxu0 0.0
    %7230 = vmatprep.subr.mxu0 0.0
    %7231 = vmatpush1.xpose.msra.mxu0 0.0
    %7232 = vmatprep.mubr.f32.mxu0 0.0
    %7233 = vmatmul.mubr.f32.gmra.mrb[0].mxu0 %v7164
    %v7234 = vpop.f32.mrb[0].mxu0
    %v7235 = vadd.f32 0.0, %v7234
    %v7236 = vpop.f32.mrb[0].mxu0
    %7237 = vdwg.mxu0
    %7238 = vrot.lane.b32.xlu0 %v6685, 100
    %v7239 = vpop.permute.xlu0 %7238
    %7240 = vrot.lane.b32.xlu0 %v6685, 68
    %v7241 = vpop.permute.xlu0 %7240
    %v7242 = vsel %vm335, %v7239, 0
    %v7244 = vsel %vm335, %v7241, 0
    %7246 = vmatprep.subr.mxu0 0.0
    %7247 = vmatpush1.xpose.msra.mxu0 %v7244
    %7248 = vmatprep.subr.mxu0 0.0
    %7249 = vmatpush1.xpose.msra.mxu0 0.0
    %7250 = vmatprep.subr.mxu0 0.0
    %7251 = vmatpush1.xpose.msra.mxu0 0.0
    %7252 = vmatprep.subr.mxu0 0.0
    %7253 = vmatpush1.xpose.msra.mxu0 0.0
    %7254 = vmatprep.subr.mxu0 0.0
    %7255 = vmatpush1.xpose.msra.mxu0 0.0
    %7256 = vmatprep.subr.mxu0 0.0
    %7257 = vmatpush1.xpose.msra.mxu0 0.0
    %7258 = vmatprep.subr.mxu0 0.0
    %7259 = vmatpush1.xpose.msra.mxu0 0.0
    %7260 = vmatprep.subr.mxu0 0.0
    %7261 = vmatpush1.xpose.msra.mxu0 0.0
    %7262 = vmatprep.subr.mxu0 0.0
    %7263 = vmatpush1.xpose.msra.mxu0 0.0
    %7264 = vmatprep.subr.mxu0 0.0
    %7265 = vmatpush1.xpose.msra.mxu0 0.0
    %7266 = vmatprep.subr.mxu0 0.0
    %7267 = vmatpush1.xpose.msra.mxu0 0.0
    %7268 = vmatprep.subr.mxu0 0.0
    %7269 = vmatpush1.xpose.msra.mxu0 0.0
    %7270 = vmatprep.subr.mxu0 0.0
    %7271 = vmatpush1.xpose.msra.mxu0 0.0
    %7272 = vmatprep.subr.mxu0 0.0
    %7273 = vmatpush1.xpose.msra.mxu0 0.0
    %7274 = vmatprep.subr.mxu0 0.0
    %7275 = vmatpush1.xpose.msra.mxu0 0.0
    %7276 = vmatprep.subr.mxu0 0.0
    %7277 = vmatpush1.xpose.msra.mxu0 0.0
    %7278 = vmatprep.subr.mxu0 0.0
    %7279 = vmatpush1.xpose.msra.mxu0 0.0
    %7280 = vmatprep.subr.mxu0 0.0
    %7281 = vmatpush1.xpose.msra.mxu0 0.0
    %7282 = vmatprep.subr.mxu0 0.0
    %7283 = vmatpush1.xpose.msra.mxu0 0.0
    %7284 = vmatprep.subr.mxu0 0.0
    %7285 = vmatpush1.xpose.msra.mxu0 0.0
    %7286 = vmatprep.subr.mxu0 0.0
    %7287 = vmatpush1.xpose.msra.mxu0 0.0
    %7288 = vmatprep.subr.mxu0 0.0
    %7289 = vmatpush1.xpose.msra.mxu0 0.0
    %7290 = vmatprep.subr.mxu0 0.0
    %7291 = vmatpush1.xpose.msra.mxu0 0.0
    %7292 = vmatprep.subr.mxu0 0.0
    %7293 = vmatpush1.xpose.msra.mxu0 0.0
    %7294 = vmatprep.subr.mxu0 0.0
    %7295 = vmatpush1.xpose.msra.mxu0 0.0
    %7296 = vmatprep.subr.mxu0 0.0
    %7297 = vmatpush1.xpose.msra.mxu0 0.0
    %7298 = vmatprep.subr.mxu0 0.0
    %7299 = vmatpush1.xpose.msra.mxu0 0.0
    %7300 = vmatprep.subr.mxu0 0.0
    %7301 = vmatpush1.xpose.msra.mxu0 0.0
    %7302 = vmatprep.subr.mxu0 0.0
    %7303 = vmatpush1.xpose.msra.mxu0 0.0
    %7304 = vmatprep.subr.mxu0 0.0
    %7305 = vmatpush1.xpose.msra.mxu0 0.0
    %7306 = vmatprep.subr.mxu0 0.0
    %7307 = vmatpush1.xpose.msra.mxu0 0.0
    %7308 = vmatprep.subr.mxu0 0.0
    %7309 = vmatpush1.xpose.msra.mxu0 0.0
    %7310 = vmatprep.mubr.f32.mxu0 0.0
    %7311 = vmatmul.mubr.f32.gmra.mrb[0].mxu0 %v7242
    %v7312 = vpop.f32.mrb[0].mxu0
    %v7313 = vadd.f32 0.0, %v7312
    %v7314 = vpop.f32.mrb[0].mxu0
    %7315 = vdwg.mxu0
    %7317 = vrot.lane.b32.xlu0 %v6690, 96
    %v7318 = vpop.permute.xlu0 %7317
    %v7319 = vsel %vm335, %v6690, 0
    %v7321 = vsel %vm335, %v7318, 0
    %7323 = vmatprep.subr.mxu0 0.0
    %7324 = vmatpush1.xpose.msra.mxu0 %v7321
    %7325 = vmatprep.subr.mxu0 0.0
    %7326 = vmatpush1.xpose.msra.mxu0 0.0
    %7327 = vmatprep.subr.mxu0 0.0
    %7328 = vmatpush1.xpose.msra.mxu0 0.0
    %7329 = vmatprep.subr.mxu0 0.0
    %7330 = vmatpush1.xpose.msra.mxu0 0.0
    %7331 = vmatprep.subr.mxu0 0.0
    %7332 = vmatpush1.xpose.msra.mxu0 0.0
    %7333 = vmatprep.subr.mxu0 0.0
    %7334 = vmatpush1.xpose.msra.mxu0 0.0
    %7335 = vmatprep.subr.mxu0 0.0
    %7336 = vmatpush1.xpose.msra.mxu0 0.0
    %7337 = vmatprep.subr.mxu0 0.0
    %7338 = vmatpush1.xpose.msra.mxu0 0.0
    %7339 = vmatprep.subr.mxu0 0.0
    %7340 = vmatpush1.xpose.msra.mxu0 0.0
    %7341 = vmatprep.subr.mxu0 0.0
    %7342 = vmatpush1.xpose.msra.mxu0 0.0
    %7343 = vmatprep.subr.mxu0 0.0
    %7344 = vmatpush1.xpose.msra.mxu0 0.0
    %7345 = vmatprep.subr.mxu0 0.0
    %7346 = vmatpush1.xpose.msra.mxu0 0.0
    %7347 = vmatprep.subr.mxu0 0.0
    %7348 = vmatpush1.xpose.msra.mxu0 0.0
    %7349 = vmatprep.subr.mxu0 0.0
    %7350 = vmatpush1.xpose.msra.mxu0 0.0
    %7351 = vmatprep.subr.mxu0 0.0
    %7352 = vmatpush1.xpose.msra.mxu0 0.0
    %7353 = vmatprep.subr.mxu0 0.0
    %7354 = vmatpush1.xpose.msra.mxu0 0.0
    %7355 = vmatprep.subr.mxu0 0.0
    %7356 = vmatpush1.xpose.msra.mxu0 0.0
    %7357 = vmatprep.subr.mxu0 0.0
    %7358 = vmatpush1.xpose.msra.mxu0 0.0
    %7359 = vmatprep.subr.mxu0 0.0
    %7360 = vmatpush1.xpose.msra.mxu0 0.0
    %7361 = vmatprep.subr.mxu0 0.0
    %7362 = vmatpush1.xpose.msra.mxu0 0.0
    %7363 = vmatprep.subr.mxu0 0.0
    %7364 = vmatpush1.xpose.msra.mxu0 0.0
    %7365 = vmatprep.subr.mxu0 0.0
    %7366 = vmatpush1.xpose.msra.mxu0 0.0
    %7367 = vmatprep.subr.mxu0 0.0
    %7368 = vmatpush1.xpose.msra.mxu0 0.0
    %7369 = vmatprep.subr.mxu0 0.0
    %7370 = vmatpush1.xpose.msra.mxu0 0.0
    %7371 = vmatprep.subr.mxu0 0.0
    %7372 = vmatpush1.xpose.msra.mxu0 0.0
    %7373 = vmatprep.subr.mxu0 0.0
    %7374 = vmatpush1.xpose.msra.mxu0 0.0
    %7375 = vmatprep.subr.mxu0 0.0
    %7376 = vmatpush1.xpose.msra.mxu0 0.0
    %7377 = vmatprep.subr.mxu0 0.0
    %7378 = vmatpush1.xpose.msra.mxu0 0.0
    %7379 = vmatprep.subr.mxu0 0.0
    %7380 = vmatpush1.xpose.msra.mxu0 0.0
    %7381 = vmatprep.subr.mxu0 0.0
    %7382 = vmatpush1.xpose.msra.mxu0 0.0
    %7383 = vmatprep.subr.mxu0 0.0
    %7384 = vmatpush1.xpose.msra.mxu0 0.0
    %7385 = vmatprep.subr.mxu0 0.0
    %7386 = vmatpush1.xpose.msra.mxu0 0.0
    %7387 = vmatprep.mubr.f32.mxu0 0.0
    %7388 = vmatmul.mubr.f32.gmra.mrb[0].mxu0 %v7319
    %v7389 = vpop.f32.mrb[0].mxu0
    %v7390 = vadd.f32 0.0, %v7389
    %v7391 = vpop.f32.mrb[0].mxu0
    %7392 = vdwg.mxu0
    %7393 = vrot.lane.b32.xlu0 %v6690, 124
    %v7394 = vpop.permute.xlu0 %7393
    %7395 = vrot.lane.b32.xlu0 %v6690, 92
    %v7396 = vpop.permute.xlu0 %7395
    %v7397 = vsel %vm335, %v7394, 0
    %v7399 = vsel %vm335, %v7396, 0
    %7401 = vmatprep.subr.mxu0 0.0
    %7402 = vmatpush1.xpose.msra.mxu0 %v7399
    %7403 = vmatprep.subr.mxu0 0.0
    %7404 = vmatpush1.xpose.msra.mxu0 0.0
    %7405 = vmatprep.subr.mxu0 0.0
    %7406 = vmatpush1.xpose.msra.mxu0 0.0
    %7407 = vmatprep.subr.mxu0 0.0
    %7408 = vmatpush1.xpose.msra.mxu0 0.0
    %7409 = vmatprep.subr.mxu0 0.0
    %7410 = vmatpush1.xpose.msra.mxu0 0.0
    %7411 = vmatprep.subr.mxu0 0.0
    %7412 = vmatpush1.xpose.msra.mxu0 0.0
    %7413 = vmatprep.subr.mxu0 0.0
    %7414 = vmatpush1.xpose.msra.mxu0 0.0
    %7415 = vmatprep.subr.mxu0 0.0
    %7416 = vmatpush1.xpose.msra.mxu0 0.0
    %7417 = vmatprep.subr.mxu0 0.0
    %7418 = vmatpush1.xpose.msra.mxu0 0.0
    %7419 = vmatprep.subr.mxu0 0.0
    %7420 = vmatpush1.xpose.msra.mxu0 0.0
    %7421 = vmatprep.subr.mxu0 0.0
    %7422 = vmatpush1.xpose.msra.mxu0 0.0
    %7423 = vmatprep.subr.mxu0 0.0
    %7424 = vmatpush1.xpose.msra.mxu0 0.0
    %7425 = vmatprep.subr.mxu0 0.0
    %7426 = vmatpush1.xpose.msra.mxu0 0.0
    %7427 = vmatprep.subr.mxu0 0.0
    %7428 = vmatpush1.xpose.msra.mxu0 0.0
    %7429 = vmatprep.subr.mxu0 0.0
    %7430 = vmatpush1.xpose.msra.mxu0 0.0
    %7431 = vmatprep.subr.mxu0 0.0
    %7432 = vmatpush1.xpose.msra.mxu0 0.0
    %7433 = vmatprep.subr.mxu0 0.0
    %7434 = vmatpush1.xpose.msra.mxu0 0.0
    %7435 = vmatprep.subr.mxu0 0.0
    %7436 = vmatpush1.xpose.msra.mxu0 0.0
    %7437 = vmatprep.subr.mxu0 0.0
    %7438 = vmatpush1.xpose.msra.mxu0 0.0
    %7439 = vmatprep.subr.mxu0 0.0
    %7440 = vmatpush1.xpose.msra.mxu0 0.0
    %7441 = vmatprep.subr.mxu0 0.0
    %7442 = vmatpush1.xpose.msra.mxu0 0.0
    %7443 = vmatprep.subr.mxu0 0.0
    %7444 = vmatpush1.xpose.msra.mxu0 0.0
    %7445 = vmatprep.subr.mxu0 0.0
    %7446 = vmatpush1.xpose.msra.mxu0 0.0
    %7447 = vmatprep.subr.mxu0 0.0
    %7448 = vmatpush1.xpose.msra.mxu0 0.0
    %7449 = vmatprep.subr.mxu0 0.0
    %7450 = vmatpush1.xpose.msra.mxu0 0.0
    %7451 = vmatprep.subr.mxu0 0.0
    %7452 = vmatpush1.xpose.msra.mxu0 0.0
    %7453 = vmatprep.subr.mxu0 0.0
    %7454 = vmatpush1.xpose.msra.mxu0 0.0
    %7455 = vmatprep.subr.mxu0 0.0
    %7456 = vmatpush1.xpose.msra.mxu0 0.0
    %7457 = vmatprep.subr.mxu0 0.0
    %7458 = vmatpush1.xpose.msra.mxu0 0.0
    %7459 = vmatprep.subr.mxu0 0.0
    %7460 = vmatpush1.xpose.msra.mxu0 0.0
    %7461 = vmatprep.subr.mxu0 0.0
    %7462 = vmatpush1.xpose.msra.mxu0 0.0
    %7463 = vmatprep.subr.mxu0 0.0
    %7464 = vmatpush1.xpose.msra.mxu0 0.0
    %7465 = vmatprep.mubr.f32.mxu0 0.0
    %7466 = vmatmul.mubr.f32.gmra.mrb[0].mxu0 %v7397
    %v7467 = vpop.f32.mrb[0].mxu0
    %v7468 = vadd.f32 0.0, %v7467
    %v7469 = vpop.f32.mrb[0].mxu0
    %7470 = vdwg.mxu0
    %7471 = vrot.lane.b32.xlu0 %v6690, 120
    %v7472 = vpop.permute.xlu0 %7471
    %7473 = vrot.lane.b32.xlu0 %v6690, 88
    %v7474 = vpop.permute.xlu0 %7473
    %v7475 = vsel %vm335, %v7472, 0
    %v7477 = vsel %vm335, %v7474, 0
    %7479 = vmatprep.subr.mxu0 0.0
    %7480 = vmatpush1.xpose.msra.mxu0 %v7477
    %7481 = vmatprep.subr.mxu0 0.0
    %7482 = vmatpush1.xpose.msra.mxu0 0.0
    %7483 = vmatprep.subr.mxu0 0.0
    %7484 = vmatpush1.xpose.msra.mxu0 0.0
    %7485 = vmatprep.subr.mxu0 0.0
    %7486 = vmatpush1.xpose.msra.mxu0 0.0
    %7487 = vmatprep.subr.mxu0 0.0
    %7488 = vmatpush1.xpose.msra.mxu0 0.0
    %7489 = vmatprep.subr.mxu0 0.0
    %7490 = vmatpush1.xpose.msra.mxu0 0.0
    %7491 = vmatprep.subr.mxu0 0.0
    %7492 = vmatpush1.xpose.msra.mxu0 0.0
    %7493 = vmatprep.subr.mxu0 0.0
    %7494 = vmatpush1.xpose.msra.mxu0 0.0
    %7495 = vmatprep.subr.mxu0 0.0
    %7496 = vmatpush1.xpose.msra.mxu0 0.0
    %7497 = vmatprep.subr.mxu0 0.0
    %7498 = vmatpush1.xpose.msra.mxu0 0.0
    %7499 = vmatprep.subr.mxu0 0.0
    %7500 = vmatpush1.xpose.msra.mxu0 0.0
    %7501 = vmatprep.subr.mxu0 0.0
    %7502 = vmatpush1.xpose.msra.mxu0 0.0
    %7503 = vmatprep.subr.mxu0 0.0
    %7504 = vmatpush1.xpose.msra.mxu0 0.0
    %7505 = vmatprep.subr.mxu0 0.0
    %7506 = vmatpush1.xpose.msra.mxu0 0.0
    %7507 = vmatprep.subr.mxu0 0.0
    %7508 = vmatpush1.xpose.msra.mxu0 0.0
    %7509 = vmatprep.subr.mxu0 0.0
    %7510 = vmatpush1.xpose.msra.mxu0 0.0
    %7511 = vmatprep.subr.mxu0 0.0
    %7512 = vmatpush1.xpose.msra.mxu0 0.0
    %7513 = vmatprep.subr.mxu0 0.0
    %7514 = vmatpush1.xpose.msra.mxu0 0.0
    %7515 = vmatprep.subr.mxu0 0.0
    %7516 = vmatpush1.xpose.msra.mxu0 0.0
    %7517 = vmatprep.subr.mxu0 0.0
    %7518 = vmatpush1.xpose.msra.mxu0 0.0
    %7519 = vmatprep.subr.mxu0 0.0
    %7520 = vmatpush1.xpose.msra.mxu0 0.0
    %7521 = vmatprep.subr.mxu0 0.0
    %7522 = vmatpush1.xpose.msra.mxu0 0.0
    %7523 = vmatprep.subr.mxu0 0.0
    %7524 = vmatpush1.xpose.msra.mxu0 0.0
    %7525 = vmatprep.subr.mxu0 0.0
    %7526 = vmatpush1.xpose.msra.mxu0 0.0
    %7527 = vmatprep.subr.mxu0 0.0
    %7528 = vmatpush1.xpose.msra.mxu0 0.0
    %7529 = vmatprep.subr.mxu0 0.0
    %7530 = vmatpush1.xpose.msra.mxu0 0.0
    %7531 = vmatprep.subr.mxu0 0.0
    %7532 = vmatpush1.xpose.msra.mxu0 0.0
    %7533 = vmatprep.subr.mxu0 0.0
    %7534 = vmatpush1.xpose.msra.mxu0 0.0
    %7535 = vmatprep.subr.mxu0 0.0
    %7536 = vmatpush1.xpose.msra.mxu0 0.0
    %7537 = vmatprep.subr.mxu0 0.0
    %7538 = vmatpush1.xpose.msra.mxu0 0.0
    %7539 = vmatprep.subr.mxu0 0.0
    %7540 = vmatpush1.xpose.msra.mxu0 0.0
    %7541 = vmatprep.subr.mxu0 0.0
    %7542 = vmatpush1.xpose.msra.mxu0 0.0
    %7543 = vmatprep.mubr.f32.mxu0 0.0
    %7544 = vmatmul.mubr.f32.gmra.mrb[0].mxu0 %v7475
    %v7545 = vpop.f32.mrb[0].mxu0
    %v7546 = vadd.f32 0.0, %v7545
    %v7547 = vpop.f32.mrb[0].mxu0
    %7548 = vdwg.mxu0
    %7549 = vrot.lane.b32.xlu0 %v6690, 116
    %v7550 = vpop.permute.xlu0 %7549
    %7551 = vrot.lane.b32.xlu0 %v6690, 84
    %v7552 = vpop.permute.xlu0 %7551
    %v7553 = vsel %vm335, %v7550, 0
    %v7555 = vsel %vm335, %v7552, 0
    %7557 = vmatprep.subr.mxu0 0.0
    %7558 = vmatpush1.xpose.msra.mxu0 %v7555
    %7559 = vmatprep.subr.mxu0 0.0
    %7560 = vmatpush1.xpose.msra.mxu0 0.0
    %7561 = vmatprep.subr.mxu0 0.0
    %7562 = vmatpush1.xpose.msra.mxu0 0.0
    %7563 = vmatprep.subr.mxu0 0.0
    %7564 = vmatpush1.xpose.msra.mxu0 0.0
    %7565 = vmatprep.subr.mxu0 0.0
    %7566 = vmatpush1.xpose.msra.mxu0 0.0
    %7567 = vmatprep.subr.mxu0 0.0
    %7568 = vmatpush1.xpose.msra.mxu0 0.0
    %7569 = vmatprep.subr.mxu0 0.0
    %7570 = vmatpush1.xpose.msra.mxu0 0.0
    %7571 = vmatprep.subr.mxu0 0.0
    %7572 = vmatpush1.xpose.msra.mxu0 0.0
    %7573 = vmatprep.subr.mxu0 0.0
    %7574 = vmatpush1.xpose.msra.mxu0 0.0
    %7575 = vmatprep.subr.mxu0 0.0
    %7576 = vmatpush1.xpose.msra.mxu0 0.0
    %7577 = vmatprep.subr.mxu0 0.0
    %7578 = vmatpush1.xpose.msra.mxu0 0.0
    %7579 = vmatprep.subr.mxu0 0.0
    %7580 = vmatpush1.xpose.msra.mxu0 0.0
    %7581 = vmatprep.subr.mxu0 0.0
    %7582 = vmatpush1.xpose.msra.mxu0 0.0
    %7583 = vmatprep.subr.mxu0 0.0
    %7584 = vmatpush1.xpose.msra.mxu0 0.0
    %7585 = vmatprep.subr.mxu0 0.0
    %7586 = vmatpush1.xpose.msra.mxu0 0.0
    %7587 = vmatprep.subr.mxu0 0.0
    %7588 = vmatpush1.xpose.msra.mxu0 0.0
    %7589 = vmatprep.subr.mxu0 0.0
    %7590 = vmatpush1.xpose.msra.mxu0 0.0
    %7591 = vmatprep.subr.mxu0 0.0
    %7592 = vmatpush1.xpose.msra.mxu0 0.0
    %7593 = vmatprep.subr.mxu0 0.0
    %7594 = vmatpush1.xpose.msra.mxu0 0.0
    %7595 = vmatprep.subr.mxu0 0.0
    %7596 = vmatpush1.xpose.msra.mxu0 0.0
    %7597 = vmatprep.subr.mxu0 0.0
    %7598 = vmatpush1.xpose.msra.mxu0 0.0
    %7599 = vmatprep.subr.mxu0 0.0
    %7600 = vmatpush1.xpose.msra.mxu0 0.0
    %7601 = vmatprep.subr.mxu0 0.0
    %7602 = vmatpush1.xpose.msra.mxu0 0.0
    %7603 = vmatprep.subr.mxu0 0.0
    %7604 = vmatpush1.xpose.msra.mxu0 0.0
    %7605 = vmatprep.subr.mxu0 0.0
    %7606 = vmatpush1.xpose.msra.mxu0 0.0
    %7607 = vmatprep.subr.mxu0 0.0
    %7608 = vmatpush1.xpose.msra.mxu0 0.0
    %7609 = vmatprep.subr.mxu0 0.0
    %7610 = vmatpush1.xpose.msra.mxu0 0.0
    %7611 = vmatprep.subr.mxu0 0.0
    %7612 = vmatpush1.xpose.msra.mxu0 0.0
    %7613 = vmatprep.subr.mxu0 0.0
    %7614 = vmatpush1.xpose.msra.mxu0 0.0
    %7615 = vmatprep.subr.mxu0 0.0
    %7616 = vmatpush1.xpose.msra.mxu0 0.0
    %7617 = vmatprep.subr.mxu0 0.0
    %7618 = vmatpush1.xpose.msra.mxu0 0.0
    %7619 = vmatprep.subr.mxu0 0.0
    %7620 = vmatpush1.xpose.msra.mxu0 0.0
    %7621 = vmatprep.mubr.f32.mxu0 0.0
    %7622 = vmatmul.mubr.f32.gmra.mrb[0].mxu0 %v7553
    %v7623 = vpop.f32.mrb[0].mxu0
    %v7624 = vadd.f32 0.0, %v7623
    %v7625 = vpop.f32.mrb[0].mxu0
    %7626 = vdwg.mxu0
    %7627 = vrot.lane.b32.xlu0 %v6690, 112
    %v7628 = vpop.permute.xlu0 %7627
    %7629 = vrot.lane.b32.xlu0 %v6690, 80
    %v7630 = vpop.permute.xlu0 %7629
    %v7631 = vsel %vm335, %v7628, 0
    %v7633 = vsel %vm335, %v7630, 0
    %7635 = vmatprep.subr.mxu0 0.0
    %7636 = vmatpush1.xpose.msra.mxu0 %v7633
    %7637 = vmatprep.subr.mxu0 0.0
    %7638 = vmatpush1.xpose.msra.mxu0 0.0
    %7639 = vmatprep.subr.mxu0 0.0
    %7640 = vmatpush1.xpose.msra.mxu0 0.0
    %7641 = vmatprep.subr.mxu0 0.0
    %7642 = vmatpush1.xpose.msra.mxu0 0.0
    %7643 = vmatprep.subr.mxu0 0.0
    %7644 = vmatpush1.xpose.msra.mxu0 0.0
    %7645 = vmatprep.subr.mxu0 0.0
    %7646 = vmatpush1.xpose.msra.mxu0 0.0
    %7647 = vmatprep.subr.mxu0 0.0
    %7648 = vmatpush1.xpose.msra.mxu0 0.0
    %7649 = vmatprep.subr.mxu0 0.0
    %7650 = vmatpush1.xpose.msra.mxu0 0.0
    %7651 = vmatprep.subr.mxu0 0.0
    %7652 = vmatpush1.xpose.msra.mxu0 0.0
    %7653 = vmatprep.subr.mxu0 0.0
    %7654 = vmatpush1.xpose.msra.mxu0 0.0
    %7655 = vmatprep.subr.mxu0 0.0
    %7656 = vmatpush1.xpose.msra.mxu0 0.0
    %7657 = vmatprep.subr.mxu0 0.0
    %7658 = vmatpush1.xpose.msra.mxu0 0.0
    %7659 = vmatprep.subr.mxu0 0.0
    %7660 = vmatpush1.xpose.msra.mxu0 0.0
    %7661 = vmatprep.subr.mxu0 0.0
    %7662 = vmatpush1.xpose.msra.mxu0 0.0
    %7663 = vmatprep.subr.mxu0 0.0
    %7664 = vmatpush1.xpose.msra.mxu0 0.0
    %7665 = vmatprep.subr.mxu0 0.0
    %7666 = vmatpush1.xpose.msra.mxu0 0.0
    %7667 = vmatprep.subr.mxu0 0.0
    %7668 = vmatpush1.xpose.msra.mxu0 0.0
    %7669 = vmatprep.subr.mxu0 0.0
    %7670 = vmatpush1.xpose.msra.mxu0 0.0
    %7671 = vmatprep.subr.mxu0 0.0
    %7672 = vmatpush1.xpose.msra.mxu0 0.0
    %7673 = vmatprep.subr.mxu0 0.0
    %7674 = vmatpush1.xpose.msra.mxu0 0.0
    %7675 = vmatprep.subr.mxu0 0.0
    %7676 = vmatpush1.xpose.msra.mxu0 0.0
    %7677 = vmatprep.subr.mxu0 0.0
    %7678 = vmatpush1.xpose.msra.mxu0 0.0
    %7679 = vmatprep.subr.mxu0 0.0
    %7680 = vmatpush1.xpose.msra.mxu0 0.0
    %7681 = vmatprep.subr.mxu0 0.0
    %7682 = vmatpush1.xpose.msra.mxu0 0.0
    %7683 = vmatprep.subr.mxu0 0.0
    %7684 = vmatpush1.xpose.msra.mxu0 0.0
    %7685 = vmatprep.subr.mxu0 0.0
    %7686 = vmatpush1.xpose.msra.mxu0 0.0
    %7687 = vmatprep.subr.mxu0 0.0
    %7688 = vmatpush1.xpose.msra.mxu0 0.0
    %7689 = vmatprep.subr.mxu0 0.0
    %7690 = vmatpush1.xpose.msra.mxu0 0.0
    %7691 = vmatprep.subr.mxu0 0.0
    %7692 = vmatpush1.xpose.msra.mxu0 0.0
    %7693 = vmatprep.subr.mxu0 0.0
    %7694 = vmatpush1.xpose.msra.mxu0 0.0
    %7695 = vmatprep.subr.mxu0 0.0
    %7696 = vmatpush1.xpose.msra.mxu0 0.0
    %7697 = vmatprep.subr.mxu0 0.0
    %7698 = vmatpush1.xpose.msra.mxu0 0.0
    %7699 = vmatprep.mubr.f32.mxu0 0.0
    %7700 = vmatmul.mubr.f32.gmra.mrb[0].mxu0 %v7631
    %v7701 = vpop.f32.mrb[0].mxu0
    %v7702 = vadd.f32 0.0, %v7701
    %v7703 = vpop.f32.mrb[0].mxu0
    %7704 = vdwg.mxu0
    %7705 = vrot.lane.b32.xlu0 %v6690, 108
    %v7706 = vpop.permute.xlu0 %7705
    %7707 = vrot.lane.b32.xlu0 %v6690, 76
    %v7708 = vpop.permute.xlu0 %7707
    %v7709 = vsel %vm335, %v7706, 0
    %v7711 = vsel %vm335, %v7708, 0
    %7713 = vmatprep.subr.mxu0 0.0
    %7714 = vmatpush1.xpose.msra.mxu0 %v7711
    %7715 = vmatprep.subr.mxu0 0.0
    %7716 = vmatpush1.xpose.msra.mxu0 0.0
    %7717 = vmatprep.subr.mxu0 0.0
    %7718 = vmatpush1.xpose.msra.mxu0 0.0
    %7719 = vmatprep.subr.mxu0 0.0
    %7720 = vmatpush1.xpose.msra.mxu0 0.0
    %7721 = vmatprep.subr.mxu0 0.0
    %7722 = vmatpush1.xpose.msra.mxu0 0.0
    %7723 = vmatprep.subr.mxu0 0.0
    %7724 = vmatpush1.xpose.msra.mxu0 0.0
    %7725 = vmatprep.subr.mxu0 0.0
    %7726 = vmatpush1.xpose.msra.mxu0 0.0
    %7727 = vmatprep.subr.mxu0 0.0
    %7728 = vmatpush1.xpose.msra.mxu0 0.0
    %7729 = vmatprep.subr.mxu0 0.0
    %7730 = vmatpush1.xpose.msra.mxu0 0.0
    %7731 = vmatprep.subr.mxu0 0.0
    %7732 = vmatpush1.xpose.msra.mxu0 0.0
    %7733 = vmatprep.subr.mxu0 0.0
    %7734 = vmatpush1.xpose.msra.mxu0 0.0
    %7735 = vmatprep.subr.mxu0 0.0
    %7736 = vmatpush1.xpose.msra.mxu0 0.0
    %7737 = vmatprep.subr.mxu0 0.0
    %7738 = vmatpush1.xpose.msra.mxu0 0.0
    %7739 = vmatprep.subr.mxu0 0.0
    %7740 = vmatpush1.xpose.msra.mxu0 0.0
    %7741 = vmatprep.subr.mxu0 0.0
    %7742 = vmatpush1.xpose.msra.mxu0 0.0
    %7743 = vmatprep.subr.mxu0 0.0
    %7744 = vmatpush1.xpose.msra.mxu0 0.0
    %7745 = vmatprep.subr.mxu0 0.0
    %7746 = vmatpush1.xpose.msra.mxu0 0.0
    %7747 = vmatprep.subr.mxu0 0.0
    %7748 = vmatpush1.xpose.msra.mxu0 0.0
    %7749 = vmatprep.subr.mxu0 0.0
    %7750 = vmatpush1.xpose.msra.mxu0 0.0
    %7751 = vmatprep.subr.mxu0 0.0
    %7752 = vmatpush1.xpose.msra.mxu0 0.0
    %7753 = vmatprep.subr.mxu0 0.0
    %7754 = vmatpush1.xpose.msra.mxu0 0.0
    %7755 = vmatprep.subr.mxu0 0.0
    %7756 = vmatpush1.xpose.msra.mxu0 0.0
    %7757 = vmatprep.subr.mxu0 0.0
    %7758 = vmatpush1.xpose.msra.mxu0 0.0
    %7759 = vmatprep.subr.mxu0 0.0
    %7760 = vmatpush1.xpose.msra.mxu0 0.0
    %7761 = vmatprep.subr.mxu0 0.0
    %7762 = vmatpush1.xpose.msra.mxu0 0.0
    %7763 = vmatprep.subr.mxu0 0.0
    %7764 = vmatpush1.xpose.msra.mxu0 0.0
    %7765 = vmatprep.subr.mxu0 0.0
    %7766 = vmatpush1.xpose.msra.mxu0 0.0
    %7767 = vmatprep.subr.mxu0 0.0
    %7768 = vmatpush1.xpose.msra.mxu0 0.0
    %7769 = vmatprep.subr.mxu0 0.0
    %7770 = vmatpush1.xpose.msra.mxu0 0.0
    %7771 = vmatprep.subr.mxu0 0.0
    %7772 = vmatpush1.xpose.msra.mxu0 0.0
    %7773 = vmatprep.subr.mxu0 0.0
    %7774 = vmatpush1.xpose.msra.mxu0 0.0
    %7775 = vmatprep.subr.mxu0 0.0
    %7776 = vmatpush1.xpose.msra.mxu0 0.0
    %7777 = vmatprep.mubr.f32.mxu0 0.0
    %7778 = vmatmul.mubr.f32.gmra.mrb[0].mxu0 %v7709
    %v7779 = vpop.f32.mrb[0].mxu0
    %v7780 = vadd.f32 0.0, %v7779
    %v7781 = vpop.f32.mrb[0].mxu0
    %7782 = vdwg.mxu0
    %7783 = vrot.lane.b32.xlu0 %v6690, 104
    %v7784 = vpop.permute.xlu0 %7783
    %7785 = vrot.lane.b32.xlu0 %v6690, 72
    %v7786 = vpop.permute.xlu0 %7785
    %v7787 = vsel %vm335, %v7784, 0
    %v7789 = vsel %vm335, %v7786, 0
    %7791 = vmatprep.subr.mxu0 0.0
    %7792 = vmatpush1.xpose.msra.mxu0 %v7789
    %7793 = vmatprep.subr.mxu0 0.0
    %7794 = vmatpush1.xpose.msra.mxu0 0.0
    %7795 = vmatprep.subr.mxu0 0.0
    %7796 = vmatpush1.xpose.msra.mxu0 0.0
    %7797 = vmatprep.subr.mxu0 0.0
    %7798 = vmatpush1.xpose.msra.mxu0 0.0
    %7799 = vmatprep.subr.mxu0 0.0
    %7800 = vmatpush1.xpose.msra.mxu0 0.0
    %7801 = vmatprep.subr.mxu0 0.0
    %7802 = vmatpush1.xpose.msra.mxu0 0.0
    %7803 = vmatprep.subr.mxu0 0.0
    %7804 = vmatpush1.xpose.msra.mxu0 0.0
    %7805 = vmatprep.subr.mxu0 0.0
    %7806 = vmatpush1.xpose.msra.mxu0 0.0
    %7807 = vmatprep.subr.mxu0 0.0
    %7808 = vmatpush1.xpose.msra.mxu0 0.0
    %7809 = vmatprep.subr.mxu0 0.0
    %7810 = vmatpush1.xpose.msra.mxu0 0.0
    %7811 = vmatprep.subr.mxu0 0.0
    %7812 = vmatpush1.xpose.msra.mxu0 0.0
    %7813 = vmatprep.subr.mxu0 0.0
    %7814 = vmatpush1.xpose.msra.mxu0 0.0
    %7815 = vmatprep.subr.mxu0 0.0
    %7816 = vmatpush1.xpose.msra.mxu0 0.0
    %7817 = vmatprep.subr.mxu0 0.0
    %7818 = vmatpush1.xpose.msra.mxu0 0.0
    %7819 = vmatprep.subr.mxu0 0.0
    %7820 = vmatpush1.xpose.msra.mxu0 0.0
    %7821 = vmatprep.subr.mxu0 0.0
    %7822 = vmatpush1.xpose.msra.mxu0 0.0
    %7823 = vmatprep.subr.mxu0 0.0
    %7824 = vmatpush1.xpose.msra.mxu0 0.0
    %7825 = vmatprep.subr.mxu0 0.0
    %7826 = vmatpush1.xpose.msra.mxu0 0.0
    %7827 = vmatprep.subr.mxu0 0.0
    %7828 = vmatpush1.xpose.msra.mxu0 0.0
    %7829 = vmatprep.subr.mxu0 0.0
    %7830 = vmatpush1.xpose.msra.mxu0 0.0
    %7831 = vmatprep.subr.mxu0 0.0
    %7832 = vmatpush1.xpose.msra.mxu0 0.0
    %7833 = vmatprep.subr.mxu0 0.0
    %7834 = vmatpush1.xpose.msra.mxu0 0.0
    %7835 = vmatprep.subr.mxu0 0.0
    %7836 = vmatpush1.xpose.msra.mxu0 0.0
    %7837 = vmatprep.subr.mxu0 0.0
    %7838 = vmatpush1.xpose.msra.mxu0 0.0
    %7839 = vmatprep.subr.mxu0 0.0
    %7840 = vmatpush1.xpose.msra.mxu0 0.0
    %7841 = vmatprep.subr.mxu0 0.0
    %7842 = vmatpush1.xpose.msra.mxu0 0.0
    %7843 = vmatprep.subr.mxu0 0.0
    %7844 = vmatpush1.xpose.msra.mxu0 0.0
    %7845 = vmatprep.subr.mxu0 0.0
    %7846 = vmatpush1.xpose.msra.mxu0 0.0
    %7847 = vmatprep.subr.mxu0 0.0
    %7848 = vmatpush1.xpose.msra.mxu0 0.0
    %7849 = vmatprep.subr.mxu0 0.0
    %7850 = vmatpush1.xpose.msra.mxu0 0.0
    %7851 = vmatprep.subr.mxu0 0.0
    %7852 = vmatpush1.xpose.msra.mxu0 0.0
    %7853 = vmatprep.subr.mxu0 0.0
    %7854 = vmatpush1.xpose.msra.mxu0 0.0
    %7855 = vmatprep.mubr.f32.mxu0 0.0
    %7856 = vmatmul.mubr.f32.gmra.mrb[0].mxu0 %v7787
    %v7857 = vpop.f32.mrb[0].mxu0
    %v7858 = vadd.f32 0.0, %v7857
    %v7859 = vpop.f32.mrb[0].mxu0
    %7860 = vdwg.mxu0
    %7861 = vrot.lane.b32.xlu0 %v6690, 100
    %v7862 = vpop.permute.xlu0 %7861
    %7863 = vrot.lane.b32.xlu0 %v6690, 68
    %v7864 = vpop.permute.xlu0 %7863
    %v7865 = vsel %vm335, %v7862, 0
    %v7867 = vsel %vm335, %v7864, 0
    %7869 = vmatprep.subr.mxu0 0.0
    %7870 = vmatpush1.xpose.msra.mxu0 %v7867
    %7871 = vmatprep.subr.mxu0 0.0
    %7872 = vmatpush1.xpose.msra.mxu0 0.0
    %7873 = vmatprep.subr.mxu0 0.0
    %7874 = vmatpush1.xpose.msra.mxu0 0.0
    %7875 = vmatprep.subr.mxu0 0.0
    %7876 = vmatpush1.xpose.msra.mxu0 0.0
    %7877 = vmatprep.subr.mxu0 0.0
    %7878 = vmatpush1.xpose.msra.mxu0 0.0
    %7879 = vmatprep.subr.mxu0 0.0
    %7880 = vmatpush1.xpose.msra.mxu0 0.0
    %7881 = vmatprep.subr.mxu0 0.0
    %7882 = vmatpush1.xpose.msra.mxu0 0.0
    %7883 = vmatprep.subr.mxu0 0.0
    %7884 = vmatpush1.xpose.msra.mxu0 0.0
    %7885 = vmatprep.subr.mxu0 0.0
    %7886 = vmatpush1.xpose.msra.mxu0 0.0
    %7887 = vmatprep.subr.mxu0 0.0
    %7888 = vmatpush1.xpose.msra.mxu0 0.0
    %7889 = vmatprep.subr.mxu0 0.0
    %7890 = vmatpush1.xpose.msra.mxu0 0.0
    %7891 = vmatprep.subr.mxu0 0.0
    %7892 = vmatpush1.xpose.msra.mxu0 0.0
    %7893 = vmatprep.subr.mxu0 0.0
    %7894 = vmatpush1.xpose.msra.mxu0 0.0
    %7895 = vmatprep.subr.mxu0 0.0
    %7896 = vmatpush1.xpose.msra.mxu0 0.0
    %7897 = vmatprep.subr.mxu0 0.0
    %7898 = vmatpush1.xpose.msra.mxu0 0.0
    %7899 = vmatprep.subr.mxu0 0.0
    %7900 = vmatpush1.xpose.msra.mxu0 0.0
    %7901 = vmatprep.subr.mxu0 0.0
    %7902 = vmatpush1.xpose.msra.mxu0 0.0
    %7903 = vmatprep.subr.mxu0 0.0
    %7904 = vmatpush1.xpose.msra.mxu0 0.0
    %7905 = vmatprep.subr.mxu0 0.0
    %7906 = vmatpush1.xpose.msra.mxu0 0.0
    %7907 = vmatprep.subr.mxu0 0.0
    %7908 = vmatpush1.xpose.msra.mxu0 0.0
    %7909 = vmatprep.subr.mxu0 0.0
    %7910 = vmatpush1.xpose.msra.mxu0 0.0
    %7911 = vmatprep.subr.mxu0 0.0
    %7912 = vmatpush1.xpose.msra.mxu0 0.0
    %7913 = vmatprep.subr.mxu0 0.0
    %7914 = vmatpush1.xpose.msra.mxu0 0.0
    %7915 = vmatprep.subr.mxu0 0.0
    %7916 = vmatpush1.xpose.msra.mxu0 0.0
    %7917 = vmatprep.subr.mxu0 0.0
    %7918 = vmatpush1.xpose.msra.mxu0 0.0
    %7919 = vmatprep.subr.mxu0 0.0
    %7920 = vmatpush1.xpose.msra.mxu0 0.0
    %7921 = vmatprep.subr.mxu0 0.0
    %7922 = vmatpush1.xpose.msra.mxu0 0.0
    %7923 = vmatprep.subr.mxu0 0.0
    %7924 = vmatpush1.xpose.msra.mxu0 0.0
    %7925 = vmatprep.subr.mxu0 0.0
    %7926 = vmatpush1.xpose.msra.mxu0 0.0
    %7927 = vmatprep.subr.mxu0 0.0
    %7928 = vmatpush1.xpose.msra.mxu0 0.0
    %7929 = vmatprep.subr.mxu0 0.0
    %7930 = vmatpush1.xpose.msra.mxu0 0.0
    %7931 = vmatprep.subr.mxu0 0.0
    %7932 = vmatpush1.xpose.msra.mxu0 0.0
    %7933 = vmatprep.mubr.f32.mxu0 0.0
    %7934 = vmatmul.mubr.f32.gmra.mrb[0].mxu0 %v7865
    %v7935 = vpop.f32.mrb[0].mxu0
    %v7936 = vadd.f32 0.0, %v7935
    %v7937 = vpop.f32.mrb[0].mxu0
    %7938 = vdwg.mxu0
    %v7939 = vmul.f32 %v6767, 0.5
    %v7940 = vmul.f32 %v6845, 0.5
    %v7941 = vmul.f32 %v6923, 0.5
    %v7942 = vmul.f32 %v7001, 0.5
    %v7943 = vmul.f32 %v7079, 0.5
    %v7944 = vmul.f32 %v7157, 0.5
    %v7945 = vmul.f32 %v7235, 0.5
    %v7946 = vmul.f32 %v7313, 0.5
    %v7947 = vmul.f32 %v7390, 0.5
    %v7948 = vmul.f32 %v7468, 0.5
    %v7949 = vmul.f32 %v7546, 0.5
    %v7950 = vmul.f32 %v7624, 0.5
    %v7951 = vmul.f32 %v7702, 0.5
    %v7952 = vmul.f32 %v7780, 0.5
    %v7953 = vmul.f32 %v7858, 0.5
    %v7954 = vmul.f32 %v7936, 0.5
    %v7955 = vsel %vm1595, %v7939, -inf
    %7956 = vmax.xlane.f32.xlu0 %v7955
    %v7957 = vpop.xlane.xlu0 %7956
    %v7958 = vsel %vm1595, %v7940, -inf
    %7959 = vmax.xlane.f32.xlu0 %v7958
    %v7960 = vpop.xlane.xlu0 %7959
    %v7961 = vsel %vm1595, %v7941, -inf
    %7962 = vmax.xlane.f32.xlu0 %v7961
    %v7963 = vpop.xlane.xlu0 %7962
    %v7964 = vsel %vm1595, %v7942, -inf
    %7965 = vmax.xlane.f32.xlu0 %v7964
    %v7966 = vpop.xlane.xlu0 %7965
    %v7967 = vsel %vm1595, %v7943, -inf
    %7968 = vmax.xlane.f32.xlu0 %v7967
    %v7969 = vpop.xlane.xlu0 %7968
    %v7970 = vsel %vm1595, %v7944, -inf
    %7971 = vmax.xlane.f32.xlu0 %v7970
    %v7972 = vpop.xlane.xlu0 %7971
    %v7973 = vsel %vm1595, %v7945, -inf
    %7974 = vmax.xlane.f32.xlu0 %v7973
    %v7975 = vpop.xlane.xlu0 %7974
    %v7976 = vsel %vm1595, %v7946, -inf
    %7977 = vmax.xlane.f32.xlu0 %v7976
    %v7978 = vpop.xlane.xlu0 %7977
    %v7979 = vsel %vm1595, %v7947, -inf
    %7980 = vmax.xlane.f32.xlu0 %v7979
    %v7981 = vpop.xlane.xlu0 %7980
    %v7982 = vsel %vm1595, %v7948, -inf
    %7983 = vmax.xlane.f32.xlu0 %v7982
    %v7984 = vpop.xlane.xlu0 %7983
    %v7985 = vsel %vm1595, %v7949, -inf
    %7986 = vmax.xlane.f32.xlu0 %v7985
    %v7987 = vpop.xlane.xlu0 %7986
    %v7988 = vsel %vm1595, %v7950, -inf
    %7989 = vmax.xlane.f32.xlu0 %v7988
    %v7990 = vpop.xlane.xlu0 %7989
    %v7991 = vsel %vm1595, %v7951, -inf
    %7992 = vmax.xlane.f32.xlu0 %v7991
    %v7993 = vpop.xlane.xlu0 %7992
    %v7994 = vsel %vm1595, %v7952, -inf
    %7995 = vmax.xlane.f32.xlu0 %v7994
    %v7996 = vpop.xlane.xlu0 %7995
    %v7997 = vsel %vm1595, %v7953, -inf
    %7998 = vmax.xlane.f32.xlu0 %v7997
    %v7999 = vpop.xlane.xlu0 %7998
    %v8000 = vsel %vm1595, %v7954, -inf
    %8001 = vmax.xlane.f32.xlu0 %v8000
    %v8002 = vpop.xlane.xlu0 %8001
    %v8003 = vsub.f32 %v7939, %v7957
    %v8004 = vsub.f32 %v7940, %v7960
    %v8005 = vsub.f32 %v7941, %v7963
    %v8006 = vsub.f32 %v7942, %v7966
    %v8007 = vsub.f32 %v7943, %v7969
    %v8008 = vsub.f32 %v7944, %v7972
    %v8009 = vsub.f32 %v7945, %v7975
    %v8010 = vsub.f32 %v7946, %v7978
    %v8011 = vsub.f32 %v7947, %v7981
    %v8012 = vsub.f32 %v7948, %v7984
    %v8013 = vsub.f32 %v7949, %v7987
    %v8014 = vsub.f32 %v7950, %v7990
    %v8015 = vsub.f32 %v7951, %v7993
    %v8016 = vsub.f32 %v7952, %v7996
    %v8017 = vsub.f32 %v7953, %v7999
    %v8018 = vsub.f32 %v7954, %v8002
    %v8019 = vmul.f32 %v8003, 1.442695
    %v8020 = vpow.pop %v8019
    %v8021 = vmul.f32 %v8004, 1.442695
    %v8022 = vpow.pop %v8021
    %v8023 = vmul.f32 %v8005, 1.442695
    %v8024 = vpow.pop %v8023
    %v8025 = vmul.f32 %v8006, 1.442695
    %v8026 = vpow.pop %v8025
    %v8027 = vmul.f32 %v8007, 1.442695
    %v8028 = vpow.pop %v8027
    %v8029 = vmul.f32 %v8008, 1.442695
    %v8030 = vpow.pop %v8029
    %v8031 = vmul.f32 %v8009, 1.442695
    %v8032 = vpow.pop %v8031
    %v8033 = vmul.f32 %v8010, 1.442695
    %v8034 = vpow.pop %v8033
    %v8035 = vmul.f32 %v8011, 1.442695
    %v8036 = vpow.pop %v8035
    %v8037 = vmul.f32 %v8012, 1.442695
    %v8038 = vpow.pop %v8037
    %v8039 = vmul.f32 %v8013, 1.442695
    %v8040 = vpow.pop %v8039
    %v8041 = vmul.f32 %v8014, 1.442695
    %v8042 = vpow.pop %v8041
    %v8043 = vmul.f32 %v8015, 1.442695
    %v8044 = vpow.pop %v8043
    %v8045 = vmul.f32 %v8016, 1.442695
    %v8046 = vpow.pop %v8045
    %v8047 = vmul.f32 %v8017, 1.442695
    %v8048 = vpow.pop %v8047
    %v8049 = vmul.f32 %v8018, 1.442695
    %v8050 = vpow.pop %v8049
    %v8051 = vsel %vm1595, %v8020, 0.0
    %8052 = vadd.xlane.f32.xlu0 %v8051
    %v8053 = vpop.xlane.xlu0 %8052
    %v8054 = vsel %vm1595, %v8022, 0.0
    %8055 = vadd.xlane.f32.xlu0 %v8054
    %v8056 = vpop.xlane.xlu0 %8055
    %v8057 = vsel %vm1595, %v8024, 0.0
    %8058 = vadd.xlane.f32.xlu0 %v8057
    %v8059 = vpop.xlane.xlu0 %8058
    %v8060 = vsel %vm1595, %v8026, 0.0
    %8061 = vadd.xlane.f32.xlu0 %v8060
    %v8062 = vpop.xlane.xlu0 %8061
    %v8063 = vsel %vm1595, %v8028, 0.0
    %8064 = vadd.xlane.f32.xlu0 %v8063
    %v8065 = vpop.xlane.xlu0 %8064
    %v8066 = vsel %vm1595, %v8030, 0.0
    %8067 = vadd.xlane.f32.xlu0 %v8066
    %v8068 = vpop.xlane.xlu0 %8067
    %v8069 = vsel %vm1595, %v8032, 0.0
    %8070 = vadd.xlane.f32.xlu0 %v8069
    %v8071 = vpop.xlane.xlu0 %8070
    %v8072 = vsel %vm1595, %v8034, 0.0
    %8073 = vadd.xlane.f32.xlu0 %v8072
    %v8074 = vpop.xlane.xlu0 %8073
    %v8075 = vsel %vm1595, %v8036, 0.0
    %8076 = vadd.xlane.f32.xlu0 %v8075
    %v8077 = vpop.xlane.xlu0 %8076
    %v8078 = vsel %vm1595, %v8038, 0.0
    %8079 = vadd.xlane.f32.xlu0 %v8078
    %v8080 = vpop.xlane.xlu0 %8079
    %v8081 = vsel %vm1595, %v8040, 0.0
    %8082 = vadd.xlane.f32.xlu0 %v8081
    %v8083 = vpop.xlane.xlu0 %8082
    %v8084 = vsel %vm1595, %v8042, 0.0
    %8085 = vadd.xlane.f32.xlu0 %v8084
    %v8086 = vpop.xlane.xlu0 %8085
    %v8087 = vsel %vm1595, %v8044, 0.0
    %8088 = vadd.xlane.f32.xlu0 %v8087
    %v8089 = vpop.xlane.xlu0 %8088
    %v8090 = vsel %vm1595, %v8046, 0.0
    %8091 = vadd.xlane.f32.xlu0 %v8090
    %v8092 = vpop.xlane.xlu0 %8091
    %v8093 = vsel %vm1595, %v8048, 0.0
    %8094 = vadd.xlane.f32.xlu0 %v8093
    %v8095 = vpop.xlane.xlu0 %8094
    %v8096 = vsel %vm1595, %v8050, 0.0
    %8097 = vadd.xlane.f32.xlu0 %v8096
    %v8098 = vpop.xlane.xlu0 %8097
    %v8099 = vrcp.pop %v8053
    %v8100 = vrcp.pop %v8056
    %v8101 = vrcp.pop %v8059
    %v8102 = vrcp.pop %v8062
    %v8103 = vrcp.pop %v8065
    %v8104 = vrcp.pop %v8068
    %v8105 = vrcp.pop %v8071
    %v8106 = vrcp.pop %v8074
    %v8107 = vrcp.pop %v8077
    %v8108 = vrcp.pop %v8080
    %v8109 = vrcp.pop %v8083
    %v8110 = vrcp.pop %v8086
    %v8111 = vrcp.pop %v8089
    %v8112 = vrcp.pop %v8092
    %v8113 = vrcp.pop %v8095
    %v8114 = vrcp.pop %v8098
    %v8115 = vmul.f32 %v8020, %v8099
    %v8116 = vmul.f32 %v8022, %v8100
    %v8117 = vmul.f32 %v8024, %v8101
    %v8118 = vmul.f32 %v8026, %v8102
    %v8119 = vmul.f32 %v8028, %v8103
    %v8120 = vmul.f32 %v8030, %v8104
    %v8121 = vmul.f32 %v8032, %v8105
    %v8122 = vmul.f32 %v8034, %v8106
    %v8123 = vmul.f32 %v8036, %v8107
    %v8124 = vmul.f32 %v8038, %v8108
    %v8125 = vmul.f32 %v8040, %v8109
    %v8126 = vmul.f32 %v8042, %v8110
    %v8127 = vmul.f32 %v8044, %v8111
    %v8128 = vmul.f32 %v8046, %v8112
    %v8129 = vmul.f32 %v8048, %v8113
    %v8130 = vmul.f32 %v8050, %v8114
    %8131 = vrot.lane.b32.xlu0 %v6685, 64
    %v8132 = vpop.permute.xlu0 %8131
    %v8135 = vsel %vm1595, %v8115, 0
    %8137 = vmatprep.subr.mxu0 0.0
    %8138 = vmatpush1.msra.mxu0 %v8132
    %8139 = vmatprep.subr.mxu0 0.0
    %8140 = vmatpush1.msra.mxu0 0.0
    %8141 = vmatprep.subr.mxu0 0.0
    %8142 = vmatpush1.msra.mxu0 0.0
    %8143 = vmatprep.subr.mxu0 0.0
    %8144 = vmatpush1.msra.mxu0 0.0
    %8145 = vmatprep.subr.mxu0 0.0
    %8146 = vmatpush1.msra.mxu0 0.0
    %8147 = vmatprep.subr.mxu0 0.0
    %8148 = vmatpush1.msra.mxu0 0.0
    %8149 = vmatprep.subr.mxu0 0.0
    %8150 = vmatpush1.msra.mxu0 0.0
    %8151 = vmatprep.subr.mxu0 0.0
    %8152 = vmatpush1.msra.mxu0 0.0
    %8153 = vmatprep.subr.mxu0 0.0
    %8154 = vmatpush1.msra.mxu0 0.0
    %8155 = vmatprep.subr.mxu0 0.0
    %8156 = vmatpush1.msra.mxu0 0.0
    %8157 = vmatprep.subr.mxu0 0.0
    %8158 = vmatpush1.msra.mxu0 0.0
    %8159 = vmatprep.subr.mxu0 0.0
    %8160 = vmatpush1.msra.mxu0 0.0
    %8161 = vmatprep.subr.mxu0 0.0
    %8162 = vmatpush1.msra.mxu0 0.0
    %8163 = vmatprep.subr.mxu0 0.0
    %8164 = vmatpush1.msra.mxu0 0.0
    %8165 = vmatprep.subr.mxu0 0.0
    %8166 = vmatpush1.msra.mxu0 0.0
    %8167 = vmatprep.subr.mxu0 0.0
    %8168 = vmatpush1.msra.mxu0 0.0
    %8169 = vmatprep.subr.mxu0 0.0
    %8170 = vmatpush1.msra.mxu0 0.0
    %8171 = vmatprep.subr.mxu0 0.0
    %8172 = vmatpush1.msra.mxu0 0.0
    %8173 = vmatprep.subr.mxu0 0.0
    %8174 = vmatpush1.msra.mxu0 0.0
    %8175 = vmatprep.subr.mxu0 0.0
    %8176 = vmatpush1.msra.mxu0 0.0
    %8177 = vmatprep.subr.mxu0 0.0
    %8178 = vmatpush1.msra.mxu0 0.0
    %8179 = vmatprep.subr.mxu0 0.0
    %8180 = vmatpush1.msra.mxu0 0.0
    %8181 = vmatprep.subr.mxu0 0.0
    %8182 = vmatpush1.msra.mxu0 0.0
    %8183 = vmatprep.subr.mxu0 0.0
    %8184 = vmatpush1.msra.mxu0 0.0
    %8185 = vmatprep.subr.mxu0 0.0
    %8186 = vmatpush1.msra.mxu0 0.0
    %8187 = vmatprep.subr.mxu0 0.0
    %8188 = vmatpush1.msra.mxu0 0.0
    %8189 = vmatprep.subr.mxu0 0.0
    %8190 = vmatpush1.msra.mxu0 0.0
    %8191 = vmatprep.subr.mxu0 0.0
    %8192 = vmatpush1.msra.mxu0 0.0
    %8193 = vmatprep.subr.mxu0 0.0
    %8194 = vmatpush1.msra.mxu0 0.0
    %8195 = vmatprep.subr.mxu0 0.0
    %8196 = vmatpush1.msra.mxu0 0.0
    %8197 = vmatprep.subr.mxu0 0.0
    %8198 = vmatpush1.msra.mxu0 0.0
    %8199 = vmatprep.subr.mxu0 0.0
    %8200 = vmatpush1.msra.mxu0 0.0
    %8201 = vmatprep.mubr.f32.mxu0 0.0
    %8202 = vmatmul.mubr.f32.gmra.mrb[0].mxu0 %v8135
    %v8203 = vpop.f32.mrb[0].mxu0
    %v8204 = vadd.f32 0.0, %v8203
    %v8205 = vpop.f32.mrb[0].mxu0
    %8206 = vdwg.mxu0
    %8207 = vrot.lane.b32.xlu0 %v6685, 60
    %v8208 = vpop.permute.xlu0 %8207
    %v8211 = vsel %vm1595, %v8116, 0
    %8213 = vmatprep.subr.mxu0 0.0
    %8214 = vmatpush1.msra.mxu0 %v8208
    %8215 = vmatprep.subr.mxu0 0.0
    %8216 = vmatpush1.msra.mxu0 0.0
    %8217 = vmatprep.subr.mxu0 0.0
    %8218 = vmatpush1.msra.mxu0 0.0
    %8219 = vmatprep.subr.mxu0 0.0
    %8220 = vmatpush1.msra.mxu0 0.0
    %8221 = vmatprep.subr.mxu0 0.0
    %8222 = vmatpush1.msra.mxu0 0.0
    %8223 = vmatprep.subr.mxu0 0.0
    %8224 = vmatpush1.msra.mxu0 0.0
    %8225 = vmatprep.subr.mxu0 0.0
    %8226 = vmatpush1.msra.mxu0 0.0
    %8227 = vmatprep.subr.mxu0 0.0
    %8228 = vmatpush1.msra.mxu0 0.0
    %8229 = vmatprep.subr.mxu0 0.0
    %8230 = vmatpush1.msra.mxu0 0.0
    %8231 = vmatprep.subr.mxu0 0.0
    %8232 = vmatpush1.msra.mxu0 0.0
    %8233 = vmatprep.subr.mxu0 0.0
    %8234 = vmatpush1.msra.mxu0 0.0
    %8235 = vmatprep.subr.mxu0 0.0
    %8236 = vmatpush1.msra.mxu0 0.0
    %8237 = vmatprep.subr.mxu0 0.0
    %8238 = vmatpush1.msra.mxu0 0.0
    %8239 = vmatprep.subr.mxu0 0.0
    %8240 = vmatpush1.msra.mxu0 0.0
    %8241 = vmatprep.subr.mxu0 0.0
    %8242 = vmatpush1.msra.mxu0 0.0
    %8243 = vmatprep.subr.mxu0 0.0
    %8244 = vmatpush1.msra.mxu0 0.0
    %8245 = vmatprep.subr.mxu0 0.0
    %8246 = vmatpush1.msra.mxu0 0.0
    %8247 = vmatprep.subr.mxu0 0.0
    %8248 = vmatpush1.msra.mxu0 0.0
    %8249 = vmatprep.subr.mxu0 0.0
    %8250 = vmatpush1.msra.mxu0 0.0
    %8251 = vmatprep.subr.mxu0 0.0
    %8252 = vmatpush1.msra.mxu0 0.0
    %8253 = vmatprep.subr.mxu0 0.0
    %8254 = vmatpush1.msra.mxu0 0.0
    %8255 = vmatprep.subr.mxu0 0.0
    %8256 = vmatpush1.msra.mxu0 0.0
    %8257 = vmatprep.subr.mxu0 0.0
    %8258 = vmatpush1.msra.mxu0 0.0
    %8259 = vmatprep.subr.mxu0 0.0
    %8260 = vmatpush1.msra.mxu0 0.0
    %8261 = vmatprep.subr.mxu0 0.0
    %8262 = vmatpush1.msra.mxu0 0.0
    %8263 = vmatprep.subr.mxu0 0.0
    %8264 = vmatpush1.msra.mxu0 0.0
    %8265 = vmatprep.subr.mxu0 0.0
    %8266 = vmatpush1.msra.mxu0 0.0
    %8267 = vmatprep.subr.mxu0 0.0
    %8268 = vmatpush1.msra.mxu0 0.0
    %8269 = vmatprep.subr.mxu0 0.0
    %8270 = vmatpush1.msra.mxu0 0.0
    %8271 = vmatprep.subr.mxu0 0.0
    %8272 = vmatpush1.msra.mxu0 0.0
    %8273 = vmatprep.subr.mxu0 0.0
    %8274 = vmatpush1.msra.mxu0 0.0
    %8275 = vmatprep.subr.mxu0 0.0
    %8276 = vmatpush1.msra.mxu0 0.0
    %8277 = vmatprep.mubr.f32.mxu0 0.0
    %8278 = vmatmul.mubr.f32.gmra.mrb[0].mxu0 %v8211
    %v8279 = vpop.f32.mrb[0].mxu0
    %v8280 = vadd.f32 0.0, %v8279
    %v8281 = vpop.f32.mrb[0].mxu0
    %8282 = vdwg.mxu0
    %8283 = vrot.lane.b32.xlu0 %v6685, 56
    %v8284 = vpop.permute.xlu0 %8283
    %v8287 = vsel %vm1595, %v8117, 0
    %8289 = vmatprep.subr.mxu0 0.0
    %8290 = vmatpush1.msra.mxu0 %v8284
    %8291 = vmatprep.subr.mxu0 0.0
    %8292 = vmatpush1.msra.mxu0 0.0
    %8293 = vmatprep.subr.mxu0 0.0
    %8294 = vmatpush1.msra.mxu0 0.0
    %8295 = vmatprep.subr.mxu0 0.0
    %8296 = vmatpush1.msra.mxu0 0.0
    %8297 = vmatprep.subr.mxu0 0.0
    %8298 = vmatpush1.msra.mxu0 0.0
    %8299 = vmatprep.subr.mxu0 0.0
    %8300 = vmatpush1.msra.mxu0 0.0
    %8301 = vmatprep.subr.mxu0 0.0
    %8302 = vmatpush1.msra.mxu0 0.0
    %8303 = vmatprep.subr.mxu0 0.0
    %8304 = vmatpush1.msra.mxu0 0.0
    %8305 = vmatprep.subr.mxu0 0.0
    %8306 = vmatpush1.msra.mxu0 0.0
    %8307 = vmatprep.subr.mxu0 0.0
    %8308 = vmatpush1.msra.mxu0 0.0
    %8309 = vmatprep.subr.mxu0 0.0
    %8310 = vmatpush1.msra.mxu0 0.0
    %8311 = vmatprep.subr.mxu0 0.0
    %8312 = vmatpush1.msra.mxu0 0.0
    %8313 = vmatprep.subr.mxu0 0.0
    %8314 = vmatpush1.msra.mxu0 0.0
    %8315 = vmatprep.subr.mxu0 0.0
    %8316 = vmatpush1.msra.mxu0 0.0
    %8317 = vmatprep.subr.mxu0 0.0
    %8318 = vmatpush1.msra.mxu0 0.0
    %8319 = vmatprep.subr.mxu0 0.0
    %8320 = vmatpush1.msra.mxu0 0.0
    %8321 = vmatprep.subr.mxu0 0.0
    %8322 = vmatpush1.msra.mxu0 0.0
    %8323 = vmatprep.subr.mxu0 0.0
    %8324 = vmatpush1.msra.mxu0 0.0
    %8325 = vmatprep.subr.mxu0 0.0
    %8326 = vmatpush1.msra.mxu0 0.0
    %8327 = vmatprep.subr.mxu0 0.0
    %8328 = vmatpush1.msra.mxu0 0.0
    %8329 = vmatprep.subr.mxu0 0.0
    %8330 = vmatpush1.msra.mxu0 0.0
    %8331 = vmatprep.subr.mxu0 0.0
    %8332 = vmatpush1.msra.mxu0 0.0
    %8333 = vmatprep.subr.mxu0 0.0
    %8334 = vmatpush1.msra.mxu0 0.0
    %8335 = vmatprep.subr.mxu0 0.0
    %8336 = vmatpush1.msra.mxu0 0.0
    %8337 = vmatprep.subr.mxu0 0.0
    %8338 = vmatpush1.msra.mxu0 0.0
    %8339 = vmatprep.subr.mxu0 0.0
    %8340 = vmatpush1.msra.mxu0 0.0
    %8341 = vmatprep.subr.mxu0 0.0
    %8342 = vmatpush1.msra.mxu0 0.0
    %8343 = vmatprep.subr.mxu0 0.0
    %8344 = vmatpush1.msra.mxu0 0.0
    %8345 = vmatprep.subr.mxu0 0.0
    %8346 = vmatpush1.msra.mxu0 0.0
    %8347 = vmatprep.subr.mxu0 0.0
    %8348 = vmatpush1.msra.mxu0 0.0
    %8349 = vmatprep.subr.mxu0 0.0
    %8350 = vmatpush1.msra.mxu0 0.0
    %8351 = vmatprep.subr.mxu0 0.0
    %8352 = vmatpush1.msra.mxu0 0.0
    %8353 = vmatprep.mubr.f32.mxu0 0.0
    %8354 = vmatmul.mubr.f32.gmra.mrb[0].mxu0 %v8287
    %v8355 = vpop.f32.mrb[0].mxu0
    %v8356 = vadd.f32 0.0, %v8355
    %v8357 = vpop.f32.mrb[0].mxu0
    %8358 = vdwg.mxu0
    %8359 = vrot.lane.b32.xlu0 %v6685, 52
    %v8360 = vpop.permute.xlu0 %8359
    %v8363 = vsel %vm1595, %v8118, 0
    %8365 = vmatprep.subr.mxu0 0.0
    %8366 = vmatpush1.msra.mxu0 %v8360
    %8367 = vmatprep.subr.mxu0 0.0
    %8368 = vmatpush1.msra.mxu0 0.0
    %8369 = vmatprep.subr.mxu0 0.0
    %8370 = vmatpush1.msra.mxu0 0.0
    %8371 = vmatprep.subr.mxu0 0.0
    %8372 = vmatpush1.msra.mxu0 0.0
    %8373 = vmatprep.subr.mxu0 0.0
    %8374 = vmatpush1.msra.mxu0 0.0
    %8375 = vmatprep.subr.mxu0 0.0
    %8376 = vmatpush1.msra.mxu0 0.0
    %8377 = vmatprep.subr.mxu0 0.0
    %8378 = vmatpush1.msra.mxu0 0.0
    %8379 = vmatprep.subr.mxu0 0.0
    %8380 = vmatpush1.msra.mxu0 0.0
    %8381 = vmatprep.subr.mxu0 0.0
    %8382 = vmatpush1.msra.mxu0 0.0
    %8383 = vmatprep.subr.mxu0 0.0
    %8384 = vmatpush1.msra.mxu0 0.0
    %8385 = vmatprep.subr.mxu0 0.0
    %8386 = vmatpush1.msra.mxu0 0.0
    %8387 = vmatprep.subr.mxu0 0.0
    %8388 = vmatpush1.msra.mxu0 0.0
    %8389 = vmatprep.subr.mxu0 0.0
    %8390 = vmatpush1.msra.mxu0 0.0
    %8391 = vmatprep.subr.mxu0 0.0
    %8392 = vmatpush1.msra.mxu0 0.0
    %8393 = vmatprep.subr.mxu0 0.0
    %8394 = vmatpush1.msra.mxu0 0.0
    %8395 = vmatprep.subr.mxu0 0.0
    %8396 = vmatpush1.msra.mxu0 0.0
    %8397 = vmatprep.subr.mxu0 0.0
    %8398 = vmatpush1.msra.mxu0 0.0
    %8399 = vmatprep.subr.mxu0 0.0
    %8400 = vmatpush1.msra.mxu0 0.0
    %8401 = vmatprep.subr.mxu0 0.0
    %8402 = vmatpush1.msra.mxu0 0.0
    %8403 = vmatprep.subr.mxu0 0.0
    %8404 = vmatpush1.msra.mxu0 0.0
    %8405 = vmatprep.subr.mxu0 0.0
    %8406 = vmatpush1.msra.mxu0 0.0
    %8407 = vmatprep.subr.mxu0 0.0
    %8408 = vmatpush1.msra.mxu0 0.0
    %8409 = vmatprep.subr.mxu0 0.0
    %8410 = vmatpush1.msra.mxu0 0.0
    %8411 = vmatprep.subr.mxu0 0.0
    %8412 = vmatpush1.msra.mxu0 0.0
    %8413 = vmatprep.subr.mxu0 0.0
    %8414 = vmatpush1.msra.mxu0 0.0
    %8415 = vmatprep.subr.mxu0 0.0
    %8416 = vmatpush1.msra.mxu0 0.0
    %8417 = vmatprep.subr.mxu0 0.0
    %8418 = vmatpush1.msra.mxu0 0.0
    %8419 = vmatprep.subr.mxu0 0.0
    %8420 = vmatpush1.msra.mxu0 0.0
    %8421 = vmatprep.subr.mxu0 0.0
    %8422 = vmatpush1.msra.mxu0 0.0
    %8423 = vmatprep.subr.mxu0 0.0
    %8424 = vmatpush1.msra.mxu0 0.0
    %8425 = vmatprep.subr.mxu0 0.0
    %8426 = vmatpush1.msra.mxu0 0.0
    %8427 = vmatprep.subr.mxu0 0.0
    %8428 = vmatpush1.msra.mxu0 0.0
    %8429 = vmatprep.mubr.f32.mxu0 0.0
    %8430 = vmatmul.mubr.f32.gmra.mrb[0].mxu0 %v8363
    %v8431 = vpop.f32.mrb[0].mxu0
    %v8432 = vadd.f32 0.0, %v8431
    %v8433 = vpop.f32.mrb[0].mxu0
    %8434 = vdwg.mxu0
    %8435 = vrot.lane.b32.xlu0 %v6685, 48
    %v8436 = vpop.permute.xlu0 %8435
    %v8439 = vsel %vm1595, %v8119, 0
    %8441 = vmatprep.subr.mxu0 0.0
    %8442 = vmatpush1.msra.mxu0 %v8436
    %8443 = vmatprep.subr.mxu0 0.0
    %8444 = vmatpush1.msra.mxu0 0.0
    %8445 = vmatprep.subr.mxu0 0.0
    %8446 = vmatpush1.msra.mxu0 0.0
    %8447 = vmatprep.subr.mxu0 0.0
    %8448 = vmatpush1.msra.mxu0 0.0
    %8449 = vmatprep.subr.mxu0 0.0
    %8450 = vmatpush1.msra.mxu0 0.0
    %8451 = vmatprep.subr.mxu0 0.0
    %8452 = vmatpush1.msra.mxu0 0.0
    %8453 = vmatprep.subr.mxu0 0.0
    %8454 = vmatpush1.msra.mxu0 0.0
    %8455 = vmatprep.subr.mxu0 0.0
    %8456 = vmatpush1.msra.mxu0 0.0
    %8457 = vmatprep.subr.mxu0 0.0
    %8458 = vmatpush1.msra.mxu0 0.0
    %8459 = vmatprep.subr.mxu0 0.0
    %8460 = vmatpush1.msra.mxu0 0.0
    %8461 = vmatprep.subr.mxu0 0.0
    %8462 = vmatpush1.msra.mxu0 0.0
    %8463 = vmatprep.subr.mxu0 0.0
    %8464 = vmatpush1.msra.mxu0 0.0
    %8465 = vmatprep.subr.mxu0 0.0
    %8466 = vmatpush1.msra.mxu0 0.0
    %8467 = vmatprep.subr.mxu0 0.0
    %8468 = vmatpush1.msra.mxu0 0.0
    %8469 = vmatprep.subr.mxu0 0.0
    %8470 = vmatpush1.msra.mxu0 0.0
    %8471 = vmatprep.subr.mxu0 0.0
    %8472 = vmatpush1.msra.mxu0 0.0
    %8473 = vmatprep.subr.mxu0 0.0
    %8474 = vmatpush1.msra.mxu0 0.0
    %8475 = vmatprep.subr.mxu0 0.0
    %8476 = vmatpush1.msra.mxu0 0.0
    %8477 = vmatprep.subr.mxu0 0.0
    %8478 = vmatpush1.msra.mxu0 0.0
    %8479 = vmatprep.subr.mxu0 0.0
    %8480 = vmatpush1.msra.mxu0 0.0
    %8481 = vmatprep.subr.mxu0 0.0
    %8482 = vmatpush1.msra.mxu0 0.0
    %8483 = vmatprep.subr.mxu0 0.0
    %8484 = vmatpush1.msra.mxu0 0.0
    %8485 = vmatprep.subr.mxu0 0.0
    %8486 = vmatpush1.msra.mxu0 0.0
    %8487 = vmatprep.subr.mxu0 0.0
    %8488 = vmatpush1.msra.mxu0 0.0
    %8489 = vmatprep.subr.mxu0 0.0
    %8490 = vmatpush1.msra.mxu0 0.0
    %8491 = vmatprep.subr.mxu0 0.0
    %8492 = vmatpush1.msra.mxu0 0.0
    %8493 = vmatprep.subr.mxu0 0.0
    %8494 = vmatpush1.msra.mxu0 0.0
    %8495 = vmatprep.subr.mxu0 0.0
    %8496 = vmatpush1.msra.mxu0 0.0
    %8497 = vmatprep.subr.mxu0 0.0
    %8498 = vmatpush1.msra.mxu0 0.0
    %8499 = vmatprep.subr.mxu0 0.0
    %8500 = vmatpush1.msra.mxu0 0.0
    %8501 = vmatprep.subr.mxu0 0.0
    %8502 = vmatpush1.msra.mxu0 0.0
    %8503 = vmatprep.subr.mxu0 0.0
    %8504 = vmatpush1.msra.mxu0 0.0
    %8505 = vmatprep.mubr.f32.mxu0 0.0
    %8506 = vmatmul.mubr.f32.gmra.mrb[0].mxu0 %v8439
    %v8507 = vpop.f32.mrb[0].mxu0
    %v8508 = vadd.f32 0.0, %v8507
    %v8509 = vpop.f32.mrb[0].mxu0
    %8510 = vdwg.mxu0
    %8511 = vrot.lane.b32.xlu0 %v6685, 44
    %v8512 = vpop.permute.xlu0 %8511
    %v8515 = vsel %vm1595, %v8120, 0
    %8517 = vmatprep.subr.mxu0 0.0
    %8518 = vmatpush1.msra.mxu0 %v8512
    %8519 = vmatprep.subr.mxu0 0.0
    %8520 = vmatpush1.msra.mxu0 0.0
    %8521 = vmatprep.subr.mxu0 0.0
    %8522 = vmatpush1.msra.mxu0 0.0
    %8523 = vmatprep.subr.mxu0 0.0
    %8524 = vmatpush1.msra.mxu0 0.0
    %8525 = vmatprep.subr.mxu0 0.0
    %8526 = vmatpush1.msra.mxu0 0.0
    %8527 = vmatprep.subr.mxu0 0.0
    %8528 = vmatpush1.msra.mxu0 0.0
    %8529 = vmatprep.subr.mxu0 0.0
    %8530 = vmatpush1.msra.mxu0 0.0
    %8531 = vmatprep.subr.mxu0 0.0
    %8532 = vmatpush1.msra.mxu0 0.0
    %8533 = vmatprep.subr.mxu0 0.0
    %8534 = vmatpush1.msra.mxu0 0.0
    %8535 = vmatprep.subr.mxu0 0.0
    %8536 = vmatpush1.msra.mxu0 0.0
    %8537 = vmatprep.subr.mxu0 0.0
    %8538 = vmatpush1.msra.mxu0 0.0
    %8539 = vmatprep.subr.mxu0 0.0
    %8540 = vmatpush1.msra.mxu0 0.0
    %8541 = vmatprep.subr.mxu0 0.0
    %8542 = vmatpush1.msra.mxu0 0.0
    %8543 = vmatprep.subr.mxu0 0.0
    %8544 = vmatpush1.msra.mxu0 0.0
    %8545 = vmatprep.subr.mxu0 0.0
    %8546 = vmatpush1.msra.mxu0 0.0
    %8547 = vmatprep.subr.mxu0 0.0
    %8548 = vmatpush1.msra.mxu0 0.0
    %8549 = vmatprep.subr.mxu0 0.0
    %8550 = vmatpush1.msra.mxu0 0.0
    %8551 = vmatprep.subr.mxu0 0.0
    %8552 = vmatpush1.msra.mxu0 0.0
    %8553 = vmatprep.subr.mxu0 0.0
    %8554 = vmatpush1.msra.mxu0 0.0
    %8555 = vmatprep.subr.mxu0 0.0
    %8556 = vmatpush1.msra.mxu0 0.0
    %8557 = vmatprep.subr.mxu0 0.0
    %8558 = vmatpush1.msra.mxu0 0.0
    %8559 = vmatprep.subr.mxu0 0.0
    %8560 = vmatpush1.msra.mxu0 0.0
    %8561 = vmatprep.subr.mxu0 0.0
    %8562 = vmatpush1.msra.mxu0 0.0
    %8563 = vmatprep.subr.mxu0 0.0
    %8564 = vmatpush1.msra.mxu0 0.0
    %8565 = vmatprep.subr.mxu0 0.0
    %8566 = vmatpush1.msra.mxu0 0.0
    %8567 = vmatprep.subr.mxu0 0.0
    %8568 = vmatpush1.msra.mxu0 0.0
    %8569 = vmatprep.subr.mxu0 0.0
    %8570 = vmatpush1.msra.mxu0 0.0
    %8571 = vmatprep.subr.mxu0 0.0
    %8572 = vmatpush1.msra.mxu0 0.0
    %8573 = vmatprep.subr.mxu0 0.0
    %8574 = vmatpush1.msra.mxu0 0.0
    %8575 = vmatprep.subr.mxu0 0.0
    %8576 = vmatpush1.msra.mxu0 0.0
    %8577 = vmatprep.subr.mxu0 0.0
    %8578 = vmatpush1.msra.mxu0 0.0
    %8579 = vmatprep.subr.mxu0 0.0
    %8580 = vmatpush1.msra.mxu0 0.0
    %8581 = vmatprep.mubr.f32.mxu0 0.0
    %8582 = vmatmul.mubr.f32.gmra.mrb[0].mxu0 %v8515
    %v8583 = vpop.f32.mrb[0].mxu0
    %v8584 = vadd.f32 0.0, %v8583
    %v8585 = vpop.f32.mrb[0].mxu0
    %8586 = vdwg.mxu0
    %8587 = vrot.lane.b32.xlu0 %v6685, 40
    %v8588 = vpop.permute.xlu0 %8587
    %v8591 = vsel %vm1595, %v8121, 0
    %8593 = vmatprep.subr.mxu0 0.0
    %8594 = vmatpush1.msra.mxu0 %v8588
    %8595 = vmatprep.subr.mxu0 0.0
    %8596 = vmatpush1.msra.mxu0 0.0
    %8597 = vmatprep.subr.mxu0 0.0
    %8598 = vmatpush1.msra.mxu0 0.0
    %8599 = vmatprep.subr.mxu0 0.0
    %8600 = vmatpush1.msra.mxu0 0.0
    %8601 = vmatprep.subr.mxu0 0.0
    %8602 = vmatpush1.msra.mxu0 0.0
    %8603 = vmatprep.subr.mxu0 0.0
    %8604 = vmatpush1.msra.mxu0 0.0
    %8605 = vmatprep.subr.mxu0 0.0
    %8606 = vmatpush1.msra.mxu0 0.0
    %8607 = vmatprep.subr.mxu0 0.0
    %8608 = vmatpush1.msra.mxu0 0.0
    %8609 = vmatprep.subr.mxu0 0.0
    %8610 = vmatpush1.msra.mxu0 0.0
    %8611 = vmatprep.subr.mxu0 0.0
    %8612 = vmatpush1.msra.mxu0 0.0
    %8613 = vmatprep.subr.mxu0 0.0
    %8614 = vmatpush1.msra.mxu0 0.0
    %8615 = vmatprep.subr.mxu0 0.0
    %8616 = vmatpush1.msra.mxu0 0.0
    %8617 = vmatprep.subr.mxu0 0.0
    %8618 = vmatpush1.msra.mxu0 0.0
    %8619 = vmatprep.subr.mxu0 0.0
    %8620 = vmatpush1.msra.mxu0 0.0
    %8621 = vmatprep.subr.mxu0 0.0
    %8622 = vmatpush1.msra.mxu0 0.0
    %8623 = vmatprep.subr.mxu0 0.0
    %8624 = vmatpush1.msra.mxu0 0.0
    %8625 = vmatprep.subr.mxu0 0.0
    %8626 = vmatpush1.msra.mxu0 0.0
    %8627 = vmatprep.subr.mxu0 0.0
    %8628 = vmatpush1.msra.mxu0 0.0
    %8629 = vmatprep.subr.mxu0 0.0
    %8630 = vmatpush1.msra.mxu0 0.0
    %8631 = vmatprep.subr.mxu0 0.0
    %8632 = vmatpush1.msra.mxu0 0.0
    %8633 = vmatprep.subr.mxu0 0.0
    %8634 = vmatpush1.msra.mxu0 0.0
    %8635 = vmatprep.subr.mxu0 0.0
    %8636 = vmatpush1.msra.mxu0 0.0
    %8637 = vmatprep.subr.mxu0 0.0
    %8638 = vmatpush1.msra.mxu0 0.0
    %8639 = vmatprep.subr.mxu0 0.0
    %8640 = vmatpush1.msra.mxu0 0.0
    %8641 = vmatprep.subr.mxu0 0.0
    %8642 = vmatpush1.msra.mxu0 0.0
    %8643 = vmatprep.subr.mxu0 0.0
    %8644 = vmatpush1.msra.mxu0 0.0
    %8645 = vmatprep.subr.mxu0 0.0
    %8646 = vmatpush1.msra.mxu0 0.0
    %8647 = vmatprep.subr.mxu0 0.0
    %8648 = vmatpush1.msra.mxu0 0.0
    %8649 = vmatprep.subr.mxu0 0.0
    %8650 = vmatpush1.msra.mxu0 0.0
    %8651 = vmatprep.subr.mxu0 0.0
    %8652 = vmatpush1.msra.mxu0 0.0
    %8653 = vmatprep.subr.mxu0 0.0
    %8654 = vmatpush1.msra.mxu0 0.0
    %8655 = vmatprep.subr.mxu0 0.0
    %8656 = vmatpush1.msra.mxu0 0.0
    %8657 = vmatprep.mubr.f32.mxu0 0.0
    %8658 = vmatmul.mubr.f32.gmra.mrb[0].mxu0 %v8591
    %v8659 = vpop.f32.mrb[0].mxu0
    %v8660 = vadd.f32 0.0, %v8659
    %v8661 = vpop.f32.mrb[0].mxu0
    %8662 = vdwg.mxu0
    %8663 = vrot.lane.b32.xlu0 %v6685, 36
    %v8664 = vpop.permute.xlu0 %8663
    %v8667 = vsel %vm1595, %v8122, 0
    %8669 = vmatprep.subr.mxu0 0.0
    %8670 = vmatpush1.msra.mxu0 %v8664
    %8671 = vmatprep.subr.mxu0 0.0
    %8672 = vmatpush1.msra.mxu0 0.0
    %8673 = vmatprep.subr.mxu0 0.0
    %8674 = vmatpush1.msra.mxu0 0.0
    %8675 = vmatprep.subr.mxu0 0.0
    %8676 = vmatpush1.msra.mxu0 0.0
    %8677 = vmatprep.subr.mxu0 0.0
    %8678 = vmatpush1.msra.mxu0 0.0
    %8679 = vmatprep.subr.mxu0 0.0
    %8680 = vmatpush1.msra.mxu0 0.0
    %8681 = vmatprep.subr.mxu0 0.0
    %8682 = vmatpush1.msra.mxu0 0.0
    %8683 = vmatprep.subr.mxu0 0.0
    %8684 = vmatpush1.msra.mxu0 0.0
    %8685 = vmatprep.subr.mxu0 0.0
    %8686 = vmatpush1.msra.mxu0 0.0
    %8687 = vmatprep.subr.mxu0 0.0
    %8688 = vmatpush1.msra.mxu0 0.0
    %8689 = vmatprep.subr.mxu0 0.0
    %8690 = vmatpush1.msra.mxu0 0.0
    %8691 = vmatprep.subr.mxu0 0.0
    %8692 = vmatpush1.msra.mxu0 0.0
    %8693 = vmatprep.subr.mxu0 0.0
    %8694 = vmatpush1.msra.mxu0 0.0
    %8695 = vmatprep.subr.mxu0 0.0
    %8696 = vmatpush1.msra.mxu0 0.0
    %8697 = vmatprep.subr.mxu0 0.0
    %8698 = vmatpush1.msra.mxu0 0.0
    %8699 = vmatprep.subr.mxu0 0.0
    %8700 = vmatpush1.msra.mxu0 0.0
    %8701 = vmatprep.subr.mxu0 0.0
    %8702 = vmatpush1.msra.mxu0 0.0
    %8703 = vmatprep.subr.mxu0 0.0
    %8704 = vmatpush1.msra.mxu0 0.0
    %8705 = vmatprep.subr.mxu0 0.0
    %8706 = vmatpush1.msra.mxu0 0.0
    %8707 = vmatprep.subr.mxu0 0.0
    %8708 = vmatpush1.msra.mxu0 0.0
    %8709 = vmatprep.subr.mxu0 0.0
    %8710 = vmatpush1.msra.mxu0 0.0
    %8711 = vmatprep.subr.mxu0 0.0
    %8712 = vmatpush1.msra.mxu0 0.0
    %8713 = vmatprep.subr.mxu0 0.0
    %8714 = vmatpush1.msra.mxu0 0.0
    %8715 = vmatprep.subr.mxu0 0.0
    %8716 = vmatpush1.msra.mxu0 0.0
    %8717 = vmatprep.subr.mxu0 0.0
    %8718 = vmatpush1.msra.mxu0 0.0
    %8719 = vmatprep.subr.mxu0 0.0
    %8720 = vmatpush1.msra.mxu0 0.0
    %8721 = vmatprep.subr.mxu0 0.0
    %8722 = vmatpush1.msra.mxu0 0.0
    %8723 = vmatprep.subr.mxu0 0.0
    %8724 = vmatpush1.msra.mxu0 0.0
    %8725 = vmatprep.subr.mxu0 0.0
    %8726 = vmatpush1.msra.mxu0 0.0
    %8727 = vmatprep.subr.mxu0 0.0
    %8728 = vmatpush1.msra.mxu0 0.0
    %8729 = vmatprep.subr.mxu0 0.0
    %8730 = vmatpush1.msra.mxu0 0.0
    %8731 = vmatprep.subr.mxu0 0.0
    %8732 = vmatpush1.msra.mxu0 0.0
    %8733 = vmatprep.mubr.f32.mxu0 0.0
    %8734 = vmatmul.mubr.f32.gmra.mrb[0].mxu0 %v8667
    %v8735 = vpop.f32.mrb[0].mxu0
    %v8736 = vadd.f32 0.0, %v8735
    %v8737 = vpop.f32.mrb[0].mxu0
    %8738 = vdwg.mxu0
    %8740 = vrot.lane.b32.xlu0 %v8280, 4
    %v8741 = vpop.permute.xlu0 %8740
    %8744 = vrot.lane.b32.xlu0 %v8356, 8
    %v8745 = vpop.permute.xlu0 %8744
    %8748 = vrot.lane.b32.xlu0 %v8432, 12
    %v8749 = vpop.permute.xlu0 %8748
    %8752 = vrot.lane.b32.xlu0 %v8508, 16
    %v8753 = vpop.permute.xlu0 %8752
    %8756 = vrot.lane.b32.xlu0 %v8584, 20
    %v8757 = vpop.permute.xlu0 %8756
    %8760 = vrot.lane.b32.xlu0 %v8660, 24
    %v8761 = vpop.permute.xlu0 %8760
    %8764 = vrot.lane.b32.xlu0 %v8736, 28
    %v8765 = vpop.permute.xlu0 %8764
    %v8767 = vsel %vm335, %v8204, %v8741
    %v8768 = vsel %vm1595, %v8767, %v8745
    %v8769 = vsel %vm2410, %v8768, %v8749
    %v8770 = vsel %vm2412, %v8769, %v8753
    %v8771 = vsel %vm2414, %v8770, %v8757
    %v8772 = vsel %vm2416, %v8771, %v8761
    %v8773 = vsel %vm2418, %v8772, %v8765
    %8774 = vrot.lane.b32.xlu0 %v6690, 64
    %v8775 = vpop.permute.xlu0 %8774
    %v8778 = vsel %vm1595, %v8123, 0
    %8780 = vmatprep.subr.mxu0 0.0
    %8781 = vmatpush1.msra.mxu0 %v8775
    %8782 = vmatprep.subr.mxu0 0.0
    %8783 = vmatpush1.msra.mxu0 0.0
    %8784 = vmatprep.subr.mxu0 0.0
    %8785 = vmatpush1.msra.mxu0 0.0
    %8786 = vmatprep.subr.mxu0 0.0
    %8787 = vmatpush1.msra.mxu0 0.0
    %8788 = vmatprep.subr.mxu0 0.0
    %8789 = vmatpush1.msra.mxu0 0.0
    %8790 = vmatprep.subr.mxu0 0.0
    %8791 = vmatpush1.msra.mxu0 0.0
    %8792 = vmatprep.subr.mxu0 0.0
    %8793 = vmatpush1.msra.mxu0 0.0
    %8794 = vmatprep.subr.mxu0 0.0
    %8795 = vmatpush1.msra.mxu0 0.0
    %8796 = vmatprep.subr.mxu0 0.0
    %8797 = vmatpush1.msra.mxu0 0.0
    %8798 = vmatprep.subr.mxu0 0.0
    %8799 = vmatpush1.msra.mxu0 0.0
    %8800 = vmatprep.subr.mxu0 0.0
    %8801 = vmatpush1.msra.mxu0 0.0
    %8802 = vmatprep.subr.mxu0 0.0
    %8803 = vmatpush1.msra.mxu0 0.0
    %8804 = vmatprep.subr.mxu0 0.0
    %8805 = vmatpush1.msra.mxu0 0.0
    %8806 = vmatprep.subr.mxu0 0.0
    %8807 = vmatpush1.msra.mxu0 0.0
    %8808 = vmatprep.subr.mxu0 0.0
    %8809 = vmatpush1.msra.mxu0 0.0
    %8810 = vmatprep.subr.mxu0 0.0
    %8811 = vmatpush1.msra.mxu0 0.0
    %8812 = vmatprep.subr.mxu0 0.0
    %8813 = vmatpush1.msra.mxu0 0.0
    %8814 = vmatprep.subr.mxu0 0.0
    %8815 = vmatpush1.msra.mxu0 0.0
    %8816 = vmatprep.subr.mxu0 0.0
    %8817 = vmatpush1.msra.mxu0 0.0
    %8818 = vmatprep.subr.mxu0 0.0
    %8819 = vmatpush1.msra.mxu0 0.0
    %8820 = vmatprep.subr.mxu0 0.0
    %8821 = vmatpush1.msra.mxu0 0.0
    %8822 = vmatprep.subr.mxu0 0.0
    %8823 = vmatpush1.msra.mxu0 0.0
    %8824 = vmatprep.subr.mxu0 0.0
    %8825 = vmatpush1.msra.mxu0 0.0
    %8826 = vmatprep.subr.mxu0 0.0
    %8827 = vmatpush1.msra.mxu0 0.0
    %8828 = vmatprep.subr.mxu0 0.0
    %8829 = vmatpush1.msra.mxu0 0.0
    %8830 = vmatprep.subr.mxu0 0.0
    %8831 = vmatpush1.msra.mxu0 0.0
    %8832 = vmatprep.subr.mxu0 0.0
    %8833 = vmatpush1.msra.mxu0 0.0
    %8834 = vmatprep.subr.mxu0 0.0
    %8835 = vmatpush1.msra.mxu0 0.0
    %8836 = vmatprep.subr.mxu0 0.0
    %8837 = vmatpush1.msra.mxu0 0.0
    %8838 = vmatprep.subr.mxu0 0.0
    %8839 = vmatpush1.msra.mxu0 0.0
    %8840 = vmatprep.subr.mxu0 0.0
    %8841 = vmatpush1.msra.mxu0 0.0
    %8842 = vmatprep.subr.mxu0 0.0
    %8843 = vmatpush1.msra.mxu0 0.0
    %8844 = vmatprep.mubr.f32.mxu0 0.0
    %8845 = vmatmul.mubr.f32.gmra.mrb[0].mxu0 %v8778
    %v8846 = vpop.f32.mrb[0].mxu0
    %v8847 = vadd.f32 0.0, %v8846
    %v8848 = vpop.f32.mrb[0].mxu0
    %8849 = vdwg.mxu0
    %8850 = vrot.lane.b32.xlu0 %v6690, 60
    %v8851 = vpop.permute.xlu0 %8850
    %v8854 = vsel %vm1595, %v8124, 0
    %8856 = vmatprep.subr.mxu0 0.0
    %8857 = vmatpush1.msra.mxu0 %v8851
    %8858 = vmatprep.subr.mxu0 0.0
    %8859 = vmatpush1.msra.mxu0 0.0
    %8860 = vmatprep.subr.mxu0 0.0
    %8861 = vmatpush1.msra.mxu0 0.0
    %8862 = vmatprep.subr.mxu0 0.0
    %8863 = vmatpush1.msra.mxu0 0.0
    %8864 = vmatprep.subr.mxu0 0.0
    %8865 = vmatpush1.msra.mxu0 0.0
    %8866 = vmatprep.subr.mxu0 0.0
    %8867 = vmatpush1.msra.mxu0 0.0
    %8868 = vmatprep.subr.mxu0 0.0
    %8869 = vmatpush1.msra.mxu0 0.0
    %8870 = vmatprep.subr.mxu0 0.0
    %8871 = vmatpush1.msra.mxu0 0.0
    %8872 = vmatprep.subr.mxu0 0.0
    %8873 = vmatpush1.msra.mxu0 0.0
    %8874 = vmatprep.subr.mxu0 0.0
    %8875 = vmatpush1.msra.mxu0 0.0
    %8876 = vmatprep.subr.mxu0 0.0
    %8877 = vmatpush1.msra.mxu0 0.0
    %8878 = vmatprep.subr.mxu0 0.0
    %8879 = vmatpush1.msra.mxu0 0.0
    %8880 = vmatprep.subr.mxu0 0.0
    %8881 = vmatpush1.msra.mxu0 0.0
    %8882 = vmatprep.subr.mxu0 0.0
    %8883 = vmatpush1.msra.mxu0 0.0
    %8884 = vmatprep.subr.mxu0 0.0
    %8885 = vmatpush1.msra.mxu0 0.0
    %8886 = vmatprep.subr.mxu0 0.0
    %8887 = vmatpush1.msra.mxu0 0.0
    %8888 = vmatprep.subr.mxu0 0.0
    %8889 = vmatpush1.msra.mxu0 0.0
    %8890 = vmatprep.subr.mxu0 0.0
    %8891 = vmatpush1.msra.mxu0 0.0
    %8892 = vmatprep.subr.mxu0 0.0
    %8893 = vmatpush1.msra.mxu0 0.0
    %8894 = vmatprep.subr.mxu0 0.0
    %8895 = vmatpush1.msra.mxu0 0.0
    %8896 = vmatprep.subr.mxu0 0.0
    %8897 = vmatpush1.msra.mxu0 0.0
    %8898 = vmatprep.subr.mxu0 0.0
    %8899 = vmatpush1.msra.mxu0 0.0
    %8900 = vmatprep.subr.mxu0 0.0
    %8901 = vmatpush1.msra.mxu0 0.0
    %8902 = vmatprep.subr.mxu0 0.0
    %8903 = vmatpush1.msra.mxu0 0.0
    %8904 = vmatprep.subr.mxu0 0.0
    %8905 = vmatpush1.msra.mxu0 0.0
    %8906 = vmatprep.subr.mxu0 0.0
    %8907 = vmatpush1.msra.mxu0 0.0
    %8908 = vmatprep.subr.mxu0 0.0
    %8909 = vmatpush1.msra.mxu0 0.0
    %8910 = vmatprep.subr.mxu0 0.0
    %8911 = vmatpush1.msra.mxu0 0.0
    %8912 = vmatprep.subr.mxu0 0.0
    %8913 = vmatpush1.msra.mxu0 0.0
    %8914 = vmatprep.subr.mxu0 0.0
    %8915 = vmatpush1.msra.mxu0 0.0
    %8916 = vmatprep.subr.mxu0 0.0
    %8917 = vmatpush1.msra.mxu0 0.0
    %8918 = vmatprep.subr.mxu0 0.0
    %8919 = vmatpush1.msra.mxu0 0.0
    %8920 = vmatprep.mubr.f32.mxu0 0.0
    %8921 = vmatmul.mubr.f32.gmra.mrb[0].mxu0 %v8854
    %v8922 = vpop.f32.mrb[0].mxu0
    %v8923 = vadd.f32 0.0, %v8922
    %v8924 = vpop.f32.mrb[0].mxu0
    %8925 = vdwg.mxu0
    %8926 = vrot.lane.b32.xlu0 %v6690, 56
    %v8927 = vpop.permute.xlu0 %8926
    %v8930 = vsel %vm1595, %v8125, 0
    %8932 = vmatprep.subr.mxu0 0.0
    %8933 = vmatpush1.msra.mxu0 %v8927
    %8934 = vmatprep.subr.mxu0 0.0
    %8935 = vmatpush1.msra.mxu0 0.0
    %8936 = vmatprep.subr.mxu0 0.0
    %8937 = vmatpush1.msra.mxu0 0.0
    %8938 = vmatprep.subr.mxu0 0.0
    %8939 = vmatpush1.msra.mxu0 0.0
    %8940 = vmatprep.subr.mxu0 0.0
    %8941 = vmatpush1.msra.mxu0 0.0
    %8942 = vmatprep.subr.mxu0 0.0
    %8943 = vmatpush1.msra.mxu0 0.0
    %8944 = vmatprep.subr.mxu0 0.0
    %8945 = vmatpush1.msra.mxu0 0.0
    %8946 = vmatprep.subr.mxu0 0.0
    %8947 = vmatpush1.msra.mxu0 0.0
    %8948 = vmatprep.subr.mxu0 0.0
    %8949 = vmatpush1.msra.mxu0 0.0
    %8950 = vmatprep.subr.mxu0 0.0
    %8951 = vmatpush1.msra.mxu0 0.0
    %8952 = vmatprep.subr.mxu0 0.0
    %8953 = vmatpush1.msra.mxu0 0.0
    %8954 = vmatprep.subr.mxu0 0.0
    %8955 = vmatpush1.msra.mxu0 0.0
    %8956 = vmatprep.subr.mxu0 0.0
    %8957 = vmatpush1.msra.mxu0 0.0
    %8958 = vmatprep.subr.mxu0 0.0
    %8959 = vmatpush1.msra.mxu0 0.0
    %8960 = vmatprep.subr.mxu0 0.0
    %8961 = vmatpush1.msra.mxu0 0.0
    %8962 = vmatprep.subr.mxu0 0.0
    %8963 = vmatpush1.msra.mxu0 0.0
    %8964 = vmatprep.subr.mxu0 0.0
    %8965 = vmatpush1.msra.mxu0 0.0
    %8966 = vmatprep.subr.mxu0 0.0
    %8967 = vmatpush1.msra.mxu0 0.0
    %8968 = vmatprep.subr.mxu0 0.0
    %8969 = vmatpush1.msra.mxu0 0.0
    %8970 = vmatprep.subr.mxu0 0.0
    %8971 = vmatpush1.msra.mxu0 0.0
    %8972 = vmatprep.subr.mxu0 0.0
    %8973 = vmatpush1.msra.mxu0 0.0
    %8974 = vmatprep.subr.mxu0 0.0
    %8975 = vmatpush1.msra.mxu0 0.0
    %8976 = vmatprep.subr.mxu0 0.0
    %8977 = vmatpush1.msra.mxu0 0.0
    %8978 = vmatprep.subr.mxu0 0.0
    %8979 = vmatpush1.msra.mxu0 0.0
    %8980 = vmatprep.subr.mxu0 0.0
    %8981 = vmatpush1.msra.mxu0 0.0
    %8982 = vmatprep.subr.mxu0 0.0
    %8983 = vmatpush1.msra.mxu0 0.0
    %8984 = vmatprep.subr.mxu0 0.0
    %8985 = vmatpush1.msra.mxu0 0.0
    %8986 = vmatprep.subr.mxu0 0.0
    %8987 = vmatpush1.msra.mxu0 0.0
    %8988 = vmatprep.subr.mxu0 0.0
    %8989 = vmatpush1.msra.mxu0 0.0
    %8990 = vmatprep.subr.mxu0 0.0
    %8991 = vmatpush1.msra.mxu0 0.0
    %8992 = vmatprep.subr.mxu0 0.0
    %8993 = vmatpush1.msra.mxu0 0.0
    %8994 = vmatprep.subr.mxu0 0.0
    %8995 = vmatpush1.msra.mxu0 0.0
    %8996 = vmatprep.mubr.f32.mxu0 0.0
    %8997 = vmatmul.mubr.f32.gmra.mrb[0].mxu0 %v8930
    %v8998 = vpop.f32.mrb[0].mxu0
    %v8999 = vadd.f32 0.0, %v8998
    %v9000 = vpop.f32.mrb[0].mxu0
    %9001 = vdwg.mxu0
    %9002 = vrot.lane.b32.xlu0 %v6690, 52
    %v9003 = vpop.permute.xlu0 %9002
    %v9006 = vsel %vm1595, %v8126, 0
    %9008 = vmatprep.subr.mxu0 0.0
    %9009 = vmatpush1.msra.mxu0 %v9003
    %9010 = vmatprep.subr.mxu0 0.0
    %9011 = vmatpush1.msra.mxu0 0.0
    %9012 = vmatprep.subr.mxu0 0.0
    %9013 = vmatpush1.msra.mxu0 0.0
    %9014 = vmatprep.subr.mxu0 0.0
    %9015 = vmatpush1.msra.mxu0 0.0
    %9016 = vmatprep.subr.mxu0 0.0
    %9017 = vmatpush1.msra.mxu0 0.0
    %9018 = vmatprep.subr.mxu0 0.0
    %9019 = vmatpush1.msra.mxu0 0.0
    %9020 = vmatprep.subr.mxu0 0.0
    %9021 = vmatpush1.msra.mxu0 0.0
    %9022 = vmatprep.subr.mxu0 0.0
    %9023 = vmatpush1.msra.mxu0 0.0
    %9024 = vmatprep.subr.mxu0 0.0
    %9025 = vmatpush1.msra.mxu0 0.0
    %9026 = vmatprep.subr.mxu0 0.0
    %9027 = vmatpush1.msra.mxu0 0.0
    %9028 = vmatprep.subr.mxu0 0.0
    %9029 = vmatpush1.msra.mxu0 0.0
    %9030 = vmatprep.subr.mxu0 0.0
    %9031 = vmatpush1.msra.mxu0 0.0
    %9032 = vmatprep.subr.mxu0 0.0
    %9033 = vmatpush1.msra.mxu0 0.0
    %9034 = vmatprep.subr.mxu0 0.0
    %9035 = vmatpush1.msra.mxu0 0.0
    %9036 = vmatprep.subr.mxu0 0.0
    %9037 = vmatpush1.msra.mxu0 0.0
    %9038 = vmatprep.subr.mxu0 0.0
    %9039 = vmatpush1.msra.mxu0 0.0
    %9040 = vmatprep.subr.mxu0 0.0
    %9041 = vmatpush1.msra.mxu0 0.0
    %9042 = vmatprep.subr.mxu0 0.0
    %9043 = vmatpush1.msra.mxu0 0.0
    %9044 = vmatprep.subr.mxu0 0.0
    %9045 = vmatpush1.msra.mxu0 0.0
    %9046 = vmatprep.subr.mxu0 0.0
    %9047 = vmatpush1.msra.mxu0 0.0
    %9048 = vmatprep.subr.mxu0 0.0
    %9049 = vmatpush1.msra.mxu0 0.0
    %9050 = vmatprep.subr.mxu0 0.0
    %9051 = vmatpush1.msra.mxu0 0.0
    %9052 = vmatprep.subr.mxu0 0.0
    %9053 = vmatpush1.msra.mxu0 0.0
    %9054 = vmatprep.subr.mxu0 0.0
    %9055 = vmatpush1.msra.mxu0 0.0
    %9056 = vmatprep.subr.mxu0 0.0
    %9057 = vmatpush1.msra.mxu0 0.0
    %9058 = vmatprep.subr.mxu0 0.0
    %9059 = vmatpush1.msra.mxu0 0.0
    %9060 = vmatprep.subr.mxu0 0.0
    %9061 = vmatpush1.msra.mxu0 0.0
    %9062 = vmatprep.subr.mxu0 0.0
    %9063 = vmatpush1.msra.mxu0 0.0
    %9064 = vmatprep.subr.mxu0 0.0
    %9065 = vmatpush1.msra.mxu0 0.0
    %9066 = vmatprep.subr.mxu0 0.0
    %9067 = vmatpush1.msra.mxu0 0.0
    %9068 = vmatprep.subr.mxu0 0.0
    %9069 = vmatpush1.msra.mxu0 0.0
    %9070 = vmatprep.subr.mxu0 0.0
    %9071 = vmatpush1.msra.mxu0 0.0
    %9072 = vmatprep.mubr.f32.mxu0 0.0
    %9073 = vmatmul.mubr.f32.gmra.mrb[0].mxu0 %v9006
    %v9074 = vpop.f32.mrb[0].mxu0
    %v9075 = vadd.f32 0.0, %v9074
    %v9076 = vpop.f32.mrb[0].mxu0
    %9077 = vdwg.mxu0
    %9078 = vrot.lane.b32.xlu0 %v6690, 48
    %v9079 = vpop.permute.xlu0 %9078
    %v9082 = vsel %vm1595, %v8127, 0
    %9084 = vmatprep.subr.mxu0 0.0
    %9085 = vmatpush1.msra.mxu0 %v9079
    %9086 = vmatprep.subr.mxu0 0.0
    %9087 = vmatpush1.msra.mxu0 0.0
    %9088 = vmatprep.subr.mxu0 0.0
    %9089 = vmatpush1.msra.mxu0 0.0
    %9090 = vmatprep.subr.mxu0 0.0
    %9091 = vmatpush1.msra.mxu0 0.0
    %9092 = vmatprep.subr.mxu0 0.0
    %9093 = vmatpush1.msra.mxu0 0.0
    %9094 = vmatprep.subr.mxu0 0.0
    %9095 = vmatpush1.msra.mxu0 0.0
    %9096 = vmatprep.subr.mxu0 0.0
    %9097 = vmatpush1.msra.mxu0 0.0
    %9098 = vmatprep.subr.mxu0 0.0
    %9099 = vmatpush1.msra.mxu0 0.0
    %9100 = vmatprep.subr.mxu0 0.0
    %9101 = vmatpush1.msra.mxu0 0.0
    %9102 = vmatprep.subr.mxu0 0.0
    %9103 = vmatpush1.msra.mxu0 0.0
    %9104 = vmatprep.subr.mxu0 0.0
    %9105 = vmatpush1.msra.mxu0 0.0
    %9106 = vmatprep.subr.mxu0 0.0
    %9107 = vmatpush1.msra.mxu0 0.0
    %9108 = vmatprep.subr.mxu0 0.0
    %9109 = vmatpush1.msra.mxu0 0.0
    %9110 = vmatprep.subr.mxu0 0.0
    %9111 = vmatpush1.msra.mxu0 0.0
    %9112 = vmatprep.subr.mxu0 0.0
    %9113 = vmatpush1.msra.mxu0 0.0
    %9114 = vmatprep.subr.mxu0 0.0
    %9115 = vmatpush1.msra.mxu0 0.0
    %9116 = vmatprep.subr.mxu0 0.0
    %9117 = vmatpush1.msra.mxu0 0.0
    %9118 = vmatprep.subr.mxu0 0.0
    %9119 = vmatpush1.msra.mxu0 0.0
    %9120 = vmatprep.subr.mxu0 0.0
    %9121 = vmatpush1.msra.mxu0 0.0
    %9122 = vmatprep.subr.mxu0 0.0
    %9123 = vmatpush1.msra.mxu0 0.0
    %9124 = vmatprep.subr.mxu0 0.0
    %9125 = vmatpush1.msra.mxu0 0.0
    %9126 = vmatprep.subr.mxu0 0.0
    %9127 = vmatpush1.msra.mxu0 0.0
    %9128 = vmatprep.subr.mxu0 0.0
    %9129 = vmatpush1.msra.mxu0 0.0
    %9130 = vmatprep.subr.mxu0 0.0
    %9131 = vmatpush1.msra.mxu0 0.0
    %9132 = vmatprep.subr.mxu0 0.0
    %9133 = vmatpush1.msra.mxu0 0.0
    %9134 = vmatprep.subr.mxu0 0.0
    %9135 = vmatpush1.msra.mxu0 0.0
    %9136 = vmatprep.subr.mxu0 0.0
    %9137 = vmatpush1.msra.mxu0 0.0
    %9138 = vmatprep.subr.mxu0 0.0
    %9139 = vmatpush1.msra.mxu0 0.0
    %9140 = vmatprep.subr.mxu0 0.0
    %9141 = vmatpush1.msra.mxu0 0.0
    %9142 = vmatprep.subr.mxu0 0.0
    %9143 = vmatpush1.msra.mxu0 0.0
    %9144 = vmatprep.subr.mxu0 0.0
    %9145 = vmatpush1.msra.mxu0 0.0
    %9146 = vmatprep.subr.mxu0 0.0
    %9147 = vmatpush1.msra.mxu0 0.0
    %9148 = vmatprep.mubr.f32.mxu0 0.0
    %9149 = vmatmul.mubr.f32.gmra.mrb[0].mxu0 %v9082
    %v9150 = vpop.f32.mrb[0].mxu0
    %v9151 = vadd.f32 0.0, %v9150
    %v9152 = vpop.f32.mrb[0].mxu0
    %9153 = vdwg.mxu0
    %9154 = vrot.lane.b32.xlu0 %v6690, 44
    %v9155 = vpop.permute.xlu0 %9154
    %v9158 = vsel %vm1595, %v8128, 0
    %9160 = vmatprep.subr.mxu0 0.0
    %9161 = vmatpush1.msra.mxu0 %v9155
    %9162 = vmatprep.subr.mxu0 0.0
    %9163 = vmatpush1.msra.mxu0 0.0
    %9164 = vmatprep.subr.mxu0 0.0
    %9165 = vmatpush1.msra.mxu0 0.0
    %9166 = vmatprep.subr.mxu0 0.0
    %9167 = vmatpush1.msra.mxu0 0.0
    %9168 = vmatprep.subr.mxu0 0.0
    %9169 = vmatpush1.msra.mxu0 0.0
    %9170 = vmatprep.subr.mxu0 0.0
    %9171 = vmatpush1.msra.mxu0 0.0
    %9172 = vmatprep.subr.mxu0 0.0
    %9173 = vmatpush1.msra.mxu0 0.0
    %9174 = vmatprep.subr.mxu0 0.0
    %9175 = vmatpush1.msra.mxu0 0.0
    %9176 = vmatprep.subr.mxu0 0.0
    %9177 = vmatpush1.msra.mxu0 0.0
    %9178 = vmatprep.subr.mxu0 0.0
    %9179 = vmatpush1.msra.mxu0 0.0
    %9180 = vmatprep.subr.mxu0 0.0
    %9181 = vmatpush1.msra.mxu0 0.0
    %9182 = vmatprep.subr.mxu0 0.0
    %9183 = vmatpush1.msra.mxu0 0.0
    %9184 = vmatprep.subr.mxu0 0.0
    %9185 = vmatpush1.msra.mxu0 0.0
    %9186 = vmatprep.subr.mxu0 0.0
    %9187 = vmatpush1.msra.mxu0 0.0
    %9188 = vmatprep.subr.mxu0 0.0
    %9189 = vmatpush1.msra.mxu0 0.0
    %9190 = vmatprep.subr.mxu0 0.0
    %9191 = vmatpush1.msra.mxu0 0.0
    %9192 = vmatprep.subr.mxu0 0.0
    %9193 = vmatpush1.msra.mxu0 0.0
    %9194 = vmatprep.subr.mxu0 0.0
    %9195 = vmatpush1.msra.mxu0 0.0
    %9196 = vmatprep.subr.mxu0 0.0
    %9197 = vmatpush1.msra.mxu0 0.0
    %9198 = vmatprep.subr.mxu0 0.0
    %9199 = vmatpush1.msra.mxu0 0.0
    %9200 = vmatprep.subr.mxu0 0.0
    %9201 = vmatpush1.msra.mxu0 0.0
    %9202 = vmatprep.subr.mxu0 0.0
    %9203 = vmatpush1.msra.mxu0 0.0
    %9204 = vmatprep.subr.mxu0 0.0
    %9205 = vmatpush1.msra.mxu0 0.0
    %9206 = vmatprep.subr.mxu0 0.0
    %9207 = vmatpush1.msra.mxu0 0.0
    %9208 = vmatprep.subr.mxu0 0.0
    %9209 = vmatpush1.msra.mxu0 0.0
    %9210 = vmatprep.subr.mxu0 0.0
    %9211 = vmatpush1.msra.mxu0 0.0
    %9212 = vmatprep.subr.mxu0 0.0
    %9213 = vmatpush1.msra.mxu0 0.0
    %9214 = vmatprep.subr.mxu0 0.0
    %9215 = vmatpush1.msra.mxu0 0.0
    %9216 = vmatprep.subr.mxu0 0.0
    %9217 = vmatpush1.msra.mxu0 0.0
    %9218 = vmatprep.subr.mxu0 0.0
    %9219 = vmatpush1.msra.mxu0 0.0
    %9220 = vmatprep.subr.mxu0 0.0
    %9221 = vmatpush1.msra.mxu0 0.0
    %9222 = vmatprep.subr.mxu0 0.0
    %9223 = vmatpush1.msra.mxu0 0.0
    %9224 = vmatprep.mubr.f32.mxu0 0.0
    %9225 = vmatmul.mubr.f32.gmra.mrb[0].mxu0 %v9158
    %v9226 = vpop.f32.mrb[0].mxu0
    %v9227 = vadd.f32 0.0, %v9226
    %v9228 = vpop.f32.mrb[0].mxu0
    %9229 = vdwg.mxu0
    %9230 = vrot.lane.b32.xlu0 %v6690, 40
    %v9231 = vpop.permute.xlu0 %9230
    %v9234 = vsel %vm1595, %v8129, 0
    %9236 = vmatprep.subr.mxu0 0.0
    %9237 = vmatpush1.msra.mxu0 %v9231
    %9238 = vmatprep.subr.mxu0 0.0
    %9239 = vmatpush1.msra.mxu0 0.0
    %9240 = vmatprep.subr.mxu0 0.0
    %9241 = vmatpush1.msra.mxu0 0.0
    %9242 = vmatprep.subr.mxu0 0.0
    %9243 = vmatpush1.msra.mxu0 0.0
    %9244 = vmatprep.subr.mxu0 0.0
    %9245 = vmatpush1.msra.mxu0 0.0
    %9246 = vmatprep.subr.mxu0 0.0
    %9247 = vmatpush1.msra.mxu0 0.0
    %9248 = vmatprep.subr.mxu0 0.0
    %9249 = vmatpush1.msra.mxu0 0.0
    %9250 = vmatprep.subr.mxu0 0.0
    %9251 = vmatpush1.msra.mxu0 0.0
    %9252 = vmatprep.subr.mxu0 0.0
    %9253 = vmatpush1.msra.mxu0 0.0
    %9254 = vmatprep.subr.mxu0 0.0
    %9255 = vmatpush1.msra.mxu0 0.0
    %9256 = vmatprep.subr.mxu0 0.0
    %9257 = vmatpush1.msra.mxu0 0.0
    %9258 = vmatprep.subr.mxu0 0.0
    %9259 = vmatpush1.msra.mxu0 0.0
    %9260 = vmatprep.subr.mxu0 0.0
    %9261 = vmatpush1.msra.mxu0 0.0
    %9262 = vmatprep.subr.mxu0 0.0
    %9263 = vmatpush1.msra.mxu0 0.0
    %9264 = vmatprep.subr.mxu0 0.0
    %9265 = vmatpush1.msra.mxu0 0.0
    %9266 = vmatprep.subr.mxu0 0.0
    %9267 = vmatpush1.msra.mxu0 0.0
    %9268 = vmatprep.subr.mxu0 0.0
    %9269 = vmatpush1.msra.mxu0 0.0
    %9270 = vmatprep.subr.mxu0 0.0
    %9271 = vmatpush1.msra.mxu0 0.0
    %9272 = vmatprep.subr.mxu0 0.0
    %9273 = vmatpush1.msra.mxu0 0.0
    %9274 = vmatprep.subr.mxu0 0.0
    %9275 = vmatpush1.msra.mxu0 0.0
    %9276 = vmatprep.subr.mxu0 0.0
    %9277 = vmatpush1.msra.mxu0 0.0
    %9278 = vmatprep.subr.mxu0 0.0
    %9279 = vmatpush1.msra.mxu0 0.0
    %9280 = vmatprep.subr.mxu0 0.0
    %9281 = vmatpush1.msra.mxu0 0.0
    %9282 = vmatprep.subr.mxu0 0.0
    %9283 = vmatpush1.msra.mxu0 0.0
    %9284 = vmatprep.subr.mxu0 0.0
    %9285 = vmatpush1.msra.mxu0 0.0
    %9286 = vmatprep.subr.mxu0 0.0
    %9287 = vmatpush1.msra.mxu0 0.0
    %9288 = vmatprep.subr.mxu0 0.0
    %9289 = vmatpush1.msra.mxu0 0.0
    %9290 = vmatprep.subr.mxu0 0.0
    %9291 = vmatpush1.msra.mxu0 0.0
    %9292 = vmatprep.subr.mxu0 0.0
    %9293 = vmatpush1.msra.mxu0 0.0
    %9294 = vmatprep.subr.mxu0 0.0
    %9295 = vmatpush1.msra.mxu0 0.0
    %9296 = vmatprep.subr.mxu0 0.0
    %9297 = vmatpush1.msra.mxu0 0.0
    %9298 = vmatprep.subr.mxu0 0.0
    %9299 = vmatpush1.msra.mxu0 0.0
    %9300 = vmatprep.mubr.f32.mxu0 0.0
    %9301 = vmatmul.mubr.f32.gmra.mrb[0].mxu0 %v9234
    %v9302 = vpop.f32.mrb[0].mxu0
    %v9303 = vadd.f32 0.0, %v9302
    %v9304 = vpop.f32.mrb[0].mxu0
    %9305 = vdwg.mxu0
    %9306 = vrot.lane.b32.xlu0 %v6690, 36
    %v9307 = vpop.permute.xlu0 %9306
    %v9310 = vsel %vm1595, %v8130, 0
    %9312 = vmatprep.subr.mxu0 0.0
    %9313 = vmatpush1.msra.mxu0 %v9307
    %9314 = vmatprep.subr.mxu0 0.0
    %9315 = vmatpush1.msra.mxu0 0.0
    %9316 = vmatprep.subr.mxu0 0.0
    %9317 = vmatpush1.msra.mxu0 0.0
    %9318 = vmatprep.subr.mxu0 0.0
    %9319 = vmatpush1.msra.mxu0 0.0
    %9320 = vmatprep.subr.mxu0 0.0
    %9321 = vmatpush1.msra.mxu0 0.0
    %9322 = vmatprep.subr.mxu0 0.0
    %9323 = vmatpush1.msra.mxu0 0.0
    %9324 = vmatprep.subr.mxu0 0.0
    %9325 = vmatpush1.msra.mxu0 0.0
    %9326 = vmatprep.subr.mxu0 0.0
    %9327 = vmatpush1.msra.mxu0 0.0
    %9328 = vmatprep.subr.mxu0 0.0
    %9329 = vmatpush1.msra.mxu0 0.0
    %9330 = vmatprep.subr.mxu0 0.0
    %9331 = vmatpush1.msra.mxu0 0.0
    %9332 = vmatprep.subr.mxu0 0.0
    %9333 = vmatpush1.msra.mxu0 0.0
    %9334 = vmatprep.subr.mxu0 0.0
    %9335 = vmatpush1.msra.mxu0 0.0
    %9336 = vmatprep.subr.mxu0 0.0
    %9337 = vmatpush1.msra.mxu0 0.0
    %9338 = vmatprep.subr.mxu0 0.0
    %9339 = vmatpush1.msra.mxu0 0.0
    %9340 = vmatprep.subr.mxu0 0.0
    %9341 = vmatpush1.msra.mxu0 0.0
    %9342 = vmatprep.subr.mxu0 0.0
    %9343 = vmatpush1.msra.mxu0 0.0
    %9344 = vmatprep.subr.mxu0 0.0
    %9345 = vmatpush1.msra.mxu0 0.0
    %9346 = vmatprep.subr.mxu0 0.0
    %9347 = vmatpush1.msra.mxu0 0.0
    %9348 = vmatprep.subr.mxu0 0.0
    %9349 = vmatpush1.msra.mxu0 0.0
    %9350 = vmatprep.subr.mxu0 0.0
    %9351 = vmatpush1.msra.mxu0 0.0
    %9352 = vmatprep.subr.mxu0 0.0
    %9353 = vmatpush1.msra.mxu0 0.0
    %9354 = vmatprep.subr.mxu0 0.0
    %9355 = vmatpush1.msra.mxu0 0.0
    %9356 = vmatprep.subr.mxu0 0.0
    %9357 = vmatpush1.msra.mxu0 0.0
    %9358 = vmatprep.subr.mxu0 0.0
    %9359 = vmatpush1.msra.mxu0 0.0
    %9360 = vmatprep.subr.mxu0 0.0
    %9361 = vmatpush1.msra.mxu0 0.0
    %9362 = vmatprep.subr.mxu0 0.0
    %9363 = vmatpush1.msra.mxu0 0.0
    %9364 = vmatprep.subr.mxu0 0.0
    %9365 = vmatpush1.msra.mxu0 0.0
    %9366 = vmatprep.subr.mxu0 0.0
    %9367 = vmatpush1.msra.mxu0 0.0
    %9368 = vmatprep.subr.mxu0 0.0
    %9369 = vmatpush1.msra.mxu0 0.0
    %9370 = vmatprep.subr.mxu0 0.0
    %9371 = vmatpush1.msra.mxu0 0.0
    %9372 = vmatprep.subr.mxu0 0.0
    %9373 = vmatpush1.msra.mxu0 0.0
    %9374 = vmatprep.subr.mxu0 0.0
    %9375 = vmatpush1.msra.mxu0 0.0
    %9376 = vmatprep.mubr.f32.mxu0 0.0
    %9377 = vmatmul.mubr.f32.gmra.mrb[0].mxu0 %v9310
    %v9378 = vpop.f32.mrb[0].mxu0
    %v9379 = vadd.f32 0.0, %v9378
    %v9380 = vpop.f32.mrb[0].mxu0
    %9381 = vdwg.mxu0
    %9383 = vrot.lane.b32.xlu0 %v8923, 4
    %v9384 = vpop.permute.xlu0 %9383
    %9387 = vrot.lane.b32.xlu0 %v8999, 8
    %v9388 = vpop.permute.xlu0 %9387
    %9391 = vrot.lane.b32.xlu0 %v9075, 12
    %v9392 = vpop.permute.xlu0 %9391
    %9395 = vrot.lane.b32.xlu0 %v9151, 16
    %v9396 = vpop.permute.xlu0 %9395
    %9399 = vrot.lane.b32.xlu0 %v9227, 20
    %v9400 = vpop.permute.xlu0 %9399
    %9403 = vrot.lane.b32.xlu0 %v9303, 24
    %v9404 = vpop.permute.xlu0 %9403
    %9407 = vrot.lane.b32.xlu0 %v9379, 28
    %v9408 = vpop.permute.xlu0 %9407
    %v9410 = vsel %vm335, %v8847, %v9384
    %v9411 = vsel %vm1595, %v9410, %v9388
    %v9412 = vsel %vm2410, %v9411, %v9392
    %v9413 = vsel %vm2412, %v9412, %v9396
    %v9414 = vsel %vm2414, %v9413, %v9400
    %v9415 = vsel %vm2416, %v9414, %v9404
    %v9416 = vsel %vm2418, %v9415, %v9408
    %v9417 = vlaneseq
    %v9418 = vshrl.u32 %v9417, 7
    %v9419 = vsub.s32 0, %v9418
    %v9420 = vrot.slane %v6601, %v9419
    %v9422 = vsel %vm48, %v8773, 0
    %v9425 = vsel %vm48, %v9416, 0
    %9427 = vmatprep.subr.mxu0 0.0
    %9428 = vmatpush1.msra.mxu0 %v6583
    %9429 = vmatprep.subr.mxu0 0.0
    %9430 = vmatpush1.msra.mxu0 %v6584
    %9431 = vmatprep.subr.mxu0 0.0
    %9432 = vmatpush1.msra.mxu0 %v6585
    %9433 = vmatprep.subr.mxu0 0.0
    %9434 = vmatpush1.msra.mxu0 %v6586
    %9435 = vmatprep.subr.mxu0 0.0
    %9436 = vmatpush1.msra.mxu0 0.0
    %9437 = vmatprep.subr.mxu0 0.0
    %9438 = vmatpush1.msra.mxu0 0.0
    %9439 = vmatprep.subr.mxu0 0.0
    %9440 = vmatpush1.msra.mxu0 0.0
    %9441 = vmatprep.subr.mxu0 0.0
    %9442 = vmatpush1.msra.mxu0 0.0
    %9443 = vmatprep.subr.mxu0 0.0
    %9444 = vmatpush1.msra.mxu0 0.0
    %9445 = vmatprep.subr.mxu0 0.0
    %9446 = vmatpush1.msra.mxu0 0.0
    %9447 = vmatprep.subr.mxu0 0.0
    %9448 = vmatpush1.msra.mxu0 0.0
    %9449 = vmatprep.subr.mxu0 0.0
    %9450 = vmatpush1.msra.mxu0 0.0
    %9451 = vmatprep.subr.mxu0 0.0
    %9452 = vmatpush1.msra.mxu0 0.0
    %9453 = vmatprep.subr.mxu0 0.0
    %9454 = vmatpush1.msra.mxu0 0.0
    %9455 = vmatprep.subr.mxu0 0.0
    %9456 = vmatpush1.msra.mxu0 0.0
    %9457 = vmatprep.subr.mxu0 0.0
    %9458 = vmatpush1.msra.mxu0 0.0
    %9459 = vmatprep.subr.mxu0 0.0
    %9460 = vmatpush1.msra.mxu0 0.0
    %9461 = vmatprep.subr.mxu0 0.0
    %9462 = vmatpush1.msra.mxu0 0.0
    %9463 = vmatprep.subr.mxu0 0.0
    %9464 = vmatpush1.msra.mxu0 0.0
    %9465 = vmatprep.subr.mxu0 0.0
    %9466 = vmatpush1.msra.mxu0 0.0
    %9467 = vmatprep.subr.mxu0 0.0
    %9468 = vmatpush1.msra.mxu0 0.0
    %9469 = vmatprep.subr.mxu0 0.0
    %9470 = vmatpush1.msra.mxu0 0.0
    %9471 = vmatprep.subr.mxu0 0.0
    %9472 = vmatpush1.msra.mxu0 0.0
    %9473 = vmatprep.subr.mxu0 0.0
    %9474 = vmatpush1.msra.mxu0 0.0
    %9475 = vmatprep.subr.mxu0 0.0
    %9476 = vmatpush1.msra.mxu0 0.0
    %9477 = vmatprep.subr.mxu0 0.0
    %9478 = vmatpush1.msra.mxu0 0.0
    %9479 = vmatprep.subr.mxu0 0.0
    %9480 = vmatpush1.msra.mxu0 0.0
    %9481 = vmatprep.subr.mxu0 0.0
    %9482 = vmatpush1.msra.mxu0 0.0
    %9483 = vmatprep.subr.mxu0 0.0
    %9484 = vmatpush1.msra.mxu0 0.0
    %9485 = vmatprep.subr.mxu0 0.0
    %9486 = vmatpush1.msra.mxu0 0.0
    %9487 = vmatprep.subr.mxu0 0.0
    %9488 = vmatpush1.msra.mxu0 0.0
    %9489 = vmatprep.subr.mxu0 0.0
    %9490 = vmatpush1.msra.mxu0 0.0
    %9491 = vmatprep.mubr.f32.mxu0 0.0
    %9492 = vmatmul.mubr.f32.gmra.mrb[0].mxu0 %v9422
    %v9493 = vpop.f32.mrb[0].mxu0
    %v9494 = vadd.f32 %v9420, %v9493
    %v9495 = vpop.f32.mrb[0].mxu0
    %9496 = vmatprep.mubr.f32.mxu0 0.0
    %9497 = vmatmul.mubr.f32.gmra.mrb[0].mxu0 %v9425
    %v9498 = vpop.f32.mrb[0].mxu0
    %v9499 = vadd.f32 %v9420, %v9498
    %v9500 = vpop.f32.mrb[0].mxu0
    %9501 = vdwg.mxu0
    %v9502 = vadd.f32 %v6576, %v9494
    %v9503 = vadd.f32 %v6577, %v9499
    %v9504 = vsel %vm48, %v9502, 0.0
    %9505 = vadd.xlane.f32.xlu0 %v9504
    %v9506 = vpop.xlane.xlu0 %9505
    %v9507 = vsel %vm48, %v9503, 0.0
    %9508 = vadd.xlane.f32.xlu0 %v9507
    %v9509 = vpop.xlane.xlu0 %9508
    %v9510 = vmul.f32 %v9506, %v3156
    %v9511 = vmul.f32 %v9509, %v3156
    %v9512 = vsub.f32 %v9502, %v9510
    %v9513 = vsub.f32 %v9503, %v9511
    %v9514 = vmul.f32 %v9512, %v9512
    %v9515 = vmul.f32 %v9513, %v9513
    %v9516 = vsel %vm48, %v9514, 0.0
    %9517 = vadd.xlane.f32.xlu0 %v9516
    %v9518 = vpop.xlane.xlu0 %9517
    %v9519 = vsel %vm48, %v9515, 0.0
    %9520 = vadd.xlane.f32.xlu0 %v9519
    %v9521 = vpop.xlane.xlu0 %9520
    %v9522 = vmul.f32 %v9518, %v3156
    %v9523 = vmul.f32 %v9521, %v3156
    %v9524 = vadd.f32 %v9522, 1e-05
    %v9525 = vadd.f32 %v9523, 1e-05
    %v9526 = vrsqrt.pop %v9524
    %v9527 = vrsqrt.pop %v9525
    %v9528 = vmul.f32 %v9512, %v9526
    %v9529 = vmul.f32 %v9513, %v9527
    %v9530 = vlaneseq
    %v9531 = vshrl.u32 %v9530, 7
    %v9532 = vsub.s32 0, %v9531
    %v9533 = vrot.slane %v6602, %v9532
    %v9534 = vmul.f32 %v9528, %v9533
    %v9535 = vmul.f32 %v9529, %v9533
    %v9536 = vlaneseq
    %v9537 = vshrl.u32 %v9536, 7
    %v9538 = vsub.s32 0, %v9537
    %v9539 = vrot.slane %v6603, %v9538
    %v9540 = vadd.f32 %v9534, %v9539
    %v9541 = vadd.f32 %v9535, %v9539
    %v9542 = vlaneseq
    %v9543 = vshrl.u32 %v9542, 7
    %v9544 = vsub.s32 0, %v9543
    %v9545 = vrot.slane %v6606, %v9544
    %v9547 = vsel %vm48, %v9540, 0
    %v9550 = vsel %vm48, %v9541, 0
    %9552 = vmatprep.subr.mxu0 0.0
    %9553 = vmatpush1.msra.mxu0 %v6587
    %9554 = vmatprep.subr.mxu0 0.0
    %9555 = vmatpush1.msra.mxu0 %v6588
    %9556 = vmatprep.subr.mxu0 0.0
    %9557 = vmatpush1.msra.mxu0 %v6589
    %9558 = vmatprep.subr.mxu0 0.0
    %9559 = vmatpush1.msra.mxu0 %v6590
    %9560 = vmatprep.subr.mxu0 0.0
    %9561 = vmatpush1.msra.mxu0 0.0
    %9562 = vmatprep.subr.mxu0 0.0
    %9563 = vmatpush1.msra.mxu0 0.0
    %9564 = vmatprep.subr.mxu0 0.0
    %9565 = vmatpush1.msra.mxu0 0.0
    %9566 = vmatprep.subr.mxu0 0.0
    %9567 = vmatpush1.msra.mxu0 0.0
    %9568 = vmatprep.subr.mxu0 0.0
    %9569 = vmatpush1.msra.mxu0 0.0
    %9570 = vmatprep.subr.mxu0 0.0
    %9571 = vmatpush1.msra.mxu0 0.0
    %9572 = vmatprep.subr.mxu0 0.0
    %9573 = vmatpush1.msra.mxu0 0.0
    %9574 = vmatprep.subr.mxu0 0.0
    %9575 = vmatpush1.msra.mxu0 0.0
    %9576 = vmatprep.subr.mxu0 0.0
    %9577 = vmatpush1.msra.mxu0 0.0
    %9578 = vmatprep.subr.mxu0 0.0
    %9579 = vmatpush1.msra.mxu0 0.0
    %9580 = vmatprep.subr.mxu0 0.0
    %9581 = vmatpush1.msra.mxu0 0.0
    %9582 = vmatprep.subr.mxu0 0.0
    %9583 = vmatpush1.msra.mxu0 0.0
    %9584 = vmatprep.subr.mxu0 0.0
    %9585 = vmatpush1.msra.mxu0 0.0
    %9586 = vmatprep.subr.mxu0 0.0
    %9587 = vmatpush1.msra.mxu0 0.0
    %9588 = vmatprep.subr.mxu0 0.0
    %9589 = vmatpush1.msra.mxu0 0.0
    %9590 = vmatprep.subr.mxu0 0.0
    %9591 = vmatpush1.msra.mxu0 0.0
    %9592 = vmatprep.subr.mxu0 0.0
    %9593 = vmatpush1.msra.mxu0 0.0
    %9594 = vmatprep.subr.mxu0 0.0
    %9595 = vmatpush1.msra.mxu0 0.0
    %9596 = vmatprep.subr.mxu0 0.0
    %9597 = vmatpush1.msra.mxu0 0.0
    %9598 = vmatprep.subr.mxu0 0.0
    %9599 = vmatpush1.msra.mxu0 0.0
    %9600 = vmatprep.subr.mxu0 0.0
    %9601 = vmatpush1.msra.mxu0 0.0
    %9602 = vmatprep.subr.mxu0 0.0
    %9603 = vmatpush1.msra.mxu0 0.0
    %9604 = vmatprep.subr.mxu0 0.0
    %9605 = vmatpush1.msra.mxu0 0.0
    %9606 = vmatprep.subr.mxu0 0.0
    %9607 = vmatpush1.msra.mxu0 0.0
    %9608 = vmatprep.subr.mxu0 0.0
    %9609 = vmatpush1.msra.mxu0 0.0
    %9610 = vmatprep.subr.mxu0 0.0
    %9611 = vmatpush1.msra.mxu0 0.0
    %9612 = vmatprep.subr.mxu0 0.0
    %9613 = vmatpush1.msra.mxu0 0.0
    %9614 = vmatprep.subr.mxu0 0.0
    %9615 = vmatpush1.msra.mxu0 0.0
    %9616 = vmatprep.mubr.f32.mxu0 0.0
    %9617 = vmatmul.mubr.f32.gmra.mrb[0].mxu0 %v9547
    %v9618 = vpop.f32.mrb[0].mxu0
    %v9619 = vadd.f32 %v9545, %v9618
    %v9620 = vpop.f32.mrb[0].mxu0
    %9621 = vmatprep.mubr.f32.mxu0 0.0
    %9622 = vmatmul.mubr.f32.gmra.mrb[0].mxu0 %v9550
    %v9623 = vpop.f32.mrb[0].mxu0
    %v9624 = vadd.f32 %v9545, %v9623
    %v9625 = vpop.f32.mrb[0].mxu0
    %9626 = vdwg.mxu0
    %v9627 = vmax.f32 %v9619, 0.0
    %v9628 = vmax.f32 %v9624, 0.0
    %v9629 = vlaneseq
    %v9630 = vshrl.u32 %v9629, 7
    %v9631 = vsub.s32 0, %v9630
    %v9632 = vrot.slane %v6607, %v9631
    %v9634 = vsel %vm3280, %v9627, 0
    %v9637 = vsel %vm3280, %v9628, 0
    %9639 = vmatprep.subr.mxu0 0.0
    %9640 = vmatpush1.msra.mxu0 %v6591
    %9641 = vmatprep.subr.mxu0 0.0
    %9642 = vmatpush1.msra.mxu0 %v6592
    %9643 = vmatprep.subr.mxu0 0.0
    %9644 = vmatpush1.msra.mxu0 %v6593
    %9645 = vmatprep.subr.mxu0 0.0
    %9646 = vmatpush1.msra.mxu0 %v6594
    %9647 = vmatprep.subr.mxu0 0.0
    %9648 = vmatpush1.msra.mxu0 %v6595
    %9649 = vmatprep.subr.mxu0 0.0
    %9650 = vmatpush1.msra.mxu0 %v6596
    %9651 = vmatprep.subr.mxu0 0.0
    %9652 = vmatpush1.msra.mxu0 %v6597
    %9653 = vmatprep.subr.mxu0 0.0
    %9654 = vmatpush1.msra.mxu0 %v6598
    %9655 = vmatprep.subr.mxu0 0.0
    %9656 = vmatpush1.msra.mxu0 0.0
    %9657 = vmatprep.subr.mxu0 0.0
    %9658 = vmatpush1.msra.mxu0 0.0
    %9659 = vmatprep.subr.mxu0 0.0
    %9660 = vmatpush1.msra.mxu0 0.0
    %9661 = vmatprep.subr.mxu0 0.0
    %9662 = vmatpush1.msra.mxu0 0.0
    %9663 = vmatprep.subr.mxu0 0.0
    %9664 = vmatpush1.msra.mxu0 0.0
    %9665 = vmatprep.subr.mxu0 0.0
    %9666 = vmatpush1.msra.mxu0 0.0
    %9667 = vmatprep.subr.mxu0 0.0
    %9668 = vmatpush1.msra.mxu0 0.0
    %9669 = vmatprep.subr.mxu0 0.0
    %9670 = vmatpush1.msra.mxu0 0.0
    %9671 = vmatprep.subr.mxu0 0.0
    %9672 = vmatpush1.msra.mxu0 0.0
    %9673 = vmatprep.subr.mxu0 0.0
    %9674 = vmatpush1.msra.mxu0 0.0
    %9675 = vmatprep.subr.mxu0 0.0
    %9676 = vmatpush1.msra.mxu0 0.0
    %9677 = vmatprep.subr.mxu0 0.0
    %9678 = vmatpush1.msra.mxu0 0.0
    %9679 = vmatprep.subr.mxu0 0.0
    %9680 = vmatpush1.msra.mxu0 0.0
    %9681 = vmatprep.subr.mxu0 0.0
    %9682 = vmatpush1.msra.mxu0 0.0
    %9683 = vmatprep.subr.mxu0 0.0
    %9684 = vmatpush1.msra.mxu0 0.0
    %9685 = vmatprep.subr.mxu0 0.0
    %9686 = vmatpush1.msra.mxu0 0.0
    %9687 = vmatprep.subr.mxu0 0.0
    %9688 = vmatpush1.msra.mxu0 0.0
    %9689 = vmatprep.subr.mxu0 0.0
    %9690 = vmatpush1.msra.mxu0 0.0
    %9691 = vmatprep.subr.mxu0 0.0
    %9692 = vmatpush1.msra.mxu0 0.0
    %9693 = vmatprep.subr.mxu0 0.0
    %9694 = vmatpush1.msra.mxu0 0.0
    %9695 = vmatprep.subr.mxu0 0.0
    %9696 = vmatpush1.msra.mxu0 0.0
    %9697 = vmatprep.subr.mxu0 0.0
    %9698 = vmatpush1.msra.mxu0 0.0
    %9699 = vmatprep.subr.mxu0 0.0
    %9700 = vmatpush1.msra.mxu0 0.0
    %9701 = vmatprep.subr.mxu0 0.0
    %9702 = vmatpush1.msra.mxu0 0.0
    %9703 = vmatprep.mubr.f32.mxu0 0.0
    %9704 = vmatmul.mubr.f32.gmra.mrb[0].mxu0 %v9634
    %v9705 = vpop.f32.mrb[0].mxu0
    %v9706 = vadd.f32 %v9632, %v9705
    %v9707 = vpop.f32.mrb[0].mxu0
    %9708 = vmatprep.mubr.f32.mxu0 0.0
    %9709 = vmatmul.mubr.f32.gmra.mrb[0].mxu0 %v9637
    %v9710 = vpop.f32.mrb[0].mxu0
    %v9711 = vadd.f32 %v9632, %v9710
    %v9712 = vpop.f32.mrb[0].mxu0
    %9713 = vdwg.mxu0
    %v9714 = vadd.f32 %v9540, %v9706
    %v9715 = vadd.f32 %v9541, %v9711
    %v9716 = vsel %vm48, %v9714, 0.0
    %9717 = vadd.xlane.f32.xlu0 %v9716
    %v9718 = vpop.xlane.xlu0 %9717
    %v9719 = vsel %vm48, %v9715, 0.0
    %9720 = vadd.xlane.f32.xlu0 %v9719
    %v9721 = vpop.xlane.xlu0 %9720
    %v9722 = vmul.f32 %v9718, %v3156
    %v9723 = vmul.f32 %v9721, %v3156
    %v9724 = vsub.f32 %v9714, %v9722
    %v9725 = vsub.f32 %v9715, %v9723
    %v9726 = vmul.f32 %v9724, %v9724
    %v9727 = vmul.f32 %v9725, %v9725
    %v9728 = vsel %vm48, %v9726, 0.0
    %9729 = vadd.xlane.f32.xlu0 %v9728
    %v9730 = vpop.xlane.xlu0 %9729
    %v9731 = vsel %vm48, %v9727, 0.0
    %9732 = vadd.xlane.f32.xlu0 %v9731
    %v9733 = vpop.xlane.xlu0 %9732
    %v9734 = vmul.f32 %v9730, %v3156
    %v9735 = vmul.f32 %v9733, %v3156
    %v9736 = vadd.f32 %v9734, 1e-05
    %v9737 = vadd.f32 %v9735, 1e-05
    %v9738 = vrsqrt.pop %v9736
    %v9739 = vrsqrt.pop %v9737
    %v9740 = vmul.f32 %v9724, %v9738
    %v9741 = vmul.f32 %v9725, %v9739
    %v9742 = vlaneseq
    %v9743 = vshrl.u32 %v9742, 7
    %v9744 = vsub.s32 0, %v9743
    %v9745 = vrot.slane %v6604, %v9744
    %v9746 = vmul.f32 %v9740, %v9745
    %v9747 = vmul.f32 %v9741, %v9745
    %v9748 = vlaneseq
    %v9749 = vshrl.u32 %v9748, 7
    %v9750 = vsub.s32 0, %v9749
    %v9751 = vrot.slane %v6605, %v9750
    %v9752 = vadd.f32 %v9746, %v9751
    %v9753 = vadd.f32 %v9747, %v9751
    %v9754 = vld [vmem:[%s1 + $0x64] sm:$0x3]
    %v9756 = vsel %vm2412, %v9754, 0
    %9758 = vmatprep.subr.mxu0 0.0
    %9759 = vmatpush1.msra.mxu0 %v9752
    %9760 = vmatprep.subr.mxu0 0.0
    %9761 = vmatpush1.msra.mxu0 %v9753
    %9762 = vmatprep.subr.mxu0 0.0
    %9763 = vmatpush1.msra.mxu0 0.0
    %9764 = vmatprep.subr.mxu0 0.0
    %9765 = vmatpush1.msra.mxu0 0.0
    %9766 = vmatprep.subr.mxu0 0.0
    %9767 = vmatpush1.msra.mxu0 0.0
    %9768 = vmatprep.subr.mxu0 0.0
    %9769 = vmatpush1.msra.mxu0 0.0
    %9770 = vmatprep.subr.mxu0 0.0
    %9771 = vmatpush1.msra.mxu0 0.0
    %9772 = vmatprep.subr.mxu0 0.0
    %9773 = vmatpush1.msra.mxu0 0.0
    %9774 = vmatprep.subr.mxu0 0.0
    %9775 = vmatpush1.msra.mxu0 0.0
    %9776 = vmatprep.subr.mxu0 0.0
    %9777 = vmatpush1.msra.mxu0 0.0
    %9778 = vmatprep.subr.mxu0 0.0
    %9779 = vmatpush1.msra.mxu0 0.0
    %9780 = vmatprep.subr.mxu0 0.0
    %9781 = vmatpush1.msra.mxu0 0.0
    %9782 = vmatprep.subr.mxu0 0.0
    %9783 = vmatpush1.msra.mxu0 0.0
    %9784 = vmatprep.subr.mxu0 0.0
    %9785 = vmatpush1.msra.mxu0 0.0
    %9786 = vmatprep.subr.mxu0 0.0
    %9787 = vmatpush1.msra.mxu0 0.0
    %9788 = vmatprep.subr.mxu0 0.0
    %9789 = vmatpush1.msra.mxu0 0.0
    %9790 = vmatprep.subr.mxu0 0.0
    %9791 = vmatpush1.msra.mxu0 0.0
    %9792 = vmatprep.subr.mxu0 0.0
    %9793 = vmatpush1.msra.mxu0 0.0
    %9794 = vmatprep.subr.mxu0 0.0
    %9795 = vmatpush1.msra.mxu0 0.0
    %9796 = vmatprep.subr.mxu0 0.0
    %9797 = vmatpush1.msra.mxu0 0.0
    %9798 = vmatprep.subr.mxu0 0.0
    %9799 = vmatpush1.msra.mxu0 0.0
    %9800 = vmatprep.subr.mxu0 0.0
    %9801 = vmatpush1.msra.mxu0 0.0
    %9802 = vmatprep.subr.mxu0 0.0
    %9803 = vmatpush1.msra.mxu0 0.0
    %9804 = vmatprep.subr.mxu0 0.0
    %9805 = vmatpush1.msra.mxu0 0.0
    %9806 = vmatprep.subr.mxu0 0.0
    %9807 = vmatpush1.msra.mxu0 0.0
    %9808 = vmatprep.subr.mxu0 0.0
    %9809 = vmatpush1.msra.mxu0 0.0
    %9810 = vmatprep.subr.mxu0 0.0
    %9811 = vmatpush1.msra.mxu0 0.0
    %9812 = vmatprep.subr.mxu0 0.0
    %9813 = vmatpush1.msra.mxu0 0.0
    %9814 = vmatprep.subr.mxu0 0.0
    %9815 = vmatpush1.msra.mxu0 0.0
    %9816 = vmatprep.subr.mxu0 0.0
    %9817 = vmatpush1.msra.mxu0 0.0
    %9818 = vmatprep.subr.mxu0 0.0
    %9819 = vmatpush1.msra.mxu0 0.0
    %9820 = vmatprep.subr.mxu0 0.0
    %9821 = vmatpush1.msra.mxu0 0.0
    %9822 = vmatprep.mubr.f32.mxu0 0.0
    %9823 = vmatmul.mubr.f32.gmra.mrb[0].mxu0 %v9756
    %v9824 = vpop.f32.mrb[0].mxu0
    %v9825 = vadd.f32 0.0, %v9824
    %v9826 = vpop.f32.mrb[0].mxu0
    %9827 = vdwg.mxu0
    %v9828 = vld [vmem:[%s1 + $0x40] sm:$0xff]
    %v9829 = vld [vmem:[%s1 + $0x48] sm:$0xff]
    %v9830 = vld [vmem:[%s1 + $0x50] sm:$0xff]
    %v9831 = vld [vmem:[%s1 + $0x58] sm:$0xff]
    %v9832 = vld [vmem:[%s1 + $0x62] sm:$0x1]
    %v9833 = vlaneseq
    %v9834 = vshrl.u32 %v9833, 7
    %v9835 = vsub.s32 0, %v9834
    %v9836 = vrot.slane %v9832, %v9835
    %v9838 = vsel %vm48, %v9825, 0
    %9840 = vmatprep.subr.mxu0 0.0
    %9841 = vmatpush1.msra.mxu0 %v9828
    %9842 = vmatprep.subr.mxu0 0.0
    %9843 = vmatpush1.msra.mxu0 %v9829
    %9844 = vmatprep.subr.mxu0 0.0
    %9845 = vmatpush1.msra.mxu0 %v9830
    %9846 = vmatprep.subr.mxu0 0.0
    %9847 = vmatpush1.msra.mxu0 %v9831
    %9848 = vmatprep.subr.mxu0 0.0
    %9849 = vmatpush1.msra.mxu0 0.0
    %9850 = vmatprep.subr.mxu0 0.0
    %9851 = vmatpush1.msra.mxu0 0.0
    %9852 = vmatprep.subr.mxu0 0.0
    %9853 = vmatpush1.msra.mxu0 0.0
    %9854 = vmatprep.subr.mxu0 0.0
    %9855 = vmatpush1.msra.mxu0 0.0
    %9856 = vmatprep.subr.mxu0 0.0
    %9857 = vmatpush1.msra.mxu0 0.0
    %9858 = vmatprep.subr.mxu0 0.0
    %9859 = vmatpush1.msra.mxu0 0.0
    %9860 = vmatprep.subr.mxu0 0.0
    %9861 = vmatpush1.msra.mxu0 0.0
    %9862 = vmatprep.subr.mxu0 0.0
    %9863 = vmatpush1.msra.mxu0 0.0
    %9864 = vmatprep.subr.mxu0 0.0
    %9865 = vmatpush1.msra.mxu0 0.0
    %9866 = vmatprep.subr.mxu0 0.0
    %9867 = vmatpush1.msra.mxu0 0.0
    %9868 = vmatprep.subr.mxu0 0.0
    %9869 = vmatpush1.msra.mxu0 0.0
    %9870 = vmatprep.subr.mxu0 0.0
    %9871 = vmatpush1.msra.mxu0 0.0
    %9872 = vmatprep.subr.mxu0 0.0
    %9873 = vmatpush1.msra.mxu0 0.0
    %9874 = vmatprep.subr.mxu0 0.0
    %9875 = vmatpush1.msra.mxu0 0.0
    %9876 = vmatprep.subr.mxu0 0.0
    %9877 = vmatpush1.msra.mxu0 0.0
    %9878 = vmatprep.subr.mxu0 0.0
    %9879 = vmatpush1.msra.mxu0 0.0
    %9880 = vmatprep.subr.mxu0 0.0
    %9881 = vmatpush1.msra.mxu0 0.0
    %9882 = vmatprep.subr.mxu0 0.0
    %9883 = vmatpush1.msra.mxu0 0.0
    %9884 = vmatprep.subr.mxu0 0.0
    %9885 = vmatpush1.msra.mxu0 0.0
    %9886 = vmatprep.subr.mxu0 0.0
    %9887 = vmatpush1.msra.mxu0 0.0
    %9888 = vmatprep.subr.mxu0 0.0
    %9889 = vmatpush1.msra.mxu0 0.0
    %9890 = vmatprep.subr.mxu0 0.0
    %9891 = vmatpush1.msra.mxu0 0.0
    %9892 = vmatprep.subr.mxu0 0.0
    %9893 = vmatpush1.msra.mxu0 0.0
    %9894 = vmatprep.subr.mxu0 0.0
    %9895 = vmatpush1.msra.mxu0 0.0
    %9896 = vmatprep.subr.mxu0 0.0
    %9897 = vmatpush1.msra.mxu0 0.0
    %9898 = vmatprep.subr.mxu0 0.0
    %9899 = vmatpush1.msra.mxu0 0.0
    %9900 = vmatprep.subr.mxu0 0.0
    %9901 = vmatpush1.msra.mxu0 0.0
    %9902 = vmatprep.subr.mxu0 0.0
    %9903 = vmatpush1.msra.mxu0 0.0
    %9904 = vmatprep.mubr.f32.mxu0 0.0
    %9905 = vmatmul.mubr.f32.gmra.mrb[0].mxu0 %v9838
    %v9906 = vpop.f32.mrb[0].mxu0
    %v9907 = vadd.f32 %v9836, %v9906
    %v9908 = vpop.f32.mrb[0].mxu0
    %9909 = vdwg.mxu0
    %vm9910 = vcmask 17408
    %9911 = vst.msk [vmem:[#allocation5] sm:$0x3] %vm9910, %v9907
    // Predicated region
    $region22: #{multi_position_forward.1} parent=1 // pred_check
      _
    $region23: #{multi_position_forward.1} parent=1 // pred_check_branch
      %9913 = sbr.rel (0) target = $region25
    $region24: #{multi_position_forward.1} parent=1 // pred_region
      %s9915 = ssub.s32 32, 32
      %9916 = vsyncadd [#allocation4], %s9915
      %s9918 = sshll.u32 [#allocation5], 4
      %s9919 = int_to_ptr.vmem [resolvable:$true] %s9918
      %9921 = dma.vmem_to_hbm [thread:$0]  %s9919, 32, %s4, [#allocation4]
    $region25: #{multi_position_forward.1} parent=1 // pred_fallthru
      _
    // Predicated region
    $region26: #{multi_position_forward.1} parent=1 // pred_check
      _
    $region27: #{multi_position_forward.1} parent=1 // pred_check_branch
      %9923 = sbr.rel (0) target = $region29
    $region28: #{multi_position_forward.1} parent=1 // pred_region
      %9924 = dma.done [#allocation4], 32
    $region29: #{multi_position_forward.1} parent=1 // pred_fallthru
      _
    %9925 = vsyncpa [#allocation3], 1
    %9926 = vsyncpa [#allocation4], 1

</llo_original>
